<compile_context>
chip_gen: v5e
topology: v5e:2x2
jax: 0.10.0
libtpu: 0.0.40
codegen_flags: <defaults>
</compile_context>

<pallas_src>
import functools

import jax
import jax.numpy as jnp
from jax.experimental import pallas as pl
from jax.experimental.pallas import tpu as pltpu


def _round_up(x, m):
    return ((x + m - 1) // m) * m


def _tensorcores_per_device():
    """Best-effort TensorCore count for one JAX device (v7x / megacore -> 2)."""
    try:
        kind = jax.devices()[0].device_kind.lower()
    except Exception:
        return 1
    if "v7" in kind:
        return 2
    if "v4" in kind or "v5p" in kind:
        return 2
    return 1


def fused_kernel(x_ref, r_ref, s1_ref, b1_ref, w_ref, g2_ref, b2_ref, o_ref,
                 *scratch, m_valid, eps, matmul_dtype, reuse_z):
    """One grid step j = one output-channel tile.

       z   = relu(x * scale1 + bias1 + r)      (BN1 + add + ReLU; padded rows/cols -> 0
                                                because r is padded with -1e9)
       y   = z @ W[:, tile_j]                  (1x1 / stride-2 conv as MXU matmul, f32 acc)
       out = (y - mean(y)) * gamma2 * rsqrt(var(y)+eps) + beta2
             with mean/var the biased batch stats over the m_valid real rows
             (padded rows of y are exactly 0, so unmasked sums are correct).
    """
    if reuse_z:
        z_ref = scratch[0]

        @pl.when(pl.program_id(0) == 0)
        def _():
            z = jnp.maximum(x_ref[...] * s1_ref[...] + b1_ref[...] + r_ref[...], 0.0)
            z_ref[...] = z.astype(matmul_dtype)

        zb = z_ref[...]
    else:
        z = jnp.maximum(x_ref[...] * s1_ref[...] + b1_ref[...] + r_ref[...], 0.0)
        zb = z.astype(matmul_dtype)

    y = jnp.dot(zb, w_ref[...], preferred_element_type=jnp.float32)

    inv_m = 1.0 / m_valid
    mean2 = jnp.sum(y, axis=0, keepdims=True) * inv_m
    var2 = jnp.maximum(
        jnp.sum(y * y, axis=0, keepdims=True) * inv_m - mean2 * mean2, 0.0)
    scale2 = g2_ref[...] * jax.lax.rsqrt(var2 + eps)
    bias2 = b2_ref[...] - mean2 * scale2

    o_ref[...] = y * scale2 + bias2


def make_fused_forward(gamma1, beta1, conv_w, gamma2, beta2,
                       *, eps=1e-5, matmul_dtype=jnp.bfloat16):
    """Prepares static parameters once and returns a jitted forward(x216, x209)."""
    C2, C1 = conv_w.shape[0], conv_w.shape[1]
    n_tc = _tensorcores_per_device()

    C1p = _round_up(C1, 128)
    C2p = _round_up(C2, 128)

    # ---- Output-channel tile selection (generation aware).
    if n_tc >= 2 and C2p >= 512:
        # 2-way split so each TensorCore owns one >=256-wide tile.
        C2p = _round_up(C2, 256)
        tn = C2p // 2
    else:
        # Single grid step on 1-TC chips: the body is sub-microsecond, so every
        # extra grid step is pure fixed overhead.
        tn = C2p
    # VMEM-safety cap: keep each (double-buffered) weight slab <= ~4 MiB.
    itemsize = jnp.dtype(matmul_dtype).itemsize
    tn_cap = max(128, ((4 << 20) // (itemsize * C1p)) // 128 * 128)
    tn = max(128, (min(tn, tn_cap) // 128) * 128)
    while C2p % tn:
        tn -= 128
    grid_n = C2p // tn

    # Reuse the activation slab across tiles only when a single core runs the
    # whole (serial) grid; with "parallel" sharding each core runs <=1 tile anyway.
    reuse_z = (grid_n > 1) and (n_tc == 1)
    dim_sem = ("arbitrary",) if reuse_z else ("parallel",)

    # ---- One-time weight / BN2-affine prep (hoisted out of the hot path).
    w_p = jnp.pad(conv_w.reshape(C2, C1).T.astype(matmul_dtype),
                  ((0, C1p - C1), (0, C2p - C2)))                    # (C1p, C2p)
    g2_p = jnp.pad(gamma2.astype(jnp.float32).reshape(1, C2),
                   ((0, 0), (0, C2p - C2)))
    b2_p = jnp.pad(beta2.astype(jnp.float32).reshape(1, C2),
                   ((0, 0), (0, C2p - C2)))
    gamma1_f = gamma1.astype(jnp.float32)
    beta1_f = beta1.astype(jnp.float32)

    @jax.jit
    def forward(x216, x209):
        N, _, H, W = x216.shape

        # BN1 (training mode): batch stats over the FULL input, folded to scale/bias.
        mean1 = jnp.mean(x216, axis=(0, 2, 3))
        var1 = jnp.var(x216, axis=(0, 2, 3))            # biased (normalization path)
        scale1 = gamma1_f * jax.lax.rsqrt(var1 + eps)
        bias1 = beta1_f - mean1 * scale1

        # Stride-2 subsample FIRST (drops 75% of the data), then NCHW -> (M, C1).
        x_s = x216[:, :, ::2, ::2]
        r_s = x209[:, :, ::2, ::2]
        Ho, Wo = x_s.shape[2], x_s.shape[3]
        M = N * Ho * Wo
        Mp = _round_up(M, 16)                           # 16: clean bf16 sublane packing

        xs = jnp.pad(x_s.transpose(0, 2, 3, 1).reshape(M, C1),
                     ((0, Mp - M), (0, C1p - C1)))
        # Residual padded with a large negative value: padded rows/cols become
        # exactly 0 after the ReLU, so no in-kernel masking is needed anywhere.
        rs = jnp.pad(r_s.transpose(0, 2, 3, 1).reshape(M, C1),
                     ((0, Mp - M), (0, C1p - C1)), constant_values=-1e9)
        s1 = jnp.pad(scale1.reshape(1, C1), ((0, 0), (0, C1p - C1)))
        b1 = jnp.pad(bias1.reshape(1, C1), ((0, 0), (0, C1p - C1)))

        kernel = functools.partial(fused_kernel, m_valid=M, eps=eps,
                                   matmul_dtype=matmul_dtype, reuse_z=reuse_z)
        scratch_shapes = ([pltpu.VMEM((Mp, C1p), matmul_dtype)] if reuse_z else [])

        out = pl.pallas_call(
            kernel,
            out_shape=jax.ShapeDtypeStruct((Mp, C2p), jnp.float32),
            grid_spec=pltpu.PrefetchScalarGridSpec(
                num_scalar_prefetch=0,
                grid=(grid_n,),
                in_specs=[
                    pl.BlockSpec((Mp, C1p), lambda j: (0, 0)),   # x (strided, padded)
                    pl.BlockSpec((Mp, C1p), lambda j: (0, 0)),   # residual
                    pl.BlockSpec((1, C1p), lambda j: (0, 0)),    # BN1 scale
                    pl.BlockSpec((1, C1p), lambda j: (0, 0)),    # BN1 bias
                    pl.BlockSpec((C1p, tn), lambda j: (0, j)),   # conv weight (bf16)
                    pl.BlockSpec((1, tn), lambda j: (0, j)),     # gamma2
                    pl.BlockSpec((1, tn), lambda j: (0, j)),     # beta2
                ],
                out_specs=pl.BlockSpec((Mp, tn), lambda j: (0, j)),
                scratch_shapes=scratch_shapes,
            ),
            compiler_params=pltpu.CompilerParams(dimension_semantics=dim_sem),
        )(xs, rs, s1, b1, w_p, g2_p, b2_p)

        # (Mp, C2p) -> valid (M, C2) -> NCHW.
        return out[:M, :C2].reshape(N, Ho, Wo, C2).transpose(0, 3, 1, 2)

    return forward


def reference_forward(x216, x209, gamma1, beta1, conv_w, gamma2, beta2, eps=1e-5):
    """Pure-JAX (f32) reference of the PyTorch module (training-mode BN)."""
    m1 = x216.mean(axis=(0, 2, 3), keepdims=True)
    v1 = x216.var(axis=(0, 2, 3), keepdims=True)
    x217 = (x216 - m1) / jnp.sqrt(v1 + eps) * gamma1.reshape(1, -1, 1, 1) \
           + beta1.reshape(1, -1, 1, 1)
    x219 = jnp.maximum(x209 + x217, 0.0)
    x220 = jax.lax.conv_general_dilated(
        x219, conv_w, window_strides=(2, 2), padding="VALID",
        dimension_numbers=("NCHW", "OIHW", "NCHW"))
    m2 = x220.mean(axis=(0, 2, 3), keepdims=True)
    v2 = x220.var(axis=(0, 2, 3), keepdims=True)
    return (x220 - m2) / jnp.sqrt(v2 + eps) * gamma2.reshape(1, -1, 1, 1) \
           + beta2.reshape(1, -1, 1, 1)


if __name__ == "__main__":
    def run_case(key, N, C1, H, W, C2):
        ks = jax.random.split(key, 7)
        x216 = jax.random.normal(ks[0], (N, C1, H, W), jnp.float32)
        x209 = jax.random.normal(ks[1], (N, C1, H, W), jnp.float32)
        gamma1 = 0.5 + jax.random.uniform(ks[2], (C1,), jnp.float32)
        beta1 = 0.1 * jax.random.normal(ks[3], (C1,), jnp.float32)
        conv_w = 0.05 * jax.random.normal(ks[4], (C2, C1, 1, 1), jnp.float32)
        gamma2 = 0.5 + jax.random.uniform(ks[5], (C2,), jnp.float32)
        beta2 = 0.1 * jax.random.normal(ks[6], (C2,), jnp.float32)

        fwd = make_fused_forward(gamma1, beta1, conv_w, gamma2, beta2)
        out = jax.block_until_ready(fwd(x216, x209))
        ref = reference_forward(x216, x209, gamma1, beta1, conv_w, gamma2, beta2)

        Ho, Wo = (H - 1) // 2 + 1, (W - 1) // 2 + 1
        assert out.shape == ref.shape == (N, C2, Ho, Wo)
        # bf16 matmul operands (f32 accumulation) vs a pure-f32 reference.
        err = float(jnp.max(jnp.abs(out - ref)))
        assert jnp.allclose(out, ref, atol=2e-2, rtol=2e-2), err

    key = jax.random.PRNGKey(0)
    ka, kb = jax.random.split(key)
    # Exact module shape: M = 1*7*7 = 49 (exercises row padding), C2p = 2048
    # (single tile on v5e/v6e, 2x1024 "parallel" tiles on v7x).
    run_case(ka, N=1, C1=896, H=14, W=14, C2=2048)
    # Channel counts that are not multiples of 128 (exercises channel padding).
    run_case(kb, N=2, C1=96, H=16, W=16, C2=192)

    print("KERNEL_OK")
</pallas_src>

<mosaic_0001>
module attributes {stable_mosaic.version = 11 : i64} {
  func.func @fused_kernel(%arg0: i32, %arg1: memref<64x896xf32, #tpu.memory_space<vmem>>, %arg2: memref<64x896xf32, #tpu.memory_space<vmem>>, %arg3: memref<1x896xf32, #tpu.memory_space<vmem>>, %arg4: memref<1x896xf32, #tpu.memory_space<vmem>>, %arg5: memref<896x2048xbf16, #tpu.memory_space<vmem>>, %arg6: memref<1x2048xf32, #tpu.memory_space<vmem>>, %arg7: memref<1x2048xf32, #tpu.memory_space<vmem>>, %arg8: memref<64x2048xf32, #tpu.memory_space<vmem>>) attributes {dimension_semantics = [#tpu.dimension_semantics<parallel>], iteration_bounds = array<i64: 1>, scalar_prefetch = 0 : i64, scratch_operands = 0 : i64, tpu.core_type = #tpu.core_type<tc>, window_params = [{pipeline_mode = #tpu.pipeline_mode<synchronous>, transform_indices = @transform_0, window_bounds = array<i64: 64, 896>}, {pipeline_mode = #tpu.pipeline_mode<synchronous>, transform_indices = @transform_1, window_bounds = array<i64: 64, 896>}, {pipeline_mode = #tpu.pipeline_mode<synchronous>, transform_indices = @transform_2, window_bounds = array<i64: 1, 896>}, {pipeline_mode = #tpu.pipeline_mode<synchronous>, transform_indices = @transform_3, window_bounds = array<i64: 1, 896>}, {transform_indices = @transform_4, window_bounds = array<i64: 896, 2048>}, {transform_indices = @transform_5, window_bounds = array<i64: 1, 2048>}, {transform_indices = @transform_6, window_bounds = array<i64: 1, 2048>}, {transform_indices = @transform_7, window_bounds = array<i64: 64, 2048>}]} {
    %c0 = arith.constant 0 : index
    %c0_0 = arith.constant 0 : index
    %0 = vector.load %arg1[%c0, %c0_0] : memref<64x896xf32, #tpu.memory_space<vmem>>, vector<64x896xf32>
    %c0_1 = arith.constant 0 : index
    %c0_2 = arith.constant 0 : index
    %1 = vector.load %arg3[%c0_1, %c0_2] : memref<1x896xf32, #tpu.memory_space<vmem>>, vector<1x896xf32>
    %2 = vector.broadcast %1 : vector<1x896xf32> to vector<64x896xf32>
    %3 = arith.mulf %0, %2 : vector<64x896xf32>
    %c0_3 = arith.constant 0 : index
    %c0_4 = arith.constant 0 : index
    %4 = vector.load %arg4[%c0_3, %c0_4] : memref<1x896xf32, #tpu.memory_space<vmem>>, vector<1x896xf32>
    %5 = vector.broadcast %4 : vector<1x896xf32> to vector<64x896xf32>
    %6 = arith.addf %3, %5 : vector<64x896xf32>
    %c0_5 = arith.constant 0 : index
    %c0_6 = arith.constant 0 : index
    %7 = vector.load %arg2[%c0_5, %c0_6] : memref<64x896xf32, #tpu.memory_space<vmem>>, vector<64x896xf32>
    %8 = arith.addf %6, %7 : vector<64x896xf32>
    %cst = arith.constant 0.000000e+00 : f32
    %9 = vector.broadcast %cst : f32 to vector<64x896xf32>
    %10 = arith.maximumf %8, %9 : vector<64x896xf32>
    %11 = arith.truncf %10 : vector<64x896xf32> to vector<64x896xbf16>
    %c0_7 = arith.constant 0 : index
    %c0_8 = arith.constant 0 : index
    %12 = vector.load %arg5[%c0_7, %c0_8] : memref<896x2048xbf16, #tpu.memory_space<vmem>>, vector<896x2048xbf16>
    %cst_9 = arith.constant dense<0.000000e+00> : vector<64x2048xf32>
    %13 = tpu.matmul %11, %12, %cst_9 {dimension_numbers = #tpu.dot_dimension_numbers<[1], [0], [0], [1], [0, 0, 1, 1], [], []>} : vector<64x896xbf16>, vector<896x2048xbf16>, vector<64x2048xf32> -> vector<64x2048xf32>
    %cst_10 = arith.constant dense<0.000000e+00> : vector<2048xf32>
    %14 = vector.multi_reduction <add>, %13, %cst_10 [0] : vector<64x2048xf32> to vector<2048xf32>
    %15 = vector.shape_cast %14 : vector<2048xf32> to vector<1x2048xf32>
    %cst_11 = arith.constant 0.0204081628 : f32
    %16 = vector.broadcast %cst_11 : f32 to vector<1x2048xf32>
    %17 = arith.mulf %15, %16 : vector<1x2048xf32>
    %18 = arith.mulf %13, %13 : vector<64x2048xf32>
    %cst_12 = arith.constant dense<0.000000e+00> : vector<2048xf32>
    %19 = vector.multi_reduction <add>, %18, %cst_12 [0] : vector<64x2048xf32> to vector<2048xf32>
    %20 = vector.shape_cast %19 : vector<2048xf32> to vector<1x2048xf32>
    %cst_13 = arith.constant 0.0204081628 : f32
    %21 = vector.broadcast %cst_13 : f32 to vector<1x2048xf32>
    %22 = arith.mulf %20, %21 : vector<1x2048xf32>
    %23 = arith.mulf %17, %17 : vector<1x2048xf32>
    %24 = arith.subf %22, %23 : vector<1x2048xf32>
    %cst_14 = arith.constant 0.000000e+00 : f32
    %25 = vector.broadcast %cst_14 : f32 to vector<1x2048xf32>
    %26 = arith.maximumf %24, %25 : vector<1x2048xf32>
    %c0_15 = arith.constant 0 : index
    %c0_16 = arith.constant 0 : index
    %27 = vector.load %arg6[%c0_15, %c0_16] : memref<1x2048xf32, #tpu.memory_space<vmem>>, vector<1x2048xf32>
    %cst_17 = arith.constant 9.99999974E-6 : f32
    %28 = vector.broadcast %cst_17 : f32 to vector<1x2048xf32>
    %29 = arith.addf %26, %28 : vector<1x2048xf32>
    %30 = math.rsqrt %29 : vector<1x2048xf32>
    %31 = arith.mulf %27, %30 : vector<1x2048xf32>
    %c0_18 = arith.constant 0 : index
    %c0_19 = arith.constant 0 : index
    %32 = vector.load %arg7[%c0_18, %c0_19] : memref<1x2048xf32, #tpu.memory_space<vmem>>, vector<1x2048xf32>
    %33 = arith.mulf %17, %31 : vector<1x2048xf32>
    %34 = arith.subf %32, %33 : vector<1x2048xf32>
    %35 = vector.broadcast %31 : vector<1x2048xf32> to vector<64x2048xf32>
    %36 = arith.mulf %13, %35 : vector<64x2048xf32>
    %37 = vector.broadcast %34 : vector<1x2048xf32> to vector<64x2048xf32>
    %38 = arith.addf %36, %37 : vector<64x2048xf32>
    %c0_20 = arith.constant 0 : index
    %c0_21 = arith.constant 0 : index
    %39 = vector.load %arg8[%c0_20, %c0_21] : memref<64x2048xf32, #tpu.memory_space<vmem>>, vector<64x2048xf32>
    tpu.vector_store %arg8[%c0_20, %c0_21], %38 {strides = array<i32>} : memref<64x2048xf32, #tpu.memory_space<vmem>>, vector<64x2048xf32>,
    return
  }
  func.func @transform_0(%arg0: i32) -> (i32, i32) {
    %c0_i32 = arith.constant 0 : i32
    %c0_i32_0 = arith.constant 0 : i32
    %c0_i32_1 = arith.constant 0 : i32
    return %c0_i32, %c0_i32_0 : i32, i32
  }
  func.func @transform_1(%arg0: i32) -> (i32, i32) {
    %c0_i32 = arith.constant 0 : i32
    %c0_i32_0 = arith.constant 0 : i32
    %c0_i32_1 = arith.constant 0 : i32
    return %c0_i32, %c0_i32_0 : i32, i32
  }
  func.func @transform_2(%arg0: i32) -> (i32, i32) {
    %c0_i32 = arith.constant 0 : i32
    %c0_i32_0 = arith.constant 0 : i32
    %c0_i32_1 = arith.constant 0 : i32
    return %c0_i32, %c0_i32_0 : i32, i32
  }
  func.func @transform_3(%arg0: i32) -> (i32, i32) {
    %c0_i32 = arith.constant 0 : i32
    %c0_i32_0 = arith.constant 0 : i32
    %c0_i32_1 = arith.constant 0 : i32
    return %c0_i32, %c0_i32_0 : i32, i32
  }
  func.func @transform_4(%arg0: i32) -> (i32, i32) {
    %c0_i32 = arith.constant 0 : i32
    %c0_i32_0 = arith.constant 0 : i32
    return %c0_i32, %arg0 : i32, i32
  }
  func.func @transform_5(%arg0: i32) -> (i32, i32) {
    %c0_i32 = arith.constant 0 : i32
    %c0_i32_0 = arith.constant 0 : i32
    return %c0_i32, %arg0 : i32, i32
  }
  func.func @transform_6(%arg0: i32) -> (i32, i32) {
    %c0_i32 = arith.constant 0 : i32
    %c0_i32_0 = arith.constant 0 : i32
    return %c0_i32, %arg0 : i32, i32
  }
  func.func @transform_7(%arg0: i32) -> (i32, i32) {
    %c0_i32 = arith.constant 0 : i32
    %c0_i32_0 = arith.constant 0 : i32
    return %c0_i32, %arg0 : i32, i32
  }
}

</mosaic_0001>

<llo_original>
// kernel: forward.1
$region0: #{forward.1}
  #allocation0 [shape = 'u32[]', space=smem, size = 0x4, offset = 0x4, fixed_abs, tag = 'smem constant byte address 0x4 - core index']
  #allocation1 [shape = 'u32[72,128]{1,0:T(1,128)}', space=vmem, size = 0x9000, scoped, tag = 'internal scratch']
  %s0 = inlined_call_operand.vmem [shape: f32[64,896], index: 0, kind: input, shape index: {}]
  %s1 = inlined_call_operand.vmem [shape: f32[64,896], index: 1, kind: input, shape index: {}]
  %s2 = inlined_call_operand.vmem [shape: f32[1,896], index: 2, kind: input, shape index: {}]
  %s3 = inlined_call_operand.vmem [shape: f32[1,896], index: 3, kind: input, shape index: {}]
  %s4 = inlined_call_operand.vmem [shape: bf16[896,2048], index: 4, kind: input, shape index: {}]
  %s5 = inlined_call_operand.vmem [shape: f32[1,2048], index: 5, kind: input, shape index: {}]
  %s6 = inlined_call_operand.vmem [shape: f32[1,2048], index: 6, kind: input, shape index: {}]
  %s7 = inlined_call_operand.vmem [shape: f32[64,2048], index: 7, kind: output, shape index: {}]
  %s8 = sld [smem:[#allocation0]]
  $region38: #{forward.1} parent=0
    _
  %s10 = ssub.s32 1, %s8
  %s11 = scalar_select 0, %s10, %s8
  // Predicated region
  $region2: #{forward.1} parent=0 // pred_check
    _
  $region3: #{forward.1} parent=0 // pred_check_branch
    %13 = sbr.rel (0) target = $region5
  $region4: #{forward.1} parent=0 // pred_region
    _
  $region5: #{forward.1} parent=0 // pred_fallthru
    _
  // Predicated region
  $region6: #{forward.1} parent=0 // pred_check
    _
  $region7: #{forward.1} parent=0 // pred_check_branch
    %15 = sbr.rel (0) target = $region9
  $region8: #{forward.1} parent=0 // pred_region
    _
  $region9: #{forward.1} parent=0 // pred_fallthru
    _
  // Predicated region
  $region10: #{forward.1} parent=0 // pred_check
    _
  $region11: #{forward.1} parent=0 // pred_check_branch
    %17 = sbr.rel (0) target = $region13
  $region12: #{forward.1} parent=0 // pred_region
    _
  $region13: #{forward.1} parent=0 // pred_fallthru
    _
  // Predicated region
  $region14: #{forward.1} parent=0 // pred_check
    _
  $region15: #{forward.1} parent=0 // pred_check_branch
    %19 = sbr.rel (0) target = $region17
  $region16: #{forward.1} parent=0 // pred_region
    _
  $region17: #{forward.1} parent=0 // pred_fallthru
    _
  // Predicated region
  $region18: #{forward.1} parent=0 // pred_check
    _
  $region19: #{forward.1} parent=0 // pred_check_branch
    %21 = sbr.rel (0) target = $region21
  $region20: #{forward.1} parent=0 // pred_region
    _
  $region21: #{forward.1} parent=0 // pred_fallthru
    _
  // Predicated region
  $region22: #{forward.1} parent=0 // pred_check
    _
  $region23: #{forward.1} parent=0 // pred_check_branch
    %23 = sbr.rel (0) target = $region25
  $region24: #{forward.1} parent=0 // pred_region
    _
  $region25: #{forward.1} parent=0 // pred_fallthru
    _
  // Predicated region
  $region26: #{forward.1} parent=0 // pred_check
    _
  $region27: #{forward.1} parent=0 // pred_check_branch
    %25 = sbr.rel (0) target = $region29
  $region28: #{forward.1} parent=0 // pred_region
    _
  $region29: #{forward.1} parent=0 // pred_fallthru
    _
  %v26 = vld [vmem:[%s0] sm:$0xff]
  %v27 = vld [vmem:[%s0 + $0x8] sm:$0xff]
  %v28 = vld [vmem:[%s0 + $0x10] sm:$0xff]
  %v29 = vld [vmem:[%s0 + $0x18] sm:$0xff]
  %v30 = vld [vmem:[%s0 + $0x20] sm:$0xff]
  %v31 = vld [vmem:[%s0 + $0x28] sm:$0xff]
  %v32 = vld [vmem:[%s0 + $0x30] sm:$0xff]
  %v33 = vld [vmem:[%s0 + $0x38] sm:$0xff]
  %v34 = vld [vmem:[%s0 + $0x40] sm:$0xff]
  %v35 = vld [vmem:[%s0 + $0x48] sm:$0xff]
  %v36 = vld [vmem:[%s0 + $0x50] sm:$0xff]
  %v37 = vld [vmem:[%s0 + $0x58] sm:$0xff]
  %v38 = vld [vmem:[%s0 + $0x60] sm:$0xff]
  %v39 = vld [vmem:[%s0 + $0x68] sm:$0xff]
  %v40 = vld [vmem:[%s0 + $0x70] sm:$0xff]
  %v41 = vld [vmem:[%s0 + $0x78] sm:$0xff]
  %v42 = vld [vmem:[%s0 + $0x80] sm:$0xff]
  %v43 = vld [vmem:[%s0 + $0x88] sm:$0xff]
  %v44 = vld [vmem:[%s0 + $0x90] sm:$0xff]
  %v45 = vld [vmem:[%s0 + $0x98] sm:$0xff]
  %v46 = vld [vmem:[%s0 + $0xa0] sm:$0xff]
  %v47 = vld [vmem:[%s0 + $0xa8] sm:$0xff]
  %v48 = vld [vmem:[%s0 + $0xb0] sm:$0xff]
  %v49 = vld [vmem:[%s0 + $0xb8] sm:$0xff]
  %v50 = vld [vmem:[%s0 + $0xc0] sm:$0xff]
  %v51 = vld [vmem:[%s0 + $0xc8] sm:$0xff]
  %v52 = vld [vmem:[%s0 + $0xd0] sm:$0xff]
  %v53 = vld [vmem:[%s0 + $0xd8] sm:$0xff]
  %v54 = vld [vmem:[%s0 + $0xe0] sm:$0xff]
  %v55 = vld [vmem:[%s0 + $0xe8] sm:$0xff]
  %v56 = vld [vmem:[%s0 + $0xf0] sm:$0xff]
  %v57 = vld [vmem:[%s0 + $0xf8] sm:$0xff]
  %v58 = vld [vmem:[%s0 + $0x100] sm:$0xff]
  %v59 = vld [vmem:[%s0 + $0x108] sm:$0xff]
  %v60 = vld [vmem:[%s0 + $0x110] sm:$0xff]
  %v61 = vld [vmem:[%s0 + $0x118] sm:$0xff]
  %v62 = vld [vmem:[%s0 + $0x120] sm:$0xff]
  %v63 = vld [vmem:[%s0 + $0x128] sm:$0xff]
  %v64 = vld [vmem:[%s0 + $0x130] sm:$0xff]
  %v65 = vld [vmem:[%s0 + $0x138] sm:$0xff]
  %v66 = vld [vmem:[%s0 + $0x140] sm:$0xff]
  %v67 = vld [vmem:[%s0 + $0x148] sm:$0xff]
  %v68 = vld [vmem:[%s0 + $0x150] sm:$0xff]
  %v69 = vld [vmem:[%s0 + $0x158] sm:$0xff]
  %v70 = vld [vmem:[%s0 + $0x160] sm:$0xff]
  %v71 = vld [vmem:[%s0 + $0x168] sm:$0xff]
  %v72 = vld [vmem:[%s0 + $0x170] sm:$0xff]
  %v73 = vld [vmem:[%s0 + $0x178] sm:$0xff]
  %v74 = vld [vmem:[%s0 + $0x180] sm:$0xff]
  %v75 = vld [vmem:[%s0 + $0x188] sm:$0xff]
  %v76 = vld [vmem:[%s0 + $0x190] sm:$0xff]
  %v77 = vld [vmem:[%s0 + $0x198] sm:$0xff]
  %v78 = vld [vmem:[%s0 + $0x1a0] sm:$0xff]
  %v79 = vld [vmem:[%s0 + $0x1a8] sm:$0xff]
  %v80 = vld [vmem:[%s0 + $0x1b0] sm:$0xff]
  %v81 = vld [vmem:[%s0 + $0x1b8] sm:$0xff]
  %v82 = vld [vmem:[%s2] sm:$0xff]
  %v84 = vperm.slane %v82, 0
  %v85 = vperm.slane %v82, 1
  %v86 = vperm.slane %v82, 2
  %v87 = vperm.slane %v82, 3
  %v88 = vperm.slane %v82, 4
  %v89 = vperm.slane %v82, 5
  %v90 = vperm.slane %v82, 6
  %v98 = vmul.f32 %v26, %v84
  %v99 = vmul.f32 %v27, %v85
  %v100 = vmul.f32 %v28, %v86
  %v101 = vmul.f32 %v29, %v87
  %v102 = vmul.f32 %v30, %v88
  %v103 = vmul.f32 %v31, %v89
  %v104 = vmul.f32 %v32, %v90
  %v105 = vmul.f32 %v33, %v84
  %v106 = vmul.f32 %v34, %v85
  %v107 = vmul.f32 %v35, %v86
  %v108 = vmul.f32 %v36, %v87
  %v109 = vmul.f32 %v37, %v88
  %v110 = vmul.f32 %v38, %v89
  %v111 = vmul.f32 %v39, %v90
  %v112 = vmul.f32 %v40, %v84
  %v113 = vmul.f32 %v41, %v85
  %v114 = vmul.f32 %v42, %v86
  %v115 = vmul.f32 %v43, %v87
  %v116 = vmul.f32 %v44, %v88
  %v117 = vmul.f32 %v45, %v89
  %v118 = vmul.f32 %v46, %v90
  %v119 = vmul.f32 %v47, %v84
  %v120 = vmul.f32 %v48, %v85
  %v121 = vmul.f32 %v49, %v86
  %v122 = vmul.f32 %v50, %v87
  %v123 = vmul.f32 %v51, %v88
  %v124 = vmul.f32 %v52, %v89
  %v125 = vmul.f32 %v53, %v90
  %v126 = vmul.f32 %v54, %v84
  %v127 = vmul.f32 %v55, %v85
  %v128 = vmul.f32 %v56, %v86
  %v129 = vmul.f32 %v57, %v87
  %v130 = vmul.f32 %v58, %v88
  %v131 = vmul.f32 %v59, %v89
  %v132 = vmul.f32 %v60, %v90
  %v133 = vmul.f32 %v61, %v84
  %v134 = vmul.f32 %v62, %v85
  %v135 = vmul.f32 %v63, %v86
  %v136 = vmul.f32 %v64, %v87
  %v137 = vmul.f32 %v65, %v88
  %v138 = vmul.f32 %v66, %v89
  %v139 = vmul.f32 %v67, %v90
  %v140 = vmul.f32 %v68, %v84
  %v141 = vmul.f32 %v69, %v85
  %v142 = vmul.f32 %v70, %v86
  %v143 = vmul.f32 %v71, %v87
  %v144 = vmul.f32 %v72, %v88
  %v145 = vmul.f32 %v73, %v89
  %v146 = vmul.f32 %v74, %v90
  %v147 = vmul.f32 %v75, %v84
  %v148 = vmul.f32 %v76, %v85
  %v149 = vmul.f32 %v77, %v86
  %v150 = vmul.f32 %v78, %v87
  %v151 = vmul.f32 %v79, %v88
  %v152 = vmul.f32 %v80, %v89
  %v153 = vmul.f32 %v81, %v90
  %v154 = vld [vmem:[%s3] sm:$0xff]
  %v156 = vperm.slane %v154, 0
  %v157 = vperm.slane %v154, 1
  %v158 = vperm.slane %v154, 2
  %v159 = vperm.slane %v154, 3
  %v160 = vperm.slane %v154, 4
  %v161 = vperm.slane %v154, 5
  %v162 = vperm.slane %v154, 6
  %v170 = vadd.f32 %v98, %v156
  %v171 = vadd.f32 %v99, %v157
  %v172 = vadd.f32 %v100, %v158
  %v173 = vadd.f32 %v101, %v159
  %v174 = vadd.f32 %v102, %v160
  %v175 = vadd.f32 %v103, %v161
  %v176 = vadd.f32 %v104, %v162
  %v177 = vadd.f32 %v105, %v156
  %v178 = vadd.f32 %v106, %v157
  %v179 = vadd.f32 %v107, %v158
  %v180 = vadd.f32 %v108, %v159
  %v181 = vadd.f32 %v109, %v160
  %v182 = vadd.f32 %v110, %v161
  %v183 = vadd.f32 %v111, %v162
  %v184 = vadd.f32 %v112, %v156
  %v185 = vadd.f32 %v113, %v157
  %v186 = vadd.f32 %v114, %v158
  %v187 = vadd.f32 %v115, %v159
  %v188 = vadd.f32 %v116, %v160
  %v189 = vadd.f32 %v117, %v161
  %v190 = vadd.f32 %v118, %v162
  %v191 = vadd.f32 %v119, %v156
  %v192 = vadd.f32 %v120, %v157
  %v193 = vadd.f32 %v121, %v158
  %v194 = vadd.f32 %v122, %v159
  %v195 = vadd.f32 %v123, %v160
  %v196 = vadd.f32 %v124, %v161
  %v197 = vadd.f32 %v125, %v162
  %v198 = vadd.f32 %v126, %v156
  %v199 = vadd.f32 %v127, %v157
  %v200 = vadd.f32 %v128, %v158
  %v201 = vadd.f32 %v129, %v159
  %v202 = vadd.f32 %v130, %v160
  %v203 = vadd.f32 %v131, %v161
  %v204 = vadd.f32 %v132, %v162
  %v205 = vadd.f32 %v133, %v156
  %v206 = vadd.f32 %v134, %v157
  %v207 = vadd.f32 %v135, %v158
  %v208 = vadd.f32 %v136, %v159
  %v209 = vadd.f32 %v137, %v160
  %v210 = vadd.f32 %v138, %v161
  %v211 = vadd.f32 %v139, %v162
  %v212 = vadd.f32 %v140, %v156
  %v213 = vadd.f32 %v141, %v157
  %v214 = vadd.f32 %v142, %v158
  %v215 = vadd.f32 %v143, %v159
  %v216 = vadd.f32 %v144, %v160
  %v217 = vadd.f32 %v145, %v161
  %v218 = vadd.f32 %v146, %v162
  %v219 = vadd.f32 %v147, %v156
  %v220 = vadd.f32 %v148, %v157
  %v221 = vadd.f32 %v149, %v158
  %v222 = vadd.f32 %v150, %v159
  %v223 = vadd.f32 %v151, %v160
  %v224 = vadd.f32 %v152, %v161
  %v225 = vadd.f32 %v153, %v162
  %v226 = vld [vmem:[%s1] sm:$0xff]
  %v227 = vld [vmem:[%s1 + $0x8] sm:$0xff]
  %v228 = vld [vmem:[%s1 + $0x10] sm:$0xff]
  %v229 = vld [vmem:[%s1 + $0x18] sm:$0xff]
  %v230 = vld [vmem:[%s1 + $0x20] sm:$0xff]
  %v231 = vld [vmem:[%s1 + $0x28] sm:$0xff]
  %v232 = vld [vmem:[%s1 + $0x30] sm:$0xff]
  %v233 = vld [vmem:[%s1 + $0x38] sm:$0xff]
  %v234 = vld [vmem:[%s1 + $0x40] sm:$0xff]
  %v235 = vld [vmem:[%s1 + $0x48] sm:$0xff]
  %v236 = vld [vmem:[%s1 + $0x50] sm:$0xff]
  %v237 = vld [vmem:[%s1 + $0x58] sm:$0xff]
  %v238 = vld [vmem:[%s1 + $0x60] sm:$0xff]
  %v239 = vld [vmem:[%s1 + $0x68] sm:$0xff]
  %v240 = vld [vmem:[%s1 + $0x70] sm:$0xff]
  %v241 = vld [vmem:[%s1 + $0x78] sm:$0xff]
  %v242 = vld [vmem:[%s1 + $0x80] sm:$0xff]
  %v243 = vld [vmem:[%s1 + $0x88] sm:$0xff]
  %v244 = vld [vmem:[%s1 + $0x90] sm:$0xff]
  %v245 = vld [vmem:[%s1 + $0x98] sm:$0xff]
  %v246 = vld [vmem:[%s1 + $0xa0] sm:$0xff]
  %v247 = vld [vmem:[%s1 + $0xa8] sm:$0xff]
  %v248 = vld [vmem:[%s1 + $0xb0] sm:$0xff]
  %v249 = vld [vmem:[%s1 + $0xb8] sm:$0xff]
  %v250 = vld [vmem:[%s1 + $0xc0] sm:$0xff]
  %v251 = vld [vmem:[%s1 + $0xc8] sm:$0xff]
  %v252 = vld [vmem:[%s1 + $0xd0] sm:$0xff]
  %v253 = vld [vmem:[%s1 + $0xd8] sm:$0xff]
  %v254 = vld [vmem:[%s1 + $0xe0] sm:$0xff]
  %v255 = vld [vmem:[%s1 + $0xe8] sm:$0xff]
  %v256 = vld [vmem:[%s1 + $0xf0] sm:$0xff]
  %v257 = vld [vmem:[%s1 + $0xf8] sm:$0xff]
  %v258 = vld [vmem:[%s1 + $0x100] sm:$0xff]
  %v259 = vld [vmem:[%s1 + $0x108] sm:$0xff]
  %v260 = vld [vmem:[%s1 + $0x110] sm:$0xff]
  %v261 = vld [vmem:[%s1 + $0x118] sm:$0xff]
  %v262 = vld [vmem:[%s1 + $0x120] sm:$0xff]
  %v263 = vld [vmem:[%s1 + $0x128] sm:$0xff]
  %v264 = vld [vmem:[%s1 + $0x130] sm:$0xff]
  %v265 = vld [vmem:[%s1 + $0x138] sm:$0xff]
  %v266 = vld [vmem:[%s1 + $0x140] sm:$0xff]
  %v267 = vld [vmem:[%s1 + $0x148] sm:$0xff]
  %v268 = vld [vmem:[%s1 + $0x150] sm:$0xff]
  %v269 = vld [vmem:[%s1 + $0x158] sm:$0xff]
  %v270 = vld [vmem:[%s1 + $0x160] sm:$0xff]
  %v271 = vld [vmem:[%s1 + $0x168] sm:$0xff]
  %v272 = vld [vmem:[%s1 + $0x170] sm:$0xff]
  %v273 = vld [vmem:[%s1 + $0x178] sm:$0xff]
  %v274 = vld [vmem:[%s1 + $0x180] sm:$0xff]
  %v275 = vld [vmem:[%s1 + $0x188] sm:$0xff]
  %v276 = vld [vmem:[%s1 + $0x190] sm:$0xff]
  %v277 = vld [vmem:[%s1 + $0x198] sm:$0xff]
  %v278 = vld [vmem:[%s1 + $0x1a0] sm:$0xff]
  %v279 = vld [vmem:[%s1 + $0x1a8] sm:$0xff]
  %v280 = vld [vmem:[%s1 + $0x1b0] sm:$0xff]
  %v281 = vld [vmem:[%s1 + $0x1b8] sm:$0xff]
  %v282 = vadd.f32 %v170, %v226
  %v283 = vadd.f32 %v171, %v227
  %v284 = vadd.f32 %v172, %v228
  %v285 = vadd.f32 %v173, %v229
  %v286 = vadd.f32 %v174, %v230
  %v287 = vadd.f32 %v175, %v231
  %v288 = vadd.f32 %v176, %v232
  %v289 = vadd.f32 %v177, %v233
  %v290 = vadd.f32 %v178, %v234
  %v291 = vadd.f32 %v179, %v235
  %v292 = vadd.f32 %v180, %v236
  %v293 = vadd.f32 %v181, %v237
  %v294 = vadd.f32 %v182, %v238
  %v295 = vadd.f32 %v183, %v239
  %v296 = vadd.f32 %v184, %v240
  %v297 = vadd.f32 %v185, %v241
  %v298 = vadd.f32 %v186, %v242
  %v299 = vadd.f32 %v187, %v243
  %v300 = vadd.f32 %v188, %v244
  %v301 = vadd.f32 %v189, %v245
  %v302 = vadd.f32 %v190, %v246
  %v303 = vadd.f32 %v191, %v247
  %v304 = vadd.f32 %v192, %v248
  %v305 = vadd.f32 %v193, %v249
  %v306 = vadd.f32 %v194, %v250
  %v307 = vadd.f32 %v195, %v251
  %v308 = vadd.f32 %v196, %v252
  %v309 = vadd.f32 %v197, %v253
  %v310 = vadd.f32 %v198, %v254
  %v311 = vadd.f32 %v199, %v255
  %v312 = vadd.f32 %v200, %v256
  %v313 = vadd.f32 %v201, %v257
  %v314 = vadd.f32 %v202, %v258
  %v315 = vadd.f32 %v203, %v259
  %v316 = vadd.f32 %v204, %v260
  %v317 = vadd.f32 %v205, %v261
  %v318 = vadd.f32 %v206, %v262
  %v319 = vadd.f32 %v207, %v263
  %v320 = vadd.f32 %v208, %v264
  %v321 = vadd.f32 %v209, %v265
  %v322 = vadd.f32 %v210, %v266
  %v323 = vadd.f32 %v211, %v267
  %v324 = vadd.f32 %v212, %v268
  %v325 = vadd.f32 %v213, %v269
  %v326 = vadd.f32 %v214, %v270
  %v327 = vadd.f32 %v215, %v271
  %v328 = vadd.f32 %v216, %v272
  %v329 = vadd.f32 %v217, %v273
  %v330 = vadd.f32 %v218, %v274
  %v331 = vadd.f32 %v219, %v275
  %v332 = vadd.f32 %v220, %v276
  %v333 = vadd.f32 %v221, %v277
  %v334 = vadd.f32 %v222, %v278
  %v335 = vadd.f32 %v223, %v279
  %v336 = vadd.f32 %v224, %v280
  %v337 = vadd.f32 %v225, %v281
  %v338 = vmax.f32 %v282, 0.0
  %v339 = vmax.f32 %v283, 0.0
  %v340 = vmax.f32 %v284, 0.0
  %v341 = vmax.f32 %v285, 0.0
  %v342 = vmax.f32 %v286, 0.0
  %v343 = vmax.f32 %v287, 0.0
  %v344 = vmax.f32 %v288, 0.0
  %v345 = vmax.f32 %v289, 0.0
  %v346 = vmax.f32 %v290, 0.0
  %v347 = vmax.f32 %v291, 0.0
  %v348 = vmax.f32 %v292, 0.0
  %v349 = vmax.f32 %v293, 0.0
  %v350 = vmax.f32 %v294, 0.0
  %v351 = vmax.f32 %v295, 0.0
  %v352 = vmax.f32 %v296, 0.0
  %v353 = vmax.f32 %v297, 0.0
  %v354 = vmax.f32 %v298, 0.0
  %v355 = vmax.f32 %v299, 0.0
  %v356 = vmax.f32 %v300, 0.0
  %v357 = vmax.f32 %v301, 0.0
  %v358 = vmax.f32 %v302, 0.0
  %v359 = vmax.f32 %v303, 0.0
  %v360 = vmax.f32 %v304, 0.0
  %v361 = vmax.f32 %v305, 0.0
  %v362 = vmax.f32 %v306, 0.0
  %v363 = vmax.f32 %v307, 0.0
  %v364 = vmax.f32 %v308, 0.0
  %v365 = vmax.f32 %v309, 0.0
  %v366 = vmax.f32 %v310, 0.0
  %v367 = vmax.f32 %v311, 0.0
  %v368 = vmax.f32 %v312, 0.0
  %v369 = vmax.f32 %v313, 0.0
  %v370 = vmax.f32 %v314, 0.0
  %v371 = vmax.f32 %v315, 0.0
  %v372 = vmax.f32 %v316, 0.0
  %v373 = vmax.f32 %v317, 0.0
  %v374 = vmax.f32 %v318, 0.0
  %v375 = vmax.f32 %v319, 0.0
  %v376 = vmax.f32 %v320, 0.0
  %v377 = vmax.f32 %v321, 0.0
  %v378 = vmax.f32 %v322, 0.0
  %v379 = vmax.f32 %v323, 0.0
  %v380 = vmax.f32 %v324, 0.0
  %v381 = vmax.f32 %v325, 0.0
  %v382 = vmax.f32 %v326, 0.0
  %v383 = vmax.f32 %v327, 0.0
  %v384 = vmax.f32 %v328, 0.0
  %v385 = vmax.f32 %v329, 0.0
  %v386 = vmax.f32 %v330, 0.0
  %v387 = vmax.f32 %v331, 0.0
  %v388 = vmax.f32 %v332, 0.0
  %v389 = vmax.f32 %v333, 0.0
  %v390 = vmax.f32 %v334, 0.0
  %v391 = vmax.f32 %v335, 0.0
  %v392 = vmax.f32 %v336, 0.0
  %v393 = vmax.f32 %v337, 0.0
  %v394 = vpack.c.bf16 %v345, %v338
  %v395 = vpack.c.bf16 %v346, %v339
  %v396 = vpack.c.bf16 %v347, %v340
  %v397 = vpack.c.bf16 %v348, %v341
  %v398 = vpack.c.bf16 %v349, %v342
  %v399 = vpack.c.bf16 %v350, %v343
  %v400 = vpack.c.bf16 %v351, %v344
  %v401 = vpack.c.bf16 %v359, %v352
  %v402 = vpack.c.bf16 %v360, %v353
  %v403 = vpack.c.bf16 %v361, %v354
  %v404 = vpack.c.bf16 %v362, %v355
  %v405 = vpack.c.bf16 %v363, %v356
  %v406 = vpack.c.bf16 %v364, %v357
  %v407 = vpack.c.bf16 %v365, %v358
  %v408 = vpack.c.bf16 %v373, %v366
  %v409 = vpack.c.bf16 %v374, %v367
  %v410 = vpack.c.bf16 %v375, %v368
  %v411 = vpack.c.bf16 %v376, %v369
  %v412 = vpack.c.bf16 %v377, %v370
  %v413 = vpack.c.bf16 %v378, %v371
  %v414 = vpack.c.bf16 %v379, %v372
  %v415 = vpack.c.bf16 %v387, %v380
  %v416 = vpack.c.bf16 %v388, %v381
  %v417 = vpack.c.bf16 %v389, %v382
  %v418 = vpack.c.bf16 %v390, %v383
  %v419 = vpack.c.bf16 %v391, %v384
  %v420 = vpack.c.bf16 %v392, %v385
  %v421 = vpack.c.bf16 %v393, %v386
  %v422 = vld [vmem:[%s4] sm:$0xff]
  %v423 = vld [vmem:[%s4 + $0x8] sm:$0xff]
  %v424 = vld [vmem:[%s4 + $0x10] sm:$0xff]
  %v425 = vld [vmem:[%s4 + $0x18] sm:$0xff]
  %v426 = vld [vmem:[%s4 + $0x20] sm:$0xff]
  %v427 = vld [vmem:[%s4 + $0x28] sm:$0xff]
  %v428 = vld [vmem:[%s4 + $0x30] sm:$0xff]
  %v429 = vld [vmem:[%s4 + $0x38] sm:$0xff]
  %v430 = vld [vmem:[%s4 + $0x40] sm:$0xff]
  %v431 = vld [vmem:[%s4 + $0x48] sm:$0xff]
  %v432 = vld [vmem:[%s4 + $0x50] sm:$0xff]
  %v433 = vld [vmem:[%s4 + $0x58] sm:$0xff]
  %v434 = vld [vmem:[%s4 + $0x60] sm:$0xff]
  %v435 = vld [vmem:[%s4 + $0x68] sm:$0xff]
  %v436 = vld [vmem:[%s4 + $0x70] sm:$0xff]
  %v437 = vld [vmem:[%s4 + $0x78] sm:$0xff]
  %v438 = vld [vmem:[%s4 + $0x80] sm:$0xff]
  %v439 = vld [vmem:[%s4 + $0x88] sm:$0xff]
  %v440 = vld [vmem:[%s4 + $0x90] sm:$0xff]
  %v441 = vld [vmem:[%s4 + $0x98] sm:$0xff]
  %v442 = vld [vmem:[%s4 + $0xa0] sm:$0xff]
  %v443 = vld [vmem:[%s4 + $0xa8] sm:$0xff]
  %v444 = vld [vmem:[%s4 + $0xb0] sm:$0xff]
  %v445 = vld [vmem:[%s4 + $0xb8] sm:$0xff]
  %v446 = vld [vmem:[%s4 + $0xc0] sm:$0xff]
  %v447 = vld [vmem:[%s4 + $0xc8] sm:$0xff]
  %v448 = vld [vmem:[%s4 + $0xd0] sm:$0xff]
  %v449 = vld [vmem:[%s4 + $0xd8] sm:$0xff]
  %v450 = vld [vmem:[%s4 + $0xe0] sm:$0xff]
  %v451 = vld [vmem:[%s4 + $0xe8] sm:$0xff]
  %v452 = vld [vmem:[%s4 + $0xf0] sm:$0xff]
  %v453 = vld [vmem:[%s4 + $0xf8] sm:$0xff]
  %v454 = vld [vmem:[%s4 + $0x100] sm:$0xff]
  %v455 = vld [vmem:[%s4 + $0x108] sm:$0xff]
  %v456 = vld [vmem:[%s4 + $0x110] sm:$0xff]
  %v457 = vld [vmem:[%s4 + $0x118] sm:$0xff]
  %v458 = vld [vmem:[%s4 + $0x120] sm:$0xff]
  %v459 = vld [vmem:[%s4 + $0x128] sm:$0xff]
  %v460 = vld [vmem:[%s4 + $0x130] sm:$0xff]
  %v461 = vld [vmem:[%s4 + $0x138] sm:$0xff]
  %v462 = vld [vmem:[%s4 + $0x140] sm:$0xff]
  %v463 = vld [vmem:[%s4 + $0x148] sm:$0xff]
  %v464 = vld [vmem:[%s4 + $0x150] sm:$0xff]
  %v465 = vld [vmem:[%s4 + $0x158] sm:$0xff]
  %v466 = vld [vmem:[%s4 + $0x160] sm:$0xff]
  %v467 = vld [vmem:[%s4 + $0x168] sm:$0xff]
  %v468 = vld [vmem:[%s4 + $0x170] sm:$0xff]
  %v469 = vld [vmem:[%s4 + $0x178] sm:$0xff]
  %v470 = vld [vmem:[%s4 + $0x180] sm:$0xff]
  %v471 = vld [vmem:[%s4 + $0x188] sm:$0xff]
  %v472 = vld [vmem:[%s4 + $0x190] sm:$0xff]
  %v473 = vld [vmem:[%s4 + $0x198] sm:$0xff]
  %v474 = vld [vmem:[%s4 + $0x1a0] sm:$0xff]
  %v475 = vld [vmem:[%s4 + $0x1a8] sm:$0xff]
  %v476 = vld [vmem:[%s4 + $0x1b0] sm:$0xff]
  %v477 = vld [vmem:[%s4 + $0x1b8] sm:$0xff]
  %v478 = vld [vmem:[%s4 + $0x1c0] sm:$0xff]
  %v479 = vld [vmem:[%s4 + $0x1c8] sm:$0xff]
  %v480 = vld [vmem:[%s4 + $0x1d0] sm:$0xff]
  %v481 = vld [vmem:[%s4 + $0x1d8] sm:$0xff]
  %v482 = vld [vmem:[%s4 + $0x1e0] sm:$0xff]
  %v483 = vld [vmem:[%s4 + $0x1e8] sm:$0xff]
  %v484 = vld [vmem:[%s4 + $0x1f0] sm:$0xff]
  %v485 = vld [vmem:[%s4 + $0x1f8] sm:$0xff]
  %v486 = vld [vmem:[%s4 + $0x200] sm:$0xff]
  %v487 = vld [vmem:[%s4 + $0x208] sm:$0xff]
  %v488 = vld [vmem:[%s4 + $0x210] sm:$0xff]
  %v489 = vld [vmem:[%s4 + $0x218] sm:$0xff]
  %v490 = vld [vmem:[%s4 + $0x220] sm:$0xff]
  %v491 = vld [vmem:[%s4 + $0x228] sm:$0xff]
  %v492 = vld [vmem:[%s4 + $0x230] sm:$0xff]
  %v493 = vld [vmem:[%s4 + $0x238] sm:$0xff]
  %v494 = vld [vmem:[%s4 + $0x240] sm:$0xff]
  %v495 = vld [vmem:[%s4 + $0x248] sm:$0xff]
  %v496 = vld [vmem:[%s4 + $0x250] sm:$0xff]
  %v497 = vld [vmem:[%s4 + $0x258] sm:$0xff]
  %v498 = vld [vmem:[%s4 + $0x260] sm:$0xff]
  %v499 = vld [vmem:[%s4 + $0x268] sm:$0xff]
  %v500 = vld [vmem:[%s4 + $0x270] sm:$0xff]
  %v501 = vld [vmem:[%s4 + $0x278] sm:$0xff]
  %v502 = vld [vmem:[%s4 + $0x280] sm:$0xff]
  %v503 = vld [vmem:[%s4 + $0x288] sm:$0xff]
  %v504 = vld [vmem:[%s4 + $0x290] sm:$0xff]
  %v505 = vld [vmem:[%s4 + $0x298] sm:$0xff]
  %v506 = vld [vmem:[%s4 + $0x2a0] sm:$0xff]
  %v507 = vld [vmem:[%s4 + $0x2a8] sm:$0xff]
  %v508 = vld [vmem:[%s4 + $0x2b0] sm:$0xff]
  %v509 = vld [vmem:[%s4 + $0x2b8] sm:$0xff]
  %v510 = vld [vmem:[%s4 + $0x2c0] sm:$0xff]
  %v511 = vld [vmem:[%s4 + $0x2c8] sm:$0xff]
  %v512 = vld [vmem:[%s4 + $0x2d0] sm:$0xff]
  %v513 = vld [vmem:[%s4 + $0x2d8] sm:$0xff]
  %v514 = vld [vmem:[%s4 + $0x2e0] sm:$0xff]
  %v515 = vld [vmem:[%s4 + $0x2e8] sm:$0xff]
  %v516 = vld [vmem:[%s4 + $0x2f0] sm:$0xff]
  %v517 = vld [vmem:[%s4 + $0x2f8] sm:$0xff]
  %v518 = vld [vmem:[%s4 + $0x300] sm:$0xff]
  %v519 = vld [vmem:[%s4 + $0x308] sm:$0xff]
  %v520 = vld [vmem:[%s4 + $0x310] sm:$0xff]
  %v521 = vld [vmem:[%s4 + $0x318] sm:$0xff]
  %v522 = vld [vmem:[%s4 + $0x320] sm:$0xff]
  %v523 = vld [vmem:[%s4 + $0x328] sm:$0xff]
  %v524 = vld [vmem:[%s4 + $0x330] sm:$0xff]
  %v525 = vld [vmem:[%s4 + $0x338] sm:$0xff]
  %v526 = vld [vmem:[%s4 + $0x340] sm:$0xff]
  %v527 = vld [vmem:[%s4 + $0x348] sm:$0xff]
  %v528 = vld [vmem:[%s4 + $0x350] sm:$0xff]
  %v529 = vld [vmem:[%s4 + $0x358] sm:$0xff]
  %v530 = vld [vmem:[%s4 + $0x360] sm:$0xff]
  %v531 = vld [vmem:[%s4 + $0x368] sm:$0xff]
  %v532 = vld [vmem:[%s4 + $0x370] sm:$0xff]
  %v533 = vld [vmem:[%s4 + $0x378] sm:$0xff]
  %v534 = vld [vmem:[%s4 + $0x380] sm:$0xff]
  %v535 = vld [vmem:[%s4 + $0x388] sm:$0xff]
  %v536 = vld [vmem:[%s4 + $0x390] sm:$0xff]
  %v537 = vld [vmem:[%s4 + $0x398] sm:$0xff]
  %v538 = vld [vmem:[%s4 + $0x3a0] sm:$0xff]
  %v539 = vld [vmem:[%s4 + $0x3a8] sm:$0xff]
  %v540 = vld [vmem:[%s4 + $0x3b0] sm:$0xff]
  %v541 = vld [vmem:[%s4 + $0x3b8] sm:$0xff]
  %v542 = vld [vmem:[%s4 + $0x3c0] sm:$0xff]
  %v543 = vld [vmem:[%s4 + $0x3c8] sm:$0xff]
  %v544 = vld [vmem:[%s4 + $0x3d0] sm:$0xff]
  %v545 = vld [vmem:[%s4 + $0x3d8] sm:$0xff]
  %v546 = vld [vmem:[%s4 + $0x3e0] sm:$0xff]
  %v547 = vld [vmem:[%s4 + $0x3e8] sm:$0xff]
  %v548 = vld [vmem:[%s4 + $0x3f0] sm:$0xff]
  %v549 = vld [vmem:[%s4 + $0x3f8] sm:$0xff]
  %v550 = vld [vmem:[%s4 + $0x400] sm:$0xff]
  %v551 = vld [vmem:[%s4 + $0x408] sm:$0xff]
  %v552 = vld [vmem:[%s4 + $0x410] sm:$0xff]
  %v553 = vld [vmem:[%s4 + $0x418] sm:$0xff]
  %v554 = vld [vmem:[%s4 + $0x420] sm:$0xff]
  %v555 = vld [vmem:[%s4 + $0x428] sm:$0xff]
  %v556 = vld [vmem:[%s4 + $0x430] sm:$0xff]
  %v557 = vld [vmem:[%s4 + $0x438] sm:$0xff]
  %v558 = vld [vmem:[%s4 + $0x440] sm:$0xff]
  %v559 = vld [vmem:[%s4 + $0x448] sm:$0xff]
  %v560 = vld [vmem:[%s4 + $0x450] sm:$0xff]
  %v561 = vld [vmem:[%s4 + $0x458] sm:$0xff]
  %v562 = vld [vmem:[%s4 + $0x460] sm:$0xff]
  %v563 = vld [vmem:[%s4 + $0x468] sm:$0xff]
  %v564 = vld [vmem:[%s4 + $0x470] sm:$0xff]
  %v565 = vld [vmem:[%s4 + $0x478] sm:$0xff]
  %v566 = vld [vmem:[%s4 + $0x480] sm:$0xff]
  %v567 = vld [vmem:[%s4 + $0x488] sm:$0xff]
  %v568 = vld [vmem:[%s4 + $0x490] sm:$0xff]
  %v569 = vld [vmem:[%s4 + $0x498] sm:$0xff]
  %v570 = vld [vmem:[%s4 + $0x4a0] sm:$0xff]
  %v571 = vld [vmem:[%s4 + $0x4a8] sm:$0xff]
  %v572 = vld [vmem:[%s4 + $0x4b0] sm:$0xff]
  %v573 = vld [vmem:[%s4 + $0x4b8] sm:$0xff]
  %v574 = vld [vmem:[%s4 + $0x4c0] sm:$0xff]
  %v575 = vld [vmem:[%s4 + $0x4c8] sm:$0xff]
  %v576 = vld [vmem:[%s4 + $0x4d0] sm:$0xff]
  %v577 = vld [vmem:[%s4 + $0x4d8] sm:$0xff]
  %v578 = vld [vmem:[%s4 + $0x4e0] sm:$0xff]
  %v579 = vld [vmem:[%s4 + $0x4e8] sm:$0xff]
  %v580 = vld [vmem:[%s4 + $0x4f0] sm:$0xff]
  %v581 = vld [vmem:[%s4 + $0x4f8] sm:$0xff]
  %v582 = vld [vmem:[%s4 + $0x500] sm:$0xff]
  %v583 = vld [vmem:[%s4 + $0x508] sm:$0xff]
  %v584 = vld [vmem:[%s4 + $0x510] sm:$0xff]
  %v585 = vld [vmem:[%s4 + $0x518] sm:$0xff]
  %v586 = vld [vmem:[%s4 + $0x520] sm:$0xff]
  %v587 = vld [vmem:[%s4 + $0x528] sm:$0xff]
  %v588 = vld [vmem:[%s4 + $0x530] sm:$0xff]
  %v589 = vld [vmem:[%s4 + $0x538] sm:$0xff]
  %v590 = vld [vmem:[%s4 + $0x540] sm:$0xff]
  %v591 = vld [vmem:[%s4 + $0x548] sm:$0xff]
  %v592 = vld [vmem:[%s4 + $0x550] sm:$0xff]
  %v593 = vld [vmem:[%s4 + $0x558] sm:$0xff]
  %v594 = vld [vmem:[%s4 + $0x560] sm:$0xff]
  %v595 = vld [vmem:[%s4 + $0x568] sm:$0xff]
  %v596 = vld [vmem:[%s4 + $0x570] sm:$0xff]
  %v597 = vld [vmem:[%s4 + $0x578] sm:$0xff]
  %v598 = vld [vmem:[%s4 + $0x580] sm:$0xff]
  %v599 = vld [vmem:[%s4 + $0x588] sm:$0xff]
  %v600 = vld [vmem:[%s4 + $0x590] sm:$0xff]
  %v601 = vld [vmem:[%s4 + $0x598] sm:$0xff]
  %v602 = vld [vmem:[%s4 + $0x5a0] sm:$0xff]
  %v603 = vld [vmem:[%s4 + $0x5a8] sm:$0xff]
  %v604 = vld [vmem:[%s4 + $0x5b0] sm:$0xff]
  %v605 = vld [vmem:[%s4 + $0x5b8] sm:$0xff]
  %v606 = vld [vmem:[%s4 + $0x5c0] sm:$0xff]
  %v607 = vld [vmem:[%s4 + $0x5c8] sm:$0xff]
  %v608 = vld [vmem:[%s4 + $0x5d0] sm:$0xff]
  %v609 = vld [vmem:[%s4 + $0x5d8] sm:$0xff]
  %v610 = vld [vmem:[%s4 + $0x5e0] sm:$0xff]
  %v611 = vld [vmem:[%s4 + $0x5e8] sm:$0xff]
  %v612 = vld [vmem:[%s4 + $0x5f0] sm:$0xff]
  %v613 = vld [vmem:[%s4 + $0x5f8] sm:$0xff]
  %v614 = vld [vmem:[%s4 + $0x600] sm:$0xff]
  %v615 = vld [vmem:[%s4 + $0x608] sm:$0xff]
  %v616 = vld [vmem:[%s4 + $0x610] sm:$0xff]
  %v617 = vld [vmem:[%s4 + $0x618] sm:$0xff]
  %v618 = vld [vmem:[%s4 + $0x620] sm:$0xff]
  %v619 = vld [vmem:[%s4 + $0x628] sm:$0xff]
  %v620 = vld [vmem:[%s4 + $0x630] sm:$0xff]
  %v621 = vld [vmem:[%s4 + $0x638] sm:$0xff]
  %v622 = vld [vmem:[%s4 + $0x640] sm:$0xff]
  %v623 = vld [vmem:[%s4 + $0x648] sm:$0xff]
  %v624 = vld [vmem:[%s4 + $0x650] sm:$0xff]
  %v625 = vld [vmem:[%s4 + $0x658] sm:$0xff]
  %v626 = vld [vmem:[%s4 + $0x660] sm:$0xff]
  %v627 = vld [vmem:[%s4 + $0x668] sm:$0xff]
  %v628 = vld [vmem:[%s4 + $0x670] sm:$0xff]
  %v629 = vld [vmem:[%s4 + $0x678] sm:$0xff]
  %v630 = vld [vmem:[%s4 + $0x680] sm:$0xff]
  %v631 = vld [vmem:[%s4 + $0x688] sm:$0xff]
  %v632 = vld [vmem:[%s4 + $0x690] sm:$0xff]
  %v633 = vld [vmem:[%s4 + $0x698] sm:$0xff]
  %v634 = vld [vmem:[%s4 + $0x6a0] sm:$0xff]
  %v635 = vld [vmem:[%s4 + $0x6a8] sm:$0xff]
  %v636 = vld [vmem:[%s4 + $0x6b0] sm:$0xff]
  %v637 = vld [vmem:[%s4 + $0x6b8] sm:$0xff]
  %v638 = vld [vmem:[%s4 + $0x6c0] sm:$0xff]
  %v639 = vld [vmem:[%s4 + $0x6c8] sm:$0xff]
  %v640 = vld [vmem:[%s4 + $0x6d0] sm:$0xff]
  %v641 = vld [vmem:[%s4 + $0x6d8] sm:$0xff]
  %v642 = vld [vmem:[%s4 + $0x6e0] sm:$0xff]
  %v643 = vld [vmem:[%s4 + $0x6e8] sm:$0xff]
  %v644 = vld [vmem:[%s4 + $0x6f0] sm:$0xff]
  %v645 = vld [vmem:[%s4 + $0x6f8] sm:$0xff]
  %v646 = vld [vmem:[%s4 + $0x700] sm:$0xff]
  %v647 = vld [vmem:[%s4 + $0x708] sm:$0xff]
  %v648 = vld [vmem:[%s4 + $0x710] sm:$0xff]
  %v649 = vld [vmem:[%s4 + $0x718] sm:$0xff]
  %v650 = vld [vmem:[%s4 + $0x720] sm:$0xff]
  %v651 = vld [vmem:[%s4 + $0x728] sm:$0xff]
  %v652 = vld [vmem:[%s4 + $0x730] sm:$0xff]
  %v653 = vld [vmem:[%s4 + $0x738] sm:$0xff]
  %v654 = vld [vmem:[%s4 + $0x740] sm:$0xff]
  %v655 = vld [vmem:[%s4 + $0x748] sm:$0xff]
  %v656 = vld [vmem:[%s4 + $0x750] sm:$0xff]
  %v657 = vld [vmem:[%s4 + $0x758] sm:$0xff]
  %v658 = vld [vmem:[%s4 + $0x760] sm:$0xff]
  %v659 = vld [vmem:[%s4 + $0x768] sm:$0xff]
  %v660 = vld [vmem:[%s4 + $0x770] sm:$0xff]
  %v661 = vld [vmem:[%s4 + $0x778] sm:$0xff]
  %v662 = vld [vmem:[%s4 + $0x780] sm:$0xff]
  %v663 = vld [vmem:[%s4 + $0x788] sm:$0xff]
  %v664 = vld [vmem:[%s4 + $0x790] sm:$0xff]
  %v665 = vld [vmem:[%s4 + $0x798] sm:$0xff]
  %v666 = vld [vmem:[%s4 + $0x7a0] sm:$0xff]
  %v667 = vld [vmem:[%s4 + $0x7a8] sm:$0xff]
  %v668 = vld [vmem:[%s4 + $0x7b0] sm:$0xff]
  %v669 = vld [vmem:[%s4 + $0x7b8] sm:$0xff]
  %v670 = vld [vmem:[%s4 + $0x7c0] sm:$0xff]
  %v671 = vld [vmem:[%s4 + $0x7c8] sm:$0xff]
  %v672 = vld [vmem:[%s4 + $0x7d0] sm:$0xff]
  %v673 = vld [vmem:[%s4 + $0x7d8] sm:$0xff]
  %v674 = vld [vmem:[%s4 + $0x7e0] sm:$0xff]
  %v675 = vld [vmem:[%s4 + $0x7e8] sm:$0xff]
  %v676 = vld [vmem:[%s4 + $0x7f0] sm:$0xff]
  %v677 = vld [vmem:[%s4 + $0x7f8] sm:$0xff]
  %v678 = vld [vmem:[%s4 + $0x800] sm:$0xff]
  %v679 = vld [vmem:[%s4 + $0x808] sm:$0xff]
  %v680 = vld [vmem:[%s4 + $0x810] sm:$0xff]
  %v681 = vld [vmem:[%s4 + $0x818] sm:$0xff]
  %v682 = vld [vmem:[%s4 + $0x820] sm:$0xff]
  %v683 = vld [vmem:[%s4 + $0x828] sm:$0xff]
  %v684 = vld [vmem:[%s4 + $0x830] sm:$0xff]
  %v685 = vld [vmem:[%s4 + $0x838] sm:$0xff]
  %v686 = vld [vmem:[%s4 + $0x840] sm:$0xff]
  %v687 = vld [vmem:[%s4 + $0x848] sm:$0xff]
  %v688 = vld [vmem:[%s4 + $0x850] sm:$0xff]
  %v689 = vld [vmem:[%s4 + $0x858] sm:$0xff]
  %v690 = vld [vmem:[%s4 + $0x860] sm:$0xff]
  %v691 = vld [vmem:[%s4 + $0x868] sm:$0xff]
  %v692 = vld [vmem:[%s4 + $0x870] sm:$0xff]
  %v693 = vld [vmem:[%s4 + $0x878] sm:$0xff]
  %v694 = vld [vmem:[%s4 + $0x880] sm:$0xff]
  %v695 = vld [vmem:[%s4 + $0x888] sm:$0xff]
  %v696 = vld [vmem:[%s4 + $0x890] sm:$0xff]
  %v697 = vld [vmem:[%s4 + $0x898] sm:$0xff]
  %v698 = vld [vmem:[%s4 + $0x8a0] sm:$0xff]
  %v699 = vld [vmem:[%s4 + $0x8a8] sm:$0xff]
  %v700 = vld [vmem:[%s4 + $0x8b0] sm:$0xff]
  %v701 = vld [vmem:[%s4 + $0x8b8] sm:$0xff]
  %v702 = vld [vmem:[%s4 + $0x8c0] sm:$0xff]
  %v703 = vld [vmem:[%s4 + $0x8c8] sm:$0xff]
  %v704 = vld [vmem:[%s4 + $0x8d0] sm:$0xff]
  %v705 = vld [vmem:[%s4 + $0x8d8] sm:$0xff]
  %v706 = vld [vmem:[%s4 + $0x8e0] sm:$0xff]
  %v707 = vld [vmem:[%s4 + $0x8e8] sm:$0xff]
  %v708 = vld [vmem:[%s4 + $0x8f0] sm:$0xff]
  %v709 = vld [vmem:[%s4 + $0x8f8] sm:$0xff]
  %v710 = vld [vmem:[%s4 + $0x900] sm:$0xff]
  %v711 = vld [vmem:[%s4 + $0x908] sm:$0xff]
  %v712 = vld [vmem:[%s4 + $0x910] sm:$0xff]
  %v713 = vld [vmem:[%s4 + $0x918] sm:$0xff]
  %v714 = vld [vmem:[%s4 + $0x920] sm:$0xff]
  %v715 = vld [vmem:[%s4 + $0x928] sm:$0xff]
  %v716 = vld [vmem:[%s4 + $0x930] sm:$0xff]
  %v717 = vld [vmem:[%s4 + $0x938] sm:$0xff]
  %v718 = vld [vmem:[%s4 + $0x940] sm:$0xff]
  %v719 = vld [vmem:[%s4 + $0x948] sm:$0xff]
  %v720 = vld [vmem:[%s4 + $0x950] sm:$0xff]
  %v721 = vld [vmem:[%s4 + $0x958] sm:$0xff]
  %v722 = vld [vmem:[%s4 + $0x960] sm:$0xff]
  %v723 = vld [vmem:[%s4 + $0x968] sm:$0xff]
  %v724 = vld [vmem:[%s4 + $0x970] sm:$0xff]
  %v725 = vld [vmem:[%s4 + $0x978] sm:$0xff]
  %v726 = vld [vmem:[%s4 + $0x980] sm:$0xff]
  %v727 = vld [vmem:[%s4 + $0x988] sm:$0xff]
  %v728 = vld [vmem:[%s4 + $0x990] sm:$0xff]
  %v729 = vld [vmem:[%s4 + $0x998] sm:$0xff]
  %v730 = vld [vmem:[%s4 + $0x9a0] sm:$0xff]
  %v731 = vld [vmem:[%s4 + $0x9a8] sm:$0xff]
  %v732 = vld [vmem:[%s4 + $0x9b0] sm:$0xff]
  %v733 = vld [vmem:[%s4 + $0x9b8] sm:$0xff]
  %v734 = vld [vmem:[%s4 + $0x9c0] sm:$0xff]
  %v735 = vld [vmem:[%s4 + $0x9c8] sm:$0xff]
  %v736 = vld [vmem:[%s4 + $0x9d0] sm:$0xff]
  %v737 = vld [vmem:[%s4 + $0x9d8] sm:$0xff]
  %v738 = vld [vmem:[%s4 + $0x9e0] sm:$0xff]
  %v739 = vld [vmem:[%s4 + $0x9e8] sm:$0xff]
  %v740 = vld [vmem:[%s4 + $0x9f0] sm:$0xff]
  %v741 = vld [vmem:[%s4 + $0x9f8] sm:$0xff]
  %v742 = vld [vmem:[%s4 + $0xa00] sm:$0xff]
  %v743 = vld [vmem:[%s4 + $0xa08] sm:$0xff]
  %v744 = vld [vmem:[%s4 + $0xa10] sm:$0xff]
  %v745 = vld [vmem:[%s4 + $0xa18] sm:$0xff]
  %v746 = vld [vmem:[%s4 + $0xa20] sm:$0xff]
  %v747 = vld [vmem:[%s4 + $0xa28] sm:$0xff]
  %v748 = vld [vmem:[%s4 + $0xa30] sm:$0xff]
  %v749 = vld [vmem:[%s4 + $0xa38] sm:$0xff]
  %v750 = vld [vmem:[%s4 + $0xa40] sm:$0xff]
  %v751 = vld [vmem:[%s4 + $0xa48] sm:$0xff]
  %v752 = vld [vmem:[%s4 + $0xa50] sm:$0xff]
  %v753 = vld [vmem:[%s4 + $0xa58] sm:$0xff]
  %v754 = vld [vmem:[%s4 + $0xa60] sm:$0xff]
  %v755 = vld [vmem:[%s4 + $0xa68] sm:$0xff]
  %v756 = vld [vmem:[%s4 + $0xa70] sm:$0xff]
  %v757 = vld [vmem:[%s4 + $0xa78] sm:$0xff]
  %v758 = vld [vmem:[%s4 + $0xa80] sm:$0xff]
  %v759 = vld [vmem:[%s4 + $0xa88] sm:$0xff]
  %v760 = vld [vmem:[%s4 + $0xa90] sm:$0xff]
  %v761 = vld [vmem:[%s4 + $0xa98] sm:$0xff]
  %v762 = vld [vmem:[%s4 + $0xaa0] sm:$0xff]
  %v763 = vld [vmem:[%s4 + $0xaa8] sm:$0xff]
  %v764 = vld [vmem:[%s4 + $0xab0] sm:$0xff]
  %v765 = vld [vmem:[%s4 + $0xab8] sm:$0xff]
  %v766 = vld [vmem:[%s4 + $0xac0] sm:$0xff]
  %v767 = vld [vmem:[%s4 + $0xac8] sm:$0xff]
  %v768 = vld [vmem:[%s4 + $0xad0] sm:$0xff]
  %v769 = vld [vmem:[%s4 + $0xad8] sm:$0xff]
  %v770 = vld [vmem:[%s4 + $0xae0] sm:$0xff]
  %v771 = vld [vmem:[%s4 + $0xae8] sm:$0xff]
  %v772 = vld [vmem:[%s4 + $0xaf0] sm:$0xff]
  %v773 = vld [vmem:[%s4 + $0xaf8] sm:$0xff]
  %v774 = vld [vmem:[%s4 + $0xb00] sm:$0xff]
  %v775 = vld [vmem:[%s4 + $0xb08] sm:$0xff]
  %v776 = vld [vmem:[%s4 + $0xb10] sm:$0xff]
  %v777 = vld [vmem:[%s4 + $0xb18] sm:$0xff]
  %v778 = vld [vmem:[%s4 + $0xb20] sm:$0xff]
  %v779 = vld [vmem:[%s4 + $0xb28] sm:$0xff]
  %v780 = vld [vmem:[%s4 + $0xb30] sm:$0xff]
  %v781 = vld [vmem:[%s4 + $0xb38] sm:$0xff]
  %v782 = vld [vmem:[%s4 + $0xb40] sm:$0xff]
  %v783 = vld [vmem:[%s4 + $0xb48] sm:$0xff]
  %v784 = vld [vmem:[%s4 + $0xb50] sm:$0xff]
  %v785 = vld [vmem:[%s4 + $0xb58] sm:$0xff]
  %v786 = vld [vmem:[%s4 + $0xb60] sm:$0xff]
  %v787 = vld [vmem:[%s4 + $0xb68] sm:$0xff]
  %v788 = vld [vmem:[%s4 + $0xb70] sm:$0xff]
  %v789 = vld [vmem:[%s4 + $0xb78] sm:$0xff]
  %v790 = vld [vmem:[%s4 + $0xb80] sm:$0xff]
  %v791 = vld [vmem:[%s4 + $0xb88] sm:$0xff]
  %v792 = vld [vmem:[%s4 + $0xb90] sm:$0xff]
  %v793 = vld [vmem:[%s4 + $0xb98] sm:$0xff]
  %v794 = vld [vmem:[%s4 + $0xba0] sm:$0xff]
  %v795 = vld [vmem:[%s4 + $0xba8] sm:$0xff]
  %v796 = vld [vmem:[%s4 + $0xbb0] sm:$0xff]
  %v797 = vld [vmem:[%s4 + $0xbb8] sm:$0xff]
  %v798 = vld [vmem:[%s4 + $0xbc0] sm:$0xff]
  %v799 = vld [vmem:[%s4 + $0xbc8] sm:$0xff]
  %v800 = vld [vmem:[%s4 + $0xbd0] sm:$0xff]
  %v801 = vld [vmem:[%s4 + $0xbd8] sm:$0xff]
  %v802 = vld [vmem:[%s4 + $0xbe0] sm:$0xff]
  %v803 = vld [vmem:[%s4 + $0xbe8] sm:$0xff]
  %v804 = vld [vmem:[%s4 + $0xbf0] sm:$0xff]
  %v805 = vld [vmem:[%s4 + $0xbf8] sm:$0xff]
  %v806 = vld [vmem:[%s4 + $0xc00] sm:$0xff]
  %v807 = vld [vmem:[%s4 + $0xc08] sm:$0xff]
  %v808 = vld [vmem:[%s4 + $0xc10] sm:$0xff]
  %v809 = vld [vmem:[%s4 + $0xc18] sm:$0xff]
  %v810 = vld [vmem:[%s4 + $0xc20] sm:$0xff]
  %v811 = vld [vmem:[%s4 + $0xc28] sm:$0xff]
  %v812 = vld [vmem:[%s4 + $0xc30] sm:$0xff]
  %v813 = vld [vmem:[%s4 + $0xc38] sm:$0xff]
  %v814 = vld [vmem:[%s4 + $0xc40] sm:$0xff]
  %v815 = vld [vmem:[%s4 + $0xc48] sm:$0xff]
  %v816 = vld [vmem:[%s4 + $0xc50] sm:$0xff]
  %v817 = vld [vmem:[%s4 + $0xc58] sm:$0xff]
  %v818 = vld [vmem:[%s4 + $0xc60] sm:$0xff]
  %v819 = vld [vmem:[%s4 + $0xc68] sm:$0xff]
  %v820 = vld [vmem:[%s4 + $0xc70] sm:$0xff]
  %v821 = vld [vmem:[%s4 + $0xc78] sm:$0xff]
  %v822 = vld [vmem:[%s4 + $0xc80] sm:$0xff]
  %v823 = vld [vmem:[%s4 + $0xc88] sm:$0xff]
  %v824 = vld [vmem:[%s4 + $0xc90] sm:$0xff]
  %v825 = vld [vmem:[%s4 + $0xc98] sm:$0xff]
  %v826 = vld [vmem:[%s4 + $0xca0] sm:$0xff]
  %v827 = vld [vmem:[%s4 + $0xca8] sm:$0xff]
  %v828 = vld [vmem:[%s4 + $0xcb0] sm:$0xff]
  %v829 = vld [vmem:[%s4 + $0xcb8] sm:$0xff]
  %v830 = vld [vmem:[%s4 + $0xcc0] sm:$0xff]
  %v831 = vld [vmem:[%s4 + $0xcc8] sm:$0xff]
  %v832 = vld [vmem:[%s4 + $0xcd0] sm:$0xff]
  %v833 = vld [vmem:[%s4 + $0xcd8] sm:$0xff]
  %v834 = vld [vmem:[%s4 + $0xce0] sm:$0xff]
  %v835 = vld [vmem:[%s4 + $0xce8] sm:$0xff]
  %v836 = vld [vmem:[%s4 + $0xcf0] sm:$0xff]
  %v837 = vld [vmem:[%s4 + $0xcf8] sm:$0xff]
  %v838 = vld [vmem:[%s4 + $0xd00] sm:$0xff]
  %v839 = vld [vmem:[%s4 + $0xd08] sm:$0xff]
  %v840 = vld [vmem:[%s4 + $0xd10] sm:$0xff]
  %v841 = vld [vmem:[%s4 + $0xd18] sm:$0xff]
  %v842 = vld [vmem:[%s4 + $0xd20] sm:$0xff]
  %v843 = vld [vmem:[%s4 + $0xd28] sm:$0xff]
  %v844 = vld [vmem:[%s4 + $0xd30] sm:$0xff]
  %v845 = vld [vmem:[%s4 + $0xd38] sm:$0xff]
  %v846 = vld [vmem:[%s4 + $0xd40] sm:$0xff]
  %v847 = vld [vmem:[%s4 + $0xd48] sm:$0xff]
  %v848 = vld [vmem:[%s4 + $0xd50] sm:$0xff]
  %v849 = vld [vmem:[%s4 + $0xd58] sm:$0xff]
  %v850 = vld [vmem:[%s4 + $0xd60] sm:$0xff]
  %v851 = vld [vmem:[%s4 + $0xd68] sm:$0xff]
  %v852 = vld [vmem:[%s4 + $0xd70] sm:$0xff]
  %v853 = vld [vmem:[%s4 + $0xd78] sm:$0xff]
  %v854 = vld [vmem:[%s4 + $0xd80] sm:$0xff]
  %v855 = vld [vmem:[%s4 + $0xd88] sm:$0xff]
  %v856 = vld [vmem:[%s4 + $0xd90] sm:$0xff]
  %v857 = vld [vmem:[%s4 + $0xd98] sm:$0xff]
  %v858 = vld [vmem:[%s4 + $0xda0] sm:$0xff]
  %v859 = vld [vmem:[%s4 + $0xda8] sm:$0xff]
  %v860 = vld [vmem:[%s4 + $0xdb0] sm:$0xff]
  %v861 = vld [vmem:[%s4 + $0xdb8] sm:$0xff]
  %v862 = vld [vmem:[%s4 + $0xdc0] sm:$0xff]
  %v863 = vld [vmem:[%s4 + $0xdc8] sm:$0xff]
  %v864 = vld [vmem:[%s4 + $0xdd0] sm:$0xff]
  %v865 = vld [vmem:[%s4 + $0xdd8] sm:$0xff]
  %v866 = vld [vmem:[%s4 + $0xde0] sm:$0xff]
  %v867 = vld [vmem:[%s4 + $0xde8] sm:$0xff]
  %v868 = vld [vmem:[%s4 + $0xdf0] sm:$0xff]
  %v869 = vld [vmem:[%s4 + $0xdf8] sm:$0xff]
  %v870 = vld [vmem:[%s4 + $0xe00] sm:$0xff]
  %v871 = vld [vmem:[%s4 + $0xe08] sm:$0xff]
  %v872 = vld [vmem:[%s4 + $0xe10] sm:$0xff]
  %v873 = vld [vmem:[%s4 + $0xe18] sm:$0xff]
  %v874 = vld [vmem:[%s4 + $0xe20] sm:$0xff]
  %v875 = vld [vmem:[%s4 + $0xe28] sm:$0xff]
  %v876 = vld [vmem:[%s4 + $0xe30] sm:$0xff]
  %v877 = vld [vmem:[%s4 + $0xe38] sm:$0xff]
  %v878 = vld [vmem:[%s4 + $0xe40] sm:$0xff]
  %v879 = vld [vmem:[%s4 + $0xe48] sm:$0xff]
  %v880 = vld [vmem:[%s4 + $0xe50] sm:$0xff]
  %v881 = vld [vmem:[%s4 + $0xe58] sm:$0xff]
  %v882 = vld [vmem:[%s4 + $0xe60] sm:$0xff]
  %v883 = vld [vmem:[%s4 + $0xe68] sm:$0xff]
  %v884 = vld [vmem:[%s4 + $0xe70] sm:$0xff]
  %v885 = vld [vmem:[%s4 + $0xe78] sm:$0xff]
  %v886 = vld [vmem:[%s4 + $0xe80] sm:$0xff]
  %v887 = vld [vmem:[%s4 + $0xe88] sm:$0xff]
  %v888 = vld [vmem:[%s4 + $0xe90] sm:$0xff]
  %v889 = vld [vmem:[%s4 + $0xe98] sm:$0xff]
  %v890 = vld [vmem:[%s4 + $0xea0] sm:$0xff]
  %v891 = vld [vmem:[%s4 + $0xea8] sm:$0xff]
  %v892 = vld [vmem:[%s4 + $0xeb0] sm:$0xff]
  %v893 = vld [vmem:[%s4 + $0xeb8] sm:$0xff]
  %v894 = vld [vmem:[%s4 + $0xec0] sm:$0xff]
  %v895 = vld [vmem:[%s4 + $0xec8] sm:$0xff]
  %v896 = vld [vmem:[%s4 + $0xed0] sm:$0xff]
  %v897 = vld [vmem:[%s4 + $0xed8] sm:$0xff]
  %v898 = vld [vmem:[%s4 + $0xee0] sm:$0xff]
  %v899 = vld [vmem:[%s4 + $0xee8] sm:$0xff]
  %v900 = vld [vmem:[%s4 + $0xef0] sm:$0xff]
  %v901 = vld [vmem:[%s4 + $0xef8] sm:$0xff]
  %v902 = vld [vmem:[%s4 + $0xf00] sm:$0xff]
  %v903 = vld [vmem:[%s4 + $0xf08] sm:$0xff]
  %v904 = vld [vmem:[%s4 + $0xf10] sm:$0xff]
  %v905 = vld [vmem:[%s4 + $0xf18] sm:$0xff]
  %v906 = vld [vmem:[%s4 + $0xf20] sm:$0xff]
  %v907 = vld [vmem:[%s4 + $0xf28] sm:$0xff]
  %v908 = vld [vmem:[%s4 + $0xf30] sm:$0xff]
  %v909 = vld [vmem:[%s4 + $0xf38] sm:$0xff]
  %v910 = vld [vmem:[%s4 + $0xf40] sm:$0xff]
  %v911 = vld [vmem:[%s4 + $0xf48] sm:$0xff]
  %v912 = vld [vmem:[%s4 + $0xf50] sm:$0xff]
  %v913 = vld [vmem:[%s4 + $0xf58] sm:$0xff]
  %v914 = vld [vmem:[%s4 + $0xf60] sm:$0xff]
  %v915 = vld [vmem:[%s4 + $0xf68] sm:$0xff]
  %v916 = vld [vmem:[%s4 + $0xf70] sm:$0xff]
  %v917 = vld [vmem:[%s4 + $0xf78] sm:$0xff]
  %v918 = vld [vmem:[%s4 + $0xf80] sm:$0xff]
  %v919 = vld [vmem:[%s4 + $0xf88] sm:$0xff]
  %v920 = vld [vmem:[%s4 + $0xf90] sm:$0xff]
  %v921 = vld [vmem:[%s4 + $0xf98] sm:$0xff]
  %v922 = vld [vmem:[%s4 + $0xfa0] sm:$0xff]
  %v923 = vld [vmem:[%s4 + $0xfa8] sm:$0xff]
  %v924 = vld [vmem:[%s4 + $0xfb0] sm:$0xff]
  %v925 = vld [vmem:[%s4 + $0xfb8] sm:$0xff]
  %v926 = vld [vmem:[%s4 + $0xfc0] sm:$0xff]
  %v927 = vld [vmem:[%s4 + $0xfc8] sm:$0xff]
  %v928 = vld [vmem:[%s4 + $0xfd0] sm:$0xff]
  %v929 = vld [vmem:[%s4 + $0xfd8] sm:$0xff]
  %v930 = vld [vmem:[%s4 + $0xfe0] sm:$0xff]
  %v931 = vld [vmem:[%s4 + $0xfe8] sm:$0xff]
  %v932 = vld [vmem:[%s4 + $0xff0] sm:$0xff]
  %v933 = vld [vmem:[%s4 + $0xff8] sm:$0xff]
  %v934 = vld [vmem:[%s4 + $0x1000] sm:$0xff]
  %v935 = vld [vmem:[%s4 + $0x1008] sm:$0xff]
  %v936 = vld [vmem:[%s4 + $0x1010] sm:$0xff]
  %v937 = vld [vmem:[%s4 + $0x1018] sm:$0xff]
  %v938 = vld [vmem:[%s4 + $0x1020] sm:$0xff]
  %v939 = vld [vmem:[%s4 + $0x1028] sm:$0xff]
  %v940 = vld [vmem:[%s4 + $0x1030] sm:$0xff]
  %v941 = vld [vmem:[%s4 + $0x1038] sm:$0xff]
  %v942 = vld [vmem:[%s4 + $0x1040] sm:$0xff]
  %v943 = vld [vmem:[%s4 + $0x1048] sm:$0xff]
  %v944 = vld [vmem:[%s4 + $0x1050] sm:$0xff]
  %v945 = vld [vmem:[%s4 + $0x1058] sm:$0xff]
  %v946 = vld [vmem:[%s4 + $0x1060] sm:$0xff]
  %v947 = vld [vmem:[%s4 + $0x1068] sm:$0xff]
  %v948 = vld [vmem:[%s4 + $0x1070] sm:$0xff]
  %v949 = vld [vmem:[%s4 + $0x1078] sm:$0xff]
  %v950 = vld [vmem:[%s4 + $0x1080] sm:$0xff]
  %v951 = vld [vmem:[%s4 + $0x1088] sm:$0xff]
  %v952 = vld [vmem:[%s4 + $0x1090] sm:$0xff]
  %v953 = vld [vmem:[%s4 + $0x1098] sm:$0xff]
  %v954 = vld [vmem:[%s4 + $0x10a0] sm:$0xff]
  %v955 = vld [vmem:[%s4 + $0x10a8] sm:$0xff]
  %v956 = vld [vmem:[%s4 + $0x10b0] sm:$0xff]
  %v957 = vld [vmem:[%s4 + $0x10b8] sm:$0xff]
  %v958 = vld [vmem:[%s4 + $0x10c0] sm:$0xff]
  %v959 = vld [vmem:[%s4 + $0x10c8] sm:$0xff]
  %v960 = vld [vmem:[%s4 + $0x10d0] sm:$0xff]
  %v961 = vld [vmem:[%s4 + $0x10d8] sm:$0xff]
  %v962 = vld [vmem:[%s4 + $0x10e0] sm:$0xff]
  %v963 = vld [vmem:[%s4 + $0x10e8] sm:$0xff]
  %v964 = vld [vmem:[%s4 + $0x10f0] sm:$0xff]
  %v965 = vld [vmem:[%s4 + $0x10f8] sm:$0xff]
  %v966 = vld [vmem:[%s4 + $0x1100] sm:$0xff]
  %v967 = vld [vmem:[%s4 + $0x1108] sm:$0xff]
  %v968 = vld [vmem:[%s4 + $0x1110] sm:$0xff]
  %v969 = vld [vmem:[%s4 + $0x1118] sm:$0xff]
  %v970 = vld [vmem:[%s4 + $0x1120] sm:$0xff]
  %v971 = vld [vmem:[%s4 + $0x1128] sm:$0xff]
  %v972 = vld [vmem:[%s4 + $0x1130] sm:$0xff]
  %v973 = vld [vmem:[%s4 + $0x1138] sm:$0xff]
  %v974 = vld [vmem:[%s4 + $0x1140] sm:$0xff]
  %v975 = vld [vmem:[%s4 + $0x1148] sm:$0xff]
  %v976 = vld [vmem:[%s4 + $0x1150] sm:$0xff]
  %v977 = vld [vmem:[%s4 + $0x1158] sm:$0xff]
  %v978 = vld [vmem:[%s4 + $0x1160] sm:$0xff]
  %v979 = vld [vmem:[%s4 + $0x1168] sm:$0xff]
  %v980 = vld [vmem:[%s4 + $0x1170] sm:$0xff]
  %v981 = vld [vmem:[%s4 + $0x1178] sm:$0xff]
  %v982 = vld [vmem:[%s4 + $0x1180] sm:$0xff]
  %v983 = vld [vmem:[%s4 + $0x1188] sm:$0xff]
  %v984 = vld [vmem:[%s4 + $0x1190] sm:$0xff]
  %v985 = vld [vmem:[%s4 + $0x1198] sm:$0xff]
  %v986 = vld [vmem:[%s4 + $0x11a0] sm:$0xff]
  %v987 = vld [vmem:[%s4 + $0x11a8] sm:$0xff]
  %v988 = vld [vmem:[%s4 + $0x11b0] sm:$0xff]
  %v989 = vld [vmem:[%s4 + $0x11b8] sm:$0xff]
  %v990 = vld [vmem:[%s4 + $0x11c0] sm:$0xff]
  %v991 = vld [vmem:[%s4 + $0x11c8] sm:$0xff]
  %v992 = vld [vmem:[%s4 + $0x11d0] sm:$0xff]
  %v993 = vld [vmem:[%s4 + $0x11d8] sm:$0xff]
  %v994 = vld [vmem:[%s4 + $0x11e0] sm:$0xff]
  %v995 = vld [vmem:[%s4 + $0x11e8] sm:$0xff]
  %v996 = vld [vmem:[%s4 + $0x11f0] sm:$0xff]
  %v997 = vld [vmem:[%s4 + $0x11f8] sm:$0xff]
  %v998 = vld [vmem:[%s4 + $0x1200] sm:$0xff]
  %v999 = vld [vmem:[%s4 + $0x1208] sm:$0xff]
  %v1000 = vld [vmem:[%s4 + $0x1210] sm:$0xff]
  %v1001 = vld [vmem:[%s4 + $0x1218] sm:$0xff]
  %v1002 = vld [vmem:[%s4 + $0x1220] sm:$0xff]
  %v1003 = vld [vmem:[%s4 + $0x1228] sm:$0xff]
  %v1004 = vld [vmem:[%s4 + $0x1230] sm:$0xff]
  %v1005 = vld [vmem:[%s4 + $0x1238] sm:$0xff]
  %v1006 = vld [vmem:[%s4 + $0x1240] sm:$0xff]
  %v1007 = vld [vmem:[%s4 + $0x1248] sm:$0xff]
  %v1008 = vld [vmem:[%s4 + $0x1250] sm:$0xff]
  %v1009 = vld [vmem:[%s4 + $0x1258] sm:$0xff]
  %v1010 = vld [vmem:[%s4 + $0x1260] sm:$0xff]
  %v1011 = vld [vmem:[%s4 + $0x1268] sm:$0xff]
  %v1012 = vld [vmem:[%s4 + $0x1270] sm:$0xff]
  %v1013 = vld [vmem:[%s4 + $0x1278] sm:$0xff]
  %v1014 = vld [vmem:[%s4 + $0x1280] sm:$0xff]
  %v1015 = vld [vmem:[%s4 + $0x1288] sm:$0xff]
  %v1016 = vld [vmem:[%s4 + $0x1290] sm:$0xff]
  %v1017 = vld [vmem:[%s4 + $0x1298] sm:$0xff]
  %v1018 = vld [vmem:[%s4 + $0x12a0] sm:$0xff]
  %v1019 = vld [vmem:[%s4 + $0x12a8] sm:$0xff]
  %v1020 = vld [vmem:[%s4 + $0x12b0] sm:$0xff]
  %v1021 = vld [vmem:[%s4 + $0x12b8] sm:$0xff]
  %v1022 = vld [vmem:[%s4 + $0x12c0] sm:$0xff]
  %v1023 = vld [vmem:[%s4 + $0x12c8] sm:$0xff]
  %v1024 = vld [vmem:[%s4 + $0x12d0] sm:$0xff]
  %v1025 = vld [vmem:[%s4 + $0x12d8] sm:$0xff]
  %v1026 = vld [vmem:[%s4 + $0x12e0] sm:$0xff]
  %v1027 = vld [vmem:[%s4 + $0x12e8] sm:$0xff]
  %v1028 = vld [vmem:[%s4 + $0x12f0] sm:$0xff]
  %v1029 = vld [vmem:[%s4 + $0x12f8] sm:$0xff]
  %v1030 = vld [vmem:[%s4 + $0x1300] sm:$0xff]
  %v1031 = vld [vmem:[%s4 + $0x1308] sm:$0xff]
  %v1032 = vld [vmem:[%s4 + $0x1310] sm:$0xff]
  %v1033 = vld [vmem:[%s4 + $0x1318] sm:$0xff]
  %v1034 = vld [vmem:[%s4 + $0x1320] sm:$0xff]
  %v1035 = vld [vmem:[%s4 + $0x1328] sm:$0xff]
  %v1036 = vld [vmem:[%s4 + $0x1330] sm:$0xff]
  %v1037 = vld [vmem:[%s4 + $0x1338] sm:$0xff]
  %v1038 = vld [vmem:[%s4 + $0x1340] sm:$0xff]
  %v1039 = vld [vmem:[%s4 + $0x1348] sm:$0xff]
  %v1040 = vld [vmem:[%s4 + $0x1350] sm:$0xff]
  %v1041 = vld [vmem:[%s4 + $0x1358] sm:$0xff]
  %v1042 = vld [vmem:[%s4 + $0x1360] sm:$0xff]
  %v1043 = vld [vmem:[%s4 + $0x1368] sm:$0xff]
  %v1044 = vld [vmem:[%s4 + $0x1370] sm:$0xff]
  %v1045 = vld [vmem:[%s4 + $0x1378] sm:$0xff]
  %v1046 = vld [vmem:[%s4 + $0x1380] sm:$0xff]
  %v1047 = vld [vmem:[%s4 + $0x1388] sm:$0xff]
  %v1048 = vld [vmem:[%s4 + $0x1390] sm:$0xff]
  %v1049 = vld [vmem:[%s4 + $0x1398] sm:$0xff]
  %v1050 = vld [vmem:[%s4 + $0x13a0] sm:$0xff]
  %v1051 = vld [vmem:[%s4 + $0x13a8] sm:$0xff]
  %v1052 = vld [vmem:[%s4 + $0x13b0] sm:$0xff]
  %v1053 = vld [vmem:[%s4 + $0x13b8] sm:$0xff]
  %v1054 = vld [vmem:[%s4 + $0x13c0] sm:$0xff]
  %v1055 = vld [vmem:[%s4 + $0x13c8] sm:$0xff]
  %v1056 = vld [vmem:[%s4 + $0x13d0] sm:$0xff]
  %v1057 = vld [vmem:[%s4 + $0x13d8] sm:$0xff]
  %v1058 = vld [vmem:[%s4 + $0x13e0] sm:$0xff]
  %v1059 = vld [vmem:[%s4 + $0x13e8] sm:$0xff]
  %v1060 = vld [vmem:[%s4 + $0x13f0] sm:$0xff]
  %v1061 = vld [vmem:[%s4 + $0x13f8] sm:$0xff]
  %v1062 = vld [vmem:[%s4 + $0x1400] sm:$0xff]
  %v1063 = vld [vmem:[%s4 + $0x1408] sm:$0xff]
  %v1064 = vld [vmem:[%s4 + $0x1410] sm:$0xff]
  %v1065 = vld [vmem:[%s4 + $0x1418] sm:$0xff]
  %v1066 = vld [vmem:[%s4 + $0x1420] sm:$0xff]
  %v1067 = vld [vmem:[%s4 + $0x1428] sm:$0xff]
  %v1068 = vld [vmem:[%s4 + $0x1430] sm:$0xff]
  %v1069 = vld [vmem:[%s4 + $0x1438] sm:$0xff]
  %v1070 = vld [vmem:[%s4 + $0x1440] sm:$0xff]
  %v1071 = vld [vmem:[%s4 + $0x1448] sm:$0xff]
  %v1072 = vld [vmem:[%s4 + $0x1450] sm:$0xff]
  %v1073 = vld [vmem:[%s4 + $0x1458] sm:$0xff]
  %v1074 = vld [vmem:[%s4 + $0x1460] sm:$0xff]
  %v1075 = vld [vmem:[%s4 + $0x1468] sm:$0xff]
  %v1076 = vld [vmem:[%s4 + $0x1470] sm:$0xff]
  %v1077 = vld [vmem:[%s4 + $0x1478] sm:$0xff]
  %v1078 = vld [vmem:[%s4 + $0x1480] sm:$0xff]
  %v1079 = vld [vmem:[%s4 + $0x1488] sm:$0xff]
  %v1080 = vld [vmem:[%s4 + $0x1490] sm:$0xff]
  %v1081 = vld [vmem:[%s4 + $0x1498] sm:$0xff]
  %v1082 = vld [vmem:[%s4 + $0x14a0] sm:$0xff]
  %v1083 = vld [vmem:[%s4 + $0x14a8] sm:$0xff]
  %v1084 = vld [vmem:[%s4 + $0x14b0] sm:$0xff]
  %v1085 = vld [vmem:[%s4 + $0x14b8] sm:$0xff]
  %v1086 = vld [vmem:[%s4 + $0x14c0] sm:$0xff]
  %v1087 = vld [vmem:[%s4 + $0x14c8] sm:$0xff]
  %v1088 = vld [vmem:[%s4 + $0x14d0] sm:$0xff]
  %v1089 = vld [vmem:[%s4 + $0x14d8] sm:$0xff]
  %v1090 = vld [vmem:[%s4 + $0x14e0] sm:$0xff]
  %v1091 = vld [vmem:[%s4 + $0x14e8] sm:$0xff]
  %v1092 = vld [vmem:[%s4 + $0x14f0] sm:$0xff]
  %v1093 = vld [vmem:[%s4 + $0x14f8] sm:$0xff]
  %v1094 = vld [vmem:[%s4 + $0x1500] sm:$0xff]
  %v1095 = vld [vmem:[%s4 + $0x1508] sm:$0xff]
  %v1096 = vld [vmem:[%s4 + $0x1510] sm:$0xff]
  %v1097 = vld [vmem:[%s4 + $0x1518] sm:$0xff]
  %v1098 = vld [vmem:[%s4 + $0x1520] sm:$0xff]
  %v1099 = vld [vmem:[%s4 + $0x1528] sm:$0xff]
  %v1100 = vld [vmem:[%s4 + $0x1530] sm:$0xff]
  %v1101 = vld [vmem:[%s4 + $0x1538] sm:$0xff]
  %v1102 = vld [vmem:[%s4 + $0x1540] sm:$0xff]
  %v1103 = vld [vmem:[%s4 + $0x1548] sm:$0xff]
  %v1104 = vld [vmem:[%s4 + $0x1550] sm:$0xff]
  %v1105 = vld [vmem:[%s4 + $0x1558] sm:$0xff]
  %v1106 = vld [vmem:[%s4 + $0x1560] sm:$0xff]
  %v1107 = vld [vmem:[%s4 + $0x1568] sm:$0xff]
  %v1108 = vld [vmem:[%s4 + $0x1570] sm:$0xff]
  %v1109 = vld [vmem:[%s4 + $0x1578] sm:$0xff]
  %v1110 = vld [vmem:[%s4 + $0x1580] sm:$0xff]
  %v1111 = vld [vmem:[%s4 + $0x1588] sm:$0xff]
  %v1112 = vld [vmem:[%s4 + $0x1590] sm:$0xff]
  %v1113 = vld [vmem:[%s4 + $0x1598] sm:$0xff]
  %v1114 = vld [vmem:[%s4 + $0x15a0] sm:$0xff]
  %v1115 = vld [vmem:[%s4 + $0x15a8] sm:$0xff]
  %v1116 = vld [vmem:[%s4 + $0x15b0] sm:$0xff]
  %v1117 = vld [vmem:[%s4 + $0x15b8] sm:$0xff]
  %v1118 = vld [vmem:[%s4 + $0x15c0] sm:$0xff]
  %v1119 = vld [vmem:[%s4 + $0x15c8] sm:$0xff]
  %v1120 = vld [vmem:[%s4 + $0x15d0] sm:$0xff]
  %v1121 = vld [vmem:[%s4 + $0x15d8] sm:$0xff]
  %v1122 = vld [vmem:[%s4 + $0x15e0] sm:$0xff]
  %v1123 = vld [vmem:[%s4 + $0x15e8] sm:$0xff]
  %v1124 = vld [vmem:[%s4 + $0x15f0] sm:$0xff]
  %v1125 = vld [vmem:[%s4 + $0x15f8] sm:$0xff]
  %v1126 = vld [vmem:[%s4 + $0x1600] sm:$0xff]
  %v1127 = vld [vmem:[%s4 + $0x1608] sm:$0xff]
  %v1128 = vld [vmem:[%s4 + $0x1610] sm:$0xff]
  %v1129 = vld [vmem:[%s4 + $0x1618] sm:$0xff]
  %v1130 = vld [vmem:[%s4 + $0x1620] sm:$0xff]
  %v1131 = vld [vmem:[%s4 + $0x1628] sm:$0xff]
  %v1132 = vld [vmem:[%s4 + $0x1630] sm:$0xff]
  %v1133 = vld [vmem:[%s4 + $0x1638] sm:$0xff]
  %v1134 = vld [vmem:[%s4 + $0x1640] sm:$0xff]
  %v1135 = vld [vmem:[%s4 + $0x1648] sm:$0xff]
  %v1136 = vld [vmem:[%s4 + $0x1650] sm:$0xff]
  %v1137 = vld [vmem:[%s4 + $0x1658] sm:$0xff]
  %v1138 = vld [vmem:[%s4 + $0x1660] sm:$0xff]
  %v1139 = vld [vmem:[%s4 + $0x1668] sm:$0xff]
  %v1140 = vld [vmem:[%s4 + $0x1670] sm:$0xff]
  %v1141 = vld [vmem:[%s4 + $0x1678] sm:$0xff]
  %v1142 = vld [vmem:[%s4 + $0x1680] sm:$0xff]
  %v1143 = vld [vmem:[%s4 + $0x1688] sm:$0xff]
  %v1144 = vld [vmem:[%s4 + $0x1690] sm:$0xff]
  %v1145 = vld [vmem:[%s4 + $0x1698] sm:$0xff]
  %v1146 = vld [vmem:[%s4 + $0x16a0] sm:$0xff]
  %v1147 = vld [vmem:[%s4 + $0x16a8] sm:$0xff]
  %v1148 = vld [vmem:[%s4 + $0x16b0] sm:$0xff]
  %v1149 = vld [vmem:[%s4 + $0x16b8] sm:$0xff]
  %v1150 = vld [vmem:[%s4 + $0x16c0] sm:$0xff]
  %v1151 = vld [vmem:[%s4 + $0x16c8] sm:$0xff]
  %v1152 = vld [vmem:[%s4 + $0x16d0] sm:$0xff]
  %v1153 = vld [vmem:[%s4 + $0x16d8] sm:$0xff]
  %v1154 = vld [vmem:[%s4 + $0x16e0] sm:$0xff]
  %v1155 = vld [vmem:[%s4 + $0x16e8] sm:$0xff]
  %v1156 = vld [vmem:[%s4 + $0x16f0] sm:$0xff]
  %v1157 = vld [vmem:[%s4 + $0x16f8] sm:$0xff]
  %v1158 = vld [vmem:[%s4 + $0x1700] sm:$0xff]
  %v1159 = vld [vmem:[%s4 + $0x1708] sm:$0xff]
  %v1160 = vld [vmem:[%s4 + $0x1710] sm:$0xff]
  %v1161 = vld [vmem:[%s4 + $0x1718] sm:$0xff]
  %v1162 = vld [vmem:[%s4 + $0x1720] sm:$0xff]
  %v1163 = vld [vmem:[%s4 + $0x1728] sm:$0xff]
  %v1164 = vld [vmem:[%s4 + $0x1730] sm:$0xff]
  %v1165 = vld [vmem:[%s4 + $0x1738] sm:$0xff]
  %v1166 = vld [vmem:[%s4 + $0x1740] sm:$0xff]
  %v1167 = vld [vmem:[%s4 + $0x1748] sm:$0xff]
  %v1168 = vld [vmem:[%s4 + $0x1750] sm:$0xff]
  %v1169 = vld [vmem:[%s4 + $0x1758] sm:$0xff]
  %v1170 = vld [vmem:[%s4 + $0x1760] sm:$0xff]
  %v1171 = vld [vmem:[%s4 + $0x1768] sm:$0xff]
  %v1172 = vld [vmem:[%s4 + $0x1770] sm:$0xff]
  %v1173 = vld [vmem:[%s4 + $0x1778] sm:$0xff]
  %v1174 = vld [vmem:[%s4 + $0x1780] sm:$0xff]
  %v1175 = vld [vmem:[%s4 + $0x1788] sm:$0xff]
  %v1176 = vld [vmem:[%s4 + $0x1790] sm:$0xff]
  %v1177 = vld [vmem:[%s4 + $0x1798] sm:$0xff]
  %v1178 = vld [vmem:[%s4 + $0x17a0] sm:$0xff]
  %v1179 = vld [vmem:[%s4 + $0x17a8] sm:$0xff]
  %v1180 = vld [vmem:[%s4 + $0x17b0] sm:$0xff]
  %v1181 = vld [vmem:[%s4 + $0x17b8] sm:$0xff]
  %v1182 = vld [vmem:[%s4 + $0x17c0] sm:$0xff]
  %v1183 = vld [vmem:[%s4 + $0x17c8] sm:$0xff]
  %v1184 = vld [vmem:[%s4 + $0x17d0] sm:$0xff]
  %v1185 = vld [vmem:[%s4 + $0x17d8] sm:$0xff]
  %v1186 = vld [vmem:[%s4 + $0x17e0] sm:$0xff]
  %v1187 = vld [vmem:[%s4 + $0x17e8] sm:$0xff]
  %v1188 = vld [vmem:[%s4 + $0x17f0] sm:$0xff]
  %v1189 = vld [vmem:[%s4 + $0x17f8] sm:$0xff]
  %v1190 = vld [vmem:[%s4 + $0x1800] sm:$0xff]
  %v1191 = vld [vmem:[%s4 + $0x1808] sm:$0xff]
  %v1192 = vld [vmem:[%s4 + $0x1810] sm:$0xff]
  %v1193 = vld [vmem:[%s4 + $0x1818] sm:$0xff]
  %v1194 = vld [vmem:[%s4 + $0x1820] sm:$0xff]
  %v1195 = vld [vmem:[%s4 + $0x1828] sm:$0xff]
  %v1196 = vld [vmem:[%s4 + $0x1830] sm:$0xff]
  %v1197 = vld [vmem:[%s4 + $0x1838] sm:$0xff]
  %v1198 = vld [vmem:[%s4 + $0x1840] sm:$0xff]
  %v1199 = vld [vmem:[%s4 + $0x1848] sm:$0xff]
  %v1200 = vld [vmem:[%s4 + $0x1850] sm:$0xff]
  %v1201 = vld [vmem:[%s4 + $0x1858] sm:$0xff]
  %v1202 = vld [vmem:[%s4 + $0x1860] sm:$0xff]
  %v1203 = vld [vmem:[%s4 + $0x1868] sm:$0xff]
  %v1204 = vld [vmem:[%s4 + $0x1870] sm:$0xff]
  %v1205 = vld [vmem:[%s4 + $0x1878] sm:$0xff]
  %v1206 = vld [vmem:[%s4 + $0x1880] sm:$0xff]
  %v1207 = vld [vmem:[%s4 + $0x1888] sm:$0xff]
  %v1208 = vld [vmem:[%s4 + $0x1890] sm:$0xff]
  %v1209 = vld [vmem:[%s4 + $0x1898] sm:$0xff]
  %v1210 = vld [vmem:[%s4 + $0x18a0] sm:$0xff]
  %v1211 = vld [vmem:[%s4 + $0x18a8] sm:$0xff]
  %v1212 = vld [vmem:[%s4 + $0x18b0] sm:$0xff]
  %v1213 = vld [vmem:[%s4 + $0x18b8] sm:$0xff]
  %v1214 = vld [vmem:[%s4 + $0x18c0] sm:$0xff]
  %v1215 = vld [vmem:[%s4 + $0x18c8] sm:$0xff]
  %v1216 = vld [vmem:[%s4 + $0x18d0] sm:$0xff]
  %v1217 = vld [vmem:[%s4 + $0x18d8] sm:$0xff]
  %v1218 = vld [vmem:[%s4 + $0x18e0] sm:$0xff]
  %v1219 = vld [vmem:[%s4 + $0x18e8] sm:$0xff]
  %v1220 = vld [vmem:[%s4 + $0x18f0] sm:$0xff]
  %v1221 = vld [vmem:[%s4 + $0x18f8] sm:$0xff]
  %v1222 = vld [vmem:[%s4 + $0x1900] sm:$0xff]
  %v1223 = vld [vmem:[%s4 + $0x1908] sm:$0xff]
  %v1224 = vld [vmem:[%s4 + $0x1910] sm:$0xff]
  %v1225 = vld [vmem:[%s4 + $0x1918] sm:$0xff]
  %v1226 = vld [vmem:[%s4 + $0x1920] sm:$0xff]
  %v1227 = vld [vmem:[%s4 + $0x1928] sm:$0xff]
  %v1228 = vld [vmem:[%s4 + $0x1930] sm:$0xff]
  %v1229 = vld [vmem:[%s4 + $0x1938] sm:$0xff]
  %v1230 = vld [vmem:[%s4 + $0x1940] sm:$0xff]
  %v1231 = vld [vmem:[%s4 + $0x1948] sm:$0xff]
  %v1232 = vld [vmem:[%s4 + $0x1950] sm:$0xff]
  %v1233 = vld [vmem:[%s4 + $0x1958] sm:$0xff]
  %v1234 = vld [vmem:[%s4 + $0x1960] sm:$0xff]
  %v1235 = vld [vmem:[%s4 + $0x1968] sm:$0xff]
  %v1236 = vld [vmem:[%s4 + $0x1970] sm:$0xff]
  %v1237 = vld [vmem:[%s4 + $0x1978] sm:$0xff]
  %v1238 = vld [vmem:[%s4 + $0x1980] sm:$0xff]
  %v1239 = vld [vmem:[%s4 + $0x1988] sm:$0xff]
  %v1240 = vld [vmem:[%s4 + $0x1990] sm:$0xff]
  %v1241 = vld [vmem:[%s4 + $0x1998] sm:$0xff]
  %v1242 = vld [vmem:[%s4 + $0x19a0] sm:$0xff]
  %v1243 = vld [vmem:[%s4 + $0x19a8] sm:$0xff]
  %v1244 = vld [vmem:[%s4 + $0x19b0] sm:$0xff]
  %v1245 = vld [vmem:[%s4 + $0x19b8] sm:$0xff]
  %v1246 = vld [vmem:[%s4 + $0x19c0] sm:$0xff]
  %v1247 = vld [vmem:[%s4 + $0x19c8] sm:$0xff]
  %v1248 = vld [vmem:[%s4 + $0x19d0] sm:$0xff]
  %v1249 = vld [vmem:[%s4 + $0x19d8] sm:$0xff]
  %v1250 = vld [vmem:[%s4 + $0x19e0] sm:$0xff]
  %v1251 = vld [vmem:[%s4 + $0x19e8] sm:$0xff]
  %v1252 = vld [vmem:[%s4 + $0x19f0] sm:$0xff]
  %v1253 = vld [vmem:[%s4 + $0x19f8] sm:$0xff]
  %v1254 = vld [vmem:[%s4 + $0x1a00] sm:$0xff]
  %v1255 = vld [vmem:[%s4 + $0x1a08] sm:$0xff]
  %v1256 = vld [vmem:[%s4 + $0x1a10] sm:$0xff]
  %v1257 = vld [vmem:[%s4 + $0x1a18] sm:$0xff]
  %v1258 = vld [vmem:[%s4 + $0x1a20] sm:$0xff]
  %v1259 = vld [vmem:[%s4 + $0x1a28] sm:$0xff]
  %v1260 = vld [vmem:[%s4 + $0x1a30] sm:$0xff]
  %v1261 = vld [vmem:[%s4 + $0x1a38] sm:$0xff]
  %v1262 = vld [vmem:[%s4 + $0x1a40] sm:$0xff]
  %v1263 = vld [vmem:[%s4 + $0x1a48] sm:$0xff]
  %v1264 = vld [vmem:[%s4 + $0x1a50] sm:$0xff]
  %v1265 = vld [vmem:[%s4 + $0x1a58] sm:$0xff]
  %v1266 = vld [vmem:[%s4 + $0x1a60] sm:$0xff]
  %v1267 = vld [vmem:[%s4 + $0x1a68] sm:$0xff]
  %v1268 = vld [vmem:[%s4 + $0x1a70] sm:$0xff]
  %v1269 = vld [vmem:[%s4 + $0x1a78] sm:$0xff]
  %v1270 = vld [vmem:[%s4 + $0x1a80] sm:$0xff]
  %v1271 = vld [vmem:[%s4 + $0x1a88] sm:$0xff]
  %v1272 = vld [vmem:[%s4 + $0x1a90] sm:$0xff]
  %v1273 = vld [vmem:[%s4 + $0x1a98] sm:$0xff]
  %v1274 = vld [vmem:[%s4 + $0x1aa0] sm:$0xff]
  %v1275 = vld [vmem:[%s4 + $0x1aa8] sm:$0xff]
  %v1276 = vld [vmem:[%s4 + $0x1ab0] sm:$0xff]
  %v1277 = vld [vmem:[%s4 + $0x1ab8] sm:$0xff]
  %v1278 = vld [vmem:[%s4 + $0x1ac0] sm:$0xff]
  %v1279 = vld [vmem:[%s4 + $0x1ac8] sm:$0xff]
  %v1280 = vld [vmem:[%s4 + $0x1ad0] sm:$0xff]
  %v1281 = vld [vmem:[%s4 + $0x1ad8] sm:$0xff]
  %v1282 = vld [vmem:[%s4 + $0x1ae0] sm:$0xff]
  %v1283 = vld [vmem:[%s4 + $0x1ae8] sm:$0xff]
  %v1284 = vld [vmem:[%s4 + $0x1af0] sm:$0xff]
  %v1285 = vld [vmem:[%s4 + $0x1af8] sm:$0xff]
  %v1286 = vld [vmem:[%s4 + $0x1b00] sm:$0xff]
  %v1287 = vld [vmem:[%s4 + $0x1b08] sm:$0xff]
  %v1288 = vld [vmem:[%s4 + $0x1b10] sm:$0xff]
  %v1289 = vld [vmem:[%s4 + $0x1b18] sm:$0xff]
  %v1290 = vld [vmem:[%s4 + $0x1b20] sm:$0xff]
  %v1291 = vld [vmem:[%s4 + $0x1b28] sm:$0xff]
  %v1292 = vld [vmem:[%s4 + $0x1b30] sm:$0xff]
  %v1293 = vld [vmem:[%s4 + $0x1b38] sm:$0xff]
  %v1294 = vld [vmem:[%s4 + $0x1b40] sm:$0xff]
  %v1295 = vld [vmem:[%s4 + $0x1b48] sm:$0xff]
  %v1296 = vld [vmem:[%s4 + $0x1b50] sm:$0xff]
  %v1297 = vld [vmem:[%s4 + $0x1b58] sm:$0xff]
  %v1298 = vld [vmem:[%s4 + $0x1b60] sm:$0xff]
  %v1299 = vld [vmem:[%s4 + $0x1b68] sm:$0xff]
  %v1300 = vld [vmem:[%s4 + $0x1b70] sm:$0xff]
  %v1301 = vld [vmem:[%s4 + $0x1b78] sm:$0xff]
  %v1302 = vld [vmem:[%s4 + $0x1b80] sm:$0xff]
  %v1303 = vld [vmem:[%s4 + $0x1b88] sm:$0xff]
  %v1304 = vld [vmem:[%s4 + $0x1b90] sm:$0xff]
  %v1305 = vld [vmem:[%s4 + $0x1b98] sm:$0xff]
  %v1306 = vld [vmem:[%s4 + $0x1ba0] sm:$0xff]
  %v1307 = vld [vmem:[%s4 + $0x1ba8] sm:$0xff]
  %v1308 = vld [vmem:[%s4 + $0x1bb0] sm:$0xff]
  %v1309 = vld [vmem:[%s4 + $0x1bb8] sm:$0xff]
  %v1310 = vld [vmem:[%s4 + $0x1bc0] sm:$0xff]
  %v1311 = vld [vmem:[%s4 + $0x1bc8] sm:$0xff]
  %v1312 = vld [vmem:[%s4 + $0x1bd0] sm:$0xff]
  %v1313 = vld [vmem:[%s4 + $0x1bd8] sm:$0xff]
  %v1314 = vld [vmem:[%s4 + $0x1be0] sm:$0xff]
  %v1315 = vld [vmem:[%s4 + $0x1be8] sm:$0xff]
  %v1316 = vld [vmem:[%s4 + $0x1bf0] sm:$0xff]
  %v1317 = vld [vmem:[%s4 + $0x1bf8] sm:$0xff]
  %v2214 = vunpack.c.l.b16 %v422
  %v2215 = vunpack.c.h.b16 %v422
  %v2216 = vunpack.c.l.b16 %v423
  %v2217 = vunpack.c.h.b16 %v423
  %v2218 = vunpack.c.l.b16 %v424
  %v2219 = vunpack.c.h.b16 %v424
  %v2220 = vunpack.c.l.b16 %v425
  %v2221 = vunpack.c.h.b16 %v425
  %v2222 = vunpack.c.l.b16 %v426
  %v2223 = vunpack.c.h.b16 %v426
  %v2224 = vunpack.c.l.b16 %v427
  %v2225 = vunpack.c.h.b16 %v427
  %v2226 = vunpack.c.l.b16 %v428
  %v2227 = vunpack.c.h.b16 %v428
  %v2228 = vunpack.c.l.b16 %v429
  %v2229 = vunpack.c.h.b16 %v429
  %v2230 = vunpack.c.l.b16 %v430
  %v2231 = vunpack.c.h.b16 %v430
  %v2232 = vunpack.c.l.b16 %v431
  %v2233 = vunpack.c.h.b16 %v431
  %v2234 = vunpack.c.l.b16 %v432
  %v2235 = vunpack.c.h.b16 %v432
  %v2236 = vunpack.c.l.b16 %v433
  %v2237 = vunpack.c.h.b16 %v433
  %v2238 = vunpack.c.l.b16 %v434
  %v2239 = vunpack.c.h.b16 %v434
  %v2240 = vunpack.c.l.b16 %v435
  %v2241 = vunpack.c.h.b16 %v435
  %v2242 = vunpack.c.l.b16 %v436
  %v2243 = vunpack.c.h.b16 %v436
  %v2244 = vunpack.c.l.b16 %v437
  %v2245 = vunpack.c.h.b16 %v437
  %v2246 = vunpack.c.l.b16 %v438
  %v2247 = vunpack.c.h.b16 %v438
  %v2248 = vunpack.c.l.b16 %v439
  %v2249 = vunpack.c.h.b16 %v439
  %v2250 = vunpack.c.l.b16 %v440
  %v2251 = vunpack.c.h.b16 %v440
  %v2252 = vunpack.c.l.b16 %v441
  %v2253 = vunpack.c.h.b16 %v441
  %v2254 = vunpack.c.l.b16 %v442
  %v2255 = vunpack.c.h.b16 %v442
  %v2256 = vunpack.c.l.b16 %v443
  %v2257 = vunpack.c.h.b16 %v443
  %v2258 = vunpack.c.l.b16 %v444
  %v2259 = vunpack.c.h.b16 %v444
  %v2260 = vunpack.c.l.b16 %v445
  %v2261 = vunpack.c.h.b16 %v445
  %v2262 = vunpack.c.l.b16 %v446
  %v2263 = vunpack.c.h.b16 %v446
  %v2264 = vunpack.c.l.b16 %v447
  %v2265 = vunpack.c.h.b16 %v447
  %v2266 = vunpack.c.l.b16 %v448
  %v2267 = vunpack.c.h.b16 %v448
  %v2268 = vunpack.c.l.b16 %v449
  %v2269 = vunpack.c.h.b16 %v449
  %v2270 = vunpack.c.l.b16 %v450
  %v2271 = vunpack.c.h.b16 %v450
  %v2272 = vunpack.c.l.b16 %v451
  %v2273 = vunpack.c.h.b16 %v451
  %v2274 = vunpack.c.l.b16 %v452
  %v2275 = vunpack.c.h.b16 %v452
  %v2276 = vunpack.c.l.b16 %v453
  %v2277 = vunpack.c.h.b16 %v453
  %v2278 = vunpack.c.l.b16 %v454
  %v2279 = vunpack.c.h.b16 %v454
  %v2280 = vunpack.c.l.b16 %v455
  %v2281 = vunpack.c.h.b16 %v455
  %v2282 = vunpack.c.l.b16 %v456
  %v2283 = vunpack.c.h.b16 %v456
  %v2284 = vunpack.c.l.b16 %v457
  %v2285 = vunpack.c.h.b16 %v457
  %v2286 = vunpack.c.l.b16 %v458
  %v2287 = vunpack.c.h.b16 %v458
  %v2288 = vunpack.c.l.b16 %v459
  %v2289 = vunpack.c.h.b16 %v459
  %v2290 = vunpack.c.l.b16 %v460
  %v2291 = vunpack.c.h.b16 %v460
  %v2292 = vunpack.c.l.b16 %v461
  %v2293 = vunpack.c.h.b16 %v461
  %v2294 = vunpack.c.l.b16 %v462
  %v2295 = vunpack.c.h.b16 %v462
  %v2296 = vunpack.c.l.b16 %v463
  %v2297 = vunpack.c.h.b16 %v463
  %v2298 = vunpack.c.l.b16 %v464
  %v2299 = vunpack.c.h.b16 %v464
  %v2300 = vunpack.c.l.b16 %v465
  %v2301 = vunpack.c.h.b16 %v465
  %v2302 = vunpack.c.l.b16 %v466
  %v2303 = vunpack.c.h.b16 %v466
  %v2304 = vunpack.c.l.b16 %v467
  %v2305 = vunpack.c.h.b16 %v467
  %v2306 = vunpack.c.l.b16 %v468
  %v2307 = vunpack.c.h.b16 %v468
  %v2308 = vunpack.c.l.b16 %v469
  %v2309 = vunpack.c.h.b16 %v469
  %v2310 = vunpack.c.l.b16 %v470
  %v2311 = vunpack.c.h.b16 %v470
  %v2312 = vunpack.c.l.b16 %v471
  %v2313 = vunpack.c.h.b16 %v471
  %v2314 = vunpack.c.l.b16 %v472
  %v2315 = vunpack.c.h.b16 %v472
  %v2316 = vunpack.c.l.b16 %v473
  %v2317 = vunpack.c.h.b16 %v473
  %v2318 = vunpack.c.l.b16 %v474
  %v2319 = vunpack.c.h.b16 %v474
  %v2320 = vunpack.c.l.b16 %v475
  %v2321 = vunpack.c.h.b16 %v475
  %v2322 = vunpack.c.l.b16 %v476
  %v2323 = vunpack.c.h.b16 %v476
  %v2324 = vunpack.c.l.b16 %v477
  %v2325 = vunpack.c.h.b16 %v477
  %v2326 = vunpack.c.l.b16 %v478
  %v2327 = vunpack.c.h.b16 %v478
  %v2328 = vunpack.c.l.b16 %v479
  %v2329 = vunpack.c.h.b16 %v479
  %v2330 = vunpack.c.l.b16 %v480
  %v2331 = vunpack.c.h.b16 %v480
  %v2332 = vunpack.c.l.b16 %v481
  %v2333 = vunpack.c.h.b16 %v481
  %v2334 = vunpack.c.l.b16 %v482
  %v2335 = vunpack.c.h.b16 %v482
  %v2336 = vunpack.c.l.b16 %v483
  %v2337 = vunpack.c.h.b16 %v483
  %v2338 = vunpack.c.l.b16 %v484
  %v2339 = vunpack.c.h.b16 %v484
  %v2340 = vunpack.c.l.b16 %v485
  %v2341 = vunpack.c.h.b16 %v485
  %v2342 = vunpack.c.l.b16 %v486
  %v2343 = vunpack.c.h.b16 %v486
  %v2344 = vunpack.c.l.b16 %v487
  %v2345 = vunpack.c.h.b16 %v487
  %v2346 = vunpack.c.l.b16 %v488
  %v2347 = vunpack.c.h.b16 %v488
  %v2348 = vunpack.c.l.b16 %v489
  %v2349 = vunpack.c.h.b16 %v489
  %v2350 = vunpack.c.l.b16 %v490
  %v2351 = vunpack.c.h.b16 %v490
  %v2352 = vunpack.c.l.b16 %v491
  %v2353 = vunpack.c.h.b16 %v491
  %v2354 = vunpack.c.l.b16 %v492
  %v2355 = vunpack.c.h.b16 %v492
  %v2356 = vunpack.c.l.b16 %v493
  %v2357 = vunpack.c.h.b16 %v493
  %v2358 = vunpack.c.l.b16 %v494
  %v2359 = vunpack.c.h.b16 %v494
  %v2360 = vunpack.c.l.b16 %v495
  %v2361 = vunpack.c.h.b16 %v495
  %v2362 = vunpack.c.l.b16 %v496
  %v2363 = vunpack.c.h.b16 %v496
  %v2364 = vunpack.c.l.b16 %v497
  %v2365 = vunpack.c.h.b16 %v497
  %v2366 = vunpack.c.l.b16 %v498
  %v2367 = vunpack.c.h.b16 %v498
  %v2368 = vunpack.c.l.b16 %v499
  %v2369 = vunpack.c.h.b16 %v499
  %v2370 = vunpack.c.l.b16 %v500
  %v2371 = vunpack.c.h.b16 %v500
  %v2372 = vunpack.c.l.b16 %v501
  %v2373 = vunpack.c.h.b16 %v501
  %v2374 = vunpack.c.l.b16 %v502
  %v2375 = vunpack.c.h.b16 %v502
  %v2376 = vunpack.c.l.b16 %v503
  %v2377 = vunpack.c.h.b16 %v503
  %v2378 = vunpack.c.l.b16 %v504
  %v2379 = vunpack.c.h.b16 %v504
  %v2380 = vunpack.c.l.b16 %v505
  %v2381 = vunpack.c.h.b16 %v505
  %v2382 = vunpack.c.l.b16 %v506
  %v2383 = vunpack.c.h.b16 %v506
  %v2384 = vunpack.c.l.b16 %v507
  %v2385 = vunpack.c.h.b16 %v507
  %v2386 = vunpack.c.l.b16 %v508
  %v2387 = vunpack.c.h.b16 %v508
  %v2388 = vunpack.c.l.b16 %v509
  %v2389 = vunpack.c.h.b16 %v509
  %v2390 = vunpack.c.l.b16 %v510
  %v2391 = vunpack.c.h.b16 %v510
  %v2392 = vunpack.c.l.b16 %v511
  %v2393 = vunpack.c.h.b16 %v511
  %v2394 = vunpack.c.l.b16 %v512
  %v2395 = vunpack.c.h.b16 %v512
  %v2396 = vunpack.c.l.b16 %v513
  %v2397 = vunpack.c.h.b16 %v513
  %v2398 = vunpack.c.l.b16 %v514
  %v2399 = vunpack.c.h.b16 %v514
  %v2400 = vunpack.c.l.b16 %v515
  %v2401 = vunpack.c.h.b16 %v515
  %v2402 = vunpack.c.l.b16 %v516
  %v2403 = vunpack.c.h.b16 %v516
  %v2404 = vunpack.c.l.b16 %v517
  %v2405 = vunpack.c.h.b16 %v517
  %v2406 = vunpack.c.l.b16 %v518
  %v2407 = vunpack.c.h.b16 %v518
  %v2408 = vunpack.c.l.b16 %v519
  %v2409 = vunpack.c.h.b16 %v519
  %v2410 = vunpack.c.l.b16 %v520
  %v2411 = vunpack.c.h.b16 %v520
  %v2412 = vunpack.c.l.b16 %v521
  %v2413 = vunpack.c.h.b16 %v521
  %v2414 = vunpack.c.l.b16 %v522
  %v2415 = vunpack.c.h.b16 %v522
  %v2416 = vunpack.c.l.b16 %v523
  %v2417 = vunpack.c.h.b16 %v523
  %v2418 = vunpack.c.l.b16 %v524
  %v2419 = vunpack.c.h.b16 %v524
  %v2420 = vunpack.c.l.b16 %v525
  %v2421 = vunpack.c.h.b16 %v525
  %v2422 = vunpack.c.l.b16 %v526
  %v2423 = vunpack.c.h.b16 %v526
  %v2424 = vunpack.c.l.b16 %v527
  %v2425 = vunpack.c.h.b16 %v527
  %v2426 = vunpack.c.l.b16 %v528
  %v2427 = vunpack.c.h.b16 %v528
  %v2428 = vunpack.c.l.b16 %v529
  %v2429 = vunpack.c.h.b16 %v529
  %v2430 = vunpack.c.l.b16 %v530
  %v2431 = vunpack.c.h.b16 %v530
  %v2432 = vunpack.c.l.b16 %v531
  %v2433 = vunpack.c.h.b16 %v531
  %v2434 = vunpack.c.l.b16 %v532
  %v2435 = vunpack.c.h.b16 %v532
  %v2436 = vunpack.c.l.b16 %v533
  %v2437 = vunpack.c.h.b16 %v533
  %v2438 = vunpack.c.l.b16 %v534
  %v2439 = vunpack.c.h.b16 %v534
  %v2440 = vunpack.c.l.b16 %v535
  %v2441 = vunpack.c.h.b16 %v535
  %v2442 = vunpack.c.l.b16 %v536
  %v2443 = vunpack.c.h.b16 %v536
  %v2444 = vunpack.c.l.b16 %v537
  %v2445 = vunpack.c.h.b16 %v537
  %v2446 = vunpack.c.l.b16 %v538
  %v2447 = vunpack.c.h.b16 %v538
  %v2448 = vunpack.c.l.b16 %v539
  %v2449 = vunpack.c.h.b16 %v539
  %v2450 = vunpack.c.l.b16 %v540
  %v2451 = vunpack.c.h.b16 %v540
  %v2452 = vunpack.c.l.b16 %v541
  %v2453 = vunpack.c.h.b16 %v541
  %v2454 = vunpack.c.l.b16 %v542
  %v2455 = vunpack.c.h.b16 %v542
  %v2456 = vunpack.c.l.b16 %v543
  %v2457 = vunpack.c.h.b16 %v543
  %v2458 = vunpack.c.l.b16 %v544
  %v2459 = vunpack.c.h.b16 %v544
  %v2460 = vunpack.c.l.b16 %v545
  %v2461 = vunpack.c.h.b16 %v545
  %v2462 = vunpack.c.l.b16 %v546
  %v2463 = vunpack.c.h.b16 %v546
  %v2464 = vunpack.c.l.b16 %v547
  %v2465 = vunpack.c.h.b16 %v547
  %v2466 = vunpack.c.l.b16 %v548
  %v2467 = vunpack.c.h.b16 %v548
  %v2468 = vunpack.c.l.b16 %v549
  %v2469 = vunpack.c.h.b16 %v549
  %v2470 = vunpack.c.l.b16 %v550
  %v2471 = vunpack.c.h.b16 %v550
  %v2472 = vunpack.c.l.b16 %v551
  %v2473 = vunpack.c.h.b16 %v551
  %v2474 = vunpack.c.l.b16 %v552
  %v2475 = vunpack.c.h.b16 %v552
  %v2476 = vunpack.c.l.b16 %v553
  %v2477 = vunpack.c.h.b16 %v553
  %v2478 = vunpack.c.l.b16 %v554
  %v2479 = vunpack.c.h.b16 %v554
  %v2480 = vunpack.c.l.b16 %v555
  %v2481 = vunpack.c.h.b16 %v555
  %v2482 = vunpack.c.l.b16 %v556
  %v2483 = vunpack.c.h.b16 %v556
  %v2484 = vunpack.c.l.b16 %v557
  %v2485 = vunpack.c.h.b16 %v557
  %v2486 = vunpack.c.l.b16 %v558
  %v2487 = vunpack.c.h.b16 %v558
  %v2488 = vunpack.c.l.b16 %v559
  %v2489 = vunpack.c.h.b16 %v559
  %v2490 = vunpack.c.l.b16 %v560
  %v2491 = vunpack.c.h.b16 %v560
  %v2492 = vunpack.c.l.b16 %v561
  %v2493 = vunpack.c.h.b16 %v561
  %v2494 = vunpack.c.l.b16 %v562
  %v2495 = vunpack.c.h.b16 %v562
  %v2496 = vunpack.c.l.b16 %v563
  %v2497 = vunpack.c.h.b16 %v563
  %v2498 = vunpack.c.l.b16 %v564
  %v2499 = vunpack.c.h.b16 %v564
  %v2500 = vunpack.c.l.b16 %v565
  %v2501 = vunpack.c.h.b16 %v565
  %v2502 = vunpack.c.l.b16 %v566
  %v2503 = vunpack.c.h.b16 %v566
  %v2504 = vunpack.c.l.b16 %v567
  %v2505 = vunpack.c.h.b16 %v567
  %v2506 = vunpack.c.l.b16 %v568
  %v2507 = vunpack.c.h.b16 %v568
  %v2508 = vunpack.c.l.b16 %v569
  %v2509 = vunpack.c.h.b16 %v569
  %v2510 = vunpack.c.l.b16 %v570
  %v2511 = vunpack.c.h.b16 %v570
  %v2512 = vunpack.c.l.b16 %v571
  %v2513 = vunpack.c.h.b16 %v571
  %v2514 = vunpack.c.l.b16 %v572
  %v2515 = vunpack.c.h.b16 %v572
  %v2516 = vunpack.c.l.b16 %v573
  %v2517 = vunpack.c.h.b16 %v573
  %v2518 = vunpack.c.l.b16 %v574
  %v2519 = vunpack.c.h.b16 %v574
  %v2520 = vunpack.c.l.b16 %v575
  %v2521 = vunpack.c.h.b16 %v575
  %v2522 = vunpack.c.l.b16 %v576
  %v2523 = vunpack.c.h.b16 %v576
  %v2524 = vunpack.c.l.b16 %v577
  %v2525 = vunpack.c.h.b16 %v577
  %v2526 = vunpack.c.l.b16 %v578
  %v2527 = vunpack.c.h.b16 %v578
  %v2528 = vunpack.c.l.b16 %v579
  %v2529 = vunpack.c.h.b16 %v579
  %v2530 = vunpack.c.l.b16 %v580
  %v2531 = vunpack.c.h.b16 %v580
  %v2532 = vunpack.c.l.b16 %v581
  %v2533 = vunpack.c.h.b16 %v581
  %v2534 = vunpack.c.l.b16 %v582
  %v2535 = vunpack.c.h.b16 %v582
  %v2536 = vunpack.c.l.b16 %v583
  %v2537 = vunpack.c.h.b16 %v583
  %v2538 = vunpack.c.l.b16 %v584
  %v2539 = vunpack.c.h.b16 %v584
  %v2540 = vunpack.c.l.b16 %v585
  %v2541 = vunpack.c.h.b16 %v585
  %v2542 = vunpack.c.l.b16 %v586
  %v2543 = vunpack.c.h.b16 %v586
  %v2544 = vunpack.c.l.b16 %v587
  %v2545 = vunpack.c.h.b16 %v587
  %v2546 = vunpack.c.l.b16 %v588
  %v2547 = vunpack.c.h.b16 %v588
  %v2548 = vunpack.c.l.b16 %v589
  %v2549 = vunpack.c.h.b16 %v589
  %v2550 = vunpack.c.l.b16 %v590
  %v2551 = vunpack.c.h.b16 %v590
  %v2552 = vunpack.c.l.b16 %v591
  %v2553 = vunpack.c.h.b16 %v591
  %v2554 = vunpack.c.l.b16 %v592
  %v2555 = vunpack.c.h.b16 %v592
  %v2556 = vunpack.c.l.b16 %v593
  %v2557 = vunpack.c.h.b16 %v593
  %v2558 = vunpack.c.l.b16 %v594
  %v2559 = vunpack.c.h.b16 %v594
  %v2560 = vunpack.c.l.b16 %v595
  %v2561 = vunpack.c.h.b16 %v595
  %v2562 = vunpack.c.l.b16 %v596
  %v2563 = vunpack.c.h.b16 %v596
  %v2564 = vunpack.c.l.b16 %v597
  %v2565 = vunpack.c.h.b16 %v597
  %v2566 = vunpack.c.l.b16 %v598
  %v2567 = vunpack.c.h.b16 %v598
  %v2568 = vunpack.c.l.b16 %v599
  %v2569 = vunpack.c.h.b16 %v599
  %v2570 = vunpack.c.l.b16 %v600
  %v2571 = vunpack.c.h.b16 %v600
  %v2572 = vunpack.c.l.b16 %v601
  %v2573 = vunpack.c.h.b16 %v601
  %v2574 = vunpack.c.l.b16 %v602
  %v2575 = vunpack.c.h.b16 %v602
  %v2576 = vunpack.c.l.b16 %v603
  %v2577 = vunpack.c.h.b16 %v603
  %v2578 = vunpack.c.l.b16 %v604
  %v2579 = vunpack.c.h.b16 %v604
  %v2580 = vunpack.c.l.b16 %v605
  %v2581 = vunpack.c.h.b16 %v605
  %v2582 = vunpack.c.l.b16 %v606
  %v2583 = vunpack.c.h.b16 %v606
  %v2584 = vunpack.c.l.b16 %v607
  %v2585 = vunpack.c.h.b16 %v607
  %v2586 = vunpack.c.l.b16 %v608
  %v2587 = vunpack.c.h.b16 %v608
  %v2588 = vunpack.c.l.b16 %v609
  %v2589 = vunpack.c.h.b16 %v609
  %v2590 = vunpack.c.l.b16 %v610
  %v2591 = vunpack.c.h.b16 %v610
  %v2592 = vunpack.c.l.b16 %v611
  %v2593 = vunpack.c.h.b16 %v611
  %v2594 = vunpack.c.l.b16 %v612
  %v2595 = vunpack.c.h.b16 %v612
  %v2596 = vunpack.c.l.b16 %v613
  %v2597 = vunpack.c.h.b16 %v613
  %v2598 = vunpack.c.l.b16 %v614
  %v2599 = vunpack.c.h.b16 %v614
  %v2600 = vunpack.c.l.b16 %v615
  %v2601 = vunpack.c.h.b16 %v615
  %v2602 = vunpack.c.l.b16 %v616
  %v2603 = vunpack.c.h.b16 %v616
  %v2604 = vunpack.c.l.b16 %v617
  %v2605 = vunpack.c.h.b16 %v617
  %v2606 = vunpack.c.l.b16 %v618
  %v2607 = vunpack.c.h.b16 %v618
  %v2608 = vunpack.c.l.b16 %v619
  %v2609 = vunpack.c.h.b16 %v619
  %v2610 = vunpack.c.l.b16 %v620
  %v2611 = vunpack.c.h.b16 %v620
  %v2612 = vunpack.c.l.b16 %v621
  %v2613 = vunpack.c.h.b16 %v621
  %v2614 = vunpack.c.l.b16 %v622
  %v2615 = vunpack.c.h.b16 %v622
  %v2616 = vunpack.c.l.b16 %v623
  %v2617 = vunpack.c.h.b16 %v623
  %v2618 = vunpack.c.l.b16 %v624
  %v2619 = vunpack.c.h.b16 %v624
  %v2620 = vunpack.c.l.b16 %v625
  %v2621 = vunpack.c.h.b16 %v625
  %v2622 = vunpack.c.l.b16 %v626
  %v2623 = vunpack.c.h.b16 %v626
  %v2624 = vunpack.c.l.b16 %v627
  %v2625 = vunpack.c.h.b16 %v627
  %v2626 = vunpack.c.l.b16 %v628
  %v2627 = vunpack.c.h.b16 %v628
  %v2628 = vunpack.c.l.b16 %v629
  %v2629 = vunpack.c.h.b16 %v629
  %v2630 = vunpack.c.l.b16 %v630
  %v2631 = vunpack.c.h.b16 %v630
  %v2632 = vunpack.c.l.b16 %v631
  %v2633 = vunpack.c.h.b16 %v631
  %v2634 = vunpack.c.l.b16 %v632
  %v2635 = vunpack.c.h.b16 %v632
  %v2636 = vunpack.c.l.b16 %v633
  %v2637 = vunpack.c.h.b16 %v633
  %v2638 = vunpack.c.l.b16 %v634
  %v2639 = vunpack.c.h.b16 %v634
  %v2640 = vunpack.c.l.b16 %v635
  %v2641 = vunpack.c.h.b16 %v635
  %v2642 = vunpack.c.l.b16 %v636
  %v2643 = vunpack.c.h.b16 %v636
  %v2644 = vunpack.c.l.b16 %v637
  %v2645 = vunpack.c.h.b16 %v637
  %v2646 = vunpack.c.l.b16 %v638
  %v2647 = vunpack.c.h.b16 %v638
  %v2648 = vunpack.c.l.b16 %v639
  %v2649 = vunpack.c.h.b16 %v639
  %v2650 = vunpack.c.l.b16 %v640
  %v2651 = vunpack.c.h.b16 %v640
  %v2652 = vunpack.c.l.b16 %v641
  %v2653 = vunpack.c.h.b16 %v641
  %v2654 = vunpack.c.l.b16 %v642
  %v2655 = vunpack.c.h.b16 %v642
  %v2656 = vunpack.c.l.b16 %v643
  %v2657 = vunpack.c.h.b16 %v643
  %v2658 = vunpack.c.l.b16 %v644
  %v2659 = vunpack.c.h.b16 %v644
  %v2660 = vunpack.c.l.b16 %v645
  %v2661 = vunpack.c.h.b16 %v645
  %v2662 = vunpack.c.l.b16 %v646
  %v2663 = vunpack.c.h.b16 %v646
  %v2664 = vunpack.c.l.b16 %v647
  %v2665 = vunpack.c.h.b16 %v647
  %v2666 = vunpack.c.l.b16 %v648
  %v2667 = vunpack.c.h.b16 %v648
  %v2668 = vunpack.c.l.b16 %v649
  %v2669 = vunpack.c.h.b16 %v649
  %v2670 = vunpack.c.l.b16 %v650
  %v2671 = vunpack.c.h.b16 %v650
  %v2672 = vunpack.c.l.b16 %v651
  %v2673 = vunpack.c.h.b16 %v651
  %v2674 = vunpack.c.l.b16 %v652
  %v2675 = vunpack.c.h.b16 %v652
  %v2676 = vunpack.c.l.b16 %v653
  %v2677 = vunpack.c.h.b16 %v653
  %v2678 = vunpack.c.l.b16 %v654
  %v2679 = vunpack.c.h.b16 %v654
  %v2680 = vunpack.c.l.b16 %v655
  %v2681 = vunpack.c.h.b16 %v655
  %v2682 = vunpack.c.l.b16 %v656
  %v2683 = vunpack.c.h.b16 %v656
  %v2684 = vunpack.c.l.b16 %v657
  %v2685 = vunpack.c.h.b16 %v657
  %v2686 = vunpack.c.l.b16 %v658
  %v2687 = vunpack.c.h.b16 %v658
  %v2688 = vunpack.c.l.b16 %v659
  %v2689 = vunpack.c.h.b16 %v659
  %v2690 = vunpack.c.l.b16 %v660
  %v2691 = vunpack.c.h.b16 %v660
  %v2692 = vunpack.c.l.b16 %v661
  %v2693 = vunpack.c.h.b16 %v661
  %v2694 = vunpack.c.l.b16 %v662
  %v2695 = vunpack.c.h.b16 %v662
  %v2696 = vunpack.c.l.b16 %v663
  %v2697 = vunpack.c.h.b16 %v663
  %v2698 = vunpack.c.l.b16 %v664
  %v2699 = vunpack.c.h.b16 %v664
  %v2700 = vunpack.c.l.b16 %v665
  %v2701 = vunpack.c.h.b16 %v665
  %v2702 = vunpack.c.l.b16 %v666
  %v2703 = vunpack.c.h.b16 %v666
  %v2704 = vunpack.c.l.b16 %v667
  %v2705 = vunpack.c.h.b16 %v667
  %v2706 = vunpack.c.l.b16 %v668
  %v2707 = vunpack.c.h.b16 %v668
  %v2708 = vunpack.c.l.b16 %v669
  %v2709 = vunpack.c.h.b16 %v669
  %v2710 = vunpack.c.l.b16 %v670
  %v2711 = vunpack.c.h.b16 %v670
  %v2712 = vunpack.c.l.b16 %v671
  %v2713 = vunpack.c.h.b16 %v671
  %v2714 = vunpack.c.l.b16 %v672
  %v2715 = vunpack.c.h.b16 %v672
  %v2716 = vunpack.c.l.b16 %v673
  %v2717 = vunpack.c.h.b16 %v673
  %v2718 = vunpack.c.l.b16 %v674
  %v2719 = vunpack.c.h.b16 %v674
  %v2720 = vunpack.c.l.b16 %v675
  %v2721 = vunpack.c.h.b16 %v675
  %v2722 = vunpack.c.l.b16 %v676
  %v2723 = vunpack.c.h.b16 %v676
  %v2724 = vunpack.c.l.b16 %v677
  %v2725 = vunpack.c.h.b16 %v677
  %v2726 = vunpack.c.l.b16 %v678
  %v2727 = vunpack.c.h.b16 %v678
  %v2728 = vunpack.c.l.b16 %v679
  %v2729 = vunpack.c.h.b16 %v679
  %v2730 = vunpack.c.l.b16 %v680
  %v2731 = vunpack.c.h.b16 %v680
  %v2732 = vunpack.c.l.b16 %v681
  %v2733 = vunpack.c.h.b16 %v681
  %v2734 = vunpack.c.l.b16 %v682
  %v2735 = vunpack.c.h.b16 %v682
  %v2736 = vunpack.c.l.b16 %v683
  %v2737 = vunpack.c.h.b16 %v683
  %v2738 = vunpack.c.l.b16 %v684
  %v2739 = vunpack.c.h.b16 %v684
  %v2740 = vunpack.c.l.b16 %v685
  %v2741 = vunpack.c.h.b16 %v685
  %v2742 = vunpack.c.l.b16 %v686
  %v2743 = vunpack.c.h.b16 %v686
  %v2744 = vunpack.c.l.b16 %v687
  %v2745 = vunpack.c.h.b16 %v687
  %v2746 = vunpack.c.l.b16 %v688
  %v2747 = vunpack.c.h.b16 %v688
  %v2748 = vunpack.c.l.b16 %v689
  %v2749 = vunpack.c.h.b16 %v689
  %v2750 = vunpack.c.l.b16 %v690
  %v2751 = vunpack.c.h.b16 %v690
  %v2752 = vunpack.c.l.b16 %v691
  %v2753 = vunpack.c.h.b16 %v691
  %v2754 = vunpack.c.l.b16 %v692
  %v2755 = vunpack.c.h.b16 %v692
  %v2756 = vunpack.c.l.b16 %v693
  %v2757 = vunpack.c.h.b16 %v693
  %v2758 = vunpack.c.l.b16 %v694
  %v2759 = vunpack.c.h.b16 %v694
  %v2760 = vunpack.c.l.b16 %v695
  %v2761 = vunpack.c.h.b16 %v695
  %v2762 = vunpack.c.l.b16 %v696
  %v2763 = vunpack.c.h.b16 %v696
  %v2764 = vunpack.c.l.b16 %v697
  %v2765 = vunpack.c.h.b16 %v697
  %v2766 = vunpack.c.l.b16 %v698
  %v2767 = vunpack.c.h.b16 %v698
  %v2768 = vunpack.c.l.b16 %v699
  %v2769 = vunpack.c.h.b16 %v699
  %v2770 = vunpack.c.l.b16 %v700
  %v2771 = vunpack.c.h.b16 %v700
  %v2772 = vunpack.c.l.b16 %v701
  %v2773 = vunpack.c.h.b16 %v701
  %v2774 = vunpack.c.l.b16 %v702
  %v2775 = vunpack.c.h.b16 %v702
  %v2776 = vunpack.c.l.b16 %v703
  %v2777 = vunpack.c.h.b16 %v703
  %v2778 = vunpack.c.l.b16 %v704
  %v2779 = vunpack.c.h.b16 %v704
  %v2780 = vunpack.c.l.b16 %v705
  %v2781 = vunpack.c.h.b16 %v705
  %v2782 = vunpack.c.l.b16 %v706
  %v2783 = vunpack.c.h.b16 %v706
  %v2784 = vunpack.c.l.b16 %v707
  %v2785 = vunpack.c.h.b16 %v707
  %v2786 = vunpack.c.l.b16 %v708
  %v2787 = vunpack.c.h.b16 %v708
  %v2788 = vunpack.c.l.b16 %v709
  %v2789 = vunpack.c.h.b16 %v709
  %v2790 = vunpack.c.l.b16 %v710
  %v2791 = vunpack.c.h.b16 %v710
  %v2792 = vunpack.c.l.b16 %v711
  %v2793 = vunpack.c.h.b16 %v711
  %v2794 = vunpack.c.l.b16 %v712
  %v2795 = vunpack.c.h.b16 %v712
  %v2796 = vunpack.c.l.b16 %v713
  %v2797 = vunpack.c.h.b16 %v713
  %v2798 = vunpack.c.l.b16 %v714
  %v2799 = vunpack.c.h.b16 %v714
  %v2800 = vunpack.c.l.b16 %v715
  %v2801 = vunpack.c.h.b16 %v715
  %v2802 = vunpack.c.l.b16 %v716
  %v2803 = vunpack.c.h.b16 %v716
  %v2804 = vunpack.c.l.b16 %v717
  %v2805 = vunpack.c.h.b16 %v717
  %v2806 = vunpack.c.l.b16 %v718
  %v2807 = vunpack.c.h.b16 %v718
  %v2808 = vunpack.c.l.b16 %v719
  %v2809 = vunpack.c.h.b16 %v719
  %v2810 = vunpack.c.l.b16 %v720
  %v2811 = vunpack.c.h.b16 %v720
  %v2812 = vunpack.c.l.b16 %v721
  %v2813 = vunpack.c.h.b16 %v721
  %v2814 = vunpack.c.l.b16 %v722
  %v2815 = vunpack.c.h.b16 %v722
  %v2816 = vunpack.c.l.b16 %v723
  %v2817 = vunpack.c.h.b16 %v723
  %v2818 = vunpack.c.l.b16 %v724
  %v2819 = vunpack.c.h.b16 %v724
  %v2820 = vunpack.c.l.b16 %v725
  %v2821 = vunpack.c.h.b16 %v725
  %v2822 = vunpack.c.l.b16 %v726
  %v2823 = vunpack.c.h.b16 %v726
  %v2824 = vunpack.c.l.b16 %v727
  %v2825 = vunpack.c.h.b16 %v727
  %v2826 = vunpack.c.l.b16 %v728
  %v2827 = vunpack.c.h.b16 %v728
  %v2828 = vunpack.c.l.b16 %v729
  %v2829 = vunpack.c.h.b16 %v729
  %v2830 = vunpack.c.l.b16 %v730
  %v2831 = vunpack.c.h.b16 %v730
  %v2832 = vunpack.c.l.b16 %v731
  %v2833 = vunpack.c.h.b16 %v731
  %v2834 = vunpack.c.l.b16 %v732
  %v2835 = vunpack.c.h.b16 %v732
  %v2836 = vunpack.c.l.b16 %v733
  %v2837 = vunpack.c.h.b16 %v733
  %v2838 = vunpack.c.l.b16 %v734
  %v2839 = vunpack.c.h.b16 %v734
  %v2840 = vunpack.c.l.b16 %v735
  %v2841 = vunpack.c.h.b16 %v735
  %v2842 = vunpack.c.l.b16 %v736
  %v2843 = vunpack.c.h.b16 %v736
  %v2844 = vunpack.c.l.b16 %v737
  %v2845 = vunpack.c.h.b16 %v737
  %v2846 = vunpack.c.l.b16 %v738
  %v2847 = vunpack.c.h.b16 %v738
  %v2848 = vunpack.c.l.b16 %v739
  %v2849 = vunpack.c.h.b16 %v739
  %v2850 = vunpack.c.l.b16 %v740
  %v2851 = vunpack.c.h.b16 %v740
  %v2852 = vunpack.c.l.b16 %v741
  %v2853 = vunpack.c.h.b16 %v741
  %v2854 = vunpack.c.l.b16 %v742
  %v2855 = vunpack.c.h.b16 %v742
  %v2856 = vunpack.c.l.b16 %v743
  %v2857 = vunpack.c.h.b16 %v743
  %v2858 = vunpack.c.l.b16 %v744
  %v2859 = vunpack.c.h.b16 %v744
  %v2860 = vunpack.c.l.b16 %v745
  %v2861 = vunpack.c.h.b16 %v745
  %v2862 = vunpack.c.l.b16 %v746
  %v2863 = vunpack.c.h.b16 %v746
  %v2864 = vunpack.c.l.b16 %v747
  %v2865 = vunpack.c.h.b16 %v747
  %v2866 = vunpack.c.l.b16 %v748
  %v2867 = vunpack.c.h.b16 %v748
  %v2868 = vunpack.c.l.b16 %v749
  %v2869 = vunpack.c.h.b16 %v749
  %v2870 = vunpack.c.l.b16 %v750
  %v2871 = vunpack.c.h.b16 %v750
  %v2872 = vunpack.c.l.b16 %v751
  %v2873 = vunpack.c.h.b16 %v751
  %v2874 = vunpack.c.l.b16 %v752
  %v2875 = vunpack.c.h.b16 %v752
  %v2876 = vunpack.c.l.b16 %v753
  %v2877 = vunpack.c.h.b16 %v753
  %v2878 = vunpack.c.l.b16 %v754
  %v2879 = vunpack.c.h.b16 %v754
  %v2880 = vunpack.c.l.b16 %v755
  %v2881 = vunpack.c.h.b16 %v755
  %v2882 = vunpack.c.l.b16 %v756
  %v2883 = vunpack.c.h.b16 %v756
  %v2884 = vunpack.c.l.b16 %v757
  %v2885 = vunpack.c.h.b16 %v757
  %v2886 = vunpack.c.l.b16 %v758
  %v2887 = vunpack.c.h.b16 %v758
  %v2888 = vunpack.c.l.b16 %v759
  %v2889 = vunpack.c.h.b16 %v759
  %v2890 = vunpack.c.l.b16 %v760
  %v2891 = vunpack.c.h.b16 %v760
  %v2892 = vunpack.c.l.b16 %v761
  %v2893 = vunpack.c.h.b16 %v761
  %v2894 = vunpack.c.l.b16 %v762
  %v2895 = vunpack.c.h.b16 %v762
  %v2896 = vunpack.c.l.b16 %v763
  %v2897 = vunpack.c.h.b16 %v763
  %v2898 = vunpack.c.l.b16 %v764
  %v2899 = vunpack.c.h.b16 %v764
  %v2900 = vunpack.c.l.b16 %v765
  %v2901 = vunpack.c.h.b16 %v765
  %v2902 = vunpack.c.l.b16 %v766
  %v2903 = vunpack.c.h.b16 %v766
  %v2904 = vunpack.c.l.b16 %v767
  %v2905 = vunpack.c.h.b16 %v767
  %v2906 = vunpack.c.l.b16 %v768
  %v2907 = vunpack.c.h.b16 %v768
  %v2908 = vunpack.c.l.b16 %v769
  %v2909 = vunpack.c.h.b16 %v769
  %v2910 = vunpack.c.l.b16 %v770
  %v2911 = vunpack.c.h.b16 %v770
  %v2912 = vunpack.c.l.b16 %v771
  %v2913 = vunpack.c.h.b16 %v771
  %v2914 = vunpack.c.l.b16 %v772
  %v2915 = vunpack.c.h.b16 %v772
  %v2916 = vunpack.c.l.b16 %v773
  %v2917 = vunpack.c.h.b16 %v773
  %v2918 = vunpack.c.l.b16 %v774
  %v2919 = vunpack.c.h.b16 %v774
  %v2920 = vunpack.c.l.b16 %v775
  %v2921 = vunpack.c.h.b16 %v775
  %v2922 = vunpack.c.l.b16 %v776
  %v2923 = vunpack.c.h.b16 %v776
  %v2924 = vunpack.c.l.b16 %v777
  %v2925 = vunpack.c.h.b16 %v777
  %v2926 = vunpack.c.l.b16 %v778
  %v2927 = vunpack.c.h.b16 %v778
  %v2928 = vunpack.c.l.b16 %v779
  %v2929 = vunpack.c.h.b16 %v779
  %v2930 = vunpack.c.l.b16 %v780
  %v2931 = vunpack.c.h.b16 %v780
  %v2932 = vunpack.c.l.b16 %v781
  %v2933 = vunpack.c.h.b16 %v781
  %v2934 = vunpack.c.l.b16 %v782
  %v2935 = vunpack.c.h.b16 %v782
  %v2936 = vunpack.c.l.b16 %v783
  %v2937 = vunpack.c.h.b16 %v783
  %v2938 = vunpack.c.l.b16 %v784
  %v2939 = vunpack.c.h.b16 %v784
  %v2940 = vunpack.c.l.b16 %v785
  %v2941 = vunpack.c.h.b16 %v785
  %v2942 = vunpack.c.l.b16 %v786
  %v2943 = vunpack.c.h.b16 %v786
  %v2944 = vunpack.c.l.b16 %v787
  %v2945 = vunpack.c.h.b16 %v787
  %v2946 = vunpack.c.l.b16 %v788
  %v2947 = vunpack.c.h.b16 %v788
  %v2948 = vunpack.c.l.b16 %v789
  %v2949 = vunpack.c.h.b16 %v789
  %v2950 = vunpack.c.l.b16 %v790
  %v2951 = vunpack.c.h.b16 %v790
  %v2952 = vunpack.c.l.b16 %v791
  %v2953 = vunpack.c.h.b16 %v791
  %v2954 = vunpack.c.l.b16 %v792
  %v2955 = vunpack.c.h.b16 %v792
  %v2956 = vunpack.c.l.b16 %v793
  %v2957 = vunpack.c.h.b16 %v793
  %v2958 = vunpack.c.l.b16 %v794
  %v2959 = vunpack.c.h.b16 %v794
  %v2960 = vunpack.c.l.b16 %v795
  %v2961 = vunpack.c.h.b16 %v795
  %v2962 = vunpack.c.l.b16 %v796
  %v2963 = vunpack.c.h.b16 %v796
  %v2964 = vunpack.c.l.b16 %v797
  %v2965 = vunpack.c.h.b16 %v797
  %v2966 = vunpack.c.l.b16 %v798
  %v2967 = vunpack.c.h.b16 %v798
  %v2968 = vunpack.c.l.b16 %v799
  %v2969 = vunpack.c.h.b16 %v799
  %v2970 = vunpack.c.l.b16 %v800
  %v2971 = vunpack.c.h.b16 %v800
  %v2972 = vunpack.c.l.b16 %v801
  %v2973 = vunpack.c.h.b16 %v801
  %v2974 = vunpack.c.l.b16 %v802
  %v2975 = vunpack.c.h.b16 %v802
  %v2976 = vunpack.c.l.b16 %v803
  %v2977 = vunpack.c.h.b16 %v803
  %v2978 = vunpack.c.l.b16 %v804
  %v2979 = vunpack.c.h.b16 %v804
  %v2980 = vunpack.c.l.b16 %v805
  %v2981 = vunpack.c.h.b16 %v805
  %v2982 = vunpack.c.l.b16 %v806
  %v2983 = vunpack.c.h.b16 %v806
  %v2984 = vunpack.c.l.b16 %v807
  %v2985 = vunpack.c.h.b16 %v807
  %v2986 = vunpack.c.l.b16 %v808
  %v2987 = vunpack.c.h.b16 %v808
  %v2988 = vunpack.c.l.b16 %v809
  %v2989 = vunpack.c.h.b16 %v809
  %v2990 = vunpack.c.l.b16 %v810
  %v2991 = vunpack.c.h.b16 %v810
  %v2992 = vunpack.c.l.b16 %v811
  %v2993 = vunpack.c.h.b16 %v811
  %v2994 = vunpack.c.l.b16 %v812
  %v2995 = vunpack.c.h.b16 %v812
  %v2996 = vunpack.c.l.b16 %v813
  %v2997 = vunpack.c.h.b16 %v813
  %v2998 = vunpack.c.l.b16 %v814
  %v2999 = vunpack.c.h.b16 %v814
  %v3000 = vunpack.c.l.b16 %v815
  %v3001 = vunpack.c.h.b16 %v815
  %v3002 = vunpack.c.l.b16 %v816
  %v3003 = vunpack.c.h.b16 %v816
  %v3004 = vunpack.c.l.b16 %v817
  %v3005 = vunpack.c.h.b16 %v817
  %v3006 = vunpack.c.l.b16 %v818
  %v3007 = vunpack.c.h.b16 %v818
  %v3008 = vunpack.c.l.b16 %v819
  %v3009 = vunpack.c.h.b16 %v819
  %v3010 = vunpack.c.l.b16 %v820
  %v3011 = vunpack.c.h.b16 %v820
  %v3012 = vunpack.c.l.b16 %v821
  %v3013 = vunpack.c.h.b16 %v821
  %v3014 = vunpack.c.l.b16 %v822
  %v3015 = vunpack.c.h.b16 %v822
  %v3016 = vunpack.c.l.b16 %v823
  %v3017 = vunpack.c.h.b16 %v823
  %v3018 = vunpack.c.l.b16 %v824
  %v3019 = vunpack.c.h.b16 %v824
  %v3020 = vunpack.c.l.b16 %v825
  %v3021 = vunpack.c.h.b16 %v825
  %v3022 = vunpack.c.l.b16 %v826
  %v3023 = vunpack.c.h.b16 %v826
  %v3024 = vunpack.c.l.b16 %v827
  %v3025 = vunpack.c.h.b16 %v827
  %v3026 = vunpack.c.l.b16 %v828
  %v3027 = vunpack.c.h.b16 %v828
  %v3028 = vunpack.c.l.b16 %v829
  %v3029 = vunpack.c.h.b16 %v829
  %v3030 = vunpack.c.l.b16 %v830
  %v3031 = vunpack.c.h.b16 %v830
  %v3032 = vunpack.c.l.b16 %v831
  %v3033 = vunpack.c.h.b16 %v831
  %v3034 = vunpack.c.l.b16 %v832
  %v3035 = vunpack.c.h.b16 %v832
  %v3036 = vunpack.c.l.b16 %v833
  %v3037 = vunpack.c.h.b16 %v833
  %v3038 = vunpack.c.l.b16 %v834
  %v3039 = vunpack.c.h.b16 %v834
  %v3040 = vunpack.c.l.b16 %v835
  %v3041 = vunpack.c.h.b16 %v835
  %v3042 = vunpack.c.l.b16 %v836
  %v3043 = vunpack.c.h.b16 %v836
  %v3044 = vunpack.c.l.b16 %v837
  %v3045 = vunpack.c.h.b16 %v837
  %v3046 = vunpack.c.l.b16 %v838
  %v3047 = vunpack.c.h.b16 %v838
  %v3048 = vunpack.c.l.b16 %v839
  %v3049 = vunpack.c.h.b16 %v839
  %v3050 = vunpack.c.l.b16 %v840
  %v3051 = vunpack.c.h.b16 %v840
  %v3052 = vunpack.c.l.b16 %v841
  %v3053 = vunpack.c.h.b16 %v841
  %v3054 = vunpack.c.l.b16 %v842
  %v3055 = vunpack.c.h.b16 %v842
  %v3056 = vunpack.c.l.b16 %v843
  %v3057 = vunpack.c.h.b16 %v843
  %v3058 = vunpack.c.l.b16 %v844
  %v3059 = vunpack.c.h.b16 %v844
  %v3060 = vunpack.c.l.b16 %v845
  %v3061 = vunpack.c.h.b16 %v845
  %v3062 = vunpack.c.l.b16 %v846
  %v3063 = vunpack.c.h.b16 %v846
  %v3064 = vunpack.c.l.b16 %v847
  %v3065 = vunpack.c.h.b16 %v847
  %v3066 = vunpack.c.l.b16 %v848
  %v3067 = vunpack.c.h.b16 %v848
  %v3068 = vunpack.c.l.b16 %v849
  %v3069 = vunpack.c.h.b16 %v849
  %v3070 = vunpack.c.l.b16 %v850
  %v3071 = vunpack.c.h.b16 %v850
  %v3072 = vunpack.c.l.b16 %v851
  %v3073 = vunpack.c.h.b16 %v851
  %v3074 = vunpack.c.l.b16 %v852
  %v3075 = vunpack.c.h.b16 %v852
  %v3076 = vunpack.c.l.b16 %v853
  %v3077 = vunpack.c.h.b16 %v853
  %v3078 = vunpack.c.l.b16 %v854
  %v3079 = vunpack.c.h.b16 %v854
  %v3080 = vunpack.c.l.b16 %v855
  %v3081 = vunpack.c.h.b16 %v855
  %v3082 = vunpack.c.l.b16 %v856
  %v3083 = vunpack.c.h.b16 %v856
  %v3084 = vunpack.c.l.b16 %v857
  %v3085 = vunpack.c.h.b16 %v857
  %v3086 = vunpack.c.l.b16 %v858
  %v3087 = vunpack.c.h.b16 %v858
  %v3088 = vunpack.c.l.b16 %v859
  %v3089 = vunpack.c.h.b16 %v859
  %v3090 = vunpack.c.l.b16 %v860
  %v3091 = vunpack.c.h.b16 %v860
  %v3092 = vunpack.c.l.b16 %v861
  %v3093 = vunpack.c.h.b16 %v861
  %v3094 = vunpack.c.l.b16 %v862
  %v3095 = vunpack.c.h.b16 %v862
  %v3096 = vunpack.c.l.b16 %v863
  %v3097 = vunpack.c.h.b16 %v863
  %v3098 = vunpack.c.l.b16 %v864
  %v3099 = vunpack.c.h.b16 %v864
  %v3100 = vunpack.c.l.b16 %v865
  %v3101 = vunpack.c.h.b16 %v865
  %v3102 = vunpack.c.l.b16 %v866
  %v3103 = vunpack.c.h.b16 %v866
  %v3104 = vunpack.c.l.b16 %v867
  %v3105 = vunpack.c.h.b16 %v867
  %v3106 = vunpack.c.l.b16 %v868
  %v3107 = vunpack.c.h.b16 %v868
  %v3108 = vunpack.c.l.b16 %v869
  %v3109 = vunpack.c.h.b16 %v869
  %v3110 = vunpack.c.l.b16 %v870
  %v3111 = vunpack.c.h.b16 %v870
  %v3112 = vunpack.c.l.b16 %v871
  %v3113 = vunpack.c.h.b16 %v871
  %v3114 = vunpack.c.l.b16 %v872
  %v3115 = vunpack.c.h.b16 %v872
  %v3116 = vunpack.c.l.b16 %v873
  %v3117 = vunpack.c.h.b16 %v873
  %v3118 = vunpack.c.l.b16 %v874
  %v3119 = vunpack.c.h.b16 %v874
  %v3120 = vunpack.c.l.b16 %v875
  %v3121 = vunpack.c.h.b16 %v875
  %v3122 = vunpack.c.l.b16 %v876
  %v3123 = vunpack.c.h.b16 %v876
  %v3124 = vunpack.c.l.b16 %v877
  %v3125 = vunpack.c.h.b16 %v877
  %v3126 = vunpack.c.l.b16 %v878
  %v3127 = vunpack.c.h.b16 %v878
  %v3128 = vunpack.c.l.b16 %v879
  %v3129 = vunpack.c.h.b16 %v879
  %v3130 = vunpack.c.l.b16 %v880
  %v3131 = vunpack.c.h.b16 %v880
  %v3132 = vunpack.c.l.b16 %v881
  %v3133 = vunpack.c.h.b16 %v881
  %v3134 = vunpack.c.l.b16 %v882
  %v3135 = vunpack.c.h.b16 %v882
  %v3136 = vunpack.c.l.b16 %v883
  %v3137 = vunpack.c.h.b16 %v883
  %v3138 = vunpack.c.l.b16 %v884
  %v3139 = vunpack.c.h.b16 %v884
  %v3140 = vunpack.c.l.b16 %v885
  %v3141 = vunpack.c.h.b16 %v885
  %v3142 = vunpack.c.l.b16 %v886
  %v3143 = vunpack.c.h.b16 %v886
  %v3144 = vunpack.c.l.b16 %v887
  %v3145 = vunpack.c.h.b16 %v887
  %v3146 = vunpack.c.l.b16 %v888
  %v3147 = vunpack.c.h.b16 %v888
  %v3148 = vunpack.c.l.b16 %v889
  %v3149 = vunpack.c.h.b16 %v889
  %v3150 = vunpack.c.l.b16 %v890
  %v3151 = vunpack.c.h.b16 %v890
  %v3152 = vunpack.c.l.b16 %v891
  %v3153 = vunpack.c.h.b16 %v891
  %v3154 = vunpack.c.l.b16 %v892
  %v3155 = vunpack.c.h.b16 %v892
  %v3156 = vunpack.c.l.b16 %v893
  %v3157 = vunpack.c.h.b16 %v893
  %v3158 = vunpack.c.l.b16 %v894
  %v3159 = vunpack.c.h.b16 %v894
  %v3160 = vunpack.c.l.b16 %v895
  %v3161 = vunpack.c.h.b16 %v895
  %v3162 = vunpack.c.l.b16 %v896
  %v3163 = vunpack.c.h.b16 %v896
  %v3164 = vunpack.c.l.b16 %v897
  %v3165 = vunpack.c.h.b16 %v897
  %v3166 = vunpack.c.l.b16 %v898
  %v3167 = vunpack.c.h.b16 %v898
  %v3168 = vunpack.c.l.b16 %v899
  %v3169 = vunpack.c.h.b16 %v899
  %v3170 = vunpack.c.l.b16 %v900
  %v3171 = vunpack.c.h.b16 %v900
  %v3172 = vunpack.c.l.b16 %v901
  %v3173 = vunpack.c.h.b16 %v901
  %v3174 = vunpack.c.l.b16 %v902
  %v3175 = vunpack.c.h.b16 %v902
  %v3176 = vunpack.c.l.b16 %v903
  %v3177 = vunpack.c.h.b16 %v903
  %v3178 = vunpack.c.l.b16 %v904
  %v3179 = vunpack.c.h.b16 %v904
  %v3180 = vunpack.c.l.b16 %v905
  %v3181 = vunpack.c.h.b16 %v905
  %v3182 = vunpack.c.l.b16 %v906
  %v3183 = vunpack.c.h.b16 %v906
  %v3184 = vunpack.c.l.b16 %v907
  %v3185 = vunpack.c.h.b16 %v907
  %v3186 = vunpack.c.l.b16 %v908
  %v3187 = vunpack.c.h.b16 %v908
  %v3188 = vunpack.c.l.b16 %v909
  %v3189 = vunpack.c.h.b16 %v909
  %v3190 = vunpack.c.l.b16 %v910
  %v3191 = vunpack.c.h.b16 %v910
  %v3192 = vunpack.c.l.b16 %v911
  %v3193 = vunpack.c.h.b16 %v911
  %v3194 = vunpack.c.l.b16 %v912
  %v3195 = vunpack.c.h.b16 %v912
  %v3196 = vunpack.c.l.b16 %v913
  %v3197 = vunpack.c.h.b16 %v913
  %v3198 = vunpack.c.l.b16 %v914
  %v3199 = vunpack.c.h.b16 %v914
  %v3200 = vunpack.c.l.b16 %v915
  %v3201 = vunpack.c.h.b16 %v915
  %v3202 = vunpack.c.l.b16 %v916
  %v3203 = vunpack.c.h.b16 %v916
  %v3204 = vunpack.c.l.b16 %v917
  %v3205 = vunpack.c.h.b16 %v917
  %v3206 = vunpack.c.l.b16 %v918
  %v3207 = vunpack.c.h.b16 %v918
  %v3208 = vunpack.c.l.b16 %v919
  %v3209 = vunpack.c.h.b16 %v919
  %v3210 = vunpack.c.l.b16 %v920
  %v3211 = vunpack.c.h.b16 %v920
  %v3212 = vunpack.c.l.b16 %v921
  %v3213 = vunpack.c.h.b16 %v921
  %v3214 = vunpack.c.l.b16 %v922
  %v3215 = vunpack.c.h.b16 %v922
  %v3216 = vunpack.c.l.b16 %v923
  %v3217 = vunpack.c.h.b16 %v923
  %v3218 = vunpack.c.l.b16 %v924
  %v3219 = vunpack.c.h.b16 %v924
  %v3220 = vunpack.c.l.b16 %v925
  %v3221 = vunpack.c.h.b16 %v925
  %v3222 = vunpack.c.l.b16 %v926
  %v3223 = vunpack.c.h.b16 %v926
  %v3224 = vunpack.c.l.b16 %v927
  %v3225 = vunpack.c.h.b16 %v927
  %v3226 = vunpack.c.l.b16 %v928
  %v3227 = vunpack.c.h.b16 %v928
  %v3228 = vunpack.c.l.b16 %v929
  %v3229 = vunpack.c.h.b16 %v929
  %v3230 = vunpack.c.l.b16 %v930
  %v3231 = vunpack.c.h.b16 %v930
  %v3232 = vunpack.c.l.b16 %v931
  %v3233 = vunpack.c.h.b16 %v931
  %v3234 = vunpack.c.l.b16 %v932
  %v3235 = vunpack.c.h.b16 %v932
  %v3236 = vunpack.c.l.b16 %v933
  %v3237 = vunpack.c.h.b16 %v933
  %v3238 = vunpack.c.l.b16 %v934
  %v3239 = vunpack.c.h.b16 %v934
  %v3240 = vunpack.c.l.b16 %v935
  %v3241 = vunpack.c.h.b16 %v935
  %v3242 = vunpack.c.l.b16 %v936
  %v3243 = vunpack.c.h.b16 %v936
  %v3244 = vunpack.c.l.b16 %v937
  %v3245 = vunpack.c.h.b16 %v937
  %v3246 = vunpack.c.l.b16 %v938
  %v3247 = vunpack.c.h.b16 %v938
  %v3248 = vunpack.c.l.b16 %v939
  %v3249 = vunpack.c.h.b16 %v939
  %v3250 = vunpack.c.l.b16 %v940
  %v3251 = vunpack.c.h.b16 %v940
  %v3252 = vunpack.c.l.b16 %v941
  %v3253 = vunpack.c.h.b16 %v941
  %v3254 = vunpack.c.l.b16 %v942
  %v3255 = vunpack.c.h.b16 %v942
  %v3256 = vunpack.c.l.b16 %v943
  %v3257 = vunpack.c.h.b16 %v943
  %v3258 = vunpack.c.l.b16 %v944
  %v3259 = vunpack.c.h.b16 %v944
  %v3260 = vunpack.c.l.b16 %v945
  %v3261 = vunpack.c.h.b16 %v945
  %v3262 = vunpack.c.l.b16 %v946
  %v3263 = vunpack.c.h.b16 %v946
  %v3264 = vunpack.c.l.b16 %v947
  %v3265 = vunpack.c.h.b16 %v947
  %v3266 = vunpack.c.l.b16 %v948
  %v3267 = vunpack.c.h.b16 %v948
  %v3268 = vunpack.c.l.b16 %v949
  %v3269 = vunpack.c.h.b16 %v949
  %v3270 = vunpack.c.l.b16 %v950
  %v3271 = vunpack.c.h.b16 %v950
  %v3272 = vunpack.c.l.b16 %v951
  %v3273 = vunpack.c.h.b16 %v951
  %v3274 = vunpack.c.l.b16 %v952
  %v3275 = vunpack.c.h.b16 %v952
  %v3276 = vunpack.c.l.b16 %v953
  %v3277 = vunpack.c.h.b16 %v953
  %v3278 = vunpack.c.l.b16 %v954
  %v3279 = vunpack.c.h.b16 %v954
  %v3280 = vunpack.c.l.b16 %v955
  %v3281 = vunpack.c.h.b16 %v955
  %v3282 = vunpack.c.l.b16 %v956
  %v3283 = vunpack.c.h.b16 %v956
  %v3284 = vunpack.c.l.b16 %v957
  %v3285 = vunpack.c.h.b16 %v957
  %v3286 = vunpack.c.l.b16 %v958
  %v3287 = vunpack.c.h.b16 %v958
  %v3288 = vunpack.c.l.b16 %v959
  %v3289 = vunpack.c.h.b16 %v959
  %v3290 = vunpack.c.l.b16 %v960
  %v3291 = vunpack.c.h.b16 %v960
  %v3292 = vunpack.c.l.b16 %v961
  %v3293 = vunpack.c.h.b16 %v961
  %v3294 = vunpack.c.l.b16 %v962
  %v3295 = vunpack.c.h.b16 %v962
  %v3296 = vunpack.c.l.b16 %v963
  %v3297 = vunpack.c.h.b16 %v963
  %v3298 = vunpack.c.l.b16 %v964
  %v3299 = vunpack.c.h.b16 %v964
  %v3300 = vunpack.c.l.b16 %v965
  %v3301 = vunpack.c.h.b16 %v965
  %v3302 = vunpack.c.l.b16 %v966
  %v3303 = vunpack.c.h.b16 %v966
  %v3304 = vunpack.c.l.b16 %v967
  %v3305 = vunpack.c.h.b16 %v967
  %v3306 = vunpack.c.l.b16 %v968
  %v3307 = vunpack.c.h.b16 %v968
  %v3308 = vunpack.c.l.b16 %v969
  %v3309 = vunpack.c.h.b16 %v969
  %v3310 = vunpack.c.l.b16 %v970
  %v3311 = vunpack.c.h.b16 %v970
  %v3312 = vunpack.c.l.b16 %v971
  %v3313 = vunpack.c.h.b16 %v971
  %v3314 = vunpack.c.l.b16 %v972
  %v3315 = vunpack.c.h.b16 %v972
  %v3316 = vunpack.c.l.b16 %v973
  %v3317 = vunpack.c.h.b16 %v973
  %v3318 = vunpack.c.l.b16 %v974
  %v3319 = vunpack.c.h.b16 %v974
  %v3320 = vunpack.c.l.b16 %v975
  %v3321 = vunpack.c.h.b16 %v975
  %v3322 = vunpack.c.l.b16 %v976
  %v3323 = vunpack.c.h.b16 %v976
  %v3324 = vunpack.c.l.b16 %v977
  %v3325 = vunpack.c.h.b16 %v977
  %v3326 = vunpack.c.l.b16 %v978
  %v3327 = vunpack.c.h.b16 %v978
  %v3328 = vunpack.c.l.b16 %v979
  %v3329 = vunpack.c.h.b16 %v979
  %v3330 = vunpack.c.l.b16 %v980
  %v3331 = vunpack.c.h.b16 %v980
  %v3332 = vunpack.c.l.b16 %v981
  %v3333 = vunpack.c.h.b16 %v981
  %v3334 = vunpack.c.l.b16 %v982
  %v3335 = vunpack.c.h.b16 %v982
  %v3336 = vunpack.c.l.b16 %v983
  %v3337 = vunpack.c.h.b16 %v983
  %v3338 = vunpack.c.l.b16 %v984
  %v3339 = vunpack.c.h.b16 %v984
  %v3340 = vunpack.c.l.b16 %v985
  %v3341 = vunpack.c.h.b16 %v985
  %v3342 = vunpack.c.l.b16 %v986
  %v3343 = vunpack.c.h.b16 %v986
  %v3344 = vunpack.c.l.b16 %v987
  %v3345 = vunpack.c.h.b16 %v987
  %v3346 = vunpack.c.l.b16 %v988
  %v3347 = vunpack.c.h.b16 %v988
  %v3348 = vunpack.c.l.b16 %v989
  %v3349 = vunpack.c.h.b16 %v989
  %v3350 = vunpack.c.l.b16 %v990
  %v3351 = vunpack.c.h.b16 %v990
  %v3352 = vunpack.c.l.b16 %v991
  %v3353 = vunpack.c.h.b16 %v991
  %v3354 = vunpack.c.l.b16 %v992
  %v3355 = vunpack.c.h.b16 %v992
  %v3356 = vunpack.c.l.b16 %v993
  %v3357 = vunpack.c.h.b16 %v993
  %v3358 = vunpack.c.l.b16 %v994
  %v3359 = vunpack.c.h.b16 %v994
  %v3360 = vunpack.c.l.b16 %v995
  %v3361 = vunpack.c.h.b16 %v995
  %v3362 = vunpack.c.l.b16 %v996
  %v3363 = vunpack.c.h.b16 %v996
  %v3364 = vunpack.c.l.b16 %v997
  %v3365 = vunpack.c.h.b16 %v997
  %v3366 = vunpack.c.l.b16 %v998
  %v3367 = vunpack.c.h.b16 %v998
  %v3368 = vunpack.c.l.b16 %v999
  %v3369 = vunpack.c.h.b16 %v999
  %v3370 = vunpack.c.l.b16 %v1000
  %v3371 = vunpack.c.h.b16 %v1000
  %v3372 = vunpack.c.l.b16 %v1001
  %v3373 = vunpack.c.h.b16 %v1001
  %v3374 = vunpack.c.l.b16 %v1002
  %v3375 = vunpack.c.h.b16 %v1002
  %v3376 = vunpack.c.l.b16 %v1003
  %v3377 = vunpack.c.h.b16 %v1003
  %v3378 = vunpack.c.l.b16 %v1004
  %v3379 = vunpack.c.h.b16 %v1004
  %v3380 = vunpack.c.l.b16 %v1005
  %v3381 = vunpack.c.h.b16 %v1005
  %v3382 = vunpack.c.l.b16 %v1006
  %v3383 = vunpack.c.h.b16 %v1006
  %v3384 = vunpack.c.l.b16 %v1007
  %v3385 = vunpack.c.h.b16 %v1007
  %v3386 = vunpack.c.l.b16 %v1008
  %v3387 = vunpack.c.h.b16 %v1008
  %v3388 = vunpack.c.l.b16 %v1009
  %v3389 = vunpack.c.h.b16 %v1009
  %v3390 = vunpack.c.l.b16 %v1010
  %v3391 = vunpack.c.h.b16 %v1010
  %v3392 = vunpack.c.l.b16 %v1011
  %v3393 = vunpack.c.h.b16 %v1011
  %v3394 = vunpack.c.l.b16 %v1012
  %v3395 = vunpack.c.h.b16 %v1012
  %v3396 = vunpack.c.l.b16 %v1013
  %v3397 = vunpack.c.h.b16 %v1013
  %v3398 = vunpack.c.l.b16 %v1014
  %v3399 = vunpack.c.h.b16 %v1014
  %v3400 = vunpack.c.l.b16 %v1015
  %v3401 = vunpack.c.h.b16 %v1015
  %v3402 = vunpack.c.l.b16 %v1016
  %v3403 = vunpack.c.h.b16 %v1016
  %v3404 = vunpack.c.l.b16 %v1017
  %v3405 = vunpack.c.h.b16 %v1017
  %v3406 = vunpack.c.l.b16 %v1018
  %v3407 = vunpack.c.h.b16 %v1018
  %v3408 = vunpack.c.l.b16 %v1019
  %v3409 = vunpack.c.h.b16 %v1019
  %v3410 = vunpack.c.l.b16 %v1020
  %v3411 = vunpack.c.h.b16 %v1020
  %v3412 = vunpack.c.l.b16 %v1021
  %v3413 = vunpack.c.h.b16 %v1021
  %v3414 = vunpack.c.l.b16 %v1022
  %v3415 = vunpack.c.h.b16 %v1022
  %v3416 = vunpack.c.l.b16 %v1023
  %v3417 = vunpack.c.h.b16 %v1023
  %v3418 = vunpack.c.l.b16 %v1024
  %v3419 = vunpack.c.h.b16 %v1024
  %v3420 = vunpack.c.l.b16 %v1025
  %v3421 = vunpack.c.h.b16 %v1025
  %v3422 = vunpack.c.l.b16 %v1026
  %v3423 = vunpack.c.h.b16 %v1026
  %v3424 = vunpack.c.l.b16 %v1027
  %v3425 = vunpack.c.h.b16 %v1027
  %v3426 = vunpack.c.l.b16 %v1028
  %v3427 = vunpack.c.h.b16 %v1028
  %v3428 = vunpack.c.l.b16 %v1029
  %v3429 = vunpack.c.h.b16 %v1029
  %v3430 = vunpack.c.l.b16 %v1030
  %v3431 = vunpack.c.h.b16 %v1030
  %v3432 = vunpack.c.l.b16 %v1031
  %v3433 = vunpack.c.h.b16 %v1031
  %v3434 = vunpack.c.l.b16 %v1032
  %v3435 = vunpack.c.h.b16 %v1032
  %v3436 = vunpack.c.l.b16 %v1033
  %v3437 = vunpack.c.h.b16 %v1033
  %v3438 = vunpack.c.l.b16 %v1034
  %v3439 = vunpack.c.h.b16 %v1034
  %v3440 = vunpack.c.l.b16 %v1035
  %v3441 = vunpack.c.h.b16 %v1035
  %v3442 = vunpack.c.l.b16 %v1036
  %v3443 = vunpack.c.h.b16 %v1036
  %v3444 = vunpack.c.l.b16 %v1037
  %v3445 = vunpack.c.h.b16 %v1037
  %v3446 = vunpack.c.l.b16 %v1038
  %v3447 = vunpack.c.h.b16 %v1038
  %v3448 = vunpack.c.l.b16 %v1039
  %v3449 = vunpack.c.h.b16 %v1039
  %v3450 = vunpack.c.l.b16 %v1040
  %v3451 = vunpack.c.h.b16 %v1040
  %v3452 = vunpack.c.l.b16 %v1041
  %v3453 = vunpack.c.h.b16 %v1041
  %v3454 = vunpack.c.l.b16 %v1042
  %v3455 = vunpack.c.h.b16 %v1042
  %v3456 = vunpack.c.l.b16 %v1043
  %v3457 = vunpack.c.h.b16 %v1043
  %v3458 = vunpack.c.l.b16 %v1044
  %v3459 = vunpack.c.h.b16 %v1044
  %v3460 = vunpack.c.l.b16 %v1045
  %v3461 = vunpack.c.h.b16 %v1045
  %v3462 = vunpack.c.l.b16 %v1046
  %v3463 = vunpack.c.h.b16 %v1046
  %v3464 = vunpack.c.l.b16 %v1047
  %v3465 = vunpack.c.h.b16 %v1047
  %v3466 = vunpack.c.l.b16 %v1048
  %v3467 = vunpack.c.h.b16 %v1048
  %v3468 = vunpack.c.l.b16 %v1049
  %v3469 = vunpack.c.h.b16 %v1049
  %v3470 = vunpack.c.l.b16 %v1050
  %v3471 = vunpack.c.h.b16 %v1050
  %v3472 = vunpack.c.l.b16 %v1051
  %v3473 = vunpack.c.h.b16 %v1051
  %v3474 = vunpack.c.l.b16 %v1052
  %v3475 = vunpack.c.h.b16 %v1052
  %v3476 = vunpack.c.l.b16 %v1053
  %v3477 = vunpack.c.h.b16 %v1053
  %v3478 = vunpack.c.l.b16 %v1054
  %v3479 = vunpack.c.h.b16 %v1054
  %v3480 = vunpack.c.l.b16 %v1055
  %v3481 = vunpack.c.h.b16 %v1055
  %v3482 = vunpack.c.l.b16 %v1056
  %v3483 = vunpack.c.h.b16 %v1056
  %v3484 = vunpack.c.l.b16 %v1057
  %v3485 = vunpack.c.h.b16 %v1057
  %v3486 = vunpack.c.l.b16 %v1058
  %v3487 = vunpack.c.h.b16 %v1058
  %v3488 = vunpack.c.l.b16 %v1059
  %v3489 = vunpack.c.h.b16 %v1059
  %v3490 = vunpack.c.l.b16 %v1060
  %v3491 = vunpack.c.h.b16 %v1060
  %v3492 = vunpack.c.l.b16 %v1061
  %v3493 = vunpack.c.h.b16 %v1061
  %v3494 = vunpack.c.l.b16 %v1062
  %v3495 = vunpack.c.h.b16 %v1062
  %v3496 = vunpack.c.l.b16 %v1063
  %v3497 = vunpack.c.h.b16 %v1063
  %v3498 = vunpack.c.l.b16 %v1064
  %v3499 = vunpack.c.h.b16 %v1064
  %v3500 = vunpack.c.l.b16 %v1065
  %v3501 = vunpack.c.h.b16 %v1065
  %v3502 = vunpack.c.l.b16 %v1066
  %v3503 = vunpack.c.h.b16 %v1066
  %v3504 = vunpack.c.l.b16 %v1067
  %v3505 = vunpack.c.h.b16 %v1067
  %v3506 = vunpack.c.l.b16 %v1068
  %v3507 = vunpack.c.h.b16 %v1068
  %v3508 = vunpack.c.l.b16 %v1069
  %v3509 = vunpack.c.h.b16 %v1069
  %v3510 = vunpack.c.l.b16 %v1070
  %v3511 = vunpack.c.h.b16 %v1070
  %v3512 = vunpack.c.l.b16 %v1071
  %v3513 = vunpack.c.h.b16 %v1071
  %v3514 = vunpack.c.l.b16 %v1072
  %v3515 = vunpack.c.h.b16 %v1072
  %v3516 = vunpack.c.l.b16 %v1073
  %v3517 = vunpack.c.h.b16 %v1073
  %v3518 = vunpack.c.l.b16 %v1074
  %v3519 = vunpack.c.h.b16 %v1074
  %v3520 = vunpack.c.l.b16 %v1075
  %v3521 = vunpack.c.h.b16 %v1075
  %v3522 = vunpack.c.l.b16 %v1076
  %v3523 = vunpack.c.h.b16 %v1076
  %v3524 = vunpack.c.l.b16 %v1077
  %v3525 = vunpack.c.h.b16 %v1077
  %v3526 = vunpack.c.l.b16 %v1078
  %v3527 = vunpack.c.h.b16 %v1078
  %v3528 = vunpack.c.l.b16 %v1079
  %v3529 = vunpack.c.h.b16 %v1079
  %v3530 = vunpack.c.l.b16 %v1080
  %v3531 = vunpack.c.h.b16 %v1080
  %v3532 = vunpack.c.l.b16 %v1081
  %v3533 = vunpack.c.h.b16 %v1081
  %v3534 = vunpack.c.l.b16 %v1082
  %v3535 = vunpack.c.h.b16 %v1082
  %v3536 = vunpack.c.l.b16 %v1083
  %v3537 = vunpack.c.h.b16 %v1083
  %v3538 = vunpack.c.l.b16 %v1084
  %v3539 = vunpack.c.h.b16 %v1084
  %v3540 = vunpack.c.l.b16 %v1085
  %v3541 = vunpack.c.h.b16 %v1085
  %v3542 = vunpack.c.l.b16 %v1086
  %v3543 = vunpack.c.h.b16 %v1086
  %v3544 = vunpack.c.l.b16 %v1087
  %v3545 = vunpack.c.h.b16 %v1087
  %v3546 = vunpack.c.l.b16 %v1088
  %v3547 = vunpack.c.h.b16 %v1088
  %v3548 = vunpack.c.l.b16 %v1089
  %v3549 = vunpack.c.h.b16 %v1089
  %v3550 = vunpack.c.l.b16 %v1090
  %v3551 = vunpack.c.h.b16 %v1090
  %v3552 = vunpack.c.l.b16 %v1091
  %v3553 = vunpack.c.h.b16 %v1091
  %v3554 = vunpack.c.l.b16 %v1092
  %v3555 = vunpack.c.h.b16 %v1092
  %v3556 = vunpack.c.l.b16 %v1093
  %v3557 = vunpack.c.h.b16 %v1093
  %v3558 = vunpack.c.l.b16 %v1094
  %v3559 = vunpack.c.h.b16 %v1094
  %v3560 = vunpack.c.l.b16 %v1095
  %v3561 = vunpack.c.h.b16 %v1095
  %v3562 = vunpack.c.l.b16 %v1096
  %v3563 = vunpack.c.h.b16 %v1096
  %v3564 = vunpack.c.l.b16 %v1097
  %v3565 = vunpack.c.h.b16 %v1097
  %v3566 = vunpack.c.l.b16 %v1098
  %v3567 = vunpack.c.h.b16 %v1098
  %v3568 = vunpack.c.l.b16 %v1099
  %v3569 = vunpack.c.h.b16 %v1099
  %v3570 = vunpack.c.l.b16 %v1100
  %v3571 = vunpack.c.h.b16 %v1100
  %v3572 = vunpack.c.l.b16 %v1101
  %v3573 = vunpack.c.h.b16 %v1101
  %v3574 = vunpack.c.l.b16 %v1102
  %v3575 = vunpack.c.h.b16 %v1102
  %v3576 = vunpack.c.l.b16 %v1103
  %v3577 = vunpack.c.h.b16 %v1103
  %v3578 = vunpack.c.l.b16 %v1104
  %v3579 = vunpack.c.h.b16 %v1104
  %v3580 = vunpack.c.l.b16 %v1105
  %v3581 = vunpack.c.h.b16 %v1105
  %v3582 = vunpack.c.l.b16 %v1106
  %v3583 = vunpack.c.h.b16 %v1106
  %v3584 = vunpack.c.l.b16 %v1107
  %v3585 = vunpack.c.h.b16 %v1107
  %v3586 = vunpack.c.l.b16 %v1108
  %v3587 = vunpack.c.h.b16 %v1108
  %v3588 = vunpack.c.l.b16 %v1109
  %v3589 = vunpack.c.h.b16 %v1109
  %v3590 = vunpack.c.l.b16 %v1110
  %v3591 = vunpack.c.h.b16 %v1110
  %v3592 = vunpack.c.l.b16 %v1111
  %v3593 = vunpack.c.h.b16 %v1111
  %v3594 = vunpack.c.l.b16 %v1112
  %v3595 = vunpack.c.h.b16 %v1112
  %v3596 = vunpack.c.l.b16 %v1113
  %v3597 = vunpack.c.h.b16 %v1113
  %v3598 = vunpack.c.l.b16 %v1114
  %v3599 = vunpack.c.h.b16 %v1114
  %v3600 = vunpack.c.l.b16 %v1115
  %v3601 = vunpack.c.h.b16 %v1115
  %v3602 = vunpack.c.l.b16 %v1116
  %v3603 = vunpack.c.h.b16 %v1116
  %v3604 = vunpack.c.l.b16 %v1117
  %v3605 = vunpack.c.h.b16 %v1117
  %v3606 = vunpack.c.l.b16 %v1118
  %v3607 = vunpack.c.h.b16 %v1118
  %v3608 = vunpack.c.l.b16 %v1119
  %v3609 = vunpack.c.h.b16 %v1119
  %v3610 = vunpack.c.l.b16 %v1120
  %v3611 = vunpack.c.h.b16 %v1120
  %v3612 = vunpack.c.l.b16 %v1121
  %v3613 = vunpack.c.h.b16 %v1121
  %v3614 = vunpack.c.l.b16 %v1122
  %v3615 = vunpack.c.h.b16 %v1122
  %v3616 = vunpack.c.l.b16 %v1123
  %v3617 = vunpack.c.h.b16 %v1123
  %v3618 = vunpack.c.l.b16 %v1124
  %v3619 = vunpack.c.h.b16 %v1124
  %v3620 = vunpack.c.l.b16 %v1125
  %v3621 = vunpack.c.h.b16 %v1125
  %v3622 = vunpack.c.l.b16 %v1126
  %v3623 = vunpack.c.h.b16 %v1126
  %v3624 = vunpack.c.l.b16 %v1127
  %v3625 = vunpack.c.h.b16 %v1127
  %v3626 = vunpack.c.l.b16 %v1128
  %v3627 = vunpack.c.h.b16 %v1128
  %v3628 = vunpack.c.l.b16 %v1129
  %v3629 = vunpack.c.h.b16 %v1129
  %v3630 = vunpack.c.l.b16 %v1130
  %v3631 = vunpack.c.h.b16 %v1130
  %v3632 = vunpack.c.l.b16 %v1131
  %v3633 = vunpack.c.h.b16 %v1131
  %v3634 = vunpack.c.l.b16 %v1132
  %v3635 = vunpack.c.h.b16 %v1132
  %v3636 = vunpack.c.l.b16 %v1133
  %v3637 = vunpack.c.h.b16 %v1133
  %v3638 = vunpack.c.l.b16 %v1134
  %v3639 = vunpack.c.h.b16 %v1134
  %v3640 = vunpack.c.l.b16 %v1135
  %v3641 = vunpack.c.h.b16 %v1135
  %v3642 = vunpack.c.l.b16 %v1136
  %v3643 = vunpack.c.h.b16 %v1136
  %v3644 = vunpack.c.l.b16 %v1137
  %v3645 = vunpack.c.h.b16 %v1137
  %v3646 = vunpack.c.l.b16 %v1138
  %v3647 = vunpack.c.h.b16 %v1138
  %v3648 = vunpack.c.l.b16 %v1139
  %v3649 = vunpack.c.h.b16 %v1139
  %v3650 = vunpack.c.l.b16 %v1140
  %v3651 = vunpack.c.h.b16 %v1140
  %v3652 = vunpack.c.l.b16 %v1141
  %v3653 = vunpack.c.h.b16 %v1141
  %v3654 = vunpack.c.l.b16 %v1142
  %v3655 = vunpack.c.h.b16 %v1142
  %v3656 = vunpack.c.l.b16 %v1143
  %v3657 = vunpack.c.h.b16 %v1143
  %v3658 = vunpack.c.l.b16 %v1144
  %v3659 = vunpack.c.h.b16 %v1144
  %v3660 = vunpack.c.l.b16 %v1145
  %v3661 = vunpack.c.h.b16 %v1145
  %v3662 = vunpack.c.l.b16 %v1146
  %v3663 = vunpack.c.h.b16 %v1146
  %v3664 = vunpack.c.l.b16 %v1147
  %v3665 = vunpack.c.h.b16 %v1147
  %v3666 = vunpack.c.l.b16 %v1148
  %v3667 = vunpack.c.h.b16 %v1148
  %v3668 = vunpack.c.l.b16 %v1149
  %v3669 = vunpack.c.h.b16 %v1149
  %v3670 = vunpack.c.l.b16 %v1150
  %v3671 = vunpack.c.h.b16 %v1150
  %v3672 = vunpack.c.l.b16 %v1151
  %v3673 = vunpack.c.h.b16 %v1151
  %v3674 = vunpack.c.l.b16 %v1152
  %v3675 = vunpack.c.h.b16 %v1152
  %v3676 = vunpack.c.l.b16 %v1153
  %v3677 = vunpack.c.h.b16 %v1153
  %v3678 = vunpack.c.l.b16 %v1154
  %v3679 = vunpack.c.h.b16 %v1154
  %v3680 = vunpack.c.l.b16 %v1155
  %v3681 = vunpack.c.h.b16 %v1155
  %v3682 = vunpack.c.l.b16 %v1156
  %v3683 = vunpack.c.h.b16 %v1156
  %v3684 = vunpack.c.l.b16 %v1157
  %v3685 = vunpack.c.h.b16 %v1157
  %v3686 = vunpack.c.l.b16 %v1158
  %v3687 = vunpack.c.h.b16 %v1158
  %v3688 = vunpack.c.l.b16 %v1159
  %v3689 = vunpack.c.h.b16 %v1159
  %v3690 = vunpack.c.l.b16 %v1160
  %v3691 = vunpack.c.h.b16 %v1160
  %v3692 = vunpack.c.l.b16 %v1161
  %v3693 = vunpack.c.h.b16 %v1161
  %v3694 = vunpack.c.l.b16 %v1162
  %v3695 = vunpack.c.h.b16 %v1162
  %v3696 = vunpack.c.l.b16 %v1163
  %v3697 = vunpack.c.h.b16 %v1163
  %v3698 = vunpack.c.l.b16 %v1164
  %v3699 = vunpack.c.h.b16 %v1164
  %v3700 = vunpack.c.l.b16 %v1165
  %v3701 = vunpack.c.h.b16 %v1165
  %v3702 = vunpack.c.l.b16 %v1166
  %v3703 = vunpack.c.h.b16 %v1166
  %v3704 = vunpack.c.l.b16 %v1167
  %v3705 = vunpack.c.h.b16 %v1167
  %v3706 = vunpack.c.l.b16 %v1168
  %v3707 = vunpack.c.h.b16 %v1168
  %v3708 = vunpack.c.l.b16 %v1169
  %v3709 = vunpack.c.h.b16 %v1169
  %v3710 = vunpack.c.l.b16 %v1170
  %v3711 = vunpack.c.h.b16 %v1170
  %v3712 = vunpack.c.l.b16 %v1171
  %v3713 = vunpack.c.h.b16 %v1171
  %v3714 = vunpack.c.l.b16 %v1172
  %v3715 = vunpack.c.h.b16 %v1172
  %v3716 = vunpack.c.l.b16 %v1173
  %v3717 = vunpack.c.h.b16 %v1173
  %v3718 = vunpack.c.l.b16 %v1174
  %v3719 = vunpack.c.h.b16 %v1174
  %v3720 = vunpack.c.l.b16 %v1175
  %v3721 = vunpack.c.h.b16 %v1175
  %v3722 = vunpack.c.l.b16 %v1176
  %v3723 = vunpack.c.h.b16 %v1176
  %v3724 = vunpack.c.l.b16 %v1177
  %v3725 = vunpack.c.h.b16 %v1177
  %v3726 = vunpack.c.l.b16 %v1178
  %v3727 = vunpack.c.h.b16 %v1178
  %v3728 = vunpack.c.l.b16 %v1179
  %v3729 = vunpack.c.h.b16 %v1179
  %v3730 = vunpack.c.l.b16 %v1180
  %v3731 = vunpack.c.h.b16 %v1180
  %v3732 = vunpack.c.l.b16 %v1181
  %v3733 = vunpack.c.h.b16 %v1181
  %v3734 = vunpack.c.l.b16 %v1182
  %v3735 = vunpack.c.h.b16 %v1182
  %v3736 = vunpack.c.l.b16 %v1183
  %v3737 = vunpack.c.h.b16 %v1183
  %v3738 = vunpack.c.l.b16 %v1184
  %v3739 = vunpack.c.h.b16 %v1184
  %v3740 = vunpack.c.l.b16 %v1185
  %v3741 = vunpack.c.h.b16 %v1185
  %v3742 = vunpack.c.l.b16 %v1186
  %v3743 = vunpack.c.h.b16 %v1186
  %v3744 = vunpack.c.l.b16 %v1187
  %v3745 = vunpack.c.h.b16 %v1187
  %v3746 = vunpack.c.l.b16 %v1188
  %v3747 = vunpack.c.h.b16 %v1188
  %v3748 = vunpack.c.l.b16 %v1189
  %v3749 = vunpack.c.h.b16 %v1189
  %v3750 = vunpack.c.l.b16 %v1190
  %v3751 = vunpack.c.h.b16 %v1190
  %v3752 = vunpack.c.l.b16 %v1191
  %v3753 = vunpack.c.h.b16 %v1191
  %v3754 = vunpack.c.l.b16 %v1192
  %v3755 = vunpack.c.h.b16 %v1192
  %v3756 = vunpack.c.l.b16 %v1193
  %v3757 = vunpack.c.h.b16 %v1193
  %v3758 = vunpack.c.l.b16 %v1194
  %v3759 = vunpack.c.h.b16 %v1194
  %v3760 = vunpack.c.l.b16 %v1195
  %v3761 = vunpack.c.h.b16 %v1195
  %v3762 = vunpack.c.l.b16 %v1196
  %v3763 = vunpack.c.h.b16 %v1196
  %v3764 = vunpack.c.l.b16 %v1197
  %v3765 = vunpack.c.h.b16 %v1197
  %v3766 = vunpack.c.l.b16 %v1198
  %v3767 = vunpack.c.h.b16 %v1198
  %v3768 = vunpack.c.l.b16 %v1199
  %v3769 = vunpack.c.h.b16 %v1199
  %v3770 = vunpack.c.l.b16 %v1200
  %v3771 = vunpack.c.h.b16 %v1200
  %v3772 = vunpack.c.l.b16 %v1201
  %v3773 = vunpack.c.h.b16 %v1201
  %v3774 = vunpack.c.l.b16 %v1202
  %v3775 = vunpack.c.h.b16 %v1202
  %v3776 = vunpack.c.l.b16 %v1203
  %v3777 = vunpack.c.h.b16 %v1203
  %v3778 = vunpack.c.l.b16 %v1204
  %v3779 = vunpack.c.h.b16 %v1204
  %v3780 = vunpack.c.l.b16 %v1205
  %v3781 = vunpack.c.h.b16 %v1205
  %v3782 = vunpack.c.l.b16 %v1206
  %v3783 = vunpack.c.h.b16 %v1206
  %v3784 = vunpack.c.l.b16 %v1207
  %v3785 = vunpack.c.h.b16 %v1207
  %v3786 = vunpack.c.l.b16 %v1208
  %v3787 = vunpack.c.h.b16 %v1208
  %v3788 = vunpack.c.l.b16 %v1209
  %v3789 = vunpack.c.h.b16 %v1209
  %v3790 = vunpack.c.l.b16 %v1210
  %v3791 = vunpack.c.h.b16 %v1210
  %v3792 = vunpack.c.l.b16 %v1211
  %v3793 = vunpack.c.h.b16 %v1211
  %v3794 = vunpack.c.l.b16 %v1212
  %v3795 = vunpack.c.h.b16 %v1212
  %v3796 = vunpack.c.l.b16 %v1213
  %v3797 = vunpack.c.h.b16 %v1213
  %v3798 = vunpack.c.l.b16 %v1214
  %v3799 = vunpack.c.h.b16 %v1214
  %v3800 = vunpack.c.l.b16 %v1215
  %v3801 = vunpack.c.h.b16 %v1215
  %v3802 = vunpack.c.l.b16 %v1216
  %v3803 = vunpack.c.h.b16 %v1216
  %v3804 = vunpack.c.l.b16 %v1217
  %v3805 = vunpack.c.h.b16 %v1217
  %v3806 = vunpack.c.l.b16 %v1218
  %v3807 = vunpack.c.h.b16 %v1218
  %v3808 = vunpack.c.l.b16 %v1219
  %v3809 = vunpack.c.h.b16 %v1219
  %v3810 = vunpack.c.l.b16 %v1220
  %v3811 = vunpack.c.h.b16 %v1220
  %v3812 = vunpack.c.l.b16 %v1221
  %v3813 = vunpack.c.h.b16 %v1221
  %v3814 = vunpack.c.l.b16 %v1222
  %v3815 = vunpack.c.h.b16 %v1222
  %v3816 = vunpack.c.l.b16 %v1223
  %v3817 = vunpack.c.h.b16 %v1223
  %v3818 = vunpack.c.l.b16 %v1224
  %v3819 = vunpack.c.h.b16 %v1224
  %v3820 = vunpack.c.l.b16 %v1225
  %v3821 = vunpack.c.h.b16 %v1225
  %v3822 = vunpack.c.l.b16 %v1226
  %v3823 = vunpack.c.h.b16 %v1226
  %v3824 = vunpack.c.l.b16 %v1227
  %v3825 = vunpack.c.h.b16 %v1227
  %v3826 = vunpack.c.l.b16 %v1228
  %v3827 = vunpack.c.h.b16 %v1228
  %v3828 = vunpack.c.l.b16 %v1229
  %v3829 = vunpack.c.h.b16 %v1229
  %v3830 = vunpack.c.l.b16 %v1230
  %v3831 = vunpack.c.h.b16 %v1230
  %v3832 = vunpack.c.l.b16 %v1231
  %v3833 = vunpack.c.h.b16 %v1231
  %v3834 = vunpack.c.l.b16 %v1232
  %v3835 = vunpack.c.h.b16 %v1232
  %v3836 = vunpack.c.l.b16 %v1233
  %v3837 = vunpack.c.h.b16 %v1233
  %v3838 = vunpack.c.l.b16 %v1234
  %v3839 = vunpack.c.h.b16 %v1234
  %v3840 = vunpack.c.l.b16 %v1235
  %v3841 = vunpack.c.h.b16 %v1235
  %v3842 = vunpack.c.l.b16 %v1236
  %v3843 = vunpack.c.h.b16 %v1236
  %v3844 = vunpack.c.l.b16 %v1237
  %v3845 = vunpack.c.h.b16 %v1237
  %v3846 = vunpack.c.l.b16 %v1238
  %v3847 = vunpack.c.h.b16 %v1238
  %v3848 = vunpack.c.l.b16 %v1239
  %v3849 = vunpack.c.h.b16 %v1239
  %v3850 = vunpack.c.l.b16 %v1240
  %v3851 = vunpack.c.h.b16 %v1240
  %v3852 = vunpack.c.l.b16 %v1241
  %v3853 = vunpack.c.h.b16 %v1241
  %v3854 = vunpack.c.l.b16 %v1242
  %v3855 = vunpack.c.h.b16 %v1242
  %v3856 = vunpack.c.l.b16 %v1243
  %v3857 = vunpack.c.h.b16 %v1243
  %v3858 = vunpack.c.l.b16 %v1244
  %v3859 = vunpack.c.h.b16 %v1244
  %v3860 = vunpack.c.l.b16 %v1245
  %v3861 = vunpack.c.h.b16 %v1245
  %v3862 = vunpack.c.l.b16 %v1246
  %v3863 = vunpack.c.h.b16 %v1246
  %v3864 = vunpack.c.l.b16 %v1247
  %v3865 = vunpack.c.h.b16 %v1247
  %v3866 = vunpack.c.l.b16 %v1248
  %v3867 = vunpack.c.h.b16 %v1248
  %v3868 = vunpack.c.l.b16 %v1249
  %v3869 = vunpack.c.h.b16 %v1249
  %v3870 = vunpack.c.l.b16 %v1250
  %v3871 = vunpack.c.h.b16 %v1250
  %v3872 = vunpack.c.l.b16 %v1251
  %v3873 = vunpack.c.h.b16 %v1251
  %v3874 = vunpack.c.l.b16 %v1252
  %v3875 = vunpack.c.h.b16 %v1252
  %v3876 = vunpack.c.l.b16 %v1253
  %v3877 = vunpack.c.h.b16 %v1253
  %v3878 = vunpack.c.l.b16 %v1254
  %v3879 = vunpack.c.h.b16 %v1254
  %v3880 = vunpack.c.l.b16 %v1255
  %v3881 = vunpack.c.h.b16 %v1255
  %v3882 = vunpack.c.l.b16 %v1256
  %v3883 = vunpack.c.h.b16 %v1256
  %v3884 = vunpack.c.l.b16 %v1257
  %v3885 = vunpack.c.h.b16 %v1257
  %v3886 = vunpack.c.l.b16 %v1258
  %v3887 = vunpack.c.h.b16 %v1258
  %v3888 = vunpack.c.l.b16 %v1259
  %v3889 = vunpack.c.h.b16 %v1259
  %v3890 = vunpack.c.l.b16 %v1260
  %v3891 = vunpack.c.h.b16 %v1260
  %v3892 = vunpack.c.l.b16 %v1261
  %v3893 = vunpack.c.h.b16 %v1261
  %v3894 = vunpack.c.l.b16 %v1262
  %v3895 = vunpack.c.h.b16 %v1262
  %v3896 = vunpack.c.l.b16 %v1263
  %v3897 = vunpack.c.h.b16 %v1263
  %v3898 = vunpack.c.l.b16 %v1264
  %v3899 = vunpack.c.h.b16 %v1264
  %v3900 = vunpack.c.l.b16 %v1265
  %v3901 = vunpack.c.h.b16 %v1265
  %v3902 = vunpack.c.l.b16 %v1266
  %v3903 = vunpack.c.h.b16 %v1266
  %v3904 = vunpack.c.l.b16 %v1267
  %v3905 = vunpack.c.h.b16 %v1267
  %v3906 = vunpack.c.l.b16 %v1268
  %v3907 = vunpack.c.h.b16 %v1268
  %v3908 = vunpack.c.l.b16 %v1269
  %v3909 = vunpack.c.h.b16 %v1269
  %v3910 = vunpack.c.l.b16 %v1270
  %v3911 = vunpack.c.h.b16 %v1270
  %v3912 = vunpack.c.l.b16 %v1271
  %v3913 = vunpack.c.h.b16 %v1271
  %v3914 = vunpack.c.l.b16 %v1272
  %v3915 = vunpack.c.h.b16 %v1272
  %v3916 = vunpack.c.l.b16 %v1273
  %v3917 = vunpack.c.h.b16 %v1273
  %v3918 = vunpack.c.l.b16 %v1274
  %v3919 = vunpack.c.h.b16 %v1274
  %v3920 = vunpack.c.l.b16 %v1275
  %v3921 = vunpack.c.h.b16 %v1275
  %v3922 = vunpack.c.l.b16 %v1276
  %v3923 = vunpack.c.h.b16 %v1276
  %v3924 = vunpack.c.l.b16 %v1277
  %v3925 = vunpack.c.h.b16 %v1277
  %v3926 = vunpack.c.l.b16 %v1278
  %v3927 = vunpack.c.h.b16 %v1278
  %v3928 = vunpack.c.l.b16 %v1279
  %v3929 = vunpack.c.h.b16 %v1279
  %v3930 = vunpack.c.l.b16 %v1280
  %v3931 = vunpack.c.h.b16 %v1280
  %v3932 = vunpack.c.l.b16 %v1281
  %v3933 = vunpack.c.h.b16 %v1281
  %v3934 = vunpack.c.l.b16 %v1282
  %v3935 = vunpack.c.h.b16 %v1282
  %v3936 = vunpack.c.l.b16 %v1283
  %v3937 = vunpack.c.h.b16 %v1283
  %v3938 = vunpack.c.l.b16 %v1284
  %v3939 = vunpack.c.h.b16 %v1284
  %v3940 = vunpack.c.l.b16 %v1285
  %v3941 = vunpack.c.h.b16 %v1285
  %v3942 = vunpack.c.l.b16 %v1286
  %v3943 = vunpack.c.h.b16 %v1286
  %v3944 = vunpack.c.l.b16 %v1287
  %v3945 = vunpack.c.h.b16 %v1287
  %v3946 = vunpack.c.l.b16 %v1288
  %v3947 = vunpack.c.h.b16 %v1288
  %v3948 = vunpack.c.l.b16 %v1289
  %v3949 = vunpack.c.h.b16 %v1289
  %v3950 = vunpack.c.l.b16 %v1290
  %v3951 = vunpack.c.h.b16 %v1290
  %v3952 = vunpack.c.l.b16 %v1291
  %v3953 = vunpack.c.h.b16 %v1291
  %v3954 = vunpack.c.l.b16 %v1292
  %v3955 = vunpack.c.h.b16 %v1292
  %v3956 = vunpack.c.l.b16 %v1293
  %v3957 = vunpack.c.h.b16 %v1293
  %v3958 = vunpack.c.l.b16 %v1294
  %v3959 = vunpack.c.h.b16 %v1294
  %v3960 = vunpack.c.l.b16 %v1295
  %v3961 = vunpack.c.h.b16 %v1295
  %v3962 = vunpack.c.l.b16 %v1296
  %v3963 = vunpack.c.h.b16 %v1296
  %v3964 = vunpack.c.l.b16 %v1297
  %v3965 = vunpack.c.h.b16 %v1297
  %v3966 = vunpack.c.l.b16 %v1298
  %v3967 = vunpack.c.h.b16 %v1298
  %v3968 = vunpack.c.l.b16 %v1299
  %v3969 = vunpack.c.h.b16 %v1299
  %v3970 = vunpack.c.l.b16 %v1300
  %v3971 = vunpack.c.h.b16 %v1300
  %v3972 = vunpack.c.l.b16 %v1301
  %v3973 = vunpack.c.h.b16 %v1301
  %v3974 = vunpack.c.l.b16 %v1302
  %v3975 = vunpack.c.h.b16 %v1302
  %v3976 = vunpack.c.l.b16 %v1303
  %v3977 = vunpack.c.h.b16 %v1303
  %v3978 = vunpack.c.l.b16 %v1304
  %v3979 = vunpack.c.h.b16 %v1304
  %v3980 = vunpack.c.l.b16 %v1305
  %v3981 = vunpack.c.h.b16 %v1305
  %v3982 = vunpack.c.l.b16 %v1306
  %v3983 = vunpack.c.h.b16 %v1306
  %v3984 = vunpack.c.l.b16 %v1307
  %v3985 = vunpack.c.h.b16 %v1307
  %v3986 = vunpack.c.l.b16 %v1308
  %v3987 = vunpack.c.h.b16 %v1308
  %v3988 = vunpack.c.l.b16 %v1309
  %v3989 = vunpack.c.h.b16 %v1309
  %v3990 = vunpack.c.l.b16 %v1310
  %v3991 = vunpack.c.h.b16 %v1310
  %v3992 = vunpack.c.l.b16 %v1311
  %v3993 = vunpack.c.h.b16 %v1311
  %v3994 = vunpack.c.l.b16 %v1312
  %v3995 = vunpack.c.h.b16 %v1312
  %v3996 = vunpack.c.l.b16 %v1313
  %v3997 = vunpack.c.h.b16 %v1313
  %v3998 = vunpack.c.l.b16 %v1314
  %v3999 = vunpack.c.h.b16 %v1314
  %v4000 = vunpack.c.l.b16 %v1315
  %v4001 = vunpack.c.h.b16 %v1315
  %v4002 = vunpack.c.l.b16 %v1316
  %v4003 = vunpack.c.h.b16 %v1316
  %v4004 = vunpack.c.l.b16 %v1317
  %v4005 = vunpack.c.h.b16 %v1317
  %v4006 = vpack.c.b16 %v2230, %v2214
  %v4007 = vpack.c.b16 %v2231, %v2215
  %v4008 = vpack.c.b16 %v2232, %v2216
  %v4009 = vpack.c.b16 %v2233, %v2217
  %v4010 = vpack.c.b16 %v2234, %v2218
  %v4011 = vpack.c.b16 %v2235, %v2219
  %v4012 = vpack.c.b16 %v2236, %v2220
  %v4013 = vpack.c.b16 %v2237, %v2221
  %v4014 = vpack.c.b16 %v2238, %v2222
  %v4015 = vpack.c.b16 %v2239, %v2223
  %v4016 = vpack.c.b16 %v2240, %v2224
  %v4017 = vpack.c.b16 %v2241, %v2225
  %v4018 = vpack.c.b16 %v2242, %v2226
  %v4019 = vpack.c.b16 %v2243, %v2227
  %v4020 = vpack.c.b16 %v2244, %v2228
  %v4021 = vpack.c.b16 %v2245, %v2229
  %v4022 = vpack.c.b16 %v2262, %v2246
  %v4023 = vpack.c.b16 %v2263, %v2247
  %v4024 = vpack.c.b16 %v2264, %v2248
  %v4025 = vpack.c.b16 %v2265, %v2249
  %v4026 = vpack.c.b16 %v2266, %v2250
  %v4027 = vpack.c.b16 %v2267, %v2251
  %v4028 = vpack.c.b16 %v2268, %v2252
  %v4029 = vpack.c.b16 %v2269, %v2253
  %v4030 = vpack.c.b16 %v2270, %v2254
  %v4031 = vpack.c.b16 %v2271, %v2255
  %v4032 = vpack.c.b16 %v2272, %v2256
  %v4033 = vpack.c.b16 %v2273, %v2257
  %v4034 = vpack.c.b16 %v2274, %v2258
  %v4035 = vpack.c.b16 %v2275, %v2259
  %v4036 = vpack.c.b16 %v2276, %v2260
  %v4037 = vpack.c.b16 %v2277, %v2261
  %v4038 = vpack.c.b16 %v2294, %v2278
  %v4039 = vpack.c.b16 %v2295, %v2279
  %v4040 = vpack.c.b16 %v2296, %v2280
  %v4041 = vpack.c.b16 %v2297, %v2281
  %v4042 = vpack.c.b16 %v2298, %v2282
  %v4043 = vpack.c.b16 %v2299, %v2283
  %v4044 = vpack.c.b16 %v2300, %v2284
  %v4045 = vpack.c.b16 %v2301, %v2285
  %v4046 = vpack.c.b16 %v2302, %v2286
  %v4047 = vpack.c.b16 %v2303, %v2287
  %v4048 = vpack.c.b16 %v2304, %v2288
  %v4049 = vpack.c.b16 %v2305, %v2289
  %v4050 = vpack.c.b16 %v2306, %v2290
  %v4051 = vpack.c.b16 %v2307, %v2291
  %v4052 = vpack.c.b16 %v2308, %v2292
  %v4053 = vpack.c.b16 %v2309, %v2293
  %v4054 = vpack.c.b16 %v2326, %v2310
  %v4055 = vpack.c.b16 %v2327, %v2311
  %v4056 = vpack.c.b16 %v2328, %v2312
  %v4057 = vpack.c.b16 %v2329, %v2313
  %v4058 = vpack.c.b16 %v2330, %v2314
  %v4059 = vpack.c.b16 %v2331, %v2315
  %v4060 = vpack.c.b16 %v2332, %v2316
  %v4061 = vpack.c.b16 %v2333, %v2317
  %v4062 = vpack.c.b16 %v2334, %v2318
  %v4063 = vpack.c.b16 %v2335, %v2319
  %v4064 = vpack.c.b16 %v2336, %v2320
  %v4065 = vpack.c.b16 %v2337, %v2321
  %v4066 = vpack.c.b16 %v2338, %v2322
  %v4067 = vpack.c.b16 %v2339, %v2323
  %v4068 = vpack.c.b16 %v2340, %v2324
  %v4069 = vpack.c.b16 %v2341, %v2325
  %v4070 = vpack.c.b16 %v2358, %v2342
  %v4071 = vpack.c.b16 %v2359, %v2343
  %v4072 = vpack.c.b16 %v2360, %v2344
  %v4073 = vpack.c.b16 %v2361, %v2345
  %v4074 = vpack.c.b16 %v2362, %v2346
  %v4075 = vpack.c.b16 %v2363, %v2347
  %v4076 = vpack.c.b16 %v2364, %v2348
  %v4077 = vpack.c.b16 %v2365, %v2349
  %v4078 = vpack.c.b16 %v2366, %v2350
  %v4079 = vpack.c.b16 %v2367, %v2351
  %v4080 = vpack.c.b16 %v2368, %v2352
  %v4081 = vpack.c.b16 %v2369, %v2353
  %v4082 = vpack.c.b16 %v2370, %v2354
  %v4083 = vpack.c.b16 %v2371, %v2355
  %v4084 = vpack.c.b16 %v2372, %v2356
  %v4085 = vpack.c.b16 %v2373, %v2357
  %v4086 = vpack.c.b16 %v2390, %v2374
  %v4087 = vpack.c.b16 %v2391, %v2375
  %v4088 = vpack.c.b16 %v2392, %v2376
  %v4089 = vpack.c.b16 %v2393, %v2377
  %v4090 = vpack.c.b16 %v2394, %v2378
  %v4091 = vpack.c.b16 %v2395, %v2379
  %v4092 = vpack.c.b16 %v2396, %v2380
  %v4093 = vpack.c.b16 %v2397, %v2381
  %v4094 = vpack.c.b16 %v2398, %v2382
  %v4095 = vpack.c.b16 %v2399, %v2383
  %v4096 = vpack.c.b16 %v2400, %v2384
  %v4097 = vpack.c.b16 %v2401, %v2385
  %v4098 = vpack.c.b16 %v2402, %v2386
  %v4099 = vpack.c.b16 %v2403, %v2387
  %v4100 = vpack.c.b16 %v2404, %v2388
  %v4101 = vpack.c.b16 %v2405, %v2389
  %v4102 = vpack.c.b16 %v2422, %v2406
  %v4103 = vpack.c.b16 %v2423, %v2407
  %v4104 = vpack.c.b16 %v2424, %v2408
  %v4105 = vpack.c.b16 %v2425, %v2409
  %v4106 = vpack.c.b16 %v2426, %v2410
  %v4107 = vpack.c.b16 %v2427, %v2411
  %v4108 = vpack.c.b16 %v2428, %v2412
  %v4109 = vpack.c.b16 %v2429, %v2413
  %v4110 = vpack.c.b16 %v2430, %v2414
  %v4111 = vpack.c.b16 %v2431, %v2415
  %v4112 = vpack.c.b16 %v2432, %v2416
  %v4113 = vpack.c.b16 %v2433, %v2417
  %v4114 = vpack.c.b16 %v2434, %v2418
  %v4115 = vpack.c.b16 %v2435, %v2419
  %v4116 = vpack.c.b16 %v2436, %v2420
  %v4117 = vpack.c.b16 %v2437, %v2421
  %v4118 = vpack.c.b16 %v2454, %v2438
  %v4119 = vpack.c.b16 %v2455, %v2439
  %v4120 = vpack.c.b16 %v2456, %v2440
  %v4121 = vpack.c.b16 %v2457, %v2441
  %v4122 = vpack.c.b16 %v2458, %v2442
  %v4123 = vpack.c.b16 %v2459, %v2443
  %v4124 = vpack.c.b16 %v2460, %v2444
  %v4125 = vpack.c.b16 %v2461, %v2445
  %v4126 = vpack.c.b16 %v2462, %v2446
  %v4127 = vpack.c.b16 %v2463, %v2447
  %v4128 = vpack.c.b16 %v2464, %v2448
  %v4129 = vpack.c.b16 %v2465, %v2449
  %v4130 = vpack.c.b16 %v2466, %v2450
  %v4131 = vpack.c.b16 %v2467, %v2451
  %v4132 = vpack.c.b16 %v2468, %v2452
  %v4133 = vpack.c.b16 %v2469, %v2453
  %v4134 = vpack.c.b16 %v2486, %v2470
  %v4135 = vpack.c.b16 %v2487, %v2471
  %v4136 = vpack.c.b16 %v2488, %v2472
  %v4137 = vpack.c.b16 %v2489, %v2473
  %v4138 = vpack.c.b16 %v2490, %v2474
  %v4139 = vpack.c.b16 %v2491, %v2475
  %v4140 = vpack.c.b16 %v2492, %v2476
  %v4141 = vpack.c.b16 %v2493, %v2477
  %v4142 = vpack.c.b16 %v2494, %v2478
  %v4143 = vpack.c.b16 %v2495, %v2479
  %v4144 = vpack.c.b16 %v2496, %v2480
  %v4145 = vpack.c.b16 %v2497, %v2481
  %v4146 = vpack.c.b16 %v2498, %v2482
  %v4147 = vpack.c.b16 %v2499, %v2483
  %v4148 = vpack.c.b16 %v2500, %v2484
  %v4149 = vpack.c.b16 %v2501, %v2485
  %v4150 = vpack.c.b16 %v2518, %v2502
  %v4151 = vpack.c.b16 %v2519, %v2503
  %v4152 = vpack.c.b16 %v2520, %v2504
  %v4153 = vpack.c.b16 %v2521, %v2505
  %v4154 = vpack.c.b16 %v2522, %v2506
  %v4155 = vpack.c.b16 %v2523, %v2507
  %v4156 = vpack.c.b16 %v2524, %v2508
  %v4157 = vpack.c.b16 %v2525, %v2509
  %v4158 = vpack.c.b16 %v2526, %v2510
  %v4159 = vpack.c.b16 %v2527, %v2511
  %v4160 = vpack.c.b16 %v2528, %v2512
  %v4161 = vpack.c.b16 %v2529, %v2513
  %v4162 = vpack.c.b16 %v2530, %v2514
  %v4163 = vpack.c.b16 %v2531, %v2515
  %v4164 = vpack.c.b16 %v2532, %v2516
  %v4165 = vpack.c.b16 %v2533, %v2517
  %v4166 = vpack.c.b16 %v2550, %v2534
  %v4167 = vpack.c.b16 %v2551, %v2535
  %v4168 = vpack.c.b16 %v2552, %v2536
  %v4169 = vpack.c.b16 %v2553, %v2537
  %v4170 = vpack.c.b16 %v2554, %v2538
  %v4171 = vpack.c.b16 %v2555, %v2539
  %v4172 = vpack.c.b16 %v2556, %v2540
  %v4173 = vpack.c.b16 %v2557, %v2541
  %v4174 = vpack.c.b16 %v2558, %v2542
  %v4175 = vpack.c.b16 %v2559, %v2543
  %v4176 = vpack.c.b16 %v2560, %v2544
  %v4177 = vpack.c.b16 %v2561, %v2545
  %v4178 = vpack.c.b16 %v2562, %v2546
  %v4179 = vpack.c.b16 %v2563, %v2547
  %v4180 = vpack.c.b16 %v2564, %v2548
  %v4181 = vpack.c.b16 %v2565, %v2549
  %v4182 = vpack.c.b16 %v2582, %v2566
  %v4183 = vpack.c.b16 %v2583, %v2567
  %v4184 = vpack.c.b16 %v2584, %v2568
  %v4185 = vpack.c.b16 %v2585, %v2569
  %v4186 = vpack.c.b16 %v2586, %v2570
  %v4187 = vpack.c.b16 %v2587, %v2571
  %v4188 = vpack.c.b16 %v2588, %v2572
  %v4189 = vpack.c.b16 %v2589, %v2573
  %v4190 = vpack.c.b16 %v2590, %v2574
  %v4191 = vpack.c.b16 %v2591, %v2575
  %v4192 = vpack.c.b16 %v2592, %v2576
  %v4193 = vpack.c.b16 %v2593, %v2577
  %v4194 = vpack.c.b16 %v2594, %v2578
  %v4195 = vpack.c.b16 %v2595, %v2579
  %v4196 = vpack.c.b16 %v2596, %v2580
  %v4197 = vpack.c.b16 %v2597, %v2581
  %v4198 = vpack.c.b16 %v2614, %v2598
  %v4199 = vpack.c.b16 %v2615, %v2599
  %v4200 = vpack.c.b16 %v2616, %v2600
  %v4201 = vpack.c.b16 %v2617, %v2601
  %v4202 = vpack.c.b16 %v2618, %v2602
  %v4203 = vpack.c.b16 %v2619, %v2603
  %v4204 = vpack.c.b16 %v2620, %v2604
  %v4205 = vpack.c.b16 %v2621, %v2605
  %v4206 = vpack.c.b16 %v2622, %v2606
  %v4207 = vpack.c.b16 %v2623, %v2607
  %v4208 = vpack.c.b16 %v2624, %v2608
  %v4209 = vpack.c.b16 %v2625, %v2609
  %v4210 = vpack.c.b16 %v2626, %v2610
  %v4211 = vpack.c.b16 %v2627, %v2611
  %v4212 = vpack.c.b16 %v2628, %v2612
  %v4213 = vpack.c.b16 %v2629, %v2613
  %v4214 = vpack.c.b16 %v2646, %v2630
  %v4215 = vpack.c.b16 %v2647, %v2631
  %v4216 = vpack.c.b16 %v2648, %v2632
  %v4217 = vpack.c.b16 %v2649, %v2633
  %v4218 = vpack.c.b16 %v2650, %v2634
  %v4219 = vpack.c.b16 %v2651, %v2635
  %v4220 = vpack.c.b16 %v2652, %v2636
  %v4221 = vpack.c.b16 %v2653, %v2637
  %v4222 = vpack.c.b16 %v2654, %v2638
  %v4223 = vpack.c.b16 %v2655, %v2639
  %v4224 = vpack.c.b16 %v2656, %v2640
  %v4225 = vpack.c.b16 %v2657, %v2641
  %v4226 = vpack.c.b16 %v2658, %v2642
  %v4227 = vpack.c.b16 %v2659, %v2643
  %v4228 = vpack.c.b16 %v2660, %v2644
  %v4229 = vpack.c.b16 %v2661, %v2645
  %v4230 = vpack.c.b16 %v2678, %v2662
  %v4231 = vpack.c.b16 %v2679, %v2663
  %v4232 = vpack.c.b16 %v2680, %v2664
  %v4233 = vpack.c.b16 %v2681, %v2665
  %v4234 = vpack.c.b16 %v2682, %v2666
  %v4235 = vpack.c.b16 %v2683, %v2667
  %v4236 = vpack.c.b16 %v2684, %v2668
  %v4237 = vpack.c.b16 %v2685, %v2669
  %v4238 = vpack.c.b16 %v2686, %v2670
  %v4239 = vpack.c.b16 %v2687, %v2671
  %v4240 = vpack.c.b16 %v2688, %v2672
  %v4241 = vpack.c.b16 %v2689, %v2673
  %v4242 = vpack.c.b16 %v2690, %v2674
  %v4243 = vpack.c.b16 %v2691, %v2675
  %v4244 = vpack.c.b16 %v2692, %v2676
  %v4245 = vpack.c.b16 %v2693, %v2677
  %v4246 = vpack.c.b16 %v2710, %v2694
  %v4247 = vpack.c.b16 %v2711, %v2695
  %v4248 = vpack.c.b16 %v2712, %v2696
  %v4249 = vpack.c.b16 %v2713, %v2697
  %v4250 = vpack.c.b16 %v2714, %v2698
  %v4251 = vpack.c.b16 %v2715, %v2699
  %v4252 = vpack.c.b16 %v2716, %v2700
  %v4253 = vpack.c.b16 %v2717, %v2701
  %v4254 = vpack.c.b16 %v2718, %v2702
  %v4255 = vpack.c.b16 %v2719, %v2703
  %v4256 = vpack.c.b16 %v2720, %v2704
  %v4257 = vpack.c.b16 %v2721, %v2705
  %v4258 = vpack.c.b16 %v2722, %v2706
  %v4259 = vpack.c.b16 %v2723, %v2707
  %v4260 = vpack.c.b16 %v2724, %v2708
  %v4261 = vpack.c.b16 %v2725, %v2709
  %v4262 = vpack.c.b16 %v2742, %v2726
  %v4263 = vpack.c.b16 %v2743, %v2727
  %v4264 = vpack.c.b16 %v2744, %v2728
  %v4265 = vpack.c.b16 %v2745, %v2729
  %v4266 = vpack.c.b16 %v2746, %v2730
  %v4267 = vpack.c.b16 %v2747, %v2731
  %v4268 = vpack.c.b16 %v2748, %v2732
  %v4269 = vpack.c.b16 %v2749, %v2733
  %v4270 = vpack.c.b16 %v2750, %v2734
  %v4271 = vpack.c.b16 %v2751, %v2735
  %v4272 = vpack.c.b16 %v2752, %v2736
  %v4273 = vpack.c.b16 %v2753, %v2737
  %v4274 = vpack.c.b16 %v2754, %v2738
  %v4275 = vpack.c.b16 %v2755, %v2739
  %v4276 = vpack.c.b16 %v2756, %v2740
  %v4277 = vpack.c.b16 %v2757, %v2741
  %v4278 = vpack.c.b16 %v2774, %v2758
  %v4279 = vpack.c.b16 %v2775, %v2759
  %v4280 = vpack.c.b16 %v2776, %v2760
  %v4281 = vpack.c.b16 %v2777, %v2761
  %v4282 = vpack.c.b16 %v2778, %v2762
  %v4283 = vpack.c.b16 %v2779, %v2763
  %v4284 = vpack.c.b16 %v2780, %v2764
  %v4285 = vpack.c.b16 %v2781, %v2765
  %v4286 = vpack.c.b16 %v2782, %v2766
  %v4287 = vpack.c.b16 %v2783, %v2767
  %v4288 = vpack.c.b16 %v2784, %v2768
  %v4289 = vpack.c.b16 %v2785, %v2769
  %v4290 = vpack.c.b16 %v2786, %v2770
  %v4291 = vpack.c.b16 %v2787, %v2771
  %v4292 = vpack.c.b16 %v2788, %v2772
  %v4293 = vpack.c.b16 %v2789, %v2773
  %v4294 = vpack.c.b16 %v2806, %v2790
  %v4295 = vpack.c.b16 %v2807, %v2791
  %v4296 = vpack.c.b16 %v2808, %v2792
  %v4297 = vpack.c.b16 %v2809, %v2793
  %v4298 = vpack.c.b16 %v2810, %v2794
  %v4299 = vpack.c.b16 %v2811, %v2795
  %v4300 = vpack.c.b16 %v2812, %v2796
  %v4301 = vpack.c.b16 %v2813, %v2797
  %v4302 = vpack.c.b16 %v2814, %v2798
  %v4303 = vpack.c.b16 %v2815, %v2799
  %v4304 = vpack.c.b16 %v2816, %v2800
  %v4305 = vpack.c.b16 %v2817, %v2801
  %v4306 = vpack.c.b16 %v2818, %v2802
  %v4307 = vpack.c.b16 %v2819, %v2803
  %v4308 = vpack.c.b16 %v2820, %v2804
  %v4309 = vpack.c.b16 %v2821, %v2805
  %v4310 = vpack.c.b16 %v2838, %v2822
  %v4311 = vpack.c.b16 %v2839, %v2823
  %v4312 = vpack.c.b16 %v2840, %v2824
  %v4313 = vpack.c.b16 %v2841, %v2825
  %v4314 = vpack.c.b16 %v2842, %v2826
  %v4315 = vpack.c.b16 %v2843, %v2827
  %v4316 = vpack.c.b16 %v2844, %v2828
  %v4317 = vpack.c.b16 %v2845, %v2829
  %v4318 = vpack.c.b16 %v2846, %v2830
  %v4319 = vpack.c.b16 %v2847, %v2831
  %v4320 = vpack.c.b16 %v2848, %v2832
  %v4321 = vpack.c.b16 %v2849, %v2833
  %v4322 = vpack.c.b16 %v2850, %v2834
  %v4323 = vpack.c.b16 %v2851, %v2835
  %v4324 = vpack.c.b16 %v2852, %v2836
  %v4325 = vpack.c.b16 %v2853, %v2837
  %v4326 = vpack.c.b16 %v2870, %v2854
  %v4327 = vpack.c.b16 %v2871, %v2855
  %v4328 = vpack.c.b16 %v2872, %v2856
  %v4329 = vpack.c.b16 %v2873, %v2857
  %v4330 = vpack.c.b16 %v2874, %v2858
  %v4331 = vpack.c.b16 %v2875, %v2859
  %v4332 = vpack.c.b16 %v2876, %v2860
  %v4333 = vpack.c.b16 %v2877, %v2861
  %v4334 = vpack.c.b16 %v2878, %v2862
  %v4335 = vpack.c.b16 %v2879, %v2863
  %v4336 = vpack.c.b16 %v2880, %v2864
  %v4337 = vpack.c.b16 %v2881, %v2865
  %v4338 = vpack.c.b16 %v2882, %v2866
  %v4339 = vpack.c.b16 %v2883, %v2867
  %v4340 = vpack.c.b16 %v2884, %v2868
  %v4341 = vpack.c.b16 %v2885, %v2869
  %v4342 = vpack.c.b16 %v2902, %v2886
  %v4343 = vpack.c.b16 %v2903, %v2887
  %v4344 = vpack.c.b16 %v2904, %v2888
  %v4345 = vpack.c.b16 %v2905, %v2889
  %v4346 = vpack.c.b16 %v2906, %v2890
  %v4347 = vpack.c.b16 %v2907, %v2891
  %v4348 = vpack.c.b16 %v2908, %v2892
  %v4349 = vpack.c.b16 %v2909, %v2893
  %v4350 = vpack.c.b16 %v2910, %v2894
  %v4351 = vpack.c.b16 %v2911, %v2895
  %v4352 = vpack.c.b16 %v2912, %v2896
  %v4353 = vpack.c.b16 %v2913, %v2897
  %v4354 = vpack.c.b16 %v2914, %v2898
  %v4355 = vpack.c.b16 %v2915, %v2899
  %v4356 = vpack.c.b16 %v2916, %v2900
  %v4357 = vpack.c.b16 %v2917, %v2901
  %v4358 = vpack.c.b16 %v2934, %v2918
  %v4359 = vpack.c.b16 %v2935, %v2919
  %v4360 = vpack.c.b16 %v2936, %v2920
  %v4361 = vpack.c.b16 %v2937, %v2921
  %v4362 = vpack.c.b16 %v2938, %v2922
  %v4363 = vpack.c.b16 %v2939, %v2923
  %v4364 = vpack.c.b16 %v2940, %v2924
  %v4365 = vpack.c.b16 %v2941, %v2925
  %v4366 = vpack.c.b16 %v2942, %v2926
  %v4367 = vpack.c.b16 %v2943, %v2927
  %v4368 = vpack.c.b16 %v2944, %v2928
  %v4369 = vpack.c.b16 %v2945, %v2929
  %v4370 = vpack.c.b16 %v2946, %v2930
  %v4371 = vpack.c.b16 %v2947, %v2931
  %v4372 = vpack.c.b16 %v2948, %v2932
  %v4373 = vpack.c.b16 %v2949, %v2933
  %v4374 = vpack.c.b16 %v2966, %v2950
  %v4375 = vpack.c.b16 %v2967, %v2951
  %v4376 = vpack.c.b16 %v2968, %v2952
  %v4377 = vpack.c.b16 %v2969, %v2953
  %v4378 = vpack.c.b16 %v2970, %v2954
  %v4379 = vpack.c.b16 %v2971, %v2955
  %v4380 = vpack.c.b16 %v2972, %v2956
  %v4381 = vpack.c.b16 %v2973, %v2957
  %v4382 = vpack.c.b16 %v2974, %v2958
  %v4383 = vpack.c.b16 %v2975, %v2959
  %v4384 = vpack.c.b16 %v2976, %v2960
  %v4385 = vpack.c.b16 %v2977, %v2961
  %v4386 = vpack.c.b16 %v2978, %v2962
  %v4387 = vpack.c.b16 %v2979, %v2963
  %v4388 = vpack.c.b16 %v2980, %v2964
  %v4389 = vpack.c.b16 %v2981, %v2965
  %v4390 = vpack.c.b16 %v2998, %v2982
  %v4391 = vpack.c.b16 %v2999, %v2983
  %v4392 = vpack.c.b16 %v3000, %v2984
  %v4393 = vpack.c.b16 %v3001, %v2985
  %v4394 = vpack.c.b16 %v3002, %v2986
  %v4395 = vpack.c.b16 %v3003, %v2987
  %v4396 = vpack.c.b16 %v3004, %v2988
  %v4397 = vpack.c.b16 %v3005, %v2989
  %v4398 = vpack.c.b16 %v3006, %v2990
  %v4399 = vpack.c.b16 %v3007, %v2991
  %v4400 = vpack.c.b16 %v3008, %v2992
  %v4401 = vpack.c.b16 %v3009, %v2993
  %v4402 = vpack.c.b16 %v3010, %v2994
  %v4403 = vpack.c.b16 %v3011, %v2995
  %v4404 = vpack.c.b16 %v3012, %v2996
  %v4405 = vpack.c.b16 %v3013, %v2997
  %v4406 = vpack.c.b16 %v3030, %v3014
  %v4407 = vpack.c.b16 %v3031, %v3015
  %v4408 = vpack.c.b16 %v3032, %v3016
  %v4409 = vpack.c.b16 %v3033, %v3017
  %v4410 = vpack.c.b16 %v3034, %v3018
  %v4411 = vpack.c.b16 %v3035, %v3019
  %v4412 = vpack.c.b16 %v3036, %v3020
  %v4413 = vpack.c.b16 %v3037, %v3021
  %v4414 = vpack.c.b16 %v3038, %v3022
  %v4415 = vpack.c.b16 %v3039, %v3023
  %v4416 = vpack.c.b16 %v3040, %v3024
  %v4417 = vpack.c.b16 %v3041, %v3025
  %v4418 = vpack.c.b16 %v3042, %v3026
  %v4419 = vpack.c.b16 %v3043, %v3027
  %v4420 = vpack.c.b16 %v3044, %v3028
  %v4421 = vpack.c.b16 %v3045, %v3029
  %v4422 = vpack.c.b16 %v3062, %v3046
  %v4423 = vpack.c.b16 %v3063, %v3047
  %v4424 = vpack.c.b16 %v3064, %v3048
  %v4425 = vpack.c.b16 %v3065, %v3049
  %v4426 = vpack.c.b16 %v3066, %v3050
  %v4427 = vpack.c.b16 %v3067, %v3051
  %v4428 = vpack.c.b16 %v3068, %v3052
  %v4429 = vpack.c.b16 %v3069, %v3053
  %v4430 = vpack.c.b16 %v3070, %v3054
  %v4431 = vpack.c.b16 %v3071, %v3055
  %v4432 = vpack.c.b16 %v3072, %v3056
  %v4433 = vpack.c.b16 %v3073, %v3057
  %v4434 = vpack.c.b16 %v3074, %v3058
  %v4435 = vpack.c.b16 %v3075, %v3059
  %v4436 = vpack.c.b16 %v3076, %v3060
  %v4437 = vpack.c.b16 %v3077, %v3061
  %v4438 = vpack.c.b16 %v3094, %v3078
  %v4439 = vpack.c.b16 %v3095, %v3079
  %v4440 = vpack.c.b16 %v3096, %v3080
  %v4441 = vpack.c.b16 %v3097, %v3081
  %v4442 = vpack.c.b16 %v3098, %v3082
  %v4443 = vpack.c.b16 %v3099, %v3083
  %v4444 = vpack.c.b16 %v3100, %v3084
  %v4445 = vpack.c.b16 %v3101, %v3085
  %v4446 = vpack.c.b16 %v3102, %v3086
  %v4447 = vpack.c.b16 %v3103, %v3087
  %v4448 = vpack.c.b16 %v3104, %v3088
  %v4449 = vpack.c.b16 %v3105, %v3089
  %v4450 = vpack.c.b16 %v3106, %v3090
  %v4451 = vpack.c.b16 %v3107, %v3091
  %v4452 = vpack.c.b16 %v3108, %v3092
  %v4453 = vpack.c.b16 %v3109, %v3093
  %v4454 = vpack.c.b16 %v3126, %v3110
  %v4455 = vpack.c.b16 %v3127, %v3111
  %v4456 = vpack.c.b16 %v3128, %v3112
  %v4457 = vpack.c.b16 %v3129, %v3113
  %v4458 = vpack.c.b16 %v3130, %v3114
  %v4459 = vpack.c.b16 %v3131, %v3115
  %v4460 = vpack.c.b16 %v3132, %v3116
  %v4461 = vpack.c.b16 %v3133, %v3117
  %v4462 = vpack.c.b16 %v3134, %v3118
  %v4463 = vpack.c.b16 %v3135, %v3119
  %v4464 = vpack.c.b16 %v3136, %v3120
  %v4465 = vpack.c.b16 %v3137, %v3121
  %v4466 = vpack.c.b16 %v3138, %v3122
  %v4467 = vpack.c.b16 %v3139, %v3123
  %v4468 = vpack.c.b16 %v3140, %v3124
  %v4469 = vpack.c.b16 %v3141, %v3125
  %v4470 = vpack.c.b16 %v3158, %v3142
  %v4471 = vpack.c.b16 %v3159, %v3143
  %v4472 = vpack.c.b16 %v3160, %v3144
  %v4473 = vpack.c.b16 %v3161, %v3145
  %v4474 = vpack.c.b16 %v3162, %v3146
  %v4475 = vpack.c.b16 %v3163, %v3147
  %v4476 = vpack.c.b16 %v3164, %v3148
  %v4477 = vpack.c.b16 %v3165, %v3149
  %v4478 = vpack.c.b16 %v3166, %v3150
  %v4479 = vpack.c.b16 %v3167, %v3151
  %v4480 = vpack.c.b16 %v3168, %v3152
  %v4481 = vpack.c.b16 %v3169, %v3153
  %v4482 = vpack.c.b16 %v3170, %v3154
  %v4483 = vpack.c.b16 %v3171, %v3155
  %v4484 = vpack.c.b16 %v3172, %v3156
  %v4485 = vpack.c.b16 %v3173, %v3157
  %v4486 = vpack.c.b16 %v3190, %v3174
  %v4487 = vpack.c.b16 %v3191, %v3175
  %v4488 = vpack.c.b16 %v3192, %v3176
  %v4489 = vpack.c.b16 %v3193, %v3177
  %v4490 = vpack.c.b16 %v3194, %v3178
  %v4491 = vpack.c.b16 %v3195, %v3179
  %v4492 = vpack.c.b16 %v3196, %v3180
  %v4493 = vpack.c.b16 %v3197, %v3181
  %v4494 = vpack.c.b16 %v3198, %v3182
  %v4495 = vpack.c.b16 %v3199, %v3183
  %v4496 = vpack.c.b16 %v3200, %v3184
  %v4497 = vpack.c.b16 %v3201, %v3185
  %v4498 = vpack.c.b16 %v3202, %v3186
  %v4499 = vpack.c.b16 %v3203, %v3187
  %v4500 = vpack.c.b16 %v3204, %v3188
  %v4501 = vpack.c.b16 %v3205, %v3189
  %v4502 = vpack.c.b16 %v3222, %v3206
  %v4503 = vpack.c.b16 %v3223, %v3207
  %v4504 = vpack.c.b16 %v3224, %v3208
  %v4505 = vpack.c.b16 %v3225, %v3209
  %v4506 = vpack.c.b16 %v3226, %v3210
  %v4507 = vpack.c.b16 %v3227, %v3211
  %v4508 = vpack.c.b16 %v3228, %v3212
  %v4509 = vpack.c.b16 %v3229, %v3213
  %v4510 = vpack.c.b16 %v3230, %v3214
  %v4511 = vpack.c.b16 %v3231, %v3215
  %v4512 = vpack.c.b16 %v3232, %v3216
  %v4513 = vpack.c.b16 %v3233, %v3217
  %v4514 = vpack.c.b16 %v3234, %v3218
  %v4515 = vpack.c.b16 %v3235, %v3219
  %v4516 = vpack.c.b16 %v3236, %v3220
  %v4517 = vpack.c.b16 %v3237, %v3221
  %v4518 = vpack.c.b16 %v3254, %v3238
  %v4519 = vpack.c.b16 %v3255, %v3239
  %v4520 = vpack.c.b16 %v3256, %v3240
  %v4521 = vpack.c.b16 %v3257, %v3241
  %v4522 = vpack.c.b16 %v3258, %v3242
  %v4523 = vpack.c.b16 %v3259, %v3243
  %v4524 = vpack.c.b16 %v3260, %v3244
  %v4525 = vpack.c.b16 %v3261, %v3245
  %v4526 = vpack.c.b16 %v3262, %v3246
  %v4527 = vpack.c.b16 %v3263, %v3247
  %v4528 = vpack.c.b16 %v3264, %v3248
  %v4529 = vpack.c.b16 %v3265, %v3249
  %v4530 = vpack.c.b16 %v3266, %v3250
  %v4531 = vpack.c.b16 %v3267, %v3251
  %v4532 = vpack.c.b16 %v3268, %v3252
  %v4533 = vpack.c.b16 %v3269, %v3253
  %v4534 = vpack.c.b16 %v3286, %v3270
  %v4535 = vpack.c.b16 %v3287, %v3271
  %v4536 = vpack.c.b16 %v3288, %v3272
  %v4537 = vpack.c.b16 %v3289, %v3273
  %v4538 = vpack.c.b16 %v3290, %v3274
  %v4539 = vpack.c.b16 %v3291, %v3275
  %v4540 = vpack.c.b16 %v3292, %v3276
  %v4541 = vpack.c.b16 %v3293, %v3277
  %v4542 = vpack.c.b16 %v3294, %v3278
  %v4543 = vpack.c.b16 %v3295, %v3279
  %v4544 = vpack.c.b16 %v3296, %v3280
  %v4545 = vpack.c.b16 %v3297, %v3281
  %v4546 = vpack.c.b16 %v3298, %v3282
  %v4547 = vpack.c.b16 %v3299, %v3283
  %v4548 = vpack.c.b16 %v3300, %v3284
  %v4549 = vpack.c.b16 %v3301, %v3285
  %v4550 = vpack.c.b16 %v3318, %v3302
  %v4551 = vpack.c.b16 %v3319, %v3303
  %v4552 = vpack.c.b16 %v3320, %v3304
  %v4553 = vpack.c.b16 %v3321, %v3305
  %v4554 = vpack.c.b16 %v3322, %v3306
  %v4555 = vpack.c.b16 %v3323, %v3307
  %v4556 = vpack.c.b16 %v3324, %v3308
  %v4557 = vpack.c.b16 %v3325, %v3309
  %v4558 = vpack.c.b16 %v3326, %v3310
  %v4559 = vpack.c.b16 %v3327, %v3311
  %v4560 = vpack.c.b16 %v3328, %v3312
  %v4561 = vpack.c.b16 %v3329, %v3313
  %v4562 = vpack.c.b16 %v3330, %v3314
  %v4563 = vpack.c.b16 %v3331, %v3315
  %v4564 = vpack.c.b16 %v3332, %v3316
  %v4565 = vpack.c.b16 %v3333, %v3317
  %v4566 = vpack.c.b16 %v3350, %v3334
  %v4567 = vpack.c.b16 %v3351, %v3335
  %v4568 = vpack.c.b16 %v3352, %v3336
  %v4569 = vpack.c.b16 %v3353, %v3337
  %v4570 = vpack.c.b16 %v3354, %v3338
  %v4571 = vpack.c.b16 %v3355, %v3339
  %v4572 = vpack.c.b16 %v3356, %v3340
  %v4573 = vpack.c.b16 %v3357, %v3341
  %v4574 = vpack.c.b16 %v3358, %v3342
  %v4575 = vpack.c.b16 %v3359, %v3343
  %v4576 = vpack.c.b16 %v3360, %v3344
  %v4577 = vpack.c.b16 %v3361, %v3345
  %v4578 = vpack.c.b16 %v3362, %v3346
  %v4579 = vpack.c.b16 %v3363, %v3347
  %v4580 = vpack.c.b16 %v3364, %v3348
  %v4581 = vpack.c.b16 %v3365, %v3349
  %v4582 = vpack.c.b16 %v3382, %v3366
  %v4583 = vpack.c.b16 %v3383, %v3367
  %v4584 = vpack.c.b16 %v3384, %v3368
  %v4585 = vpack.c.b16 %v3385, %v3369
  %v4586 = vpack.c.b16 %v3386, %v3370
  %v4587 = vpack.c.b16 %v3387, %v3371
  %v4588 = vpack.c.b16 %v3388, %v3372
  %v4589 = vpack.c.b16 %v3389, %v3373
  %v4590 = vpack.c.b16 %v3390, %v3374
  %v4591 = vpack.c.b16 %v3391, %v3375
  %v4592 = vpack.c.b16 %v3392, %v3376
  %v4593 = vpack.c.b16 %v3393, %v3377
  %v4594 = vpack.c.b16 %v3394, %v3378
  %v4595 = vpack.c.b16 %v3395, %v3379
  %v4596 = vpack.c.b16 %v3396, %v3380
  %v4597 = vpack.c.b16 %v3397, %v3381
  %v4598 = vpack.c.b16 %v3414, %v3398
  %v4599 = vpack.c.b16 %v3415, %v3399
  %v4600 = vpack.c.b16 %v3416, %v3400
  %v4601 = vpack.c.b16 %v3417, %v3401
  %v4602 = vpack.c.b16 %v3418, %v3402
  %v4603 = vpack.c.b16 %v3419, %v3403
  %v4604 = vpack.c.b16 %v3420, %v3404
  %v4605 = vpack.c.b16 %v3421, %v3405
  %v4606 = vpack.c.b16 %v3422, %v3406
  %v4607 = vpack.c.b16 %v3423, %v3407
  %v4608 = vpack.c.b16 %v3424, %v3408
  %v4609 = vpack.c.b16 %v3425, %v3409
  %v4610 = vpack.c.b16 %v3426, %v3410
  %v4611 = vpack.c.b16 %v3427, %v3411
  %v4612 = vpack.c.b16 %v3428, %v3412
  %v4613 = vpack.c.b16 %v3429, %v3413
  %v4614 = vpack.c.b16 %v3446, %v3430
  %v4615 = vpack.c.b16 %v3447, %v3431
  %v4616 = vpack.c.b16 %v3448, %v3432
  %v4617 = vpack.c.b16 %v3449, %v3433
  %v4618 = vpack.c.b16 %v3450, %v3434
  %v4619 = vpack.c.b16 %v3451, %v3435
  %v4620 = vpack.c.b16 %v3452, %v3436
  %v4621 = vpack.c.b16 %v3453, %v3437
  %v4622 = vpack.c.b16 %v3454, %v3438
  %v4623 = vpack.c.b16 %v3455, %v3439
  %v4624 = vpack.c.b16 %v3456, %v3440
  %v4625 = vpack.c.b16 %v3457, %v3441
  %v4626 = vpack.c.b16 %v3458, %v3442
  %v4627 = vpack.c.b16 %v3459, %v3443
  %v4628 = vpack.c.b16 %v3460, %v3444
  %v4629 = vpack.c.b16 %v3461, %v3445
  %v4630 = vpack.c.b16 %v3478, %v3462
  %v4631 = vpack.c.b16 %v3479, %v3463
  %v4632 = vpack.c.b16 %v3480, %v3464
  %v4633 = vpack.c.b16 %v3481, %v3465
  %v4634 = vpack.c.b16 %v3482, %v3466
  %v4635 = vpack.c.b16 %v3483, %v3467
  %v4636 = vpack.c.b16 %v3484, %v3468
  %v4637 = vpack.c.b16 %v3485, %v3469
  %v4638 = vpack.c.b16 %v3486, %v3470
  %v4639 = vpack.c.b16 %v3487, %v3471
  %v4640 = vpack.c.b16 %v3488, %v3472
  %v4641 = vpack.c.b16 %v3489, %v3473
  %v4642 = vpack.c.b16 %v3490, %v3474
  %v4643 = vpack.c.b16 %v3491, %v3475
  %v4644 = vpack.c.b16 %v3492, %v3476
  %v4645 = vpack.c.b16 %v3493, %v3477
  %v4646 = vpack.c.b16 %v3510, %v3494
  %v4647 = vpack.c.b16 %v3511, %v3495
  %v4648 = vpack.c.b16 %v3512, %v3496
  %v4649 = vpack.c.b16 %v3513, %v3497
  %v4650 = vpack.c.b16 %v3514, %v3498
  %v4651 = vpack.c.b16 %v3515, %v3499
  %v4652 = vpack.c.b16 %v3516, %v3500
  %v4653 = vpack.c.b16 %v3517, %v3501
  %v4654 = vpack.c.b16 %v3518, %v3502
  %v4655 = vpack.c.b16 %v3519, %v3503
  %v4656 = vpack.c.b16 %v3520, %v3504
  %v4657 = vpack.c.b16 %v3521, %v3505
  %v4658 = vpack.c.b16 %v3522, %v3506
  %v4659 = vpack.c.b16 %v3523, %v3507
  %v4660 = vpack.c.b16 %v3524, %v3508
  %v4661 = vpack.c.b16 %v3525, %v3509
  %v4662 = vpack.c.b16 %v3542, %v3526
  %v4663 = vpack.c.b16 %v3543, %v3527
  %v4664 = vpack.c.b16 %v3544, %v3528
  %v4665 = vpack.c.b16 %v3545, %v3529
  %v4666 = vpack.c.b16 %v3546, %v3530
  %v4667 = vpack.c.b16 %v3547, %v3531
  %v4668 = vpack.c.b16 %v3548, %v3532
  %v4669 = vpack.c.b16 %v3549, %v3533
  %v4670 = vpack.c.b16 %v3550, %v3534
  %v4671 = vpack.c.b16 %v3551, %v3535
  %v4672 = vpack.c.b16 %v3552, %v3536
  %v4673 = vpack.c.b16 %v3553, %v3537
  %v4674 = vpack.c.b16 %v3554, %v3538
  %v4675 = vpack.c.b16 %v3555, %v3539
  %v4676 = vpack.c.b16 %v3556, %v3540
  %v4677 = vpack.c.b16 %v3557, %v3541
  %v4678 = vpack.c.b16 %v3574, %v3558
  %v4679 = vpack.c.b16 %v3575, %v3559
  %v4680 = vpack.c.b16 %v3576, %v3560
  %v4681 = vpack.c.b16 %v3577, %v3561
  %v4682 = vpack.c.b16 %v3578, %v3562
  %v4683 = vpack.c.b16 %v3579, %v3563
  %v4684 = vpack.c.b16 %v3580, %v3564
  %v4685 = vpack.c.b16 %v3581, %v3565
  %v4686 = vpack.c.b16 %v3582, %v3566
  %v4687 = vpack.c.b16 %v3583, %v3567
  %v4688 = vpack.c.b16 %v3584, %v3568
  %v4689 = vpack.c.b16 %v3585, %v3569
  %v4690 = vpack.c.b16 %v3586, %v3570
  %v4691 = vpack.c.b16 %v3587, %v3571
  %v4692 = vpack.c.b16 %v3588, %v3572
  %v4693 = vpack.c.b16 %v3589, %v3573
  %v4694 = vpack.c.b16 %v3606, %v3590
  %v4695 = vpack.c.b16 %v3607, %v3591
  %v4696 = vpack.c.b16 %v3608, %v3592
  %v4697 = vpack.c.b16 %v3609, %v3593
  %v4698 = vpack.c.b16 %v3610, %v3594
  %v4699 = vpack.c.b16 %v3611, %v3595
  %v4700 = vpack.c.b16 %v3612, %v3596
  %v4701 = vpack.c.b16 %v3613, %v3597
  %v4702 = vpack.c.b16 %v3614, %v3598
  %v4703 = vpack.c.b16 %v3615, %v3599
  %v4704 = vpack.c.b16 %v3616, %v3600
  %v4705 = vpack.c.b16 %v3617, %v3601
  %v4706 = vpack.c.b16 %v3618, %v3602
  %v4707 = vpack.c.b16 %v3619, %v3603
  %v4708 = vpack.c.b16 %v3620, %v3604
  %v4709 = vpack.c.b16 %v3621, %v3605
  %v4710 = vpack.c.b16 %v3638, %v3622
  %v4711 = vpack.c.b16 %v3639, %v3623
  %v4712 = vpack.c.b16 %v3640, %v3624
  %v4713 = vpack.c.b16 %v3641, %v3625
  %v4714 = vpack.c.b16 %v3642, %v3626
  %v4715 = vpack.c.b16 %v3643, %v3627
  %v4716 = vpack.c.b16 %v3644, %v3628
  %v4717 = vpack.c.b16 %v3645, %v3629
  %v4718 = vpack.c.b16 %v3646, %v3630
  %v4719 = vpack.c.b16 %v3647, %v3631
  %v4720 = vpack.c.b16 %v3648, %v3632
  %v4721 = vpack.c.b16 %v3649, %v3633
  %v4722 = vpack.c.b16 %v3650, %v3634
  %v4723 = vpack.c.b16 %v3651, %v3635
  %v4724 = vpack.c.b16 %v3652, %v3636
  %v4725 = vpack.c.b16 %v3653, %v3637
  %v4726 = vpack.c.b16 %v3670, %v3654
  %v4727 = vpack.c.b16 %v3671, %v3655
  %v4728 = vpack.c.b16 %v3672, %v3656
  %v4729 = vpack.c.b16 %v3673, %v3657
  %v4730 = vpack.c.b16 %v3674, %v3658
  %v4731 = vpack.c.b16 %v3675, %v3659
  %v4732 = vpack.c.b16 %v3676, %v3660
  %v4733 = vpack.c.b16 %v3677, %v3661
  %v4734 = vpack.c.b16 %v3678, %v3662
  %v4735 = vpack.c.b16 %v3679, %v3663
  %v4736 = vpack.c.b16 %v3680, %v3664
  %v4737 = vpack.c.b16 %v3681, %v3665
  %v4738 = vpack.c.b16 %v3682, %v3666
  %v4739 = vpack.c.b16 %v3683, %v3667
  %v4740 = vpack.c.b16 %v3684, %v3668
  %v4741 = vpack.c.b16 %v3685, %v3669
  %v4742 = vpack.c.b16 %v3702, %v3686
  %v4743 = vpack.c.b16 %v3703, %v3687
  %v4744 = vpack.c.b16 %v3704, %v3688
  %v4745 = vpack.c.b16 %v3705, %v3689
  %v4746 = vpack.c.b16 %v3706, %v3690
  %v4747 = vpack.c.b16 %v3707, %v3691
  %v4748 = vpack.c.b16 %v3708, %v3692
  %v4749 = vpack.c.b16 %v3709, %v3693
  %v4750 = vpack.c.b16 %v3710, %v3694
  %v4751 = vpack.c.b16 %v3711, %v3695
  %v4752 = vpack.c.b16 %v3712, %v3696
  %v4753 = vpack.c.b16 %v3713, %v3697
  %v4754 = vpack.c.b16 %v3714, %v3698
  %v4755 = vpack.c.b16 %v3715, %v3699
  %v4756 = vpack.c.b16 %v3716, %v3700
  %v4757 = vpack.c.b16 %v3717, %v3701
  %v4758 = vpack.c.b16 %v3734, %v3718
  %v4759 = vpack.c.b16 %v3735, %v3719
  %v4760 = vpack.c.b16 %v3736, %v3720
  %v4761 = vpack.c.b16 %v3737, %v3721
  %v4762 = vpack.c.b16 %v3738, %v3722
  %v4763 = vpack.c.b16 %v3739, %v3723
  %v4764 = vpack.c.b16 %v3740, %v3724
  %v4765 = vpack.c.b16 %v3741, %v3725
  %v4766 = vpack.c.b16 %v3742, %v3726
  %v4767 = vpack.c.b16 %v3743, %v3727
  %v4768 = vpack.c.b16 %v3744, %v3728
  %v4769 = vpack.c.b16 %v3745, %v3729
  %v4770 = vpack.c.b16 %v3746, %v3730
  %v4771 = vpack.c.b16 %v3747, %v3731
  %v4772 = vpack.c.b16 %v3748, %v3732
  %v4773 = vpack.c.b16 %v3749, %v3733
  %v4774 = vpack.c.b16 %v3766, %v3750
  %v4775 = vpack.c.b16 %v3767, %v3751
  %v4776 = vpack.c.b16 %v3768, %v3752
  %v4777 = vpack.c.b16 %v3769, %v3753
  %v4778 = vpack.c.b16 %v3770, %v3754
  %v4779 = vpack.c.b16 %v3771, %v3755
  %v4780 = vpack.c.b16 %v3772, %v3756
  %v4781 = vpack.c.b16 %v3773, %v3757
  %v4782 = vpack.c.b16 %v3774, %v3758
  %v4783 = vpack.c.b16 %v3775, %v3759
  %v4784 = vpack.c.b16 %v3776, %v3760
  %v4785 = vpack.c.b16 %v3777, %v3761
  %v4786 = vpack.c.b16 %v3778, %v3762
  %v4787 = vpack.c.b16 %v3779, %v3763
  %v4788 = vpack.c.b16 %v3780, %v3764
  %v4789 = vpack.c.b16 %v3781, %v3765
  %v4790 = vpack.c.b16 %v3798, %v3782
  %v4791 = vpack.c.b16 %v3799, %v3783
  %v4792 = vpack.c.b16 %v3800, %v3784
  %v4793 = vpack.c.b16 %v3801, %v3785
  %v4794 = vpack.c.b16 %v3802, %v3786
  %v4795 = vpack.c.b16 %v3803, %v3787
  %v4796 = vpack.c.b16 %v3804, %v3788
  %v4797 = vpack.c.b16 %v3805, %v3789
  %v4798 = vpack.c.b16 %v3806, %v3790
  %v4799 = vpack.c.b16 %v3807, %v3791
  %v4800 = vpack.c.b16 %v3808, %v3792
  %v4801 = vpack.c.b16 %v3809, %v3793
  %v4802 = vpack.c.b16 %v3810, %v3794
  %v4803 = vpack.c.b16 %v3811, %v3795
  %v4804 = vpack.c.b16 %v3812, %v3796
  %v4805 = vpack.c.b16 %v3813, %v3797
  %v4806 = vpack.c.b16 %v3830, %v3814
  %v4807 = vpack.c.b16 %v3831, %v3815
  %v4808 = vpack.c.b16 %v3832, %v3816
  %v4809 = vpack.c.b16 %v3833, %v3817
  %v4810 = vpack.c.b16 %v3834, %v3818
  %v4811 = vpack.c.b16 %v3835, %v3819
  %v4812 = vpack.c.b16 %v3836, %v3820
  %v4813 = vpack.c.b16 %v3837, %v3821
  %v4814 = vpack.c.b16 %v3838, %v3822
  %v4815 = vpack.c.b16 %v3839, %v3823
  %v4816 = vpack.c.b16 %v3840, %v3824
  %v4817 = vpack.c.b16 %v3841, %v3825
  %v4818 = vpack.c.b16 %v3842, %v3826
  %v4819 = vpack.c.b16 %v3843, %v3827
  %v4820 = vpack.c.b16 %v3844, %v3828
  %v4821 = vpack.c.b16 %v3845, %v3829
  %v4822 = vpack.c.b16 %v3862, %v3846
  %v4823 = vpack.c.b16 %v3863, %v3847
  %v4824 = vpack.c.b16 %v3864, %v3848
  %v4825 = vpack.c.b16 %v3865, %v3849
  %v4826 = vpack.c.b16 %v3866, %v3850
  %v4827 = vpack.c.b16 %v3867, %v3851
  %v4828 = vpack.c.b16 %v3868, %v3852
  %v4829 = vpack.c.b16 %v3869, %v3853
  %v4830 = vpack.c.b16 %v3870, %v3854
  %v4831 = vpack.c.b16 %v3871, %v3855
  %v4832 = vpack.c.b16 %v3872, %v3856
  %v4833 = vpack.c.b16 %v3873, %v3857
  %v4834 = vpack.c.b16 %v3874, %v3858
  %v4835 = vpack.c.b16 %v3875, %v3859
  %v4836 = vpack.c.b16 %v3876, %v3860
  %v4837 = vpack.c.b16 %v3877, %v3861
  %v4838 = vpack.c.b16 %v3894, %v3878
  %v4839 = vpack.c.b16 %v3895, %v3879
  %v4840 = vpack.c.b16 %v3896, %v3880
  %v4841 = vpack.c.b16 %v3897, %v3881
  %v4842 = vpack.c.b16 %v3898, %v3882
  %v4843 = vpack.c.b16 %v3899, %v3883
  %v4844 = vpack.c.b16 %v3900, %v3884
  %v4845 = vpack.c.b16 %v3901, %v3885
  %v4846 = vpack.c.b16 %v3902, %v3886
  %v4847 = vpack.c.b16 %v3903, %v3887
  %v4848 = vpack.c.b16 %v3904, %v3888
  %v4849 = vpack.c.b16 %v3905, %v3889
  %v4850 = vpack.c.b16 %v3906, %v3890
  %v4851 = vpack.c.b16 %v3907, %v3891
  %v4852 = vpack.c.b16 %v3908, %v3892
  %v4853 = vpack.c.b16 %v3909, %v3893
  %v4854 = vpack.c.b16 %v3926, %v3910
  %v4855 = vpack.c.b16 %v3927, %v3911
  %v4856 = vpack.c.b16 %v3928, %v3912
  %v4857 = vpack.c.b16 %v3929, %v3913
  %v4858 = vpack.c.b16 %v3930, %v3914
  %v4859 = vpack.c.b16 %v3931, %v3915
  %v4860 = vpack.c.b16 %v3932, %v3916
  %v4861 = vpack.c.b16 %v3933, %v3917
  %v4862 = vpack.c.b16 %v3934, %v3918
  %v4863 = vpack.c.b16 %v3935, %v3919
  %v4864 = vpack.c.b16 %v3936, %v3920
  %v4865 = vpack.c.b16 %v3937, %v3921
  %v4866 = vpack.c.b16 %v3938, %v3922
  %v4867 = vpack.c.b16 %v3939, %v3923
  %v4868 = vpack.c.b16 %v3940, %v3924
  %v4869 = vpack.c.b16 %v3941, %v3925
  %v4870 = vpack.c.b16 %v3958, %v3942
  %v4871 = vpack.c.b16 %v3959, %v3943
  %v4872 = vpack.c.b16 %v3960, %v3944
  %v4873 = vpack.c.b16 %v3961, %v3945
  %v4874 = vpack.c.b16 %v3962, %v3946
  %v4875 = vpack.c.b16 %v3963, %v3947
  %v4876 = vpack.c.b16 %v3964, %v3948
  %v4877 = vpack.c.b16 %v3965, %v3949
  %v4878 = vpack.c.b16 %v3966, %v3950
  %v4879 = vpack.c.b16 %v3967, %v3951
  %v4880 = vpack.c.b16 %v3968, %v3952
  %v4881 = vpack.c.b16 %v3969, %v3953
  %v4882 = vpack.c.b16 %v3970, %v3954
  %v4883 = vpack.c.b16 %v3971, %v3955
  %v4884 = vpack.c.b16 %v3972, %v3956
  %v4885 = vpack.c.b16 %v3973, %v3957
  %v4886 = vpack.c.b16 %v3990, %v3974
  %v4887 = vpack.c.b16 %v3991, %v3975
  %v4888 = vpack.c.b16 %v3992, %v3976
  %v4889 = vpack.c.b16 %v3993, %v3977
  %v4890 = vpack.c.b16 %v3994, %v3978
  %v4891 = vpack.c.b16 %v3995, %v3979
  %v4892 = vpack.c.b16 %v3996, %v3980
  %v4893 = vpack.c.b16 %v3997, %v3981
  %v4894 = vpack.c.b16 %v3998, %v3982
  %v4895 = vpack.c.b16 %v3999, %v3983
  %v4896 = vpack.c.b16 %v4000, %v3984
  %v4897 = vpack.c.b16 %v4001, %v3985
  %v4898 = vpack.c.b16 %v4002, %v3986
  %v4899 = vpack.c.b16 %v4003, %v3987
  %v4900 = vpack.c.b16 %v4004, %v3988
  %v4901 = vpack.c.b16 %v4005, %v3989
  %5798 = vmatpush.bf16.msra.mxu0 %v4118
  %5799 = vmatpush.bf16.msra.mxu0 %v4102
  %5800 = vmatpush.bf16.msra.mxu0 %v4086
  %5801 = vmatpush.bf16.msra.mxu0 %v4070
  %5802 = vmatpush.bf16.msra.mxu0 %v4054
  %5803 = vmatpush.bf16.msra.mxu0 %v4038
  %5804 = vmatpush.bf16.msra.mxu0 %v4022
  %5805 = vmatpush.bf16.msra.mxu0 %v4006
  %5806 = vmatmul.bf16.gmra.mxu0 %v394
  %v5807 = vpop.f32.mrf.mxu0
  %v5808 = vadd.f32 0.0, %v5807
  %v5809 = vpop.f32.mrf.mxu0
  %v5810 = vadd.f32 0.0, %v5809
  %5811 = vmatmul.bf16.gmra.mxu0 %v401
  %v5812 = vpop.f32.mrf.mxu0
  %v5813 = vadd.f32 0.0, %v5812
  %v5814 = vpop.f32.mrf.mxu0
  %v5815 = vadd.f32 0.0, %v5814
  %5816 = vmatmul.bf16.gmra.mxu0 %v408
  %v5817 = vpop.f32.mrf.mxu0
  %v5818 = vadd.f32 0.0, %v5817
  %v5819 = vpop.f32.mrf.mxu0
  %v5820 = vadd.f32 0.0, %v5819
  %5821 = vmatmul.bf16.gmra.mxu0 %v415
  %v5822 = vpop.f32.mrf.mxu0
  %v5823 = vadd.f32 0.0, %v5822
  %v5824 = vpop.f32.mrf.mxu0
  %v5825 = vadd.f32 0.0, %v5824
  %5826 = vdwg.mxu0
  %5827 = vmatpush.bf16.msra.mxu0 %v4246
  %5828 = vmatpush.bf16.msra.mxu0 %v4230
  %5829 = vmatpush.bf16.msra.mxu0 %v4214
  %5830 = vmatpush.bf16.msra.mxu0 %v4198
  %5831 = vmatpush.bf16.msra.mxu0 %v4182
  %5832 = vmatpush.bf16.msra.mxu0 %v4166
  %5833 = vmatpush.bf16.msra.mxu0 %v4150
  %5834 = vmatpush.bf16.msra.mxu0 %v4134
  %5835 = vmatmul.bf16.gmra.mxu0 %v395
  %v5836 = vpop.f32.mrf.mxu0
  %v5837 = vadd.f32 %v5808, %v5836
  %v5838 = vpop.f32.mrf.mxu0
  %v5839 = vadd.f32 %v5810, %v5838
  %5840 = vmatmul.bf16.gmra.mxu0 %v402
  %v5841 = vpop.f32.mrf.mxu0
  %v5842 = vadd.f32 %v5813, %v5841
  %v5843 = vpop.f32.mrf.mxu0
  %v5844 = vadd.f32 %v5815, %v5843
  %5845 = vmatmul.bf16.gmra.mxu0 %v409
  %v5846 = vpop.f32.mrf.mxu0
  %v5847 = vadd.f32 %v5818, %v5846
  %v5848 = vpop.f32.mrf.mxu0
  %v5849 = vadd.f32 %v5820, %v5848
  %5850 = vmatmul.bf16.gmra.mxu0 %v416
  %v5851 = vpop.f32.mrf.mxu0
  %v5852 = vadd.f32 %v5823, %v5851
  %v5853 = vpop.f32.mrf.mxu0
  %v5854 = vadd.f32 %v5825, %v5853
  %5855 = vdwg.mxu0
  %5856 = vmatpush.bf16.msra.mxu0 %v4374
  %5857 = vmatpush.bf16.msra.mxu0 %v4358
  %5858 = vmatpush.bf16.msra.mxu0 %v4342
  %5859 = vmatpush.bf16.msra.mxu0 %v4326
  %5860 = vmatpush.bf16.msra.mxu0 %v4310
  %5861 = vmatpush.bf16.msra.mxu0 %v4294
  %5862 = vmatpush.bf16.msra.mxu0 %v4278
  %5863 = vmatpush.bf16.msra.mxu0 %v4262
  %5864 = vmatmul.bf16.gmra.mxu0 %v396
  %v5865 = vpop.f32.mrf.mxu0
  %v5866 = vadd.f32 %v5837, %v5865
  %v5867 = vpop.f32.mrf.mxu0
  %v5868 = vadd.f32 %v5839, %v5867
  %5869 = vmatmul.bf16.gmra.mxu0 %v403
  %v5870 = vpop.f32.mrf.mxu0
  %v5871 = vadd.f32 %v5842, %v5870
  %v5872 = vpop.f32.mrf.mxu0
  %v5873 = vadd.f32 %v5844, %v5872
  %5874 = vmatmul.bf16.gmra.mxu0 %v410
  %v5875 = vpop.f32.mrf.mxu0
  %v5876 = vadd.f32 %v5847, %v5875
  %v5877 = vpop.f32.mrf.mxu0
  %v5878 = vadd.f32 %v5849, %v5877
  %5879 = vmatmul.bf16.gmra.mxu0 %v417
  %v5880 = vpop.f32.mrf.mxu0
  %v5881 = vadd.f32 %v5852, %v5880
  %v5882 = vpop.f32.mrf.mxu0
  %v5883 = vadd.f32 %v5854, %v5882
  %5884 = vdwg.mxu0
  %5885 = vmatpush.bf16.msra.mxu0 %v4502
  %5886 = vmatpush.bf16.msra.mxu0 %v4486
  %5887 = vmatpush.bf16.msra.mxu0 %v4470
  %5888 = vmatpush.bf16.msra.mxu0 %v4454
  %5889 = vmatpush.bf16.msra.mxu0 %v4438
  %5890 = vmatpush.bf16.msra.mxu0 %v4422
  %5891 = vmatpush.bf16.msra.mxu0 %v4406
  %5892 = vmatpush.bf16.msra.mxu0 %v4390
  %5893 = vmatmul.bf16.gmra.mxu0 %v397
  %v5894 = vpop.f32.mrf.mxu0
  %v5895 = vadd.f32 %v5866, %v5894
  %v5896 = vpop.f32.mrf.mxu0
  %v5897 = vadd.f32 %v5868, %v5896
  %5898 = vmatmul.bf16.gmra.mxu0 %v404
  %v5899 = vpop.f32.mrf.mxu0
  %v5900 = vadd.f32 %v5871, %v5899
  %v5901 = vpop.f32.mrf.mxu0
  %v5902 = vadd.f32 %v5873, %v5901
  %5903 = vmatmul.bf16.gmra.mxu0 %v411
  %v5904 = vpop.f32.mrf.mxu0
  %v5905 = vadd.f32 %v5876, %v5904
  %v5906 = vpop.f32.mrf.mxu0
  %v5907 = vadd.f32 %v5878, %v5906
  %5908 = vmatmul.bf16.gmra.mxu0 %v418
  %v5909 = vpop.f32.mrf.mxu0
  %v5910 = vadd.f32 %v5881, %v5909
  %v5911 = vpop.f32.mrf.mxu0
  %v5912 = vadd.f32 %v5883, %v5911
  %5913 = vdwg.mxu0
  %5914 = vmatpush.bf16.msra.mxu0 %v4630
  %5915 = vmatpush.bf16.msra.mxu0 %v4614
  %5916 = vmatpush.bf16.msra.mxu0 %v4598
  %5917 = vmatpush.bf16.msra.mxu0 %v4582
  %5918 = vmatpush.bf16.msra.mxu0 %v4566
  %5919 = vmatpush.bf16.msra.mxu0 %v4550
  %5920 = vmatpush.bf16.msra.mxu0 %v4534
  %5921 = vmatpush.bf16.msra.mxu0 %v4518
  %5922 = vmatmul.bf16.gmra.mxu0 %v398
  %v5923 = vpop.f32.mrf.mxu0
  %v5924 = vadd.f32 %v5895, %v5923
  %v5925 = vpop.f32.mrf.mxu0
  %v5926 = vadd.f32 %v5897, %v5925
  %5927 = vmatmul.bf16.gmra.mxu0 %v405
  %v5928 = vpop.f32.mrf.mxu0
  %v5929 = vadd.f32 %v5900, %v5928
  %v5930 = vpop.f32.mrf.mxu0
  %v5931 = vadd.f32 %v5902, %v5930
  %5932 = vmatmul.bf16.gmra.mxu0 %v412
  %v5933 = vpop.f32.mrf.mxu0
  %v5934 = vadd.f32 %v5905, %v5933
  %v5935 = vpop.f32.mrf.mxu0
  %v5936 = vadd.f32 %v5907, %v5935
  %5937 = vmatmul.bf16.gmra.mxu0 %v419
  %v5938 = vpop.f32.mrf.mxu0
  %v5939 = vadd.f32 %v5910, %v5938
  %v5940 = vpop.f32.mrf.mxu0
  %v5941 = vadd.f32 %v5912, %v5940
  %5942 = vdwg.mxu0
  %5943 = vmatpush.bf16.msra.mxu0 %v4758
  %5944 = vmatpush.bf16.msra.mxu0 %v4742
  %5945 = vmatpush.bf16.msra.mxu0 %v4726
  %5946 = vmatpush.bf16.msra.mxu0 %v4710
  %5947 = vmatpush.bf16.msra.mxu0 %v4694
  %5948 = vmatpush.bf16.msra.mxu0 %v4678
  %5949 = vmatpush.bf16.msra.mxu0 %v4662
  %5950 = vmatpush.bf16.msra.mxu0 %v4646
  %5951 = vmatmul.bf16.gmra.mxu0 %v399
  %v5952 = vpop.f32.mrf.mxu0
  %v5953 = vadd.f32 %v5924, %v5952
  %v5954 = vpop.f32.mrf.mxu0
  %v5955 = vadd.f32 %v5926, %v5954
  %5956 = vmatmul.bf16.gmra.mxu0 %v406
  %v5957 = vpop.f32.mrf.mxu0
  %v5958 = vadd.f32 %v5929, %v5957
  %v5959 = vpop.f32.mrf.mxu0
  %v5960 = vadd.f32 %v5931, %v5959
  %5961 = vmatmul.bf16.gmra.mxu0 %v413
  %v5962 = vpop.f32.mrf.mxu0
  %v5963 = vadd.f32 %v5934, %v5962
  %v5964 = vpop.f32.mrf.mxu0
  %v5965 = vadd.f32 %v5936, %v5964
  %5966 = vmatmul.bf16.gmra.mxu0 %v420
  %v5967 = vpop.f32.mrf.mxu0
  %v5968 = vadd.f32 %v5939, %v5967
  %v5969 = vpop.f32.mrf.mxu0
  %v5970 = vadd.f32 %v5941, %v5969
  %5971 = vdwg.mxu0
  %5972 = vmatpush.bf16.msra.mxu0 %v4886
  %5973 = vmatpush.bf16.msra.mxu0 %v4870
  %5974 = vmatpush.bf16.msra.mxu0 %v4854
  %5975 = vmatpush.bf16.msra.mxu0 %v4838
  %5976 = vmatpush.bf16.msra.mxu0 %v4822
  %5977 = vmatpush.bf16.msra.mxu0 %v4806
  %5978 = vmatpush.bf16.msra.mxu0 %v4790
  %5979 = vmatpush.bf16.msra.mxu0 %v4774
  %5980 = vmatmul.bf16.gmra.mxu0 %v400
  %v5981 = vpop.f32.mrf.mxu0
  %v5982 = vadd.f32 %v5953, %v5981
  %v5983 = vpop.f32.mrf.mxu0
  %v5984 = vadd.f32 %v5955, %v5983
  %5985 = vmatmul.bf16.gmra.mxu0 %v407
  %v5986 = vpop.f32.mrf.mxu0
  %v5987 = vadd.f32 %v5958, %v5986
  %v5988 = vpop.f32.mrf.mxu0
  %v5989 = vadd.f32 %v5960, %v5988
  %5990 = vmatmul.bf16.gmra.mxu0 %v414
  %v5991 = vpop.f32.mrf.mxu0
  %v5992 = vadd.f32 %v5963, %v5991
  %v5993 = vpop.f32.mrf.mxu0
  %v5994 = vadd.f32 %v5965, %v5993
  %5995 = vmatmul.bf16.gmra.mxu0 %v421
  %v5996 = vpop.f32.mrf.mxu0
  %v5997 = vadd.f32 %v5968, %v5996
  %v5998 = vpop.f32.mrf.mxu0
  %v5999 = vadd.f32 %v5970, %v5998
  %6000 = vdwg.mxu0
  %6001 = vmatpush.bf16.msra.mxu0 %v4119
  %6002 = vmatpush.bf16.msra.mxu0 %v4103
  %6003 = vmatpush.bf16.msra.mxu0 %v4087
  %6004 = vmatpush.bf16.msra.mxu0 %v4071
  %6005 = vmatpush.bf16.msra.mxu0 %v4055
  %6006 = vmatpush.bf16.msra.mxu0 %v4039
  %6007 = vmatpush.bf16.msra.mxu0 %v4023
  %6008 = vmatpush.bf16.msra.mxu0 %v4007
  %6009 = vmatmul.bf16.gmra.mxu0 %v394
  %v6010 = vpop.f32.mrf.mxu0
  %v6011 = vadd.f32 0.0, %v6010
  %v6012 = vpop.f32.mrf.mxu0
  %v6013 = vadd.f32 0.0, %v6012
  %6014 = vmatmul.bf16.gmra.mxu0 %v401
  %v6015 = vpop.f32.mrf.mxu0
  %v6016 = vadd.f32 0.0, %v6015
  %v6017 = vpop.f32.mrf.mxu0
  %v6018 = vadd.f32 0.0, %v6017
  %6019 = vmatmul.bf16.gmra.mxu0 %v408
  %v6020 = vpop.f32.mrf.mxu0
  %v6021 = vadd.f32 0.0, %v6020
  %v6022 = vpop.f32.mrf.mxu0
  %v6023 = vadd.f32 0.0, %v6022
  %6024 = vmatmul.bf16.gmra.mxu0 %v415
  %v6025 = vpop.f32.mrf.mxu0
  %v6026 = vadd.f32 0.0, %v6025
  %v6027 = vpop.f32.mrf.mxu0
  %v6028 = vadd.f32 0.0, %v6027
  %6029 = vdwg.mxu0
  %6030 = vmatpush.bf16.msra.mxu0 %v4247
  %6031 = vmatpush.bf16.msra.mxu0 %v4231
  %6032 = vmatpush.bf16.msra.mxu0 %v4215
  %6033 = vmatpush.bf16.msra.mxu0 %v4199
  %6034 = vmatpush.bf16.msra.mxu0 %v4183
  %6035 = vmatpush.bf16.msra.mxu0 %v4167
  %6036 = vmatpush.bf16.msra.mxu0 %v4151
  %6037 = vmatpush.bf16.msra.mxu0 %v4135
  %6038 = vmatmul.bf16.gmra.mxu0 %v395
  %v6039 = vpop.f32.mrf.mxu0
  %v6040 = vadd.f32 %v6011, %v6039
  %v6041 = vpop.f32.mrf.mxu0
  %v6042 = vadd.f32 %v6013, %v6041
  %6043 = vmatmul.bf16.gmra.mxu0 %v402
  %v6044 = vpop.f32.mrf.mxu0
  %v6045 = vadd.f32 %v6016, %v6044
  %v6046 = vpop.f32.mrf.mxu0
  %v6047 = vadd.f32 %v6018, %v6046
  %6048 = vmatmul.bf16.gmra.mxu0 %v409
  %v6049 = vpop.f32.mrf.mxu0
  %v6050 = vadd.f32 %v6021, %v6049
  %v6051 = vpop.f32.mrf.mxu0
  %v6052 = vadd.f32 %v6023, %v6051
  %6053 = vmatmul.bf16.gmra.mxu0 %v416
  %v6054 = vpop.f32.mrf.mxu0
  %v6055 = vadd.f32 %v6026, %v6054
  %v6056 = vpop.f32.mrf.mxu0
  %v6057 = vadd.f32 %v6028, %v6056
  %6058 = vdwg.mxu0
  %6059 = vmatpush.bf16.msra.mxu0 %v4375
  %6060 = vmatpush.bf16.msra.mxu0 %v4359
  %6061 = vmatpush.bf16.msra.mxu0 %v4343
  %6062 = vmatpush.bf16.msra.mxu0 %v4327
  %6063 = vmatpush.bf16.msra.mxu0 %v4311
  %6064 = vmatpush.bf16.msra.mxu0 %v4295
  %6065 = vmatpush.bf16.msra.mxu0 %v4279
  %6066 = vmatpush.bf16.msra.mxu0 %v4263
  %6067 = vmatmul.bf16.gmra.mxu0 %v396
  %v6068 = vpop.f32.mrf.mxu0
  %v6069 = vadd.f32 %v6040, %v6068
  %v6070 = vpop.f32.mrf.mxu0
  %v6071 = vadd.f32 %v6042, %v6070
  %6072 = vmatmul.bf16.gmra.mxu0 %v403
  %v6073 = vpop.f32.mrf.mxu0
  %v6074 = vadd.f32 %v6045, %v6073
  %v6075 = vpop.f32.mrf.mxu0
  %v6076 = vadd.f32 %v6047, %v6075
  %6077 = vmatmul.bf16.gmra.mxu0 %v410
  %v6078 = vpop.f32.mrf.mxu0
  %v6079 = vadd.f32 %v6050, %v6078
  %v6080 = vpop.f32.mrf.mxu0
  %v6081 = vadd.f32 %v6052, %v6080
  %6082 = vmatmul.bf16.gmra.mxu0 %v417
  %v6083 = vpop.f32.mrf.mxu0
  %v6084 = vadd.f32 %v6055, %v6083
  %v6085 = vpop.f32.mrf.mxu0
  %v6086 = vadd.f32 %v6057, %v6085
  %6087 = vdwg.mxu0
  %6088 = vmatpush.bf16.msra.mxu0 %v4503
  %6089 = vmatpush.bf16.msra.mxu0 %v4487
  %6090 = vmatpush.bf16.msra.mxu0 %v4471
  %6091 = vmatpush.bf16.msra.mxu0 %v4455
  %6092 = vmatpush.bf16.msra.mxu0 %v4439
  %6093 = vmatpush.bf16.msra.mxu0 %v4423
  %6094 = vmatpush.bf16.msra.mxu0 %v4407
  %6095 = vmatpush.bf16.msra.mxu0 %v4391
  %6096 = vmatmul.bf16.gmra.mxu0 %v397
  %v6097 = vpop.f32.mrf.mxu0
  %v6098 = vadd.f32 %v6069, %v6097
  %v6099 = vpop.f32.mrf.mxu0
  %v6100 = vadd.f32 %v6071, %v6099
  %6101 = vmatmul.bf16.gmra.mxu0 %v404
  %v6102 = vpop.f32.mrf.mxu0
  %v6103 = vadd.f32 %v6074, %v6102
  %v6104 = vpop.f32.mrf.mxu0
  %v6105 = vadd.f32 %v6076, %v6104
  %6106 = vmatmul.bf16.gmra.mxu0 %v411
  %v6107 = vpop.f32.mrf.mxu0
  %v6108 = vadd.f32 %v6079, %v6107
  %v6109 = vpop.f32.mrf.mxu0
  %v6110 = vadd.f32 %v6081, %v6109
  %6111 = vmatmul.bf16.gmra.mxu0 %v418
  %v6112 = vpop.f32.mrf.mxu0
  %v6113 = vadd.f32 %v6084, %v6112
  %v6114 = vpop.f32.mrf.mxu0
  %v6115 = vadd.f32 %v6086, %v6114
  %6116 = vdwg.mxu0
  %6117 = vmatpush.bf16.msra.mxu0 %v4631
  %6118 = vmatpush.bf16.msra.mxu0 %v4615
  %6119 = vmatpush.bf16.msra.mxu0 %v4599
  %6120 = vmatpush.bf16.msra.mxu0 %v4583
  %6121 = vmatpush.bf16.msra.mxu0 %v4567
  %6122 = vmatpush.bf16.msra.mxu0 %v4551
  %6123 = vmatpush.bf16.msra.mxu0 %v4535
  %6124 = vmatpush.bf16.msra.mxu0 %v4519
  %6125 = vmatmul.bf16.gmra.mxu0 %v398
  %v6126 = vpop.f32.mrf.mxu0
  %v6127 = vadd.f32 %v6098, %v6126
  %v6128 = vpop.f32.mrf.mxu0
  %v6129 = vadd.f32 %v6100, %v6128
  %6130 = vmatmul.bf16.gmra.mxu0 %v405
  %v6131 = vpop.f32.mrf.mxu0
  %v6132 = vadd.f32 %v6103, %v6131
  %v6133 = vpop.f32.mrf.mxu0
  %v6134 = vadd.f32 %v6105, %v6133
  %6135 = vmatmul.bf16.gmra.mxu0 %v412
  %v6136 = vpop.f32.mrf.mxu0
  %v6137 = vadd.f32 %v6108, %v6136
  %v6138 = vpop.f32.mrf.mxu0
  %v6139 = vadd.f32 %v6110, %v6138
  %6140 = vmatmul.bf16.gmra.mxu0 %v419
  %v6141 = vpop.f32.mrf.mxu0
  %v6142 = vadd.f32 %v6113, %v6141
  %v6143 = vpop.f32.mrf.mxu0
  %v6144 = vadd.f32 %v6115, %v6143
  %6145 = vdwg.mxu0
  %6146 = vmatpush.bf16.msra.mxu0 %v4759
  %6147 = vmatpush.bf16.msra.mxu0 %v4743
  %6148 = vmatpush.bf16.msra.mxu0 %v4727
  %6149 = vmatpush.bf16.msra.mxu0 %v4711
  %6150 = vmatpush.bf16.msra.mxu0 %v4695
  %6151 = vmatpush.bf16.msra.mxu0 %v4679
  %6152 = vmatpush.bf16.msra.mxu0 %v4663
  %6153 = vmatpush.bf16.msra.mxu0 %v4647
  %6154 = vmatmul.bf16.gmra.mxu0 %v399
  %v6155 = vpop.f32.mrf.mxu0
  %v6156 = vadd.f32 %v6127, %v6155
  %v6157 = vpop.f32.mrf.mxu0
  %v6158 = vadd.f32 %v6129, %v6157
  %6159 = vmatmul.bf16.gmra.mxu0 %v406
  %v6160 = vpop.f32.mrf.mxu0
  %v6161 = vadd.f32 %v6132, %v6160
  %v6162 = vpop.f32.mrf.mxu0
  %v6163 = vadd.f32 %v6134, %v6162
  %6164 = vmatmul.bf16.gmra.mxu0 %v413
  %v6165 = vpop.f32.mrf.mxu0
  %v6166 = vadd.f32 %v6137, %v6165
  %v6167 = vpop.f32.mrf.mxu0
  %v6168 = vadd.f32 %v6139, %v6167
  %6169 = vmatmul.bf16.gmra.mxu0 %v420
  %v6170 = vpop.f32.mrf.mxu0
  %v6171 = vadd.f32 %v6142, %v6170
  %v6172 = vpop.f32.mrf.mxu0
  %v6173 = vadd.f32 %v6144, %v6172
  %6174 = vdwg.mxu0
  %6175 = vmatpush.bf16.msra.mxu0 %v4887
  %6176 = vmatpush.bf16.msra.mxu0 %v4871
  %6177 = vmatpush.bf16.msra.mxu0 %v4855
  %6178 = vmatpush.bf16.msra.mxu0 %v4839
  %6179 = vmatpush.bf16.msra.mxu0 %v4823
  %6180 = vmatpush.bf16.msra.mxu0 %v4807
  %6181 = vmatpush.bf16.msra.mxu0 %v4791
  %6182 = vmatpush.bf16.msra.mxu0 %v4775
  %6183 = vmatmul.bf16.gmra.mxu0 %v400
  %v6184 = vpop.f32.mrf.mxu0
  %v6185 = vadd.f32 %v6156, %v6184
  %v6186 = vpop.f32.mrf.mxu0
  %v6187 = vadd.f32 %v6158, %v6186
  %6188 = vmatmul.bf16.gmra.mxu0 %v407
  %v6189 = vpop.f32.mrf.mxu0
  %v6190 = vadd.f32 %v6161, %v6189
  %v6191 = vpop.f32.mrf.mxu0
  %v6192 = vadd.f32 %v6163, %v6191
  %6193 = vmatmul.bf16.gmra.mxu0 %v414
  %v6194 = vpop.f32.mrf.mxu0
  %v6195 = vadd.f32 %v6166, %v6194
  %v6196 = vpop.f32.mrf.mxu0
  %v6197 = vadd.f32 %v6168, %v6196
  %6198 = vmatmul.bf16.gmra.mxu0 %v421
  %v6199 = vpop.f32.mrf.mxu0
  %v6200 = vadd.f32 %v6171, %v6199
  %v6201 = vpop.f32.mrf.mxu0
  %v6202 = vadd.f32 %v6173, %v6201
  %6203 = vdwg.mxu0
  %6204 = vmatpush.bf16.msra.mxu0 %v4120
  %6205 = vmatpush.bf16.msra.mxu0 %v4104
  %6206 = vmatpush.bf16.msra.mxu0 %v4088
  %6207 = vmatpush.bf16.msra.mxu0 %v4072
  %6208 = vmatpush.bf16.msra.mxu0 %v4056
  %6209 = vmatpush.bf16.msra.mxu0 %v4040
  %6210 = vmatpush.bf16.msra.mxu0 %v4024
  %6211 = vmatpush.bf16.msra.mxu0 %v4008
  %6212 = vmatmul.bf16.gmra.mxu0 %v394
  %v6213 = vpop.f32.mrf.mxu0
  %v6214 = vadd.f32 0.0, %v6213
  %v6215 = vpop.f32.mrf.mxu0
  %v6216 = vadd.f32 0.0, %v6215
  %6217 = vmatmul.bf16.gmra.mxu0 %v401
  %v6218 = vpop.f32.mrf.mxu0
  %v6219 = vadd.f32 0.0, %v6218
  %v6220 = vpop.f32.mrf.mxu0
  %v6221 = vadd.f32 0.0, %v6220
  %6222 = vmatmul.bf16.gmra.mxu0 %v408
  %v6223 = vpop.f32.mrf.mxu0
  %v6224 = vadd.f32 0.0, %v6223
  %v6225 = vpop.f32.mrf.mxu0
  %v6226 = vadd.f32 0.0, %v6225
  %6227 = vmatmul.bf16.gmra.mxu0 %v415
  %v6228 = vpop.f32.mrf.mxu0
  %v6229 = vadd.f32 0.0, %v6228
  %v6230 = vpop.f32.mrf.mxu0
  %v6231 = vadd.f32 0.0, %v6230
  %6232 = vdwg.mxu0
  %6233 = vmatpush.bf16.msra.mxu0 %v4248
  %6234 = vmatpush.bf16.msra.mxu0 %v4232
  %6235 = vmatpush.bf16.msra.mxu0 %v4216
  %6236 = vmatpush.bf16.msra.mxu0 %v4200
  %6237 = vmatpush.bf16.msra.mxu0 %v4184
  %6238 = vmatpush.bf16.msra.mxu0 %v4168
  %6239 = vmatpush.bf16.msra.mxu0 %v4152
  %6240 = vmatpush.bf16.msra.mxu0 %v4136
  %6241 = vmatmul.bf16.gmra.mxu0 %v395
  %v6242 = vpop.f32.mrf.mxu0
  %v6243 = vadd.f32 %v6214, %v6242
  %v6244 = vpop.f32.mrf.mxu0
  %v6245 = vadd.f32 %v6216, %v6244
  %6246 = vmatmul.bf16.gmra.mxu0 %v402
  %v6247 = vpop.f32.mrf.mxu0
  %v6248 = vadd.f32 %v6219, %v6247
  %v6249 = vpop.f32.mrf.mxu0
  %v6250 = vadd.f32 %v6221, %v6249
  %6251 = vmatmul.bf16.gmra.mxu0 %v409
  %v6252 = vpop.f32.mrf.mxu0
  %v6253 = vadd.f32 %v6224, %v6252
  %v6254 = vpop.f32.mrf.mxu0
  %v6255 = vadd.f32 %v6226, %v6254
  %6256 = vmatmul.bf16.gmra.mxu0 %v416
  %v6257 = vpop.f32.mrf.mxu0
  %v6258 = vadd.f32 %v6229, %v6257
  %v6259 = vpop.f32.mrf.mxu0
  %v6260 = vadd.f32 %v6231, %v6259
  %6261 = vdwg.mxu0
  %6262 = vmatpush.bf16.msra.mxu0 %v4376
  %6263 = vmatpush.bf16.msra.mxu0 %v4360
  %6264 = vmatpush.bf16.msra.mxu0 %v4344
  %6265 = vmatpush.bf16.msra.mxu0 %v4328
  %6266 = vmatpush.bf16.msra.mxu0 %v4312
  %6267 = vmatpush.bf16.msra.mxu0 %v4296
  %6268 = vmatpush.bf16.msra.mxu0 %v4280
  %6269 = vmatpush.bf16.msra.mxu0 %v4264
  %6270 = vmatmul.bf16.gmra.mxu0 %v396
  %v6271 = vpop.f32.mrf.mxu0
  %v6272 = vadd.f32 %v6243, %v6271
  %v6273 = vpop.f32.mrf.mxu0
  %v6274 = vadd.f32 %v6245, %v6273
  %6275 = vmatmul.bf16.gmra.mxu0 %v403
  %v6276 = vpop.f32.mrf.mxu0
  %v6277 = vadd.f32 %v6248, %v6276
  %v6278 = vpop.f32.mrf.mxu0
  %v6279 = vadd.f32 %v6250, %v6278
  %6280 = vmatmul.bf16.gmra.mxu0 %v410
  %v6281 = vpop.f32.mrf.mxu0
  %v6282 = vadd.f32 %v6253, %v6281
  %v6283 = vpop.f32.mrf.mxu0
  %v6284 = vadd.f32 %v6255, %v6283
  %6285 = vmatmul.bf16.gmra.mxu0 %v417
  %v6286 = vpop.f32.mrf.mxu0
  %v6287 = vadd.f32 %v6258, %v6286
  %v6288 = vpop.f32.mrf.mxu0
  %v6289 = vadd.f32 %v6260, %v6288
  %6290 = vdwg.mxu0
  %6291 = vmatpush.bf16.msra.mxu0 %v4504
  %6292 = vmatpush.bf16.msra.mxu0 %v4488
  %6293 = vmatpush.bf16.msra.mxu0 %v4472
  %6294 = vmatpush.bf16.msra.mxu0 %v4456
  %6295 = vmatpush.bf16.msra.mxu0 %v4440
  %6296 = vmatpush.bf16.msra.mxu0 %v4424
  %6297 = vmatpush.bf16.msra.mxu0 %v4408
  %6298 = vmatpush.bf16.msra.mxu0 %v4392
  %6299 = vmatmul.bf16.gmra.mxu0 %v397
  %v6300 = vpop.f32.mrf.mxu0
  %v6301 = vadd.f32 %v6272, %v6300
  %v6302 = vpop.f32.mrf.mxu0
  %v6303 = vadd.f32 %v6274, %v6302
  %6304 = vmatmul.bf16.gmra.mxu0 %v404
  %v6305 = vpop.f32.mrf.mxu0
  %v6306 = vadd.f32 %v6277, %v6305
  %v6307 = vpop.f32.mrf.mxu0
  %v6308 = vadd.f32 %v6279, %v6307
  %6309 = vmatmul.bf16.gmra.mxu0 %v411
  %v6310 = vpop.f32.mrf.mxu0
  %v6311 = vadd.f32 %v6282, %v6310
  %v6312 = vpop.f32.mrf.mxu0
  %v6313 = vadd.f32 %v6284, %v6312
  %6314 = vmatmul.bf16.gmra.mxu0 %v418
  %v6315 = vpop.f32.mrf.mxu0
  %v6316 = vadd.f32 %v6287, %v6315
  %v6317 = vpop.f32.mrf.mxu0
  %v6318 = vadd.f32 %v6289, %v6317
  %6319 = vdwg.mxu0
  %6320 = vmatpush.bf16.msra.mxu0 %v4632
  %6321 = vmatpush.bf16.msra.mxu0 %v4616
  %6322 = vmatpush.bf16.msra.mxu0 %v4600
  %6323 = vmatpush.bf16.msra.mxu0 %v4584
  %6324 = vmatpush.bf16.msra.mxu0 %v4568
  %6325 = vmatpush.bf16.msra.mxu0 %v4552
  %6326 = vmatpush.bf16.msra.mxu0 %v4536
  %6327 = vmatpush.bf16.msra.mxu0 %v4520
  %6328 = vmatmul.bf16.gmra.mxu0 %v398
  %v6329 = vpop.f32.mrf.mxu0
  %v6330 = vadd.f32 %v6301, %v6329
  %v6331 = vpop.f32.mrf.mxu0
  %v6332 = vadd.f32 %v6303, %v6331
  %6333 = vmatmul.bf16.gmra.mxu0 %v405
  %v6334 = vpop.f32.mrf.mxu0
  %v6335 = vadd.f32 %v6306, %v6334
  %v6336 = vpop.f32.mrf.mxu0
  %v6337 = vadd.f32 %v6308, %v6336
  %6338 = vmatmul.bf16.gmra.mxu0 %v412
  %v6339 = vpop.f32.mrf.mxu0
  %v6340 = vadd.f32 %v6311, %v6339
  %v6341 = vpop.f32.mrf.mxu0
  %v6342 = vadd.f32 %v6313, %v6341
  %6343 = vmatmul.bf16.gmra.mxu0 %v419
  %v6344 = vpop.f32.mrf.mxu0
  %v6345 = vadd.f32 %v6316, %v6344
  %v6346 = vpop.f32.mrf.mxu0
  %v6347 = vadd.f32 %v6318, %v6346
  %6348 = vdwg.mxu0
  %6349 = vmatpush.bf16.msra.mxu0 %v4760
  %6350 = vmatpush.bf16.msra.mxu0 %v4744
  %6351 = vmatpush.bf16.msra.mxu0 %v4728
  %6352 = vmatpush.bf16.msra.mxu0 %v4712
  %6353 = vmatpush.bf16.msra.mxu0 %v4696
  %6354 = vmatpush.bf16.msra.mxu0 %v4680
  %6355 = vmatpush.bf16.msra.mxu0 %v4664
  %6356 = vmatpush.bf16.msra.mxu0 %v4648
  %6357 = vmatmul.bf16.gmra.mxu0 %v399
  %v6358 = vpop.f32.mrf.mxu0
  %v6359 = vadd.f32 %v6330, %v6358
  %v6360 = vpop.f32.mrf.mxu0
  %v6361 = vadd.f32 %v6332, %v6360
  %6362 = vmatmul.bf16.gmra.mxu0 %v406
  %v6363 = vpop.f32.mrf.mxu0
  %v6364 = vadd.f32 %v6335, %v6363
  %v6365 = vpop.f32.mrf.mxu0
  %v6366 = vadd.f32 %v6337, %v6365
  %6367 = vmatmul.bf16.gmra.mxu0 %v413
  %v6368 = vpop.f32.mrf.mxu0
  %v6369 = vadd.f32 %v6340, %v6368
  %v6370 = vpop.f32.mrf.mxu0
  %v6371 = vadd.f32 %v6342, %v6370
  %6372 = vmatmul.bf16.gmra.mxu0 %v420
  %v6373 = vpop.f32.mrf.mxu0
  %v6374 = vadd.f32 %v6345, %v6373
  %v6375 = vpop.f32.mrf.mxu0
  %v6376 = vadd.f32 %v6347, %v6375
  %6377 = vdwg.mxu0
  %6378 = vmatpush.bf16.msra.mxu0 %v4888
  %6379 = vmatpush.bf16.msra.mxu0 %v4872
  %6380 = vmatpush.bf16.msra.mxu0 %v4856
  %6381 = vmatpush.bf16.msra.mxu0 %v4840
  %6382 = vmatpush.bf16.msra.mxu0 %v4824
  %6383 = vmatpush.bf16.msra.mxu0 %v4808
  %6384 = vmatpush.bf16.msra.mxu0 %v4792
  %6385 = vmatpush.bf16.msra.mxu0 %v4776
  %6386 = vmatmul.bf16.gmra.mxu0 %v400
  %v6387 = vpop.f32.mrf.mxu0
  %v6388 = vadd.f32 %v6359, %v6387
  %v6389 = vpop.f32.mrf.mxu0
  %v6390 = vadd.f32 %v6361, %v6389
  %6391 = vmatmul.bf16.gmra.mxu0 %v407
  %v6392 = vpop.f32.mrf.mxu0
  %v6393 = vadd.f32 %v6364, %v6392
  %v6394 = vpop.f32.mrf.mxu0
  %v6395 = vadd.f32 %v6366, %v6394
  %6396 = vmatmul.bf16.gmra.mxu0 %v414
  %v6397 = vpop.f32.mrf.mxu0
  %v6398 = vadd.f32 %v6369, %v6397
  %v6399 = vpop.f32.mrf.mxu0
  %v6400 = vadd.f32 %v6371, %v6399
  %6401 = vmatmul.bf16.gmra.mxu0 %v421
  %v6402 = vpop.f32.mrf.mxu0
  %v6403 = vadd.f32 %v6374, %v6402
  %v6404 = vpop.f32.mrf.mxu0
  %v6405 = vadd.f32 %v6376, %v6404
  %6406 = vdwg.mxu0
  %6407 = vmatpush.bf16.msra.mxu0 %v4121
  %6408 = vmatpush.bf16.msra.mxu0 %v4105
  %6409 = vmatpush.bf16.msra.mxu0 %v4089
  %6410 = vmatpush.bf16.msra.mxu0 %v4073
  %6411 = vmatpush.bf16.msra.mxu0 %v4057
  %6412 = vmatpush.bf16.msra.mxu0 %v4041
  %6413 = vmatpush.bf16.msra.mxu0 %v4025
  %6414 = vmatpush.bf16.msra.mxu0 %v4009
  %6415 = vmatmul.bf16.gmra.mxu0 %v394
  %v6416 = vpop.f32.mrf.mxu0
  %v6417 = vadd.f32 0.0, %v6416
  %v6418 = vpop.f32.mrf.mxu0
  %v6419 = vadd.f32 0.0, %v6418
  %6420 = vmatmul.bf16.gmra.mxu0 %v401
  %v6421 = vpop.f32.mrf.mxu0
  %v6422 = vadd.f32 0.0, %v6421
  %v6423 = vpop.f32.mrf.mxu0
  %v6424 = vadd.f32 0.0, %v6423
  %6425 = vmatmul.bf16.gmra.mxu0 %v408
  %v6426 = vpop.f32.mrf.mxu0
  %v6427 = vadd.f32 0.0, %v6426
  %v6428 = vpop.f32.mrf.mxu0
  %v6429 = vadd.f32 0.0, %v6428
  %6430 = vmatmul.bf16.gmra.mxu0 %v415
  %v6431 = vpop.f32.mrf.mxu0
  %v6432 = vadd.f32 0.0, %v6431
  %v6433 = vpop.f32.mrf.mxu0
  %v6434 = vadd.f32 0.0, %v6433
  %6435 = vdwg.mxu0
  %6436 = vmatpush.bf16.msra.mxu0 %v4249
  %6437 = vmatpush.bf16.msra.mxu0 %v4233
  %6438 = vmatpush.bf16.msra.mxu0 %v4217
  %6439 = vmatpush.bf16.msra.mxu0 %v4201
  %6440 = vmatpush.bf16.msra.mxu0 %v4185
  %6441 = vmatpush.bf16.msra.mxu0 %v4169
  %6442 = vmatpush.bf16.msra.mxu0 %v4153
  %6443 = vmatpush.bf16.msra.mxu0 %v4137
  %6444 = vmatmul.bf16.gmra.mxu0 %v395
  %v6445 = vpop.f32.mrf.mxu0
  %v6446 = vadd.f32 %v6417, %v6445
  %v6447 = vpop.f32.mrf.mxu0
  %v6448 = vadd.f32 %v6419, %v6447
  %6449 = vmatmul.bf16.gmra.mxu0 %v402
  %v6450 = vpop.f32.mrf.mxu0
  %v6451 = vadd.f32 %v6422, %v6450
  %v6452 = vpop.f32.mrf.mxu0
  %v6453 = vadd.f32 %v6424, %v6452
  %6454 = vmatmul.bf16.gmra.mxu0 %v409
  %v6455 = vpop.f32.mrf.mxu0
  %v6456 = vadd.f32 %v6427, %v6455
  %v6457 = vpop.f32.mrf.mxu0
  %v6458 = vadd.f32 %v6429, %v6457
  %6459 = vmatmul.bf16.gmra.mxu0 %v416
  %v6460 = vpop.f32.mrf.mxu0
  %v6461 = vadd.f32 %v6432, %v6460
  %v6462 = vpop.f32.mrf.mxu0
  %v6463 = vadd.f32 %v6434, %v6462
  %6464 = vdwg.mxu0
  %6465 = vmatpush.bf16.msra.mxu0 %v4377
  %6466 = vmatpush.bf16.msra.mxu0 %v4361
  %6467 = vmatpush.bf16.msra.mxu0 %v4345
  %6468 = vmatpush.bf16.msra.mxu0 %v4329
  %6469 = vmatpush.bf16.msra.mxu0 %v4313
  %6470 = vmatpush.bf16.msra.mxu0 %v4297
  %6471 = vmatpush.bf16.msra.mxu0 %v4281
  %6472 = vmatpush.bf16.msra.mxu0 %v4265
  %6473 = vmatmul.bf16.gmra.mxu0 %v396
  %v6474 = vpop.f32.mrf.mxu0
  %v6475 = vadd.f32 %v6446, %v6474
  %v6476 = vpop.f32.mrf.mxu0
  %v6477 = vadd.f32 %v6448, %v6476
  %6478 = vmatmul.bf16.gmra.mxu0 %v403
  %v6479 = vpop.f32.mrf.mxu0
  %v6480 = vadd.f32 %v6451, %v6479
  %v6481 = vpop.f32.mrf.mxu0
  %v6482 = vadd.f32 %v6453, %v6481
  %6483 = vmatmul.bf16.gmra.mxu0 %v410
  %v6484 = vpop.f32.mrf.mxu0
  %v6485 = vadd.f32 %v6456, %v6484
  %v6486 = vpop.f32.mrf.mxu0
  %v6487 = vadd.f32 %v6458, %v6486
  %6488 = vmatmul.bf16.gmra.mxu0 %v417
  %v6489 = vpop.f32.mrf.mxu0
  %v6490 = vadd.f32 %v6461, %v6489
  %v6491 = vpop.f32.mrf.mxu0
  %v6492 = vadd.f32 %v6463, %v6491
  %6493 = vdwg.mxu0
  %6494 = vmatpush.bf16.msra.mxu0 %v4505
  %6495 = vmatpush.bf16.msra.mxu0 %v4489
  %6496 = vmatpush.bf16.msra.mxu0 %v4473
  %6497 = vmatpush.bf16.msra.mxu0 %v4457
  %6498 = vmatpush.bf16.msra.mxu0 %v4441
  %6499 = vmatpush.bf16.msra.mxu0 %v4425
  %6500 = vmatpush.bf16.msra.mxu0 %v4409
  %6501 = vmatpush.bf16.msra.mxu0 %v4393
  %6502 = vmatmul.bf16.gmra.mxu0 %v397
  %v6503 = vpop.f32.mrf.mxu0
  %v6504 = vadd.f32 %v6475, %v6503
  %v6505 = vpop.f32.mrf.mxu0
  %v6506 = vadd.f32 %v6477, %v6505
  %6507 = vmatmul.bf16.gmra.mxu0 %v404
  %v6508 = vpop.f32.mrf.mxu0
  %v6509 = vadd.f32 %v6480, %v6508
  %v6510 = vpop.f32.mrf.mxu0
  %v6511 = vadd.f32 %v6482, %v6510
  %6512 = vmatmul.bf16.gmra.mxu0 %v411
  %v6513 = vpop.f32.mrf.mxu0
  %v6514 = vadd.f32 %v6485, %v6513
  %v6515 = vpop.f32.mrf.mxu0
  %v6516 = vadd.f32 %v6487, %v6515
  %6517 = vmatmul.bf16.gmra.mxu0 %v418
  %v6518 = vpop.f32.mrf.mxu0
  %v6519 = vadd.f32 %v6490, %v6518
  %v6520 = vpop.f32.mrf.mxu0
  %v6521 = vadd.f32 %v6492, %v6520
  %6522 = vdwg.mxu0
  %6523 = vmatpush.bf16.msra.mxu0 %v4633
  %6524 = vmatpush.bf16.msra.mxu0 %v4617
  %6525 = vmatpush.bf16.msra.mxu0 %v4601
  %6526 = vmatpush.bf16.msra.mxu0 %v4585
  %6527 = vmatpush.bf16.msra.mxu0 %v4569
  %6528 = vmatpush.bf16.msra.mxu0 %v4553
  %6529 = vmatpush.bf16.msra.mxu0 %v4537
  %6530 = vmatpush.bf16.msra.mxu0 %v4521
  %6531 = vmatmul.bf16.gmra.mxu0 %v398
  %v6532 = vpop.f32.mrf.mxu0
  %v6533 = vadd.f32 %v6504, %v6532
  %v6534 = vpop.f32.mrf.mxu0
  %v6535 = vadd.f32 %v6506, %v6534
  %6536 = vmatmul.bf16.gmra.mxu0 %v405
  %v6537 = vpop.f32.mrf.mxu0
  %v6538 = vadd.f32 %v6509, %v6537
  %v6539 = vpop.f32.mrf.mxu0
  %v6540 = vadd.f32 %v6511, %v6539
  %6541 = vmatmul.bf16.gmra.mxu0 %v412
  %v6542 = vpop.f32.mrf.mxu0
  %v6543 = vadd.f32 %v6514, %v6542
  %v6544 = vpop.f32.mrf.mxu0
  %v6545 = vadd.f32 %v6516, %v6544
  %6546 = vmatmul.bf16.gmra.mxu0 %v419
  %v6547 = vpop.f32.mrf.mxu0
  %v6548 = vadd.f32 %v6519, %v6547
  %v6549 = vpop.f32.mrf.mxu0
  %v6550 = vadd.f32 %v6521, %v6549
  %6551 = vdwg.mxu0
  %6552 = vmatpush.bf16.msra.mxu0 %v4761
  %6553 = vmatpush.bf16.msra.mxu0 %v4745
  %6554 = vmatpush.bf16.msra.mxu0 %v4729
  %6555 = vmatpush.bf16.msra.mxu0 %v4713
  %6556 = vmatpush.bf16.msra.mxu0 %v4697
  %6557 = vmatpush.bf16.msra.mxu0 %v4681
  %6558 = vmatpush.bf16.msra.mxu0 %v4665
  %6559 = vmatpush.bf16.msra.mxu0 %v4649
  %6560 = vmatmul.bf16.gmra.mxu0 %v399
  %v6561 = vpop.f32.mrf.mxu0
  %v6562 = vadd.f32 %v6533, %v6561
  %v6563 = vpop.f32.mrf.mxu0
  %v6564 = vadd.f32 %v6535, %v6563
  %6565 = vmatmul.bf16.gmra.mxu0 %v406
  %v6566 = vpop.f32.mrf.mxu0
  %v6567 = vadd.f32 %v6538, %v6566
  %v6568 = vpop.f32.mrf.mxu0
  %v6569 = vadd.f32 %v6540, %v6568
  %6570 = vmatmul.bf16.gmra.mxu0 %v413
  %v6571 = vpop.f32.mrf.mxu0
  %v6572 = vadd.f32 %v6543, %v6571
  %v6573 = vpop.f32.mrf.mxu0
  %v6574 = vadd.f32 %v6545, %v6573
  %6575 = vmatmul.bf16.gmra.mxu0 %v420
  %v6576 = vpop.f32.mrf.mxu0
  %v6577 = vadd.f32 %v6548, %v6576
  %v6578 = vpop.f32.mrf.mxu0
  %v6579 = vadd.f32 %v6550, %v6578
  %6580 = vdwg.mxu0
  %6581 = vmatpush.bf16.msra.mxu0 %v4889
  %6582 = vmatpush.bf16.msra.mxu0 %v4873
  %6583 = vmatpush.bf16.msra.mxu0 %v4857
  %6584 = vmatpush.bf16.msra.mxu0 %v4841
  %6585 = vmatpush.bf16.msra.mxu0 %v4825
  %6586 = vmatpush.bf16.msra.mxu0 %v4809
  %6587 = vmatpush.bf16.msra.mxu0 %v4793
  %6588 = vmatpush.bf16.msra.mxu0 %v4777
  %6589 = vmatmul.bf16.gmra.mxu0 %v400
  %v6590 = vpop.f32.mrf.mxu0
  %v6591 = vadd.f32 %v6562, %v6590
  %v6592 = vpop.f32.mrf.mxu0
  %v6593 = vadd.f32 %v6564, %v6592
  %6594 = vmatmul.bf16.gmra.mxu0 %v407
  %v6595 = vpop.f32.mrf.mxu0
  %v6596 = vadd.f32 %v6567, %v6595
  %v6597 = vpop.f32.mrf.mxu0
  %v6598 = vadd.f32 %v6569, %v6597
  %6599 = vmatmul.bf16.gmra.mxu0 %v414
  %v6600 = vpop.f32.mrf.mxu0
  %v6601 = vadd.f32 %v6572, %v6600
  %v6602 = vpop.f32.mrf.mxu0
  %v6603 = vadd.f32 %v6574, %v6602
  %6604 = vmatmul.bf16.gmra.mxu0 %v421
  %v6605 = vpop.f32.mrf.mxu0
  %v6606 = vadd.f32 %v6577, %v6605
  %v6607 = vpop.f32.mrf.mxu0
  %v6608 = vadd.f32 %v6579, %v6607
  %6609 = vdwg.mxu0
  %6610 = vmatpush.bf16.msra.mxu0 %v4122
  %6611 = vmatpush.bf16.msra.mxu0 %v4106
  %6612 = vmatpush.bf16.msra.mxu0 %v4090
  %6613 = vmatpush.bf16.msra.mxu0 %v4074
  %6614 = vmatpush.bf16.msra.mxu0 %v4058
  %6615 = vmatpush.bf16.msra.mxu0 %v4042
  %6616 = vmatpush.bf16.msra.mxu0 %v4026
  %6617 = vmatpush.bf16.msra.mxu0 %v4010
  %6618 = vmatmul.bf16.gmra.mxu0 %v394
  %v6619 = vpop.f32.mrf.mxu0
  %v6620 = vadd.f32 0.0, %v6619
  %v6621 = vpop.f32.mrf.mxu0
  %v6622 = vadd.f32 0.0, %v6621
  %6623 = vmatmul.bf16.gmra.mxu0 %v401
  %v6624 = vpop.f32.mrf.mxu0
  %v6625 = vadd.f32 0.0, %v6624
  %v6626 = vpop.f32.mrf.mxu0
  %v6627 = vadd.f32 0.0, %v6626
  %6628 = vmatmul.bf16.gmra.mxu0 %v408
  %v6629 = vpop.f32.mrf.mxu0
  %v6630 = vadd.f32 0.0, %v6629
  %v6631 = vpop.f32.mrf.mxu0
  %v6632 = vadd.f32 0.0, %v6631
  %6633 = vmatmul.bf16.gmra.mxu0 %v415
  %v6634 = vpop.f32.mrf.mxu0
  %v6635 = vadd.f32 0.0, %v6634
  %v6636 = vpop.f32.mrf.mxu0
  %v6637 = vadd.f32 0.0, %v6636
  %6638 = vdwg.mxu0
  %6639 = vmatpush.bf16.msra.mxu0 %v4250
  %6640 = vmatpush.bf16.msra.mxu0 %v4234
  %6641 = vmatpush.bf16.msra.mxu0 %v4218
  %6642 = vmatpush.bf16.msra.mxu0 %v4202
  %6643 = vmatpush.bf16.msra.mxu0 %v4186
  %6644 = vmatpush.bf16.msra.mxu0 %v4170
  %6645 = vmatpush.bf16.msra.mxu0 %v4154
  %6646 = vmatpush.bf16.msra.mxu0 %v4138
  %6647 = vmatmul.bf16.gmra.mxu0 %v395
  %v6648 = vpop.f32.mrf.mxu0
  %v6649 = vadd.f32 %v6620, %v6648
  %v6650 = vpop.f32.mrf.mxu0
  %v6651 = vadd.f32 %v6622, %v6650
  %6652 = vmatmul.bf16.gmra.mxu0 %v402
  %v6653 = vpop.f32.mrf.mxu0
  %v6654 = vadd.f32 %v6625, %v6653
  %v6655 = vpop.f32.mrf.mxu0
  %v6656 = vadd.f32 %v6627, %v6655
  %6657 = vmatmul.bf16.gmra.mxu0 %v409
  %v6658 = vpop.f32.mrf.mxu0
  %v6659 = vadd.f32 %v6630, %v6658
  %v6660 = vpop.f32.mrf.mxu0
  %v6661 = vadd.f32 %v6632, %v6660
  %6662 = vmatmul.bf16.gmra.mxu0 %v416
  %v6663 = vpop.f32.mrf.mxu0
  %v6664 = vadd.f32 %v6635, %v6663
  %v6665 = vpop.f32.mrf.mxu0
  %v6666 = vadd.f32 %v6637, %v6665
  %6667 = vdwg.mxu0
  %6668 = vmatpush.bf16.msra.mxu0 %v4378
  %6669 = vmatpush.bf16.msra.mxu0 %v4362
  %6670 = vmatpush.bf16.msra.mxu0 %v4346
  %6671 = vmatpush.bf16.msra.mxu0 %v4330
  %6672 = vmatpush.bf16.msra.mxu0 %v4314
  %6673 = vmatpush.bf16.msra.mxu0 %v4298
  %6674 = vmatpush.bf16.msra.mxu0 %v4282
  %6675 = vmatpush.bf16.msra.mxu0 %v4266
  %6676 = vmatmul.bf16.gmra.mxu0 %v396
  %v6677 = vpop.f32.mrf.mxu0
  %v6678 = vadd.f32 %v6649, %v6677
  %v6679 = vpop.f32.mrf.mxu0
  %v6680 = vadd.f32 %v6651, %v6679
  %6681 = vmatmul.bf16.gmra.mxu0 %v403
  %v6682 = vpop.f32.mrf.mxu0
  %v6683 = vadd.f32 %v6654, %v6682
  %v6684 = vpop.f32.mrf.mxu0
  %v6685 = vadd.f32 %v6656, %v6684
  %6686 = vmatmul.bf16.gmra.mxu0 %v410
  %v6687 = vpop.f32.mrf.mxu0
  %v6688 = vadd.f32 %v6659, %v6687
  %v6689 = vpop.f32.mrf.mxu0
  %v6690 = vadd.f32 %v6661, %v6689
  %6691 = vmatmul.bf16.gmra.mxu0 %v417
  %v6692 = vpop.f32.mrf.mxu0
  %v6693 = vadd.f32 %v6664, %v6692
  %v6694 = vpop.f32.mrf.mxu0
  %v6695 = vadd.f32 %v6666, %v6694
  %6696 = vdwg.mxu0
  %6697 = vmatpush.bf16.msra.mxu0 %v4506
  %6698 = vmatpush.bf16.msra.mxu0 %v4490
  %6699 = vmatpush.bf16.msra.mxu0 %v4474
  %6700 = vmatpush.bf16.msra.mxu0 %v4458
  %6701 = vmatpush.bf16.msra.mxu0 %v4442
  %6702 = vmatpush.bf16.msra.mxu0 %v4426
  %6703 = vmatpush.bf16.msra.mxu0 %v4410
  %6704 = vmatpush.bf16.msra.mxu0 %v4394
  %6705 = vmatmul.bf16.gmra.mxu0 %v397
  %v6706 = vpop.f32.mrf.mxu0
  %v6707 = vadd.f32 %v6678, %v6706
  %v6708 = vpop.f32.mrf.mxu0
  %v6709 = vadd.f32 %v6680, %v6708
  %6710 = vmatmul.bf16.gmra.mxu0 %v404
  %v6711 = vpop.f32.mrf.mxu0
  %v6712 = vadd.f32 %v6683, %v6711
  %v6713 = vpop.f32.mrf.mxu0
  %v6714 = vadd.f32 %v6685, %v6713
  %6715 = vmatmul.bf16.gmra.mxu0 %v411
  %v6716 = vpop.f32.mrf.mxu0
  %v6717 = vadd.f32 %v6688, %v6716
  %v6718 = vpop.f32.mrf.mxu0
  %v6719 = vadd.f32 %v6690, %v6718
  %6720 = vmatmul.bf16.gmra.mxu0 %v418
  %v6721 = vpop.f32.mrf.mxu0
  %v6722 = vadd.f32 %v6693, %v6721
  %v6723 = vpop.f32.mrf.mxu0
  %v6724 = vadd.f32 %v6695, %v6723
  %6725 = vdwg.mxu0
  %6726 = vmatpush.bf16.msra.mxu0 %v4634
  %6727 = vmatpush.bf16.msra.mxu0 %v4618
  %6728 = vmatpush.bf16.msra.mxu0 %v4602
  %6729 = vmatpush.bf16.msra.mxu0 %v4586
  %6730 = vmatpush.bf16.msra.mxu0 %v4570
  %6731 = vmatpush.bf16.msra.mxu0 %v4554
  %6732 = vmatpush.bf16.msra.mxu0 %v4538
  %6733 = vmatpush.bf16.msra.mxu0 %v4522
  %6734 = vmatmul.bf16.gmra.mxu0 %v398
  %v6735 = vpop.f32.mrf.mxu0
  %v6736 = vadd.f32 %v6707, %v6735
  %v6737 = vpop.f32.mrf.mxu0
  %v6738 = vadd.f32 %v6709, %v6737
  %6739 = vmatmul.bf16.gmra.mxu0 %v405
  %v6740 = vpop.f32.mrf.mxu0
  %v6741 = vadd.f32 %v6712, %v6740
  %v6742 = vpop.f32.mrf.mxu0
  %v6743 = vadd.f32 %v6714, %v6742
  %6744 = vmatmul.bf16.gmra.mxu0 %v412
  %v6745 = vpop.f32.mrf.mxu0
  %v6746 = vadd.f32 %v6717, %v6745
  %v6747 = vpop.f32.mrf.mxu0
  %v6748 = vadd.f32 %v6719, %v6747
  %6749 = vmatmul.bf16.gmra.mxu0 %v419
  %v6750 = vpop.f32.mrf.mxu0
  %v6751 = vadd.f32 %v6722, %v6750
  %v6752 = vpop.f32.mrf.mxu0
  %v6753 = vadd.f32 %v6724, %v6752
  %6754 = vdwg.mxu0
  %6755 = vmatpush.bf16.msra.mxu0 %v4762
  %6756 = vmatpush.bf16.msra.mxu0 %v4746
  %6757 = vmatpush.bf16.msra.mxu0 %v4730
  %6758 = vmatpush.bf16.msra.mxu0 %v4714
  %6759 = vmatpush.bf16.msra.mxu0 %v4698
  %6760 = vmatpush.bf16.msra.mxu0 %v4682
  %6761 = vmatpush.bf16.msra.mxu0 %v4666
  %6762 = vmatpush.bf16.msra.mxu0 %v4650
  %6763 = vmatmul.bf16.gmra.mxu0 %v399
  %v6764 = vpop.f32.mrf.mxu0
  %v6765 = vadd.f32 %v6736, %v6764
  %v6766 = vpop.f32.mrf.mxu0
  %v6767 = vadd.f32 %v6738, %v6766
  %6768 = vmatmul.bf16.gmra.mxu0 %v406
  %v6769 = vpop.f32.mrf.mxu0
  %v6770 = vadd.f32 %v6741, %v6769
  %v6771 = vpop.f32.mrf.mxu0
  %v6772 = vadd.f32 %v6743, %v6771
  %6773 = vmatmul.bf16.gmra.mxu0 %v413
  %v6774 = vpop.f32.mrf.mxu0
  %v6775 = vadd.f32 %v6746, %v6774
  %v6776 = vpop.f32.mrf.mxu0
  %v6777 = vadd.f32 %v6748, %v6776
  %6778 = vmatmul.bf16.gmra.mxu0 %v420
  %v6779 = vpop.f32.mrf.mxu0
  %v6780 = vadd.f32 %v6751, %v6779
  %v6781 = vpop.f32.mrf.mxu0
  %v6782 = vadd.f32 %v6753, %v6781
  %6783 = vdwg.mxu0
  %6784 = vmatpush.bf16.msra.mxu0 %v4890
  %6785 = vmatpush.bf16.msra.mxu0 %v4874
  %6786 = vmatpush.bf16.msra.mxu0 %v4858
  %6787 = vmatpush.bf16.msra.mxu0 %v4842
  %6788 = vmatpush.bf16.msra.mxu0 %v4826
  %6789 = vmatpush.bf16.msra.mxu0 %v4810
  %6790 = vmatpush.bf16.msra.mxu0 %v4794
  %6791 = vmatpush.bf16.msra.mxu0 %v4778
  %6792 = vmatmul.bf16.gmra.mxu0 %v400
  %v6793 = vpop.f32.mrf.mxu0
  %v6794 = vadd.f32 %v6765, %v6793
  %v6795 = vpop.f32.mrf.mxu0
  %v6796 = vadd.f32 %v6767, %v6795
  %6797 = vmatmul.bf16.gmra.mxu0 %v407
  %v6798 = vpop.f32.mrf.mxu0
  %v6799 = vadd.f32 %v6770, %v6798
  %v6800 = vpop.f32.mrf.mxu0
  %v6801 = vadd.f32 %v6772, %v6800
  %6802 = vmatmul.bf16.gmra.mxu0 %v414
  %v6803 = vpop.f32.mrf.mxu0
  %v6804 = vadd.f32 %v6775, %v6803
  %v6805 = vpop.f32.mrf.mxu0
  %v6806 = vadd.f32 %v6777, %v6805
  %6807 = vmatmul.bf16.gmra.mxu0 %v421
  %v6808 = vpop.f32.mrf.mxu0
  %v6809 = vadd.f32 %v6780, %v6808
  %v6810 = vpop.f32.mrf.mxu0
  %v6811 = vadd.f32 %v6782, %v6810
  %6812 = vdwg.mxu0
  %6813 = vmatpush.bf16.msra.mxu0 %v4123
  %6814 = vmatpush.bf16.msra.mxu0 %v4107
  %6815 = vmatpush.bf16.msra.mxu0 %v4091
  %6816 = vmatpush.bf16.msra.mxu0 %v4075
  %6817 = vmatpush.bf16.msra.mxu0 %v4059
  %6818 = vmatpush.bf16.msra.mxu0 %v4043
  %6819 = vmatpush.bf16.msra.mxu0 %v4027
  %6820 = vmatpush.bf16.msra.mxu0 %v4011
  %6821 = vmatmul.bf16.gmra.mxu0 %v394
  %v6822 = vpop.f32.mrf.mxu0
  %v6823 = vadd.f32 0.0, %v6822
  %v6824 = vpop.f32.mrf.mxu0
  %v6825 = vadd.f32 0.0, %v6824
  %6826 = vmatmul.bf16.gmra.mxu0 %v401
  %v6827 = vpop.f32.mrf.mxu0
  %v6828 = vadd.f32 0.0, %v6827
  %v6829 = vpop.f32.mrf.mxu0
  %v6830 = vadd.f32 0.0, %v6829
  %6831 = vmatmul.bf16.gmra.mxu0 %v408
  %v6832 = vpop.f32.mrf.mxu0
  %v6833 = vadd.f32 0.0, %v6832
  %v6834 = vpop.f32.mrf.mxu0
  %v6835 = vadd.f32 0.0, %v6834
  %6836 = vmatmul.bf16.gmra.mxu0 %v415
  %v6837 = vpop.f32.mrf.mxu0
  %v6838 = vadd.f32 0.0, %v6837
  %v6839 = vpop.f32.mrf.mxu0
  %v6840 = vadd.f32 0.0, %v6839
  %6841 = vdwg.mxu0
  %6842 = vmatpush.bf16.msra.mxu0 %v4251
  %6843 = vmatpush.bf16.msra.mxu0 %v4235
  %6844 = vmatpush.bf16.msra.mxu0 %v4219
  %6845 = vmatpush.bf16.msra.mxu0 %v4203
  %6846 = vmatpush.bf16.msra.mxu0 %v4187
  %6847 = vmatpush.bf16.msra.mxu0 %v4171
  %6848 = vmatpush.bf16.msra.mxu0 %v4155
  %6849 = vmatpush.bf16.msra.mxu0 %v4139
  %6850 = vmatmul.bf16.gmra.mxu0 %v395
  %v6851 = vpop.f32.mrf.mxu0
  %v6852 = vadd.f32 %v6823, %v6851
  %v6853 = vpop.f32.mrf.mxu0
  %v6854 = vadd.f32 %v6825, %v6853
  %6855 = vmatmul.bf16.gmra.mxu0 %v402
  %v6856 = vpop.f32.mrf.mxu0
  %v6857 = vadd.f32 %v6828, %v6856
  %v6858 = vpop.f32.mrf.mxu0
  %v6859 = vadd.f32 %v6830, %v6858
  %6860 = vmatmul.bf16.gmra.mxu0 %v409
  %v6861 = vpop.f32.mrf.mxu0
  %v6862 = vadd.f32 %v6833, %v6861
  %v6863 = vpop.f32.mrf.mxu0
  %v6864 = vadd.f32 %v6835, %v6863
  %6865 = vmatmul.bf16.gmra.mxu0 %v416
  %v6866 = vpop.f32.mrf.mxu0
  %v6867 = vadd.f32 %v6838, %v6866
  %v6868 = vpop.f32.mrf.mxu0
  %v6869 = vadd.f32 %v6840, %v6868
  %6870 = vdwg.mxu0
  %6871 = vmatpush.bf16.msra.mxu0 %v4379
  %6872 = vmatpush.bf16.msra.mxu0 %v4363
  %6873 = vmatpush.bf16.msra.mxu0 %v4347
  %6874 = vmatpush.bf16.msra.mxu0 %v4331
  %6875 = vmatpush.bf16.msra.mxu0 %v4315
  %6876 = vmatpush.bf16.msra.mxu0 %v4299
  %6877 = vmatpush.bf16.msra.mxu0 %v4283
  %6878 = vmatpush.bf16.msra.mxu0 %v4267
  %6879 = vmatmul.bf16.gmra.mxu0 %v396
  %v6880 = vpop.f32.mrf.mxu0
  %v6881 = vadd.f32 %v6852, %v6880
  %v6882 = vpop.f32.mrf.mxu0
  %v6883 = vadd.f32 %v6854, %v6882
  %6884 = vmatmul.bf16.gmra.mxu0 %v403
  %v6885 = vpop.f32.mrf.mxu0
  %v6886 = vadd.f32 %v6857, %v6885
  %v6887 = vpop.f32.mrf.mxu0
  %v6888 = vadd.f32 %v6859, %v6887
  %6889 = vmatmul.bf16.gmra.mxu0 %v410
  %v6890 = vpop.f32.mrf.mxu0
  %v6891 = vadd.f32 %v6862, %v6890
  %v6892 = vpop.f32.mrf.mxu0
  %v6893 = vadd.f32 %v6864, %v6892
  %6894 = vmatmul.bf16.gmra.mxu0 %v417
  %v6895 = vpop.f32.mrf.mxu0
  %v6896 = vadd.f32 %v6867, %v6895
  %v6897 = vpop.f32.mrf.mxu0
  %v6898 = vadd.f32 %v6869, %v6897
  %6899 = vdwg.mxu0
  %6900 = vmatpush.bf16.msra.mxu0 %v4507
  %6901 = vmatpush.bf16.msra.mxu0 %v4491
  %6902 = vmatpush.bf16.msra.mxu0 %v4475
  %6903 = vmatpush.bf16.msra.mxu0 %v4459
  %6904 = vmatpush.bf16.msra.mxu0 %v4443
  %6905 = vmatpush.bf16.msra.mxu0 %v4427
  %6906 = vmatpush.bf16.msra.mxu0 %v4411
  %6907 = vmatpush.bf16.msra.mxu0 %v4395
  %6908 = vmatmul.bf16.gmra.mxu0 %v397
  %v6909 = vpop.f32.mrf.mxu0
  %v6910 = vadd.f32 %v6881, %v6909
  %v6911 = vpop.f32.mrf.mxu0
  %v6912 = vadd.f32 %v6883, %v6911
  %6913 = vmatmul.bf16.gmra.mxu0 %v404
  %v6914 = vpop.f32.mrf.mxu0
  %v6915 = vadd.f32 %v6886, %v6914
  %v6916 = vpop.f32.mrf.mxu0
  %v6917 = vadd.f32 %v6888, %v6916
  %6918 = vmatmul.bf16.gmra.mxu0 %v411
  %v6919 = vpop.f32.mrf.mxu0
  %v6920 = vadd.f32 %v6891, %v6919
  %v6921 = vpop.f32.mrf.mxu0
  %v6922 = vadd.f32 %v6893, %v6921
  %6923 = vmatmul.bf16.gmra.mxu0 %v418
  %v6924 = vpop.f32.mrf.mxu0
  %v6925 = vadd.f32 %v6896, %v6924
  %v6926 = vpop.f32.mrf.mxu0
  %v6927 = vadd.f32 %v6898, %v6926
  %6928 = vdwg.mxu0
  %6929 = vmatpush.bf16.msra.mxu0 %v4635
  %6930 = vmatpush.bf16.msra.mxu0 %v4619
  %6931 = vmatpush.bf16.msra.mxu0 %v4603
  %6932 = vmatpush.bf16.msra.mxu0 %v4587
  %6933 = vmatpush.bf16.msra.mxu0 %v4571
  %6934 = vmatpush.bf16.msra.mxu0 %v4555
  %6935 = vmatpush.bf16.msra.mxu0 %v4539
  %6936 = vmatpush.bf16.msra.mxu0 %v4523
  %6937 = vmatmul.bf16.gmra.mxu0 %v398
  %v6938 = vpop.f32.mrf.mxu0
  %v6939 = vadd.f32 %v6910, %v6938
  %v6940 = vpop.f32.mrf.mxu0
  %v6941 = vadd.f32 %v6912, %v6940
  %6942 = vmatmul.bf16.gmra.mxu0 %v405
  %v6943 = vpop.f32.mrf.mxu0
  %v6944 = vadd.f32 %v6915, %v6943
  %v6945 = vpop.f32.mrf.mxu0
  %v6946 = vadd.f32 %v6917, %v6945
  %6947 = vmatmul.bf16.gmra.mxu0 %v412
  %v6948 = vpop.f32.mrf.mxu0
  %v6949 = vadd.f32 %v6920, %v6948
  %v6950 = vpop.f32.mrf.mxu0
  %v6951 = vadd.f32 %v6922, %v6950
  %6952 = vmatmul.bf16.gmra.mxu0 %v419
  %v6953 = vpop.f32.mrf.mxu0
  %v6954 = vadd.f32 %v6925, %v6953
  %v6955 = vpop.f32.mrf.mxu0
  %v6956 = vadd.f32 %v6927, %v6955
  %6957 = vdwg.mxu0
  %6958 = vmatpush.bf16.msra.mxu0 %v4763
  %6959 = vmatpush.bf16.msra.mxu0 %v4747
  %6960 = vmatpush.bf16.msra.mxu0 %v4731
  %6961 = vmatpush.bf16.msra.mxu0 %v4715
  %6962 = vmatpush.bf16.msra.mxu0 %v4699
  %6963 = vmatpush.bf16.msra.mxu0 %v4683
  %6964 = vmatpush.bf16.msra.mxu0 %v4667
  %6965 = vmatpush.bf16.msra.mxu0 %v4651
  %6966 = vmatmul.bf16.gmra.mxu0 %v399
  %v6967 = vpop.f32.mrf.mxu0
  %v6968 = vadd.f32 %v6939, %v6967
  %v6969 = vpop.f32.mrf.mxu0
  %v6970 = vadd.f32 %v6941, %v6969
  %6971 = vmatmul.bf16.gmra.mxu0 %v406
  %v6972 = vpop.f32.mrf.mxu0
  %v6973 = vadd.f32 %v6944, %v6972
  %v6974 = vpop.f32.mrf.mxu0
  %v6975 = vadd.f32 %v6946, %v6974
  %6976 = vmatmul.bf16.gmra.mxu0 %v413
  %v6977 = vpop.f32.mrf.mxu0
  %v6978 = vadd.f32 %v6949, %v6977
  %v6979 = vpop.f32.mrf.mxu0
  %v6980 = vadd.f32 %v6951, %v6979
  %6981 = vmatmul.bf16.gmra.mxu0 %v420
  %v6982 = vpop.f32.mrf.mxu0
  %v6983 = vadd.f32 %v6954, %v6982
  %v6984 = vpop.f32.mrf.mxu0
  %v6985 = vadd.f32 %v6956, %v6984
  %6986 = vdwg.mxu0
  %6987 = vmatpush.bf16.msra.mxu0 %v4891
  %6988 = vmatpush.bf16.msra.mxu0 %v4875
  %6989 = vmatpush.bf16.msra.mxu0 %v4859
  %6990 = vmatpush.bf16.msra.mxu0 %v4843
  %6991 = vmatpush.bf16.msra.mxu0 %v4827
  %6992 = vmatpush.bf16.msra.mxu0 %v4811
  %6993 = vmatpush.bf16.msra.mxu0 %v4795
  %6994 = vmatpush.bf16.msra.mxu0 %v4779
  %6995 = vmatmul.bf16.gmra.mxu0 %v400
  %v6996 = vpop.f32.mrf.mxu0
  %v6997 = vadd.f32 %v6968, %v6996
  %v6998 = vpop.f32.mrf.mxu0
  %v6999 = vadd.f32 %v6970, %v6998
  %7000 = vmatmul.bf16.gmra.mxu0 %v407
  %v7001 = vpop.f32.mrf.mxu0
  %v7002 = vadd.f32 %v6973, %v7001
  %v7003 = vpop.f32.mrf.mxu0
  %v7004 = vadd.f32 %v6975, %v7003
  %7005 = vmatmul.bf16.gmra.mxu0 %v414
  %v7006 = vpop.f32.mrf.mxu0
  %v7007 = vadd.f32 %v6978, %v7006
  %v7008 = vpop.f32.mrf.mxu0
  %v7009 = vadd.f32 %v6980, %v7008
  %7010 = vmatmul.bf16.gmra.mxu0 %v421
  %v7011 = vpop.f32.mrf.mxu0
  %v7012 = vadd.f32 %v6983, %v7011
  %v7013 = vpop.f32.mrf.mxu0
  %v7014 = vadd.f32 %v6985, %v7013
  %7015 = vdwg.mxu0
  %7016 = vmatpush.bf16.msra.mxu0 %v4124
  %7017 = vmatpush.bf16.msra.mxu0 %v4108
  %7018 = vmatpush.bf16.msra.mxu0 %v4092
  %7019 = vmatpush.bf16.msra.mxu0 %v4076
  %7020 = vmatpush.bf16.msra.mxu0 %v4060
  %7021 = vmatpush.bf16.msra.mxu0 %v4044
  %7022 = vmatpush.bf16.msra.mxu0 %v4028
  %7023 = vmatpush.bf16.msra.mxu0 %v4012
  %7024 = vmatmul.bf16.gmra.mxu0 %v394
  %v7025 = vpop.f32.mrf.mxu0
  %v7026 = vadd.f32 0.0, %v7025
  %v7027 = vpop.f32.mrf.mxu0
  %v7028 = vadd.f32 0.0, %v7027
  %7029 = vmatmul.bf16.gmra.mxu0 %v401
  %v7030 = vpop.f32.mrf.mxu0
  %v7031 = vadd.f32 0.0, %v7030
  %v7032 = vpop.f32.mrf.mxu0
  %v7033 = vadd.f32 0.0, %v7032
  %7034 = vmatmul.bf16.gmra.mxu0 %v408
  %v7035 = vpop.f32.mrf.mxu0
  %v7036 = vadd.f32 0.0, %v7035
  %v7037 = vpop.f32.mrf.mxu0
  %v7038 = vadd.f32 0.0, %v7037
  %7039 = vmatmul.bf16.gmra.mxu0 %v415
  %v7040 = vpop.f32.mrf.mxu0
  %v7041 = vadd.f32 0.0, %v7040
  %v7042 = vpop.f32.mrf.mxu0
  %v7043 = vadd.f32 0.0, %v7042
  %7044 = vdwg.mxu0
  %7045 = vmatpush.bf16.msra.mxu0 %v4252
  %7046 = vmatpush.bf16.msra.mxu0 %v4236
  %7047 = vmatpush.bf16.msra.mxu0 %v4220
  %7048 = vmatpush.bf16.msra.mxu0 %v4204
  %7049 = vmatpush.bf16.msra.mxu0 %v4188
  %7050 = vmatpush.bf16.msra.mxu0 %v4172
  %7051 = vmatpush.bf16.msra.mxu0 %v4156
  %7052 = vmatpush.bf16.msra.mxu0 %v4140
  %7053 = vmatmul.bf16.gmra.mxu0 %v395
  %v7054 = vpop.f32.mrf.mxu0
  %v7055 = vadd.f32 %v7026, %v7054
  %v7056 = vpop.f32.mrf.mxu0
  %v7057 = vadd.f32 %v7028, %v7056
  %7058 = vmatmul.bf16.gmra.mxu0 %v402
  %v7059 = vpop.f32.mrf.mxu0
  %v7060 = vadd.f32 %v7031, %v7059
  %v7061 = vpop.f32.mrf.mxu0
  %v7062 = vadd.f32 %v7033, %v7061
  %7063 = vmatmul.bf16.gmra.mxu0 %v409
  %v7064 = vpop.f32.mrf.mxu0
  %v7065 = vadd.f32 %v7036, %v7064
  %v7066 = vpop.f32.mrf.mxu0
  %v7067 = vadd.f32 %v7038, %v7066
  %7068 = vmatmul.bf16.gmra.mxu0 %v416
  %v7069 = vpop.f32.mrf.mxu0
  %v7070 = vadd.f32 %v7041, %v7069
  %v7071 = vpop.f32.mrf.mxu0
  %v7072 = vadd.f32 %v7043, %v7071
  %7073 = vdwg.mxu0
  %7074 = vmatpush.bf16.msra.mxu0 %v4380
  %7075 = vmatpush.bf16.msra.mxu0 %v4364
  %7076 = vmatpush.bf16.msra.mxu0 %v4348
  %7077 = vmatpush.bf16.msra.mxu0 %v4332
  %7078 = vmatpush.bf16.msra.mxu0 %v4316
  %7079 = vmatpush.bf16.msra.mxu0 %v4300
  %7080 = vmatpush.bf16.msra.mxu0 %v4284
  %7081 = vmatpush.bf16.msra.mxu0 %v4268
  %7082 = vmatmul.bf16.gmra.mxu0 %v396
  %v7083 = vpop.f32.mrf.mxu0
  %v7084 = vadd.f32 %v7055, %v7083
  %v7085 = vpop.f32.mrf.mxu0
  %v7086 = vadd.f32 %v7057, %v7085
  %7087 = vmatmul.bf16.gmra.mxu0 %v403
  %v7088 = vpop.f32.mrf.mxu0
  %v7089 = vadd.f32 %v7060, %v7088
  %v7090 = vpop.f32.mrf.mxu0
  %v7091 = vadd.f32 %v7062, %v7090
  %7092 = vmatmul.bf16.gmra.mxu0 %v410
  %v7093 = vpop.f32.mrf.mxu0
  %v7094 = vadd.f32 %v7065, %v7093
  %v7095 = vpop.f32.mrf.mxu0
  %v7096 = vadd.f32 %v7067, %v7095
  %7097 = vmatmul.bf16.gmra.mxu0 %v417
  %v7098 = vpop.f32.mrf.mxu0
  %v7099 = vadd.f32 %v7070, %v7098
  %v7100 = vpop.f32.mrf.mxu0
  %v7101 = vadd.f32 %v7072, %v7100
  %7102 = vdwg.mxu0
  %7103 = vmatpush.bf16.msra.mxu0 %v4508
  %7104 = vmatpush.bf16.msra.mxu0 %v4492
  %7105 = vmatpush.bf16.msra.mxu0 %v4476
  %7106 = vmatpush.bf16.msra.mxu0 %v4460
  %7107 = vmatpush.bf16.msra.mxu0 %v4444
  %7108 = vmatpush.bf16.msra.mxu0 %v4428
  %7109 = vmatpush.bf16.msra.mxu0 %v4412
  %7110 = vmatpush.bf16.msra.mxu0 %v4396
  %7111 = vmatmul.bf16.gmra.mxu0 %v397
  %v7112 = vpop.f32.mrf.mxu0
  %v7113 = vadd.f32 %v7084, %v7112
  %v7114 = vpop.f32.mrf.mxu0
  %v7115 = vadd.f32 %v7086, %v7114
  %7116 = vmatmul.bf16.gmra.mxu0 %v404
  %v7117 = vpop.f32.mrf.mxu0
  %v7118 = vadd.f32 %v7089, %v7117
  %v7119 = vpop.f32.mrf.mxu0
  %v7120 = vadd.f32 %v7091, %v7119
  %7121 = vmatmul.bf16.gmra.mxu0 %v411
  %v7122 = vpop.f32.mrf.mxu0
  %v7123 = vadd.f32 %v7094, %v7122
  %v7124 = vpop.f32.mrf.mxu0
  %v7125 = vadd.f32 %v7096, %v7124
  %7126 = vmatmul.bf16.gmra.mxu0 %v418
  %v7127 = vpop.f32.mrf.mxu0
  %v7128 = vadd.f32 %v7099, %v7127
  %v7129 = vpop.f32.mrf.mxu0
  %v7130 = vadd.f32 %v7101, %v7129
  %7131 = vdwg.mxu0
  %7132 = vmatpush.bf16.msra.mxu0 %v4636
  %7133 = vmatpush.bf16.msra.mxu0 %v4620
  %7134 = vmatpush.bf16.msra.mxu0 %v4604
  %7135 = vmatpush.bf16.msra.mxu0 %v4588
  %7136 = vmatpush.bf16.msra.mxu0 %v4572
  %7137 = vmatpush.bf16.msra.mxu0 %v4556
  %7138 = vmatpush.bf16.msra.mxu0 %v4540
  %7139 = vmatpush.bf16.msra.mxu0 %v4524
  %7140 = vmatmul.bf16.gmra.mxu0 %v398
  %v7141 = vpop.f32.mrf.mxu0
  %v7142 = vadd.f32 %v7113, %v7141
  %v7143 = vpop.f32.mrf.mxu0
  %v7144 = vadd.f32 %v7115, %v7143
  %7145 = vmatmul.bf16.gmra.mxu0 %v405
  %v7146 = vpop.f32.mrf.mxu0
  %v7147 = vadd.f32 %v7118, %v7146
  %v7148 = vpop.f32.mrf.mxu0
  %v7149 = vadd.f32 %v7120, %v7148
  %7150 = vmatmul.bf16.gmra.mxu0 %v412
  %v7151 = vpop.f32.mrf.mxu0
  %v7152 = vadd.f32 %v7123, %v7151
  %v7153 = vpop.f32.mrf.mxu0
  %v7154 = vadd.f32 %v7125, %v7153
  %7155 = vmatmul.bf16.gmra.mxu0 %v419
  %v7156 = vpop.f32.mrf.mxu0
  %v7157 = vadd.f32 %v7128, %v7156
  %v7158 = vpop.f32.mrf.mxu0
  %v7159 = vadd.f32 %v7130, %v7158
  %7160 = vdwg.mxu0
  %7161 = vmatpush.bf16.msra.mxu0 %v4764
  %7162 = vmatpush.bf16.msra.mxu0 %v4748
  %7163 = vmatpush.bf16.msra.mxu0 %v4732
  %7164 = vmatpush.bf16.msra.mxu0 %v4716
  %7165 = vmatpush.bf16.msra.mxu0 %v4700
  %7166 = vmatpush.bf16.msra.mxu0 %v4684
  %7167 = vmatpush.bf16.msra.mxu0 %v4668
  %7168 = vmatpush.bf16.msra.mxu0 %v4652
  %7169 = vmatmul.bf16.gmra.mxu0 %v399
  %v7170 = vpop.f32.mrf.mxu0
  %v7171 = vadd.f32 %v7142, %v7170
  %v7172 = vpop.f32.mrf.mxu0
  %v7173 = vadd.f32 %v7144, %v7172
  %7174 = vmatmul.bf16.gmra.mxu0 %v406
  %v7175 = vpop.f32.mrf.mxu0
  %v7176 = vadd.f32 %v7147, %v7175
  %v7177 = vpop.f32.mrf.mxu0
  %v7178 = vadd.f32 %v7149, %v7177
  %7179 = vmatmul.bf16.gmra.mxu0 %v413
  %v7180 = vpop.f32.mrf.mxu0
  %v7181 = vadd.f32 %v7152, %v7180
  %v7182 = vpop.f32.mrf.mxu0
  %v7183 = vadd.f32 %v7154, %v7182
  %7184 = vmatmul.bf16.gmra.mxu0 %v420
  %v7185 = vpop.f32.mrf.mxu0
  %v7186 = vadd.f32 %v7157, %v7185
  %v7187 = vpop.f32.mrf.mxu0
  %v7188 = vadd.f32 %v7159, %v7187
  %7189 = vdwg.mxu0
  %7190 = vmatpush.bf16.msra.mxu0 %v4892
  %7191 = vmatpush.bf16.msra.mxu0 %v4876
  %7192 = vmatpush.bf16.msra.mxu0 %v4860
  %7193 = vmatpush.bf16.msra.mxu0 %v4844
  %7194 = vmatpush.bf16.msra.mxu0 %v4828
  %7195 = vmatpush.bf16.msra.mxu0 %v4812
  %7196 = vmatpush.bf16.msra.mxu0 %v4796
  %7197 = vmatpush.bf16.msra.mxu0 %v4780
  %7198 = vmatmul.bf16.gmra.mxu0 %v400
  %v7199 = vpop.f32.mrf.mxu0
  %v7200 = vadd.f32 %v7171, %v7199
  %v7201 = vpop.f32.mrf.mxu0
  %v7202 = vadd.f32 %v7173, %v7201
  %7203 = vmatmul.bf16.gmra.mxu0 %v407
  %v7204 = vpop.f32.mrf.mxu0
  %v7205 = vadd.f32 %v7176, %v7204
  %v7206 = vpop.f32.mrf.mxu0
  %v7207 = vadd.f32 %v7178, %v7206
  %7208 = vmatmul.bf16.gmra.mxu0 %v414
  %v7209 = vpop.f32.mrf.mxu0
  %v7210 = vadd.f32 %v7181, %v7209
  %v7211 = vpop.f32.mrf.mxu0
  %v7212 = vadd.f32 %v7183, %v7211
  %7213 = vmatmul.bf16.gmra.mxu0 %v421
  %v7214 = vpop.f32.mrf.mxu0
  %v7215 = vadd.f32 %v7186, %v7214
  %v7216 = vpop.f32.mrf.mxu0
  %v7217 = vadd.f32 %v7188, %v7216
  %7218 = vdwg.mxu0
  %7219 = vmatpush.bf16.msra.mxu0 %v4125
  %7220 = vmatpush.bf16.msra.mxu0 %v4109
  %7221 = vmatpush.bf16.msra.mxu0 %v4093
  %7222 = vmatpush.bf16.msra.mxu0 %v4077
  %7223 = vmatpush.bf16.msra.mxu0 %v4061
  %7224 = vmatpush.bf16.msra.mxu0 %v4045
  %7225 = vmatpush.bf16.msra.mxu0 %v4029
  %7226 = vmatpush.bf16.msra.mxu0 %v4013
  %7227 = vmatmul.bf16.gmra.mxu0 %v394
  %v7228 = vpop.f32.mrf.mxu0
  %v7229 = vadd.f32 0.0, %v7228
  %v7230 = vpop.f32.mrf.mxu0
  %v7231 = vadd.f32 0.0, %v7230
  %7232 = vmatmul.bf16.gmra.mxu0 %v401
  %v7233 = vpop.f32.mrf.mxu0
  %v7234 = vadd.f32 0.0, %v7233
  %v7235 = vpop.f32.mrf.mxu0
  %v7236 = vadd.f32 0.0, %v7235
  %7237 = vmatmul.bf16.gmra.mxu0 %v408
  %v7238 = vpop.f32.mrf.mxu0
  %v7239 = vadd.f32 0.0, %v7238
  %v7240 = vpop.f32.mrf.mxu0
  %v7241 = vadd.f32 0.0, %v7240
  %7242 = vmatmul.bf16.gmra.mxu0 %v415
  %v7243 = vpop.f32.mrf.mxu0
  %v7244 = vadd.f32 0.0, %v7243
  %v7245 = vpop.f32.mrf.mxu0
  %v7246 = vadd.f32 0.0, %v7245
  %7247 = vdwg.mxu0
  %7248 = vmatpush.bf16.msra.mxu0 %v4253
  %7249 = vmatpush.bf16.msra.mxu0 %v4237
  %7250 = vmatpush.bf16.msra.mxu0 %v4221
  %7251 = vmatpush.bf16.msra.mxu0 %v4205
  %7252 = vmatpush.bf16.msra.mxu0 %v4189
  %7253 = vmatpush.bf16.msra.mxu0 %v4173
  %7254 = vmatpush.bf16.msra.mxu0 %v4157
  %7255 = vmatpush.bf16.msra.mxu0 %v4141
  %7256 = vmatmul.bf16.gmra.mxu0 %v395
  %v7257 = vpop.f32.mrf.mxu0
  %v7258 = vadd.f32 %v7229, %v7257
  %v7259 = vpop.f32.mrf.mxu0
  %v7260 = vadd.f32 %v7231, %v7259
  %7261 = vmatmul.bf16.gmra.mxu0 %v402
  %v7262 = vpop.f32.mrf.mxu0
  %v7263 = vadd.f32 %v7234, %v7262
  %v7264 = vpop.f32.mrf.mxu0
  %v7265 = vadd.f32 %v7236, %v7264
  %7266 = vmatmul.bf16.gmra.mxu0 %v409
  %v7267 = vpop.f32.mrf.mxu0
  %v7268 = vadd.f32 %v7239, %v7267
  %v7269 = vpop.f32.mrf.mxu0
  %v7270 = vadd.f32 %v7241, %v7269
  %7271 = vmatmul.bf16.gmra.mxu0 %v416
  %v7272 = vpop.f32.mrf.mxu0
  %v7273 = vadd.f32 %v7244, %v7272
  %v7274 = vpop.f32.mrf.mxu0
  %v7275 = vadd.f32 %v7246, %v7274
  %7276 = vdwg.mxu0
  %7277 = vmatpush.bf16.msra.mxu0 %v4381
  %7278 = vmatpush.bf16.msra.mxu0 %v4365
  %7279 = vmatpush.bf16.msra.mxu0 %v4349
  %7280 = vmatpush.bf16.msra.mxu0 %v4333
  %7281 = vmatpush.bf16.msra.mxu0 %v4317
  %7282 = vmatpush.bf16.msra.mxu0 %v4301
  %7283 = vmatpush.bf16.msra.mxu0 %v4285
  %7284 = vmatpush.bf16.msra.mxu0 %v4269
  %7285 = vmatmul.bf16.gmra.mxu0 %v396
  %v7286 = vpop.f32.mrf.mxu0
  %v7287 = vadd.f32 %v7258, %v7286
  %v7288 = vpop.f32.mrf.mxu0
  %v7289 = vadd.f32 %v7260, %v7288
  %7290 = vmatmul.bf16.gmra.mxu0 %v403
  %v7291 = vpop.f32.mrf.mxu0
  %v7292 = vadd.f32 %v7263, %v7291
  %v7293 = vpop.f32.mrf.mxu0
  %v7294 = vadd.f32 %v7265, %v7293
  %7295 = vmatmul.bf16.gmra.mxu0 %v410
  %v7296 = vpop.f32.mrf.mxu0
  %v7297 = vadd.f32 %v7268, %v7296
  %v7298 = vpop.f32.mrf.mxu0
  %v7299 = vadd.f32 %v7270, %v7298
  %7300 = vmatmul.bf16.gmra.mxu0 %v417
  %v7301 = vpop.f32.mrf.mxu0
  %v7302 = vadd.f32 %v7273, %v7301
  %v7303 = vpop.f32.mrf.mxu0
  %v7304 = vadd.f32 %v7275, %v7303
  %7305 = vdwg.mxu0
  %7306 = vmatpush.bf16.msra.mxu0 %v4509
  %7307 = vmatpush.bf16.msra.mxu0 %v4493
  %7308 = vmatpush.bf16.msra.mxu0 %v4477
  %7309 = vmatpush.bf16.msra.mxu0 %v4461
  %7310 = vmatpush.bf16.msra.mxu0 %v4445
  %7311 = vmatpush.bf16.msra.mxu0 %v4429
  %7312 = vmatpush.bf16.msra.mxu0 %v4413
  %7313 = vmatpush.bf16.msra.mxu0 %v4397
  %7314 = vmatmul.bf16.gmra.mxu0 %v397
  %v7315 = vpop.f32.mrf.mxu0
  %v7316 = vadd.f32 %v7287, %v7315
  %v7317 = vpop.f32.mrf.mxu0
  %v7318 = vadd.f32 %v7289, %v7317
  %7319 = vmatmul.bf16.gmra.mxu0 %v404
  %v7320 = vpop.f32.mrf.mxu0
  %v7321 = vadd.f32 %v7292, %v7320
  %v7322 = vpop.f32.mrf.mxu0
  %v7323 = vadd.f32 %v7294, %v7322
  %7324 = vmatmul.bf16.gmra.mxu0 %v411
  %v7325 = vpop.f32.mrf.mxu0
  %v7326 = vadd.f32 %v7297, %v7325
  %v7327 = vpop.f32.mrf.mxu0
  %v7328 = vadd.f32 %v7299, %v7327
  %7329 = vmatmul.bf16.gmra.mxu0 %v418
  %v7330 = vpop.f32.mrf.mxu0
  %v7331 = vadd.f32 %v7302, %v7330
  %v7332 = vpop.f32.mrf.mxu0
  %v7333 = vadd.f32 %v7304, %v7332
  %7334 = vdwg.mxu0
  %7335 = vmatpush.bf16.msra.mxu0 %v4637
  %7336 = vmatpush.bf16.msra.mxu0 %v4621
  %7337 = vmatpush.bf16.msra.mxu0 %v4605
  %7338 = vmatpush.bf16.msra.mxu0 %v4589
  %7339 = vmatpush.bf16.msra.mxu0 %v4573
  %7340 = vmatpush.bf16.msra.mxu0 %v4557
  %7341 = vmatpush.bf16.msra.mxu0 %v4541
  %7342 = vmatpush.bf16.msra.mxu0 %v4525
  %7343 = vmatmul.bf16.gmra.mxu0 %v398
  %v7344 = vpop.f32.mrf.mxu0
  %v7345 = vadd.f32 %v7316, %v7344
  %v7346 = vpop.f32.mrf.mxu0
  %v7347 = vadd.f32 %v7318, %v7346
  %7348 = vmatmul.bf16.gmra.mxu0 %v405
  %v7349 = vpop.f32.mrf.mxu0
  %v7350 = vadd.f32 %v7321, %v7349
  %v7351 = vpop.f32.mrf.mxu0
  %v7352 = vadd.f32 %v7323, %v7351
  %7353 = vmatmul.bf16.gmra.mxu0 %v412
  %v7354 = vpop.f32.mrf.mxu0
  %v7355 = vadd.f32 %v7326, %v7354
  %v7356 = vpop.f32.mrf.mxu0
  %v7357 = vadd.f32 %v7328, %v7356
  %7358 = vmatmul.bf16.gmra.mxu0 %v419
  %v7359 = vpop.f32.mrf.mxu0
  %v7360 = vadd.f32 %v7331, %v7359
  %v7361 = vpop.f32.mrf.mxu0
  %v7362 = vadd.f32 %v7333, %v7361
  %7363 = vdwg.mxu0
  %7364 = vmatpush.bf16.msra.mxu0 %v4765
  %7365 = vmatpush.bf16.msra.mxu0 %v4749
  %7366 = vmatpush.bf16.msra.mxu0 %v4733
  %7367 = vmatpush.bf16.msra.mxu0 %v4717
  %7368 = vmatpush.bf16.msra.mxu0 %v4701
  %7369 = vmatpush.bf16.msra.mxu0 %v4685
  %7370 = vmatpush.bf16.msra.mxu0 %v4669
  %7371 = vmatpush.bf16.msra.mxu0 %v4653
  %7372 = vmatmul.bf16.gmra.mxu0 %v399
  %v7373 = vpop.f32.mrf.mxu0
  %v7374 = vadd.f32 %v7345, %v7373
  %v7375 = vpop.f32.mrf.mxu0
  %v7376 = vadd.f32 %v7347, %v7375
  %7377 = vmatmul.bf16.gmra.mxu0 %v406
  %v7378 = vpop.f32.mrf.mxu0
  %v7379 = vadd.f32 %v7350, %v7378
  %v7380 = vpop.f32.mrf.mxu0
  %v7381 = vadd.f32 %v7352, %v7380
  %7382 = vmatmul.bf16.gmra.mxu0 %v413
  %v7383 = vpop.f32.mrf.mxu0
  %v7384 = vadd.f32 %v7355, %v7383
  %v7385 = vpop.f32.mrf.mxu0
  %v7386 = vadd.f32 %v7357, %v7385
  %7387 = vmatmul.bf16.gmra.mxu0 %v420
  %v7388 = vpop.f32.mrf.mxu0
  %v7389 = vadd.f32 %v7360, %v7388
  %v7390 = vpop.f32.mrf.mxu0
  %v7391 = vadd.f32 %v7362, %v7390
  %7392 = vdwg.mxu0
  %7393 = vmatpush.bf16.msra.mxu0 %v4893
  %7394 = vmatpush.bf16.msra.mxu0 %v4877
  %7395 = vmatpush.bf16.msra.mxu0 %v4861
  %7396 = vmatpush.bf16.msra.mxu0 %v4845
  %7397 = vmatpush.bf16.msra.mxu0 %v4829
  %7398 = vmatpush.bf16.msra.mxu0 %v4813
  %7399 = vmatpush.bf16.msra.mxu0 %v4797
  %7400 = vmatpush.bf16.msra.mxu0 %v4781
  %7401 = vmatmul.bf16.gmra.mxu0 %v400
  %v7402 = vpop.f32.mrf.mxu0
  %v7403 = vadd.f32 %v7374, %v7402
  %v7404 = vpop.f32.mrf.mxu0
  %v7405 = vadd.f32 %v7376, %v7404
  %7406 = vmatmul.bf16.gmra.mxu0 %v407
  %v7407 = vpop.f32.mrf.mxu0
  %v7408 = vadd.f32 %v7379, %v7407
  %v7409 = vpop.f32.mrf.mxu0
  %v7410 = vadd.f32 %v7381, %v7409
  %7411 = vmatmul.bf16.gmra.mxu0 %v414
  %v7412 = vpop.f32.mrf.mxu0
  %v7413 = vadd.f32 %v7384, %v7412
  %v7414 = vpop.f32.mrf.mxu0
  %v7415 = vadd.f32 %v7386, %v7414
  %7416 = vmatmul.bf16.gmra.mxu0 %v421
  %v7417 = vpop.f32.mrf.mxu0
  %v7418 = vadd.f32 %v7389, %v7417
  %v7419 = vpop.f32.mrf.mxu0
  %v7420 = vadd.f32 %v7391, %v7419
  %7421 = vdwg.mxu0
  %7422 = vmatpush.bf16.msra.mxu0 %v4126
  %7423 = vmatpush.bf16.msra.mxu0 %v4110
  %7424 = vmatpush.bf16.msra.mxu0 %v4094
  %7425 = vmatpush.bf16.msra.mxu0 %v4078
  %7426 = vmatpush.bf16.msra.mxu0 %v4062
  %7427 = vmatpush.bf16.msra.mxu0 %v4046
  %7428 = vmatpush.bf16.msra.mxu0 %v4030
  %7429 = vmatpush.bf16.msra.mxu0 %v4014
  %7430 = vmatmul.bf16.gmra.mxu0 %v394
  %v7431 = vpop.f32.mrf.mxu0
  %v7432 = vadd.f32 0.0, %v7431
  %v7433 = vpop.f32.mrf.mxu0
  %v7434 = vadd.f32 0.0, %v7433
  %7435 = vmatmul.bf16.gmra.mxu0 %v401
  %v7436 = vpop.f32.mrf.mxu0
  %v7437 = vadd.f32 0.0, %v7436
  %v7438 = vpop.f32.mrf.mxu0
  %v7439 = vadd.f32 0.0, %v7438
  %7440 = vmatmul.bf16.gmra.mxu0 %v408
  %v7441 = vpop.f32.mrf.mxu0
  %v7442 = vadd.f32 0.0, %v7441
  %v7443 = vpop.f32.mrf.mxu0
  %v7444 = vadd.f32 0.0, %v7443
  %7445 = vmatmul.bf16.gmra.mxu0 %v415
  %v7446 = vpop.f32.mrf.mxu0
  %v7447 = vadd.f32 0.0, %v7446
  %v7448 = vpop.f32.mrf.mxu0
  %v7449 = vadd.f32 0.0, %v7448
  %7450 = vdwg.mxu0
  %7451 = vmatpush.bf16.msra.mxu0 %v4254
  %7452 = vmatpush.bf16.msra.mxu0 %v4238
  %7453 = vmatpush.bf16.msra.mxu0 %v4222
  %7454 = vmatpush.bf16.msra.mxu0 %v4206
  %7455 = vmatpush.bf16.msra.mxu0 %v4190
  %7456 = vmatpush.bf16.msra.mxu0 %v4174
  %7457 = vmatpush.bf16.msra.mxu0 %v4158
  %7458 = vmatpush.bf16.msra.mxu0 %v4142
  %7459 = vmatmul.bf16.gmra.mxu0 %v395
  %v7460 = vpop.f32.mrf.mxu0
  %v7461 = vadd.f32 %v7432, %v7460
  %v7462 = vpop.f32.mrf.mxu0
  %v7463 = vadd.f32 %v7434, %v7462
  %7464 = vmatmul.bf16.gmra.mxu0 %v402
  %v7465 = vpop.f32.mrf.mxu0
  %v7466 = vadd.f32 %v7437, %v7465
  %v7467 = vpop.f32.mrf.mxu0
  %v7468 = vadd.f32 %v7439, %v7467
  %7469 = vmatmul.bf16.gmra.mxu0 %v409
  %v7470 = vpop.f32.mrf.mxu0
  %v7471 = vadd.f32 %v7442, %v7470
  %v7472 = vpop.f32.mrf.mxu0
  %v7473 = vadd.f32 %v7444, %v7472
  %7474 = vmatmul.bf16.gmra.mxu0 %v416
  %v7475 = vpop.f32.mrf.mxu0
  %v7476 = vadd.f32 %v7447, %v7475
  %v7477 = vpop.f32.mrf.mxu0
  %v7478 = vadd.f32 %v7449, %v7477
  %7479 = vdwg.mxu0
  %7480 = vmatpush.bf16.msra.mxu0 %v4382
  %7481 = vmatpush.bf16.msra.mxu0 %v4366
  %7482 = vmatpush.bf16.msra.mxu0 %v4350
  %7483 = vmatpush.bf16.msra.mxu0 %v4334
  %7484 = vmatpush.bf16.msra.mxu0 %v4318
  %7485 = vmatpush.bf16.msra.mxu0 %v4302
  %7486 = vmatpush.bf16.msra.mxu0 %v4286
  %7487 = vmatpush.bf16.msra.mxu0 %v4270
  %7488 = vmatmul.bf16.gmra.mxu0 %v396
  %v7489 = vpop.f32.mrf.mxu0
  %v7490 = vadd.f32 %v7461, %v7489
  %v7491 = vpop.f32.mrf.mxu0
  %v7492 = vadd.f32 %v7463, %v7491
  %7493 = vmatmul.bf16.gmra.mxu0 %v403
  %v7494 = vpop.f32.mrf.mxu0
  %v7495 = vadd.f32 %v7466, %v7494
  %v7496 = vpop.f32.mrf.mxu0
  %v7497 = vadd.f32 %v7468, %v7496
  %7498 = vmatmul.bf16.gmra.mxu0 %v410
  %v7499 = vpop.f32.mrf.mxu0
  %v7500 = vadd.f32 %v7471, %v7499
  %v7501 = vpop.f32.mrf.mxu0
  %v7502 = vadd.f32 %v7473, %v7501
  %7503 = vmatmul.bf16.gmra.mxu0 %v417
  %v7504 = vpop.f32.mrf.mxu0
  %v7505 = vadd.f32 %v7476, %v7504
  %v7506 = vpop.f32.mrf.mxu0
  %v7507 = vadd.f32 %v7478, %v7506
  %7508 = vdwg.mxu0
  %7509 = vmatpush.bf16.msra.mxu0 %v4510
  %7510 = vmatpush.bf16.msra.mxu0 %v4494
  %7511 = vmatpush.bf16.msra.mxu0 %v4478
  %7512 = vmatpush.bf16.msra.mxu0 %v4462
  %7513 = vmatpush.bf16.msra.mxu0 %v4446
  %7514 = vmatpush.bf16.msra.mxu0 %v4430
  %7515 = vmatpush.bf16.msra.mxu0 %v4414
  %7516 = vmatpush.bf16.msra.mxu0 %v4398
  %7517 = vmatmul.bf16.gmra.mxu0 %v397
  %v7518 = vpop.f32.mrf.mxu0
  %v7519 = vadd.f32 %v7490, %v7518
  %v7520 = vpop.f32.mrf.mxu0
  %v7521 = vadd.f32 %v7492, %v7520
  %7522 = vmatmul.bf16.gmra.mxu0 %v404
  %v7523 = vpop.f32.mrf.mxu0
  %v7524 = vadd.f32 %v7495, %v7523
  %v7525 = vpop.f32.mrf.mxu0
  %v7526 = vadd.f32 %v7497, %v7525
  %7527 = vmatmul.bf16.gmra.mxu0 %v411
  %v7528 = vpop.f32.mrf.mxu0
  %v7529 = vadd.f32 %v7500, %v7528
  %v7530 = vpop.f32.mrf.mxu0
  %v7531 = vadd.f32 %v7502, %v7530
  %7532 = vmatmul.bf16.gmra.mxu0 %v418
  %v7533 = vpop.f32.mrf.mxu0
  %v7534 = vadd.f32 %v7505, %v7533
  %v7535 = vpop.f32.mrf.mxu0
  %v7536 = vadd.f32 %v7507, %v7535
  %7537 = vdwg.mxu0
  %7538 = vmatpush.bf16.msra.mxu0 %v4638
  %7539 = vmatpush.bf16.msra.mxu0 %v4622
  %7540 = vmatpush.bf16.msra.mxu0 %v4606
  %7541 = vmatpush.bf16.msra.mxu0 %v4590
  %7542 = vmatpush.bf16.msra.mxu0 %v4574
  %7543 = vmatpush.bf16.msra.mxu0 %v4558
  %7544 = vmatpush.bf16.msra.mxu0 %v4542
  %7545 = vmatpush.bf16.msra.mxu0 %v4526
  %7546 = vmatmul.bf16.gmra.mxu0 %v398
  %v7547 = vpop.f32.mrf.mxu0
  %v7548 = vadd.f32 %v7519, %v7547
  %v7549 = vpop.f32.mrf.mxu0
  %v7550 = vadd.f32 %v7521, %v7549
  %7551 = vmatmul.bf16.gmra.mxu0 %v405
  %v7552 = vpop.f32.mrf.mxu0
  %v7553 = vadd.f32 %v7524, %v7552
  %v7554 = vpop.f32.mrf.mxu0
  %v7555 = vadd.f32 %v7526, %v7554
  %7556 = vmatmul.bf16.gmra.mxu0 %v412
  %v7557 = vpop.f32.mrf.mxu0
  %v7558 = vadd.f32 %v7529, %v7557
  %v7559 = vpop.f32.mrf.mxu0
  %v7560 = vadd.f32 %v7531, %v7559
  %7561 = vmatmul.bf16.gmra.mxu0 %v419
  %v7562 = vpop.f32.mrf.mxu0
  %v7563 = vadd.f32 %v7534, %v7562
  %v7564 = vpop.f32.mrf.mxu0
  %v7565 = vadd.f32 %v7536, %v7564
  %7566 = vdwg.mxu0
  %7567 = vmatpush.bf16.msra.mxu0 %v4766
  %7568 = vmatpush.bf16.msra.mxu0 %v4750
  %7569 = vmatpush.bf16.msra.mxu0 %v4734
  %7570 = vmatpush.bf16.msra.mxu0 %v4718
  %7571 = vmatpush.bf16.msra.mxu0 %v4702
  %7572 = vmatpush.bf16.msra.mxu0 %v4686
  %7573 = vmatpush.bf16.msra.mxu0 %v4670
  %7574 = vmatpush.bf16.msra.mxu0 %v4654
  %7575 = vmatmul.bf16.gmra.mxu0 %v399
  %v7576 = vpop.f32.mrf.mxu0
  %v7577 = vadd.f32 %v7548, %v7576
  %v7578 = vpop.f32.mrf.mxu0
  %v7579 = vadd.f32 %v7550, %v7578
  %7580 = vmatmul.bf16.gmra.mxu0 %v406
  %v7581 = vpop.f32.mrf.mxu0
  %v7582 = vadd.f32 %v7553, %v7581
  %v7583 = vpop.f32.mrf.mxu0
  %v7584 = vadd.f32 %v7555, %v7583
  %7585 = vmatmul.bf16.gmra.mxu0 %v413
  %v7586 = vpop.f32.mrf.mxu0
  %v7587 = vadd.f32 %v7558, %v7586
  %v7588 = vpop.f32.mrf.mxu0
  %v7589 = vadd.f32 %v7560, %v7588
  %7590 = vmatmul.bf16.gmra.mxu0 %v420
  %v7591 = vpop.f32.mrf.mxu0
  %v7592 = vadd.f32 %v7563, %v7591
  %v7593 = vpop.f32.mrf.mxu0
  %v7594 = vadd.f32 %v7565, %v7593
  %7595 = vdwg.mxu0
  %7596 = vmatpush.bf16.msra.mxu0 %v4894
  %7597 = vmatpush.bf16.msra.mxu0 %v4878
  %7598 = vmatpush.bf16.msra.mxu0 %v4862
  %7599 = vmatpush.bf16.msra.mxu0 %v4846
  %7600 = vmatpush.bf16.msra.mxu0 %v4830
  %7601 = vmatpush.bf16.msra.mxu0 %v4814
  %7602 = vmatpush.bf16.msra.mxu0 %v4798
  %7603 = vmatpush.bf16.msra.mxu0 %v4782
  %7604 = vmatmul.bf16.gmra.mxu0 %v400
  %v7605 = vpop.f32.mrf.mxu0
  %v7606 = vadd.f32 %v7577, %v7605
  %v7607 = vpop.f32.mrf.mxu0
  %v7608 = vadd.f32 %v7579, %v7607
  %7609 = vmatmul.bf16.gmra.mxu0 %v407
  %v7610 = vpop.f32.mrf.mxu0
  %v7611 = vadd.f32 %v7582, %v7610
  %v7612 = vpop.f32.mrf.mxu0
  %v7613 = vadd.f32 %v7584, %v7612
  %7614 = vmatmul.bf16.gmra.mxu0 %v414
  %v7615 = vpop.f32.mrf.mxu0
  %v7616 = vadd.f32 %v7587, %v7615
  %v7617 = vpop.f32.mrf.mxu0
  %v7618 = vadd.f32 %v7589, %v7617
  %7619 = vmatmul.bf16.gmra.mxu0 %v421
  %v7620 = vpop.f32.mrf.mxu0
  %v7621 = vadd.f32 %v7592, %v7620
  %v7622 = vpop.f32.mrf.mxu0
  %v7623 = vadd.f32 %v7594, %v7622
  %7624 = vdwg.mxu0
  %7625 = vmatpush.bf16.msra.mxu0 %v4127
  %7626 = vmatpush.bf16.msra.mxu0 %v4111
  %7627 = vmatpush.bf16.msra.mxu0 %v4095
  %7628 = vmatpush.bf16.msra.mxu0 %v4079
  %7629 = vmatpush.bf16.msra.mxu0 %v4063
  %7630 = vmatpush.bf16.msra.mxu0 %v4047
  %7631 = vmatpush.bf16.msra.mxu0 %v4031
  %7632 = vmatpush.bf16.msra.mxu0 %v4015
  %7633 = vmatmul.bf16.gmra.mxu0 %v394
  %v7634 = vpop.f32.mrf.mxu0
  %v7635 = vadd.f32 0.0, %v7634
  %v7636 = vpop.f32.mrf.mxu0
  %v7637 = vadd.f32 0.0, %v7636
  %7638 = vmatmul.bf16.gmra.mxu0 %v401
  %v7639 = vpop.f32.mrf.mxu0
  %v7640 = vadd.f32 0.0, %v7639
  %v7641 = vpop.f32.mrf.mxu0
  %v7642 = vadd.f32 0.0, %v7641
  %7643 = vmatmul.bf16.gmra.mxu0 %v408
  %v7644 = vpop.f32.mrf.mxu0
  %v7645 = vadd.f32 0.0, %v7644
  %v7646 = vpop.f32.mrf.mxu0
  %v7647 = vadd.f32 0.0, %v7646
  %7648 = vmatmul.bf16.gmra.mxu0 %v415
  %v7649 = vpop.f32.mrf.mxu0
  %v7650 = vadd.f32 0.0, %v7649
  %v7651 = vpop.f32.mrf.mxu0
  %v7652 = vadd.f32 0.0, %v7651
  %7653 = vdwg.mxu0
  %7654 = vmatpush.bf16.msra.mxu0 %v4255
  %7655 = vmatpush.bf16.msra.mxu0 %v4239
  %7656 = vmatpush.bf16.msra.mxu0 %v4223
  %7657 = vmatpush.bf16.msra.mxu0 %v4207
  %7658 = vmatpush.bf16.msra.mxu0 %v4191
  %7659 = vmatpush.bf16.msra.mxu0 %v4175
  %7660 = vmatpush.bf16.msra.mxu0 %v4159
  %7661 = vmatpush.bf16.msra.mxu0 %v4143
  %7662 = vmatmul.bf16.gmra.mxu0 %v395
  %v7663 = vpop.f32.mrf.mxu0
  %v7664 = vadd.f32 %v7635, %v7663
  %v7665 = vpop.f32.mrf.mxu0
  %v7666 = vadd.f32 %v7637, %v7665
  %7667 = vmatmul.bf16.gmra.mxu0 %v402
  %v7668 = vpop.f32.mrf.mxu0
  %v7669 = vadd.f32 %v7640, %v7668
  %v7670 = vpop.f32.mrf.mxu0
  %v7671 = vadd.f32 %v7642, %v7670
  %7672 = vmatmul.bf16.gmra.mxu0 %v409
  %v7673 = vpop.f32.mrf.mxu0
  %v7674 = vadd.f32 %v7645, %v7673
  %v7675 = vpop.f32.mrf.mxu0
  %v7676 = vadd.f32 %v7647, %v7675
  %7677 = vmatmul.bf16.gmra.mxu0 %v416
  %v7678 = vpop.f32.mrf.mxu0
  %v7679 = vadd.f32 %v7650, %v7678
  %v7680 = vpop.f32.mrf.mxu0
  %v7681 = vadd.f32 %v7652, %v7680
  %7682 = vdwg.mxu0
  %7683 = vmatpush.bf16.msra.mxu0 %v4383
  %7684 = vmatpush.bf16.msra.mxu0 %v4367
  %7685 = vmatpush.bf16.msra.mxu0 %v4351
  %7686 = vmatpush.bf16.msra.mxu0 %v4335
  %7687 = vmatpush.bf16.msra.mxu0 %v4319
  %7688 = vmatpush.bf16.msra.mxu0 %v4303
  %7689 = vmatpush.bf16.msra.mxu0 %v4287
  %7690 = vmatpush.bf16.msra.mxu0 %v4271
  %7691 = vmatmul.bf16.gmra.mxu0 %v396
  %v7692 = vpop.f32.mrf.mxu0
  %v7693 = vadd.f32 %v7664, %v7692
  %v7694 = vpop.f32.mrf.mxu0
  %v7695 = vadd.f32 %v7666, %v7694
  %7696 = vmatmul.bf16.gmra.mxu0 %v403
  %v7697 = vpop.f32.mrf.mxu0
  %v7698 = vadd.f32 %v7669, %v7697
  %v7699 = vpop.f32.mrf.mxu0
  %v7700 = vadd.f32 %v7671, %v7699
  %7701 = vmatmul.bf16.gmra.mxu0 %v410
  %v7702 = vpop.f32.mrf.mxu0
  %v7703 = vadd.f32 %v7674, %v7702
  %v7704 = vpop.f32.mrf.mxu0
  %v7705 = vadd.f32 %v7676, %v7704
  %7706 = vmatmul.bf16.gmra.mxu0 %v417
  %v7707 = vpop.f32.mrf.mxu0
  %v7708 = vadd.f32 %v7679, %v7707
  %v7709 = vpop.f32.mrf.mxu0
  %v7710 = vadd.f32 %v7681, %v7709
  %7711 = vdwg.mxu0
  %7712 = vmatpush.bf16.msra.mxu0 %v4511
  %7713 = vmatpush.bf16.msra.mxu0 %v4495
  %7714 = vmatpush.bf16.msra.mxu0 %v4479
  %7715 = vmatpush.bf16.msra.mxu0 %v4463
  %7716 = vmatpush.bf16.msra.mxu0 %v4447
  %7717 = vmatpush.bf16.msra.mxu0 %v4431
  %7718 = vmatpush.bf16.msra.mxu0 %v4415
  %7719 = vmatpush.bf16.msra.mxu0 %v4399
  %7720 = vmatmul.bf16.gmra.mxu0 %v397
  %v7721 = vpop.f32.mrf.mxu0
  %v7722 = vadd.f32 %v7693, %v7721
  %v7723 = vpop.f32.mrf.mxu0
  %v7724 = vadd.f32 %v7695, %v7723
  %7725 = vmatmul.bf16.gmra.mxu0 %v404
  %v7726 = vpop.f32.mrf.mxu0
  %v7727 = vadd.f32 %v7698, %v7726
  %v7728 = vpop.f32.mrf.mxu0
  %v7729 = vadd.f32 %v7700, %v7728
  %7730 = vmatmul.bf16.gmra.mxu0 %v411
  %v7731 = vpop.f32.mrf.mxu0
  %v7732 = vadd.f32 %v7703, %v7731
  %v7733 = vpop.f32.mrf.mxu0
  %v7734 = vadd.f32 %v7705, %v7733
  %7735 = vmatmul.bf16.gmra.mxu0 %v418
  %v7736 = vpop.f32.mrf.mxu0
  %v7737 = vadd.f32 %v7708, %v7736
  %v7738 = vpop.f32.mrf.mxu0
  %v7739 = vadd.f32 %v7710, %v7738
  %7740 = vdwg.mxu0
  %7741 = vmatpush.bf16.msra.mxu0 %v4639
  %7742 = vmatpush.bf16.msra.mxu0 %v4623
  %7743 = vmatpush.bf16.msra.mxu0 %v4607
  %7744 = vmatpush.bf16.msra.mxu0 %v4591
  %7745 = vmatpush.bf16.msra.mxu0 %v4575
  %7746 = vmatpush.bf16.msra.mxu0 %v4559
  %7747 = vmatpush.bf16.msra.mxu0 %v4543
  %7748 = vmatpush.bf16.msra.mxu0 %v4527
  %7749 = vmatmul.bf16.gmra.mxu0 %v398
  %v7750 = vpop.f32.mrf.mxu0
  %v7751 = vadd.f32 %v7722, %v7750
  %v7752 = vpop.f32.mrf.mxu0
  %v7753 = vadd.f32 %v7724, %v7752
  %7754 = vmatmul.bf16.gmra.mxu0 %v405
  %v7755 = vpop.f32.mrf.mxu0
  %v7756 = vadd.f32 %v7727, %v7755
  %v7757 = vpop.f32.mrf.mxu0
  %v7758 = vadd.f32 %v7729, %v7757
  %7759 = vmatmul.bf16.gmra.mxu0 %v412
  %v7760 = vpop.f32.mrf.mxu0
  %v7761 = vadd.f32 %v7732, %v7760
  %v7762 = vpop.f32.mrf.mxu0
  %v7763 = vadd.f32 %v7734, %v7762
  %7764 = vmatmul.bf16.gmra.mxu0 %v419
  %v7765 = vpop.f32.mrf.mxu0
  %v7766 = vadd.f32 %v7737, %v7765
  %v7767 = vpop.f32.mrf.mxu0
  %v7768 = vadd.f32 %v7739, %v7767
  %7769 = vdwg.mxu0
  %7770 = vmatpush.bf16.msra.mxu0 %v4767
  %7771 = vmatpush.bf16.msra.mxu0 %v4751
  %7772 = vmatpush.bf16.msra.mxu0 %v4735
  %7773 = vmatpush.bf16.msra.mxu0 %v4719
  %7774 = vmatpush.bf16.msra.mxu0 %v4703
  %7775 = vmatpush.bf16.msra.mxu0 %v4687
  %7776 = vmatpush.bf16.msra.mxu0 %v4671
  %7777 = vmatpush.bf16.msra.mxu0 %v4655
  %7778 = vmatmul.bf16.gmra.mxu0 %v399
  %v7779 = vpop.f32.mrf.mxu0
  %v7780 = vadd.f32 %v7751, %v7779
  %v7781 = vpop.f32.mrf.mxu0
  %v7782 = vadd.f32 %v7753, %v7781
  %7783 = vmatmul.bf16.gmra.mxu0 %v406
  %v7784 = vpop.f32.mrf.mxu0
  %v7785 = vadd.f32 %v7756, %v7784
  %v7786 = vpop.f32.mrf.mxu0
  %v7787 = vadd.f32 %v7758, %v7786
  %7788 = vmatmul.bf16.gmra.mxu0 %v413
  %v7789 = vpop.f32.mrf.mxu0
  %v7790 = vadd.f32 %v7761, %v7789
  %v7791 = vpop.f32.mrf.mxu0
  %v7792 = vadd.f32 %v7763, %v7791
  %7793 = vmatmul.bf16.gmra.mxu0 %v420
  %v7794 = vpop.f32.mrf.mxu0
  %v7795 = vadd.f32 %v7766, %v7794
  %v7796 = vpop.f32.mrf.mxu0
  %v7797 = vadd.f32 %v7768, %v7796
  %7798 = vdwg.mxu0
  %7799 = vmatpush.bf16.msra.mxu0 %v4895
  %7800 = vmatpush.bf16.msra.mxu0 %v4879
  %7801 = vmatpush.bf16.msra.mxu0 %v4863
  %7802 = vmatpush.bf16.msra.mxu0 %v4847
  %7803 = vmatpush.bf16.msra.mxu0 %v4831
  %7804 = vmatpush.bf16.msra.mxu0 %v4815
  %7805 = vmatpush.bf16.msra.mxu0 %v4799
  %7806 = vmatpush.bf16.msra.mxu0 %v4783
  %7807 = vmatmul.bf16.gmra.mxu0 %v400
  %v7808 = vpop.f32.mrf.mxu0
  %v7809 = vadd.f32 %v7780, %v7808
  %v7810 = vpop.f32.mrf.mxu0
  %v7811 = vadd.f32 %v7782, %v7810
  %7812 = vmatmul.bf16.gmra.mxu0 %v407
  %v7813 = vpop.f32.mrf.mxu0
  %v7814 = vadd.f32 %v7785, %v7813
  %v7815 = vpop.f32.mrf.mxu0
  %v7816 = vadd.f32 %v7787, %v7815
  %7817 = vmatmul.bf16.gmra.mxu0 %v414
  %v7818 = vpop.f32.mrf.mxu0
  %v7819 = vadd.f32 %v7790, %v7818
  %v7820 = vpop.f32.mrf.mxu0
  %v7821 = vadd.f32 %v7792, %v7820
  %7822 = vmatmul.bf16.gmra.mxu0 %v421
  %v7823 = vpop.f32.mrf.mxu0
  %v7824 = vadd.f32 %v7795, %v7823
  %v7825 = vpop.f32.mrf.mxu0
  %v7826 = vadd.f32 %v7797, %v7825
  %7827 = vdwg.mxu0
  %7828 = vmatpush.bf16.msra.mxu0 %v4128
  %7829 = vmatpush.bf16.msra.mxu0 %v4112
  %7830 = vmatpush.bf16.msra.mxu0 %v4096
  %7831 = vmatpush.bf16.msra.mxu0 %v4080
  %7832 = vmatpush.bf16.msra.mxu0 %v4064
  %7833 = vmatpush.bf16.msra.mxu0 %v4048
  %7834 = vmatpush.bf16.msra.mxu0 %v4032
  %7835 = vmatpush.bf16.msra.mxu0 %v4016
  %7836 = vmatmul.bf16.gmra.mxu0 %v394
  %v7837 = vpop.f32.mrf.mxu0
  %v7838 = vadd.f32 0.0, %v7837
  %v7839 = vpop.f32.mrf.mxu0
  %v7840 = vadd.f32 0.0, %v7839
  %7841 = vmatmul.bf16.gmra.mxu0 %v401
  %v7842 = vpop.f32.mrf.mxu0
  %v7843 = vadd.f32 0.0, %v7842
  %v7844 = vpop.f32.mrf.mxu0
  %v7845 = vadd.f32 0.0, %v7844
  %7846 = vmatmul.bf16.gmra.mxu0 %v408
  %v7847 = vpop.f32.mrf.mxu0
  %v7848 = vadd.f32 0.0, %v7847
  %v7849 = vpop.f32.mrf.mxu0
  %v7850 = vadd.f32 0.0, %v7849
  %7851 = vmatmul.bf16.gmra.mxu0 %v415
  %v7852 = vpop.f32.mrf.mxu0
  %v7853 = vadd.f32 0.0, %v7852
  %v7854 = vpop.f32.mrf.mxu0
  %v7855 = vadd.f32 0.0, %v7854
  %7856 = vdwg.mxu0
  %7857 = vmatpush.bf16.msra.mxu0 %v4256
  %7858 = vmatpush.bf16.msra.mxu0 %v4240
  %7859 = vmatpush.bf16.msra.mxu0 %v4224
  %7860 = vmatpush.bf16.msra.mxu0 %v4208
  %7861 = vmatpush.bf16.msra.mxu0 %v4192
  %7862 = vmatpush.bf16.msra.mxu0 %v4176
  %7863 = vmatpush.bf16.msra.mxu0 %v4160
  %7864 = vmatpush.bf16.msra.mxu0 %v4144
  %7865 = vmatmul.bf16.gmra.mxu0 %v395
  %v7866 = vpop.f32.mrf.mxu0
  %v7867 = vadd.f32 %v7838, %v7866
  %v7868 = vpop.f32.mrf.mxu0
  %v7869 = vadd.f32 %v7840, %v7868
  %7870 = vmatmul.bf16.gmra.mxu0 %v402
  %v7871 = vpop.f32.mrf.mxu0
  %v7872 = vadd.f32 %v7843, %v7871
  %v7873 = vpop.f32.mrf.mxu0
  %v7874 = vadd.f32 %v7845, %v7873
  %7875 = vmatmul.bf16.gmra.mxu0 %v409
  %v7876 = vpop.f32.mrf.mxu0
  %v7877 = vadd.f32 %v7848, %v7876
  %v7878 = vpop.f32.mrf.mxu0
  %v7879 = vadd.f32 %v7850, %v7878
  %7880 = vmatmul.bf16.gmra.mxu0 %v416
  %v7881 = vpop.f32.mrf.mxu0
  %v7882 = vadd.f32 %v7853, %v7881
  %v7883 = vpop.f32.mrf.mxu0
  %v7884 = vadd.f32 %v7855, %v7883
  %7885 = vdwg.mxu0
  %7886 = vmatpush.bf16.msra.mxu0 %v4384
  %7887 = vmatpush.bf16.msra.mxu0 %v4368
  %7888 = vmatpush.bf16.msra.mxu0 %v4352
  %7889 = vmatpush.bf16.msra.mxu0 %v4336
  %7890 = vmatpush.bf16.msra.mxu0 %v4320
  %7891 = vmatpush.bf16.msra.mxu0 %v4304
  %7892 = vmatpush.bf16.msra.mxu0 %v4288
  %7893 = vmatpush.bf16.msra.mxu0 %v4272
  %7894 = vmatmul.bf16.gmra.mxu0 %v396
  %v7895 = vpop.f32.mrf.mxu0
  %v7896 = vadd.f32 %v7867, %v7895
  %v7897 = vpop.f32.mrf.mxu0
  %v7898 = vadd.f32 %v7869, %v7897
  %7899 = vmatmul.bf16.gmra.mxu0 %v403
  %v7900 = vpop.f32.mrf.mxu0
  %v7901 = vadd.f32 %v7872, %v7900
  %v7902 = vpop.f32.mrf.mxu0
  %v7903 = vadd.f32 %v7874, %v7902
  %7904 = vmatmul.bf16.gmra.mxu0 %v410
  %v7905 = vpop.f32.mrf.mxu0
  %v7906 = vadd.f32 %v7877, %v7905
  %v7907 = vpop.f32.mrf.mxu0
  %v7908 = vadd.f32 %v7879, %v7907
  %7909 = vmatmul.bf16.gmra.mxu0 %v417
  %v7910 = vpop.f32.mrf.mxu0
  %v7911 = vadd.f32 %v7882, %v7910
  %v7912 = vpop.f32.mrf.mxu0
  %v7913 = vadd.f32 %v7884, %v7912
  %7914 = vdwg.mxu0
  %7915 = vmatpush.bf16.msra.mxu0 %v4512
  %7916 = vmatpush.bf16.msra.mxu0 %v4496
  %7917 = vmatpush.bf16.msra.mxu0 %v4480
  %7918 = vmatpush.bf16.msra.mxu0 %v4464
  %7919 = vmatpush.bf16.msra.mxu0 %v4448
  %7920 = vmatpush.bf16.msra.mxu0 %v4432
  %7921 = vmatpush.bf16.msra.mxu0 %v4416
  %7922 = vmatpush.bf16.msra.mxu0 %v4400
  %7923 = vmatmul.bf16.gmra.mxu0 %v397
  %v7924 = vpop.f32.mrf.mxu0
  %v7925 = vadd.f32 %v7896, %v7924
  %v7926 = vpop.f32.mrf.mxu0
  %v7927 = vadd.f32 %v7898, %v7926
  %7928 = vmatmul.bf16.gmra.mxu0 %v404
  %v7929 = vpop.f32.mrf.mxu0
  %v7930 = vadd.f32 %v7901, %v7929
  %v7931 = vpop.f32.mrf.mxu0
  %v7932 = vadd.f32 %v7903, %v7931
  %7933 = vmatmul.bf16.gmra.mxu0 %v411
  %v7934 = vpop.f32.mrf.mxu0
  %v7935 = vadd.f32 %v7906, %v7934
  %v7936 = vpop.f32.mrf.mxu0
  %v7937 = vadd.f32 %v7908, %v7936
  %7938 = vmatmul.bf16.gmra.mxu0 %v418
  %v7939 = vpop.f32.mrf.mxu0
  %v7940 = vadd.f32 %v7911, %v7939
  %v7941 = vpop.f32.mrf.mxu0
  %v7942 = vadd.f32 %v7913, %v7941
  %7943 = vdwg.mxu0
  %7944 = vmatpush.bf16.msra.mxu0 %v4640
  %7945 = vmatpush.bf16.msra.mxu0 %v4624
  %7946 = vmatpush.bf16.msra.mxu0 %v4608
  %7947 = vmatpush.bf16.msra.mxu0 %v4592
  %7948 = vmatpush.bf16.msra.mxu0 %v4576
  %7949 = vmatpush.bf16.msra.mxu0 %v4560
  %7950 = vmatpush.bf16.msra.mxu0 %v4544
  %7951 = vmatpush.bf16.msra.mxu0 %v4528
  %7952 = vmatmul.bf16.gmra.mxu0 %v398
  %v7953 = vpop.f32.mrf.mxu0
  %v7954 = vadd.f32 %v7925, %v7953
  %v7955 = vpop.f32.mrf.mxu0
  %v7956 = vadd.f32 %v7927, %v7955
  %7957 = vmatmul.bf16.gmra.mxu0 %v405
  %v7958 = vpop.f32.mrf.mxu0
  %v7959 = vadd.f32 %v7930, %v7958
  %v7960 = vpop.f32.mrf.mxu0
  %v7961 = vadd.f32 %v7932, %v7960
  %7962 = vmatmul.bf16.gmra.mxu0 %v412
  %v7963 = vpop.f32.mrf.mxu0
  %v7964 = vadd.f32 %v7935, %v7963
  %v7965 = vpop.f32.mrf.mxu0
  %v7966 = vadd.f32 %v7937, %v7965
  %7967 = vmatmul.bf16.gmra.mxu0 %v419
  %v7968 = vpop.f32.mrf.mxu0
  %v7969 = vadd.f32 %v7940, %v7968
  %v7970 = vpop.f32.mrf.mxu0
  %v7971 = vadd.f32 %v7942, %v7970
  %7972 = vdwg.mxu0
  %7973 = vmatpush.bf16.msra.mxu0 %v4768
  %7974 = vmatpush.bf16.msra.mxu0 %v4752
  %7975 = vmatpush.bf16.msra.mxu0 %v4736
  %7976 = vmatpush.bf16.msra.mxu0 %v4720
  %7977 = vmatpush.bf16.msra.mxu0 %v4704
  %7978 = vmatpush.bf16.msra.mxu0 %v4688
  %7979 = vmatpush.bf16.msra.mxu0 %v4672
  %7980 = vmatpush.bf16.msra.mxu0 %v4656
  %7981 = vmatmul.bf16.gmra.mxu0 %v399
  %v7982 = vpop.f32.mrf.mxu0
  %v7983 = vadd.f32 %v7954, %v7982
  %v7984 = vpop.f32.mrf.mxu0
  %v7985 = vadd.f32 %v7956, %v7984
  %7986 = vmatmul.bf16.gmra.mxu0 %v406
  %v7987 = vpop.f32.mrf.mxu0
  %v7988 = vadd.f32 %v7959, %v7987
  %v7989 = vpop.f32.mrf.mxu0
  %v7990 = vadd.f32 %v7961, %v7989
  %7991 = vmatmul.bf16.gmra.mxu0 %v413
  %v7992 = vpop.f32.mrf.mxu0
  %v7993 = vadd.f32 %v7964, %v7992
  %v7994 = vpop.f32.mrf.mxu0
  %v7995 = vadd.f32 %v7966, %v7994
  %7996 = vmatmul.bf16.gmra.mxu0 %v420
  %v7997 = vpop.f32.mrf.mxu0
  %v7998 = vadd.f32 %v7969, %v7997
  %v7999 = vpop.f32.mrf.mxu0
  %v8000 = vadd.f32 %v7971, %v7999
  %8001 = vdwg.mxu0
  %8002 = vmatpush.bf16.msra.mxu0 %v4896
  %8003 = vmatpush.bf16.msra.mxu0 %v4880
  %8004 = vmatpush.bf16.msra.mxu0 %v4864
  %8005 = vmatpush.bf16.msra.mxu0 %v4848
  %8006 = vmatpush.bf16.msra.mxu0 %v4832
  %8007 = vmatpush.bf16.msra.mxu0 %v4816
  %8008 = vmatpush.bf16.msra.mxu0 %v4800
  %8009 = vmatpush.bf16.msra.mxu0 %v4784
  %8010 = vmatmul.bf16.gmra.mxu0 %v400
  %v8011 = vpop.f32.mrf.mxu0
  %v8012 = vadd.f32 %v7983, %v8011
  %v8013 = vpop.f32.mrf.mxu0
  %v8014 = vadd.f32 %v7985, %v8013
  %8015 = vmatmul.bf16.gmra.mxu0 %v407
  %v8016 = vpop.f32.mrf.mxu0
  %v8017 = vadd.f32 %v7988, %v8016
  %v8018 = vpop.f32.mrf.mxu0
  %v8019 = vadd.f32 %v7990, %v8018
  %8020 = vmatmul.bf16.gmra.mxu0 %v414
  %v8021 = vpop.f32.mrf.mxu0
  %v8022 = vadd.f32 %v7993, %v8021
  %v8023 = vpop.f32.mrf.mxu0
  %v8024 = vadd.f32 %v7995, %v8023
  %8025 = vmatmul.bf16.gmra.mxu0 %v421
  %v8026 = vpop.f32.mrf.mxu0
  %v8027 = vadd.f32 %v7998, %v8026
  %v8028 = vpop.f32.mrf.mxu0
  %v8029 = vadd.f32 %v8000, %v8028
  %8030 = vdwg.mxu0
  %8031 = vmatpush.bf16.msra.mxu0 %v4129
  %8032 = vmatpush.bf16.msra.mxu0 %v4113
  %8033 = vmatpush.bf16.msra.mxu0 %v4097
  %8034 = vmatpush.bf16.msra.mxu0 %v4081
  %8035 = vmatpush.bf16.msra.mxu0 %v4065
  %8036 = vmatpush.bf16.msra.mxu0 %v4049
  %8037 = vmatpush.bf16.msra.mxu0 %v4033
  %8038 = vmatpush.bf16.msra.mxu0 %v4017
  %8039 = vmatmul.bf16.gmra.mxu0 %v394
  %v8040 = vpop.f32.mrf.mxu0
  %v8041 = vadd.f32 0.0, %v8040
  %v8042 = vpop.f32.mrf.mxu0
  %v8043 = vadd.f32 0.0, %v8042
  %8044 = vmatmul.bf16.gmra.mxu0 %v401
  %v8045 = vpop.f32.mrf.mxu0
  %v8046 = vadd.f32 0.0, %v8045
  %v8047 = vpop.f32.mrf.mxu0
  %v8048 = vadd.f32 0.0, %v8047
  %8049 = vmatmul.bf16.gmra.mxu0 %v408
  %v8050 = vpop.f32.mrf.mxu0
  %v8051 = vadd.f32 0.0, %v8050
  %v8052 = vpop.f32.mrf.mxu0
  %v8053 = vadd.f32 0.0, %v8052
  %8054 = vmatmul.bf16.gmra.mxu0 %v415
  %v8055 = vpop.f32.mrf.mxu0
  %v8056 = vadd.f32 0.0, %v8055
  %v8057 = vpop.f32.mrf.mxu0
  %v8058 = vadd.f32 0.0, %v8057
  %8059 = vdwg.mxu0
  %8060 = vmatpush.bf16.msra.mxu0 %v4257
  %8061 = vmatpush.bf16.msra.mxu0 %v4241
  %8062 = vmatpush.bf16.msra.mxu0 %v4225
  %8063 = vmatpush.bf16.msra.mxu0 %v4209
  %8064 = vmatpush.bf16.msra.mxu0 %v4193
  %8065 = vmatpush.bf16.msra.mxu0 %v4177
  %8066 = vmatpush.bf16.msra.mxu0 %v4161
  %8067 = vmatpush.bf16.msra.mxu0 %v4145
  %8068 = vmatmul.bf16.gmra.mxu0 %v395
  %v8069 = vpop.f32.mrf.mxu0
  %v8070 = vadd.f32 %v8041, %v8069
  %v8071 = vpop.f32.mrf.mxu0
  %v8072 = vadd.f32 %v8043, %v8071
  %8073 = vmatmul.bf16.gmra.mxu0 %v402
  %v8074 = vpop.f32.mrf.mxu0
  %v8075 = vadd.f32 %v8046, %v8074
  %v8076 = vpop.f32.mrf.mxu0
  %v8077 = vadd.f32 %v8048, %v8076
  %8078 = vmatmul.bf16.gmra.mxu0 %v409
  %v8079 = vpop.f32.mrf.mxu0
  %v8080 = vadd.f32 %v8051, %v8079
  %v8081 = vpop.f32.mrf.mxu0
  %v8082 = vadd.f32 %v8053, %v8081
  %8083 = vmatmul.bf16.gmra.mxu0 %v416
  %v8084 = vpop.f32.mrf.mxu0
  %v8085 = vadd.f32 %v8056, %v8084
  %v8086 = vpop.f32.mrf.mxu0
  %v8087 = vadd.f32 %v8058, %v8086
  %8088 = vdwg.mxu0
  %8089 = vmatpush.bf16.msra.mxu0 %v4385
  %8090 = vmatpush.bf16.msra.mxu0 %v4369
  %8091 = vmatpush.bf16.msra.mxu0 %v4353
  %8092 = vmatpush.bf16.msra.mxu0 %v4337
  %8093 = vmatpush.bf16.msra.mxu0 %v4321
  %8094 = vmatpush.bf16.msra.mxu0 %v4305
  %8095 = vmatpush.bf16.msra.mxu0 %v4289
  %8096 = vmatpush.bf16.msra.mxu0 %v4273
  %8097 = vmatmul.bf16.gmra.mxu0 %v396
  %v8098 = vpop.f32.mrf.mxu0
  %v8099 = vadd.f32 %v8070, %v8098
  %v8100 = vpop.f32.mrf.mxu0
  %v8101 = vadd.f32 %v8072, %v8100
  %8102 = vmatmul.bf16.gmra.mxu0 %v403
  %v8103 = vpop.f32.mrf.mxu0
  %v8104 = vadd.f32 %v8075, %v8103
  %v8105 = vpop.f32.mrf.mxu0
  %v8106 = vadd.f32 %v8077, %v8105
  %8107 = vmatmul.bf16.gmra.mxu0 %v410
  %v8108 = vpop.f32.mrf.mxu0
  %v8109 = vadd.f32 %v8080, %v8108
  %v8110 = vpop.f32.mrf.mxu0
  %v8111 = vadd.f32 %v8082, %v8110
  %8112 = vmatmul.bf16.gmra.mxu0 %v417
  %v8113 = vpop.f32.mrf.mxu0
  %v8114 = vadd.f32 %v8085, %v8113
  %v8115 = vpop.f32.mrf.mxu0
  %v8116 = vadd.f32 %v8087, %v8115
  %8117 = vdwg.mxu0
  %8118 = vmatpush.bf16.msra.mxu0 %v4513
  %8119 = vmatpush.bf16.msra.mxu0 %v4497
  %8120 = vmatpush.bf16.msra.mxu0 %v4481
  %8121 = vmatpush.bf16.msra.mxu0 %v4465
  %8122 = vmatpush.bf16.msra.mxu0 %v4449
  %8123 = vmatpush.bf16.msra.mxu0 %v4433
  %8124 = vmatpush.bf16.msra.mxu0 %v4417
  %8125 = vmatpush.bf16.msra.mxu0 %v4401
  %8126 = vmatmul.bf16.gmra.mxu0 %v397
  %v8127 = vpop.f32.mrf.mxu0
  %v8128 = vadd.f32 %v8099, %v8127
  %v8129 = vpop.f32.mrf.mxu0
  %v8130 = vadd.f32 %v8101, %v8129
  %8131 = vmatmul.bf16.gmra.mxu0 %v404
  %v8132 = vpop.f32.mrf.mxu0
  %v8133 = vadd.f32 %v8104, %v8132
  %v8134 = vpop.f32.mrf.mxu0
  %v8135 = vadd.f32 %v8106, %v8134
  %8136 = vmatmul.bf16.gmra.mxu0 %v411
  %v8137 = vpop.f32.mrf.mxu0
  %v8138 = vadd.f32 %v8109, %v8137
  %v8139 = vpop.f32.mrf.mxu0
  %v8140 = vadd.f32 %v8111, %v8139
  %8141 = vmatmul.bf16.gmra.mxu0 %v418
  %v8142 = vpop.f32.mrf.mxu0
  %v8143 = vadd.f32 %v8114, %v8142
  %v8144 = vpop.f32.mrf.mxu0
  %v8145 = vadd.f32 %v8116, %v8144
  %8146 = vdwg.mxu0
  %8147 = vmatpush.bf16.msra.mxu0 %v4641
  %8148 = vmatpush.bf16.msra.mxu0 %v4625
  %8149 = vmatpush.bf16.msra.mxu0 %v4609
  %8150 = vmatpush.bf16.msra.mxu0 %v4593
  %8151 = vmatpush.bf16.msra.mxu0 %v4577
  %8152 = vmatpush.bf16.msra.mxu0 %v4561
  %8153 = vmatpush.bf16.msra.mxu0 %v4545
  %8154 = vmatpush.bf16.msra.mxu0 %v4529
  %8155 = vmatmul.bf16.gmra.mxu0 %v398
  %v8156 = vpop.f32.mrf.mxu0
  %v8157 = vadd.f32 %v8128, %v8156
  %v8158 = vpop.f32.mrf.mxu0
  %v8159 = vadd.f32 %v8130, %v8158
  %8160 = vmatmul.bf16.gmra.mxu0 %v405
  %v8161 = vpop.f32.mrf.mxu0
  %v8162 = vadd.f32 %v8133, %v8161
  %v8163 = vpop.f32.mrf.mxu0
  %v8164 = vadd.f32 %v8135, %v8163
  %8165 = vmatmul.bf16.gmra.mxu0 %v412
  %v8166 = vpop.f32.mrf.mxu0
  %v8167 = vadd.f32 %v8138, %v8166
  %v8168 = vpop.f32.mrf.mxu0
  %v8169 = vadd.f32 %v8140, %v8168
  %8170 = vmatmul.bf16.gmra.mxu0 %v419
  %v8171 = vpop.f32.mrf.mxu0
  %v8172 = vadd.f32 %v8143, %v8171
  %v8173 = vpop.f32.mrf.mxu0
  %v8174 = vadd.f32 %v8145, %v8173
  %8175 = vdwg.mxu0
  %8176 = vmatpush.bf16.msra.mxu0 %v4769
  %8177 = vmatpush.bf16.msra.mxu0 %v4753
  %8178 = vmatpush.bf16.msra.mxu0 %v4737
  %8179 = vmatpush.bf16.msra.mxu0 %v4721
  %8180 = vmatpush.bf16.msra.mxu0 %v4705
  %8181 = vmatpush.bf16.msra.mxu0 %v4689
  %8182 = vmatpush.bf16.msra.mxu0 %v4673
  %8183 = vmatpush.bf16.msra.mxu0 %v4657
  %8184 = vmatmul.bf16.gmra.mxu0 %v399
  %v8185 = vpop.f32.mrf.mxu0
  %v8186 = vadd.f32 %v8157, %v8185
  %v8187 = vpop.f32.mrf.mxu0
  %v8188 = vadd.f32 %v8159, %v8187
  %8189 = vmatmul.bf16.gmra.mxu0 %v406
  %v8190 = vpop.f32.mrf.mxu0
  %v8191 = vadd.f32 %v8162, %v8190
  %v8192 = vpop.f32.mrf.mxu0
  %v8193 = vadd.f32 %v8164, %v8192
  %8194 = vmatmul.bf16.gmra.mxu0 %v413
  %v8195 = vpop.f32.mrf.mxu0
  %v8196 = vadd.f32 %v8167, %v8195
  %v8197 = vpop.f32.mrf.mxu0
  %v8198 = vadd.f32 %v8169, %v8197
  %8199 = vmatmul.bf16.gmra.mxu0 %v420
  %v8200 = vpop.f32.mrf.mxu0
  %v8201 = vadd.f32 %v8172, %v8200
  %v8202 = vpop.f32.mrf.mxu0
  %v8203 = vadd.f32 %v8174, %v8202
  %8204 = vdwg.mxu0
  %8205 = vmatpush.bf16.msra.mxu0 %v4897
  %8206 = vmatpush.bf16.msra.mxu0 %v4881
  %8207 = vmatpush.bf16.msra.mxu0 %v4865
  %8208 = vmatpush.bf16.msra.mxu0 %v4849
  %8209 = vmatpush.bf16.msra.mxu0 %v4833
  %8210 = vmatpush.bf16.msra.mxu0 %v4817
  %8211 = vmatpush.bf16.msra.mxu0 %v4801
  %8212 = vmatpush.bf16.msra.mxu0 %v4785
  %8213 = vmatmul.bf16.gmra.mxu0 %v400
  %v8214 = vpop.f32.mrf.mxu0
  %v8215 = vadd.f32 %v8186, %v8214
  %v8216 = vpop.f32.mrf.mxu0
  %v8217 = vadd.f32 %v8188, %v8216
  %8218 = vmatmul.bf16.gmra.mxu0 %v407
  %v8219 = vpop.f32.mrf.mxu0
  %v8220 = vadd.f32 %v8191, %v8219
  %v8221 = vpop.f32.mrf.mxu0
  %v8222 = vadd.f32 %v8193, %v8221
  %8223 = vmatmul.bf16.gmra.mxu0 %v414
  %v8224 = vpop.f32.mrf.mxu0
  %v8225 = vadd.f32 %v8196, %v8224
  %v8226 = vpop.f32.mrf.mxu0
  %v8227 = vadd.f32 %v8198, %v8226
  %8228 = vmatmul.bf16.gmra.mxu0 %v421
  %v8229 = vpop.f32.mrf.mxu0
  %v8230 = vadd.f32 %v8201, %v8229
  %v8231 = vpop.f32.mrf.mxu0
  %v8232 = vadd.f32 %v8203, %v8231
  %8233 = vdwg.mxu0
  %8234 = vmatpush.bf16.msra.mxu0 %v4130
  %8235 = vmatpush.bf16.msra.mxu0 %v4114
  %8236 = vmatpush.bf16.msra.mxu0 %v4098
  %8237 = vmatpush.bf16.msra.mxu0 %v4082
  %8238 = vmatpush.bf16.msra.mxu0 %v4066
  %8239 = vmatpush.bf16.msra.mxu0 %v4050
  %8240 = vmatpush.bf16.msra.mxu0 %v4034
  %8241 = vmatpush.bf16.msra.mxu0 %v4018
  %8242 = vmatmul.bf16.gmra.mxu0 %v394
  %v8243 = vpop.f32.mrf.mxu0
  %v8244 = vadd.f32 0.0, %v8243
  %v8245 = vpop.f32.mrf.mxu0
  %v8246 = vadd.f32 0.0, %v8245
  %8247 = vmatmul.bf16.gmra.mxu0 %v401
  %v8248 = vpop.f32.mrf.mxu0
  %v8249 = vadd.f32 0.0, %v8248
  %v8250 = vpop.f32.mrf.mxu0
  %v8251 = vadd.f32 0.0, %v8250
  %8252 = vmatmul.bf16.gmra.mxu0 %v408
  %v8253 = vpop.f32.mrf.mxu0
  %v8254 = vadd.f32 0.0, %v8253
  %v8255 = vpop.f32.mrf.mxu0
  %v8256 = vadd.f32 0.0, %v8255
  %8257 = vmatmul.bf16.gmra.mxu0 %v415
  %v8258 = vpop.f32.mrf.mxu0
  %v8259 = vadd.f32 0.0, %v8258
  %v8260 = vpop.f32.mrf.mxu0
  %v8261 = vadd.f32 0.0, %v8260
  %8262 = vdwg.mxu0
  %8263 = vmatpush.bf16.msra.mxu0 %v4258
  %8264 = vmatpush.bf16.msra.mxu0 %v4242
  %8265 = vmatpush.bf16.msra.mxu0 %v4226
  %8266 = vmatpush.bf16.msra.mxu0 %v4210
  %8267 = vmatpush.bf16.msra.mxu0 %v4194
  %8268 = vmatpush.bf16.msra.mxu0 %v4178
  %8269 = vmatpush.bf16.msra.mxu0 %v4162
  %8270 = vmatpush.bf16.msra.mxu0 %v4146
  %8271 = vmatmul.bf16.gmra.mxu0 %v395
  %v8272 = vpop.f32.mrf.mxu0
  %v8273 = vadd.f32 %v8244, %v8272
  %v8274 = vpop.f32.mrf.mxu0
  %v8275 = vadd.f32 %v8246, %v8274
  %8276 = vmatmul.bf16.gmra.mxu0 %v402
  %v8277 = vpop.f32.mrf.mxu0
  %v8278 = vadd.f32 %v8249, %v8277
  %v8279 = vpop.f32.mrf.mxu0
  %v8280 = vadd.f32 %v8251, %v8279
  %8281 = vmatmul.bf16.gmra.mxu0 %v409
  %v8282 = vpop.f32.mrf.mxu0
  %v8283 = vadd.f32 %v8254, %v8282
  %v8284 = vpop.f32.mrf.mxu0
  %v8285 = vadd.f32 %v8256, %v8284
  %8286 = vmatmul.bf16.gmra.mxu0 %v416
  %v8287 = vpop.f32.mrf.mxu0
  %v8288 = vadd.f32 %v8259, %v8287
  %v8289 = vpop.f32.mrf.mxu0
  %v8290 = vadd.f32 %v8261, %v8289
  %8291 = vdwg.mxu0
  %8292 = vmatpush.bf16.msra.mxu0 %v4386
  %8293 = vmatpush.bf16.msra.mxu0 %v4370
  %8294 = vmatpush.bf16.msra.mxu0 %v4354
  %8295 = vmatpush.bf16.msra.mxu0 %v4338
  %8296 = vmatpush.bf16.msra.mxu0 %v4322
  %8297 = vmatpush.bf16.msra.mxu0 %v4306
  %8298 = vmatpush.bf16.msra.mxu0 %v4290
  %8299 = vmatpush.bf16.msra.mxu0 %v4274
  %8300 = vmatmul.bf16.gmra.mxu0 %v396
  %v8301 = vpop.f32.mrf.mxu0
  %v8302 = vadd.f32 %v8273, %v8301
  %v8303 = vpop.f32.mrf.mxu0
  %v8304 = vadd.f32 %v8275, %v8303
  %8305 = vmatmul.bf16.gmra.mxu0 %v403
  %v8306 = vpop.f32.mrf.mxu0
  %v8307 = vadd.f32 %v8278, %v8306
  %v8308 = vpop.f32.mrf.mxu0
  %v8309 = vadd.f32 %v8280, %v8308
  %8310 = vmatmul.bf16.gmra.mxu0 %v410
  %v8311 = vpop.f32.mrf.mxu0
  %v8312 = vadd.f32 %v8283, %v8311
  %v8313 = vpop.f32.mrf.mxu0
  %v8314 = vadd.f32 %v8285, %v8313
  %8315 = vmatmul.bf16.gmra.mxu0 %v417
  %v8316 = vpop.f32.mrf.mxu0
  %v8317 = vadd.f32 %v8288, %v8316
  %v8318 = vpop.f32.mrf.mxu0
  %v8319 = vadd.f32 %v8290, %v8318
  %8320 = vdwg.mxu0
  %8321 = vmatpush.bf16.msra.mxu0 %v4514
  %8322 = vmatpush.bf16.msra.mxu0 %v4498
  %8323 = vmatpush.bf16.msra.mxu0 %v4482
  %8324 = vmatpush.bf16.msra.mxu0 %v4466
  %8325 = vmatpush.bf16.msra.mxu0 %v4450
  %8326 = vmatpush.bf16.msra.mxu0 %v4434
  %8327 = vmatpush.bf16.msra.mxu0 %v4418
  %8328 = vmatpush.bf16.msra.mxu0 %v4402
  %8329 = vmatmul.bf16.gmra.mxu0 %v397
  %v8330 = vpop.f32.mrf.mxu0
  %v8331 = vadd.f32 %v8302, %v8330
  %v8332 = vpop.f32.mrf.mxu0
  %v8333 = vadd.f32 %v8304, %v8332
  %8334 = vmatmul.bf16.gmra.mxu0 %v404
  %v8335 = vpop.f32.mrf.mxu0
  %v8336 = vadd.f32 %v8307, %v8335
  %v8337 = vpop.f32.mrf.mxu0
  %v8338 = vadd.f32 %v8309, %v8337
  %8339 = vmatmul.bf16.gmra.mxu0 %v411
  %v8340 = vpop.f32.mrf.mxu0
  %v8341 = vadd.f32 %v8312, %v8340
  %v8342 = vpop.f32.mrf.mxu0
  %v8343 = vadd.f32 %v8314, %v8342
  %8344 = vmatmul.bf16.gmra.mxu0 %v418
  %v8345 = vpop.f32.mrf.mxu0
  %v8346 = vadd.f32 %v8317, %v8345
  %v8347 = vpop.f32.mrf.mxu0
  %v8348 = vadd.f32 %v8319, %v8347
  %8349 = vdwg.mxu0
  %8350 = vmatpush.bf16.msra.mxu0 %v4642
  %8351 = vmatpush.bf16.msra.mxu0 %v4626
  %8352 = vmatpush.bf16.msra.mxu0 %v4610
  %8353 = vmatpush.bf16.msra.mxu0 %v4594
  %8354 = vmatpush.bf16.msra.mxu0 %v4578
  %8355 = vmatpush.bf16.msra.mxu0 %v4562
  %8356 = vmatpush.bf16.msra.mxu0 %v4546
  %8357 = vmatpush.bf16.msra.mxu0 %v4530
  %8358 = vmatmul.bf16.gmra.mxu0 %v398
  %v8359 = vpop.f32.mrf.mxu0
  %v8360 = vadd.f32 %v8331, %v8359
  %v8361 = vpop.f32.mrf.mxu0
  %v8362 = vadd.f32 %v8333, %v8361
  %8363 = vmatmul.bf16.gmra.mxu0 %v405
  %v8364 = vpop.f32.mrf.mxu0
  %v8365 = vadd.f32 %v8336, %v8364
  %v8366 = vpop.f32.mrf.mxu0
  %v8367 = vadd.f32 %v8338, %v8366
  %8368 = vmatmul.bf16.gmra.mxu0 %v412
  %v8369 = vpop.f32.mrf.mxu0
  %v8370 = vadd.f32 %v8341, %v8369
  %v8371 = vpop.f32.mrf.mxu0
  %v8372 = vadd.f32 %v8343, %v8371
  %8373 = vmatmul.bf16.gmra.mxu0 %v419
  %v8374 = vpop.f32.mrf.mxu0
  %v8375 = vadd.f32 %v8346, %v8374
  %v8376 = vpop.f32.mrf.mxu0
  %v8377 = vadd.f32 %v8348, %v8376
  %8378 = vdwg.mxu0
  %8379 = vmatpush.bf16.msra.mxu0 %v4770
  %8380 = vmatpush.bf16.msra.mxu0 %v4754
  %8381 = vmatpush.bf16.msra.mxu0 %v4738
  %8382 = vmatpush.bf16.msra.mxu0 %v4722
  %8383 = vmatpush.bf16.msra.mxu0 %v4706
  %8384 = vmatpush.bf16.msra.mxu0 %v4690
  %8385 = vmatpush.bf16.msra.mxu0 %v4674
  %8386 = vmatpush.bf16.msra.mxu0 %v4658
  %8387 = vmatmul.bf16.gmra.mxu0 %v399
  %v8388 = vpop.f32.mrf.mxu0
  %v8389 = vadd.f32 %v8360, %v8388
  %v8390 = vpop.f32.mrf.mxu0
  %v8391 = vadd.f32 %v8362, %v8390
  %8392 = vmatmul.bf16.gmra.mxu0 %v406
  %v8393 = vpop.f32.mrf.mxu0
  %v8394 = vadd.f32 %v8365, %v8393
  %v8395 = vpop.f32.mrf.mxu0
  %v8396 = vadd.f32 %v8367, %v8395
  %8397 = vmatmul.bf16.gmra.mxu0 %v413
  %v8398 = vpop.f32.mrf.mxu0
  %v8399 = vadd.f32 %v8370, %v8398
  %v8400 = vpop.f32.mrf.mxu0
  %v8401 = vadd.f32 %v8372, %v8400
  %8402 = vmatmul.bf16.gmra.mxu0 %v420
  %v8403 = vpop.f32.mrf.mxu0
  %v8404 = vadd.f32 %v8375, %v8403
  %v8405 = vpop.f32.mrf.mxu0
  %v8406 = vadd.f32 %v8377, %v8405
  %8407 = vdwg.mxu0
  %8408 = vmatpush.bf16.msra.mxu0 %v4898
  %8409 = vmatpush.bf16.msra.mxu0 %v4882
  %8410 = vmatpush.bf16.msra.mxu0 %v4866
  %8411 = vmatpush.bf16.msra.mxu0 %v4850
  %8412 = vmatpush.bf16.msra.mxu0 %v4834
  %8413 = vmatpush.bf16.msra.mxu0 %v4818
  %8414 = vmatpush.bf16.msra.mxu0 %v4802
  %8415 = vmatpush.bf16.msra.mxu0 %v4786
  %8416 = vmatmul.bf16.gmra.mxu0 %v400
  %v8417 = vpop.f32.mrf.mxu0
  %v8418 = vadd.f32 %v8389, %v8417
  %v8419 = vpop.f32.mrf.mxu0
  %v8420 = vadd.f32 %v8391, %v8419
  %8421 = vmatmul.bf16.gmra.mxu0 %v407
  %v8422 = vpop.f32.mrf.mxu0
  %v8423 = vadd.f32 %v8394, %v8422
  %v8424 = vpop.f32.mrf.mxu0
  %v8425 = vadd.f32 %v8396, %v8424
  %8426 = vmatmul.bf16.gmra.mxu0 %v414
  %v8427 = vpop.f32.mrf.mxu0
  %v8428 = vadd.f32 %v8399, %v8427
  %v8429 = vpop.f32.mrf.mxu0
  %v8430 = vadd.f32 %v8401, %v8429
  %8431 = vmatmul.bf16.gmra.mxu0 %v421
  %v8432 = vpop.f32.mrf.mxu0
  %v8433 = vadd.f32 %v8404, %v8432
  %v8434 = vpop.f32.mrf.mxu0
  %v8435 = vadd.f32 %v8406, %v8434
  %8436 = vdwg.mxu0
  %8437 = vmatpush.bf16.msra.mxu0 %v4131
  %8438 = vmatpush.bf16.msra.mxu0 %v4115
  %8439 = vmatpush.bf16.msra.mxu0 %v4099
  %8440 = vmatpush.bf16.msra.mxu0 %v4083
  %8441 = vmatpush.bf16.msra.mxu0 %v4067
  %8442 = vmatpush.bf16.msra.mxu0 %v4051
  %8443 = vmatpush.bf16.msra.mxu0 %v4035
  %8444 = vmatpush.bf16.msra.mxu0 %v4019
  %8445 = vmatmul.bf16.gmra.mxu0 %v394
  %v8446 = vpop.f32.mrf.mxu0
  %v8447 = vadd.f32 0.0, %v8446
  %v8448 = vpop.f32.mrf.mxu0
  %v8449 = vadd.f32 0.0, %v8448
  %8450 = vmatmul.bf16.gmra.mxu0 %v401
  %v8451 = vpop.f32.mrf.mxu0
  %v8452 = vadd.f32 0.0, %v8451
  %v8453 = vpop.f32.mrf.mxu0
  %v8454 = vadd.f32 0.0, %v8453
  %8455 = vmatmul.bf16.gmra.mxu0 %v408
  %v8456 = vpop.f32.mrf.mxu0
  %v8457 = vadd.f32 0.0, %v8456
  %v8458 = vpop.f32.mrf.mxu0
  %v8459 = vadd.f32 0.0, %v8458
  %8460 = vmatmul.bf16.gmra.mxu0 %v415
  %v8461 = vpop.f32.mrf.mxu0
  %v8462 = vadd.f32 0.0, %v8461
  %v8463 = vpop.f32.mrf.mxu0
  %v8464 = vadd.f32 0.0, %v8463
  %8465 = vdwg.mxu0
  %8466 = vmatpush.bf16.msra.mxu0 %v4259
  %8467 = vmatpush.bf16.msra.mxu0 %v4243
  %8468 = vmatpush.bf16.msra.mxu0 %v4227
  %8469 = vmatpush.bf16.msra.mxu0 %v4211
  %8470 = vmatpush.bf16.msra.mxu0 %v4195
  %8471 = vmatpush.bf16.msra.mxu0 %v4179
  %8472 = vmatpush.bf16.msra.mxu0 %v4163
  %8473 = vmatpush.bf16.msra.mxu0 %v4147
  %8474 = vmatmul.bf16.gmra.mxu0 %v395
  %v8475 = vpop.f32.mrf.mxu0
  %v8476 = vadd.f32 %v8447, %v8475
  %v8477 = vpop.f32.mrf.mxu0
  %v8478 = vadd.f32 %v8449, %v8477
  %8479 = vmatmul.bf16.gmra.mxu0 %v402
  %v8480 = vpop.f32.mrf.mxu0
  %v8481 = vadd.f32 %v8452, %v8480
  %v8482 = vpop.f32.mrf.mxu0
  %v8483 = vadd.f32 %v8454, %v8482
  %8484 = vmatmul.bf16.gmra.mxu0 %v409
  %v8485 = vpop.f32.mrf.mxu0
  %v8486 = vadd.f32 %v8457, %v8485
  %v8487 = vpop.f32.mrf.mxu0
  %v8488 = vadd.f32 %v8459, %v8487
  %8489 = vmatmul.bf16.gmra.mxu0 %v416
  %v8490 = vpop.f32.mrf.mxu0
  %v8491 = vadd.f32 %v8462, %v8490
  %v8492 = vpop.f32.mrf.mxu0
  %v8493 = vadd.f32 %v8464, %v8492
  %8494 = vdwg.mxu0
  %8495 = vmatpush.bf16.msra.mxu0 %v4387
  %8496 = vmatpush.bf16.msra.mxu0 %v4371
  %8497 = vmatpush.bf16.msra.mxu0 %v4355
  %8498 = vmatpush.bf16.msra.mxu0 %v4339
  %8499 = vmatpush.bf16.msra.mxu0 %v4323
  %8500 = vmatpush.bf16.msra.mxu0 %v4307
  %8501 = vmatpush.bf16.msra.mxu0 %v4291
  %8502 = vmatpush.bf16.msra.mxu0 %v4275
  %8503 = vmatmul.bf16.gmra.mxu0 %v396
  %v8504 = vpop.f32.mrf.mxu0
  %v8505 = vadd.f32 %v8476, %v8504
  %v8506 = vpop.f32.mrf.mxu0
  %v8507 = vadd.f32 %v8478, %v8506
  %8508 = vmatmul.bf16.gmra.mxu0 %v403
  %v8509 = vpop.f32.mrf.mxu0
  %v8510 = vadd.f32 %v8481, %v8509
  %v8511 = vpop.f32.mrf.mxu0
  %v8512 = vadd.f32 %v8483, %v8511
  %8513 = vmatmul.bf16.gmra.mxu0 %v410
  %v8514 = vpop.f32.mrf.mxu0
  %v8515 = vadd.f32 %v8486, %v8514
  %v8516 = vpop.f32.mrf.mxu0
  %v8517 = vadd.f32 %v8488, %v8516
  %8518 = vmatmul.bf16.gmra.mxu0 %v417
  %v8519 = vpop.f32.mrf.mxu0
  %v8520 = vadd.f32 %v8491, %v8519
  %v8521 = vpop.f32.mrf.mxu0
  %v8522 = vadd.f32 %v8493, %v8521
  %8523 = vdwg.mxu0
  %8524 = vmatpush.bf16.msra.mxu0 %v4515
  %8525 = vmatpush.bf16.msra.mxu0 %v4499
  %8526 = vmatpush.bf16.msra.mxu0 %v4483
  %8527 = vmatpush.bf16.msra.mxu0 %v4467
  %8528 = vmatpush.bf16.msra.mxu0 %v4451
  %8529 = vmatpush.bf16.msra.mxu0 %v4435
  %8530 = vmatpush.bf16.msra.mxu0 %v4419
  %8531 = vmatpush.bf16.msra.mxu0 %v4403
  %8532 = vmatmul.bf16.gmra.mxu0 %v397
  %v8533 = vpop.f32.mrf.mxu0
  %v8534 = vadd.f32 %v8505, %v8533
  %v8535 = vpop.f32.mrf.mxu0
  %v8536 = vadd.f32 %v8507, %v8535
  %8537 = vmatmul.bf16.gmra.mxu0 %v404
  %v8538 = vpop.f32.mrf.mxu0
  %v8539 = vadd.f32 %v8510, %v8538
  %v8540 = vpop.f32.mrf.mxu0
  %v8541 = vadd.f32 %v8512, %v8540
  %8542 = vmatmul.bf16.gmra.mxu0 %v411
  %v8543 = vpop.f32.mrf.mxu0
  %v8544 = vadd.f32 %v8515, %v8543
  %v8545 = vpop.f32.mrf.mxu0
  %v8546 = vadd.f32 %v8517, %v8545
  %8547 = vmatmul.bf16.gmra.mxu0 %v418
  %v8548 = vpop.f32.mrf.mxu0
  %v8549 = vadd.f32 %v8520, %v8548
  %v8550 = vpop.f32.mrf.mxu0
  %v8551 = vadd.f32 %v8522, %v8550
  %8552 = vdwg.mxu0
  %8553 = vmatpush.bf16.msra.mxu0 %v4643
  %8554 = vmatpush.bf16.msra.mxu0 %v4627
  %8555 = vmatpush.bf16.msra.mxu0 %v4611
  %8556 = vmatpush.bf16.msra.mxu0 %v4595
  %8557 = vmatpush.bf16.msra.mxu0 %v4579
  %8558 = vmatpush.bf16.msra.mxu0 %v4563
  %8559 = vmatpush.bf16.msra.mxu0 %v4547
  %8560 = vmatpush.bf16.msra.mxu0 %v4531
  %8561 = vmatmul.bf16.gmra.mxu0 %v398
  %v8562 = vpop.f32.mrf.mxu0
  %v8563 = vadd.f32 %v8534, %v8562
  %v8564 = vpop.f32.mrf.mxu0
  %v8565 = vadd.f32 %v8536, %v8564
  %8566 = vmatmul.bf16.gmra.mxu0 %v405
  %v8567 = vpop.f32.mrf.mxu0
  %v8568 = vadd.f32 %v8539, %v8567
  %v8569 = vpop.f32.mrf.mxu0
  %v8570 = vadd.f32 %v8541, %v8569
  %8571 = vmatmul.bf16.gmra.mxu0 %v412
  %v8572 = vpop.f32.mrf.mxu0
  %v8573 = vadd.f32 %v8544, %v8572
  %v8574 = vpop.f32.mrf.mxu0
  %v8575 = vadd.f32 %v8546, %v8574
  %8576 = vmatmul.bf16.gmra.mxu0 %v419
  %v8577 = vpop.f32.mrf.mxu0
  %v8578 = vadd.f32 %v8549, %v8577
  %v8579 = vpop.f32.mrf.mxu0
  %v8580 = vadd.f32 %v8551, %v8579
  %8581 = vdwg.mxu0
  %8582 = vmatpush.bf16.msra.mxu0 %v4771
  %8583 = vmatpush.bf16.msra.mxu0 %v4755
  %8584 = vmatpush.bf16.msra.mxu0 %v4739
  %8585 = vmatpush.bf16.msra.mxu0 %v4723
  %8586 = vmatpush.bf16.msra.mxu0 %v4707
  %8587 = vmatpush.bf16.msra.mxu0 %v4691
  %8588 = vmatpush.bf16.msra.mxu0 %v4675
  %8589 = vmatpush.bf16.msra.mxu0 %v4659
  %8590 = vmatmul.bf16.gmra.mxu0 %v399
  %v8591 = vpop.f32.mrf.mxu0
  %v8592 = vadd.f32 %v8563, %v8591
  %v8593 = vpop.f32.mrf.mxu0
  %v8594 = vadd.f32 %v8565, %v8593
  %8595 = vmatmul.bf16.gmra.mxu0 %v406
  %v8596 = vpop.f32.mrf.mxu0
  %v8597 = vadd.f32 %v8568, %v8596
  %v8598 = vpop.f32.mrf.mxu0
  %v8599 = vadd.f32 %v8570, %v8598
  %8600 = vmatmul.bf16.gmra.mxu0 %v413
  %v8601 = vpop.f32.mrf.mxu0
  %v8602 = vadd.f32 %v8573, %v8601
  %v8603 = vpop.f32.mrf.mxu0
  %v8604 = vadd.f32 %v8575, %v8603
  %8605 = vmatmul.bf16.gmra.mxu0 %v420
  %v8606 = vpop.f32.mrf.mxu0
  %v8607 = vadd.f32 %v8578, %v8606
  %v8608 = vpop.f32.mrf.mxu0
  %v8609 = vadd.f32 %v8580, %v8608
  %8610 = vdwg.mxu0
  %8611 = vmatpush.bf16.msra.mxu0 %v4899
  %8612 = vmatpush.bf16.msra.mxu0 %v4883
  %8613 = vmatpush.bf16.msra.mxu0 %v4867
  %8614 = vmatpush.bf16.msra.mxu0 %v4851
  %8615 = vmatpush.bf16.msra.mxu0 %v4835
  %8616 = vmatpush.bf16.msra.mxu0 %v4819
  %8617 = vmatpush.bf16.msra.mxu0 %v4803
  %8618 = vmatpush.bf16.msra.mxu0 %v4787
  %8619 = vmatmul.bf16.gmra.mxu0 %v400
  %v8620 = vpop.f32.mrf.mxu0
  %v8621 = vadd.f32 %v8592, %v8620
  %v8622 = vpop.f32.mrf.mxu0
  %v8623 = vadd.f32 %v8594, %v8622
  %8624 = vmatmul.bf16.gmra.mxu0 %v407
  %v8625 = vpop.f32.mrf.mxu0
  %v8626 = vadd.f32 %v8597, %v8625
  %v8627 = vpop.f32.mrf.mxu0
  %v8628 = vadd.f32 %v8599, %v8627
  %8629 = vmatmul.bf16.gmra.mxu0 %v414
  %v8630 = vpop.f32.mrf.mxu0
  %v8631 = vadd.f32 %v8602, %v8630
  %v8632 = vpop.f32.mrf.mxu0
  %v8633 = vadd.f32 %v8604, %v8632
  %8634 = vmatmul.bf16.gmra.mxu0 %v421
  %v8635 = vpop.f32.mrf.mxu0
  %v8636 = vadd.f32 %v8607, %v8635
  %v8637 = vpop.f32.mrf.mxu0
  %v8638 = vadd.f32 %v8609, %v8637
  %8639 = vdwg.mxu0
  %8640 = vmatpush.bf16.msra.mxu0 %v4132
  %8641 = vmatpush.bf16.msra.mxu0 %v4116
  %8642 = vmatpush.bf16.msra.mxu0 %v4100
  %8643 = vmatpush.bf16.msra.mxu0 %v4084
  %8644 = vmatpush.bf16.msra.mxu0 %v4068
  %8645 = vmatpush.bf16.msra.mxu0 %v4052
  %8646 = vmatpush.bf16.msra.mxu0 %v4036
  %8647 = vmatpush.bf16.msra.mxu0 %v4020
  %8648 = vmatmul.bf16.gmra.mxu0 %v394
  %v8649 = vpop.f32.mrf.mxu0
  %v8650 = vadd.f32 0.0, %v8649
  %v8651 = vpop.f32.mrf.mxu0
  %v8652 = vadd.f32 0.0, %v8651
  %8653 = vmatmul.bf16.gmra.mxu0 %v401
  %v8654 = vpop.f32.mrf.mxu0
  %v8655 = vadd.f32 0.0, %v8654
  %v8656 = vpop.f32.mrf.mxu0
  %v8657 = vadd.f32 0.0, %v8656
  %8658 = vmatmul.bf16.gmra.mxu0 %v408
  %v8659 = vpop.f32.mrf.mxu0
  %v8660 = vadd.f32 0.0, %v8659
  %v8661 = vpop.f32.mrf.mxu0
  %v8662 = vadd.f32 0.0, %v8661
  %8663 = vmatmul.bf16.gmra.mxu0 %v415
  %v8664 = vpop.f32.mrf.mxu0
  %v8665 = vadd.f32 0.0, %v8664
  %v8666 = vpop.f32.mrf.mxu0
  %v8667 = vadd.f32 0.0, %v8666
  %8668 = vdwg.mxu0
  %8669 = vmatpush.bf16.msra.mxu0 %v4260
  %8670 = vmatpush.bf16.msra.mxu0 %v4244
  %8671 = vmatpush.bf16.msra.mxu0 %v4228
  %8672 = vmatpush.bf16.msra.mxu0 %v4212
  %8673 = vmatpush.bf16.msra.mxu0 %v4196
  %8674 = vmatpush.bf16.msra.mxu0 %v4180
  %8675 = vmatpush.bf16.msra.mxu0 %v4164
  %8676 = vmatpush.bf16.msra.mxu0 %v4148
  %8677 = vmatmul.bf16.gmra.mxu0 %v395
  %v8678 = vpop.f32.mrf.mxu0
  %v8679 = vadd.f32 %v8650, %v8678
  %v8680 = vpop.f32.mrf.mxu0
  %v8681 = vadd.f32 %v8652, %v8680
  %8682 = vmatmul.bf16.gmra.mxu0 %v402
  %v8683 = vpop.f32.mrf.mxu0
  %v8684 = vadd.f32 %v8655, %v8683
  %v8685 = vpop.f32.mrf.mxu0
  %v8686 = vadd.f32 %v8657, %v8685
  %8687 = vmatmul.bf16.gmra.mxu0 %v409
  %v8688 = vpop.f32.mrf.mxu0
  %v8689 = vadd.f32 %v8660, %v8688
  %v8690 = vpop.f32.mrf.mxu0
  %v8691 = vadd.f32 %v8662, %v8690
  %8692 = vmatmul.bf16.gmra.mxu0 %v416
  %v8693 = vpop.f32.mrf.mxu0
  %v8694 = vadd.f32 %v8665, %v8693
  %v8695 = vpop.f32.mrf.mxu0
  %v8696 = vadd.f32 %v8667, %v8695
  %8697 = vdwg.mxu0
  %8698 = vmatpush.bf16.msra.mxu0 %v4388
  %8699 = vmatpush.bf16.msra.mxu0 %v4372
  %8700 = vmatpush.bf16.msra.mxu0 %v4356
  %8701 = vmatpush.bf16.msra.mxu0 %v4340
  %8702 = vmatpush.bf16.msra.mxu0 %v4324
  %8703 = vmatpush.bf16.msra.mxu0 %v4308
  %8704 = vmatpush.bf16.msra.mxu0 %v4292
  %8705 = vmatpush.bf16.msra.mxu0 %v4276
  %8706 = vmatmul.bf16.gmra.mxu0 %v396
  %v8707 = vpop.f32.mrf.mxu0
  %v8708 = vadd.f32 %v8679, %v8707
  %v8709 = vpop.f32.mrf.mxu0
  %v8710 = vadd.f32 %v8681, %v8709
  %8711 = vmatmul.bf16.gmra.mxu0 %v403
  %v8712 = vpop.f32.mrf.mxu0
  %v8713 = vadd.f32 %v8684, %v8712
  %v8714 = vpop.f32.mrf.mxu0
  %v8715 = vadd.f32 %v8686, %v8714
  %8716 = vmatmul.bf16.gmra.mxu0 %v410
  %v8717 = vpop.f32.mrf.mxu0
  %v8718 = vadd.f32 %v8689, %v8717
  %v8719 = vpop.f32.mrf.mxu0
  %v8720 = vadd.f32 %v8691, %v8719
  %8721 = vmatmul.bf16.gmra.mxu0 %v417
  %v8722 = vpop.f32.mrf.mxu0
  %v8723 = vadd.f32 %v8694, %v8722
  %v8724 = vpop.f32.mrf.mxu0
  %v8725 = vadd.f32 %v8696, %v8724
  %8726 = vdwg.mxu0
  %8727 = vmatpush.bf16.msra.mxu0 %v4516
  %8728 = vmatpush.bf16.msra.mxu0 %v4500
  %8729 = vmatpush.bf16.msra.mxu0 %v4484
  %8730 = vmatpush.bf16.msra.mxu0 %v4468
  %8731 = vmatpush.bf16.msra.mxu0 %v4452
  %8732 = vmatpush.bf16.msra.mxu0 %v4436
  %8733 = vmatpush.bf16.msra.mxu0 %v4420
  %8734 = vmatpush.bf16.msra.mxu0 %v4404
  %8735 = vmatmul.bf16.gmra.mxu0 %v397
  %v8736 = vpop.f32.mrf.mxu0
  %v8737 = vadd.f32 %v8708, %v8736
  %v8738 = vpop.f32.mrf.mxu0
  %v8739 = vadd.f32 %v8710, %v8738
  %8740 = vmatmul.bf16.gmra.mxu0 %v404
  %v8741 = vpop.f32.mrf.mxu0
  %v8742 = vadd.f32 %v8713, %v8741
  %v8743 = vpop.f32.mrf.mxu0
  %v8744 = vadd.f32 %v8715, %v8743
  %8745 = vmatmul.bf16.gmra.mxu0 %v411
  %v8746 = vpop.f32.mrf.mxu0
  %v8747 = vadd.f32 %v8718, %v8746
  %v8748 = vpop.f32.mrf.mxu0
  %v8749 = vadd.f32 %v8720, %v8748
  %8750 = vmatmul.bf16.gmra.mxu0 %v418
  %v8751 = vpop.f32.mrf.mxu0
  %v8752 = vadd.f32 %v8723, %v8751
  %v8753 = vpop.f32.mrf.mxu0
  %v8754 = vadd.f32 %v8725, %v8753
  %8755 = vdwg.mxu0
  %8756 = vmatpush.bf16.msra.mxu0 %v4644
  %8757 = vmatpush.bf16.msra.mxu0 %v4628
  %8758 = vmatpush.bf16.msra.mxu0 %v4612
  %8759 = vmatpush.bf16.msra.mxu0 %v4596
  %8760 = vmatpush.bf16.msra.mxu0 %v4580
  %8761 = vmatpush.bf16.msra.mxu0 %v4564
  %8762 = vmatpush.bf16.msra.mxu0 %v4548
  %8763 = vmatpush.bf16.msra.mxu0 %v4532
  %8764 = vmatmul.bf16.gmra.mxu0 %v398
  %v8765 = vpop.f32.mrf.mxu0
  %v8766 = vadd.f32 %v8737, %v8765
  %v8767 = vpop.f32.mrf.mxu0
  %v8768 = vadd.f32 %v8739, %v8767
  %8769 = vmatmul.bf16.gmra.mxu0 %v405
  %v8770 = vpop.f32.mrf.mxu0
  %v8771 = vadd.f32 %v8742, %v8770
  %v8772 = vpop.f32.mrf.mxu0
  %v8773 = vadd.f32 %v8744, %v8772
  %8774 = vmatmul.bf16.gmra.mxu0 %v412
  %v8775 = vpop.f32.mrf.mxu0
  %v8776 = vadd.f32 %v8747, %v8775
  %v8777 = vpop.f32.mrf.mxu0
  %v8778 = vadd.f32 %v8749, %v8777
  %8779 = vmatmul.bf16.gmra.mxu0 %v419
  %v8780 = vpop.f32.mrf.mxu0
  %v8781 = vadd.f32 %v8752, %v8780
  %v8782 = vpop.f32.mrf.mxu0
  %v8783 = vadd.f32 %v8754, %v8782
  %8784 = vdwg.mxu0
  %8785 = vmatpush.bf16.msra.mxu0 %v4772
  %8786 = vmatpush.bf16.msra.mxu0 %v4756
  %8787 = vmatpush.bf16.msra.mxu0 %v4740
  %8788 = vmatpush.bf16.msra.mxu0 %v4724
  %8789 = vmatpush.bf16.msra.mxu0 %v4708
  %8790 = vmatpush.bf16.msra.mxu0 %v4692
  %8791 = vmatpush.bf16.msra.mxu0 %v4676
  %8792 = vmatpush.bf16.msra.mxu0 %v4660
  %8793 = vmatmul.bf16.gmra.mxu0 %v399
  %v8794 = vpop.f32.mrf.mxu0
  %v8795 = vadd.f32 %v8766, %v8794
  %v8796 = vpop.f32.mrf.mxu0
  %v8797 = vadd.f32 %v8768, %v8796
  %8798 = vmatmul.bf16.gmra.mxu0 %v406
  %v8799 = vpop.f32.mrf.mxu0
  %v8800 = vadd.f32 %v8771, %v8799
  %v8801 = vpop.f32.mrf.mxu0
  %v8802 = vadd.f32 %v8773, %v8801
  %8803 = vmatmul.bf16.gmra.mxu0 %v413
  %v8804 = vpop.f32.mrf.mxu0
  %v8805 = vadd.f32 %v8776, %v8804
  %v8806 = vpop.f32.mrf.mxu0
  %v8807 = vadd.f32 %v8778, %v8806
  %8808 = vmatmul.bf16.gmra.mxu0 %v420
  %v8809 = vpop.f32.mrf.mxu0
  %v8810 = vadd.f32 %v8781, %v8809
  %v8811 = vpop.f32.mrf.mxu0
  %v8812 = vadd.f32 %v8783, %v8811
  %8813 = vdwg.mxu0
  %8814 = vmatpush.bf16.msra.mxu0 %v4900
  %8815 = vmatpush.bf16.msra.mxu0 %v4884
  %8816 = vmatpush.bf16.msra.mxu0 %v4868
  %8817 = vmatpush.bf16.msra.mxu0 %v4852
  %8818 = vmatpush.bf16.msra.mxu0 %v4836
  %8819 = vmatpush.bf16.msra.mxu0 %v4820
  %8820 = vmatpush.bf16.msra.mxu0 %v4804
  %8821 = vmatpush.bf16.msra.mxu0 %v4788
  %8822 = vmatmul.bf16.gmra.mxu0 %v400
  %v8823 = vpop.f32.mrf.mxu0
  %v8824 = vadd.f32 %v8795, %v8823
  %v8825 = vpop.f32.mrf.mxu0
  %v8826 = vadd.f32 %v8797, %v8825
  %8827 = vmatmul.bf16.gmra.mxu0 %v407
  %v8828 = vpop.f32.mrf.mxu0
  %v8829 = vadd.f32 %v8800, %v8828
  %v8830 = vpop.f32.mrf.mxu0
  %v8831 = vadd.f32 %v8802, %v8830
  %8832 = vmatmul.bf16.gmra.mxu0 %v414
  %v8833 = vpop.f32.mrf.mxu0
  %v8834 = vadd.f32 %v8805, %v8833
  %v8835 = vpop.f32.mrf.mxu0
  %v8836 = vadd.f32 %v8807, %v8835
  %8837 = vmatmul.bf16.gmra.mxu0 %v421
  %v8838 = vpop.f32.mrf.mxu0
  %v8839 = vadd.f32 %v8810, %v8838
  %v8840 = vpop.f32.mrf.mxu0
  %v8841 = vadd.f32 %v8812, %v8840
  %8842 = vdwg.mxu0
  %8843 = vmatpush.bf16.msra.mxu0 %v4133
  %8844 = vmatpush.bf16.msra.mxu0 %v4117
  %8845 = vmatpush.bf16.msra.mxu0 %v4101
  %8846 = vmatpush.bf16.msra.mxu0 %v4085
  %8847 = vmatpush.bf16.msra.mxu0 %v4069
  %8848 = vmatpush.bf16.msra.mxu0 %v4053
  %8849 = vmatpush.bf16.msra.mxu0 %v4037
  %8850 = vmatpush.bf16.msra.mxu0 %v4021
  %8851 = vmatmul.bf16.gmra.mxu0 %v394
  %v8852 = vpop.f32.mrf.mxu0
  %v8853 = vadd.f32 0.0, %v8852
  %v8854 = vpop.f32.mrf.mxu0
  %v8855 = vadd.f32 0.0, %v8854
  %8856 = vmatmul.bf16.gmra.mxu0 %v401
  %v8857 = vpop.f32.mrf.mxu0
  %v8858 = vadd.f32 0.0, %v8857
  %v8859 = vpop.f32.mrf.mxu0
  %v8860 = vadd.f32 0.0, %v8859
  %8861 = vmatmul.bf16.gmra.mxu0 %v408
  %v8862 = vpop.f32.mrf.mxu0
  %v8863 = vadd.f32 0.0, %v8862
  %v8864 = vpop.f32.mrf.mxu0
  %v8865 = vadd.f32 0.0, %v8864
  %8866 = vmatmul.bf16.gmra.mxu0 %v415
  %v8867 = vpop.f32.mrf.mxu0
  %v8868 = vadd.f32 0.0, %v8867
  %v8869 = vpop.f32.mrf.mxu0
  %v8870 = vadd.f32 0.0, %v8869
  %8871 = vdwg.mxu0
  %8872 = vmatpush.bf16.msra.mxu0 %v4261
  %8873 = vmatpush.bf16.msra.mxu0 %v4245
  %8874 = vmatpush.bf16.msra.mxu0 %v4229
  %8875 = vmatpush.bf16.msra.mxu0 %v4213
  %8876 = vmatpush.bf16.msra.mxu0 %v4197
  %8877 = vmatpush.bf16.msra.mxu0 %v4181
  %8878 = vmatpush.bf16.msra.mxu0 %v4165
  %8879 = vmatpush.bf16.msra.mxu0 %v4149
  %8880 = vmatmul.bf16.gmra.mxu0 %v395
  %v8881 = vpop.f32.mrf.mxu0
  %v8882 = vadd.f32 %v8853, %v8881
  %v8883 = vpop.f32.mrf.mxu0
  %v8884 = vadd.f32 %v8855, %v8883
  %8885 = vmatmul.bf16.gmra.mxu0 %v402
  %v8886 = vpop.f32.mrf.mxu0
  %v8887 = vadd.f32 %v8858, %v8886
  %v8888 = vpop.f32.mrf.mxu0
  %v8889 = vadd.f32 %v8860, %v8888
  %8890 = vmatmul.bf16.gmra.mxu0 %v409
  %v8891 = vpop.f32.mrf.mxu0
  %v8892 = vadd.f32 %v8863, %v8891
  %v8893 = vpop.f32.mrf.mxu0
  %v8894 = vadd.f32 %v8865, %v8893
  %8895 = vmatmul.bf16.gmra.mxu0 %v416
  %v8896 = vpop.f32.mrf.mxu0
  %v8897 = vadd.f32 %v8868, %v8896
  %v8898 = vpop.f32.mrf.mxu0
  %v8899 = vadd.f32 %v8870, %v8898
  %8900 = vdwg.mxu0
  %8901 = vmatpush.bf16.msra.mxu0 %v4389
  %8902 = vmatpush.bf16.msra.mxu0 %v4373
  %8903 = vmatpush.bf16.msra.mxu0 %v4357
  %8904 = vmatpush.bf16.msra.mxu0 %v4341
  %8905 = vmatpush.bf16.msra.mxu0 %v4325
  %8906 = vmatpush.bf16.msra.mxu0 %v4309
  %8907 = vmatpush.bf16.msra.mxu0 %v4293
  %8908 = vmatpush.bf16.msra.mxu0 %v4277
  %8909 = vmatmul.bf16.gmra.mxu0 %v396
  %v8910 = vpop.f32.mrf.mxu0
  %v8911 = vadd.f32 %v8882, %v8910
  %v8912 = vpop.f32.mrf.mxu0
  %v8913 = vadd.f32 %v8884, %v8912
  %8914 = vmatmul.bf16.gmra.mxu0 %v403
  %v8915 = vpop.f32.mrf.mxu0
  %v8916 = vadd.f32 %v8887, %v8915
  %v8917 = vpop.f32.mrf.mxu0
  %v8918 = vadd.f32 %v8889, %v8917
  %8919 = vmatmul.bf16.gmra.mxu0 %v410
  %v8920 = vpop.f32.mrf.mxu0
  %v8921 = vadd.f32 %v8892, %v8920
  %v8922 = vpop.f32.mrf.mxu0
  %v8923 = vadd.f32 %v8894, %v8922
  %8924 = vmatmul.bf16.gmra.mxu0 %v417
  %v8925 = vpop.f32.mrf.mxu0
  %v8926 = vadd.f32 %v8897, %v8925
  %v8927 = vpop.f32.mrf.mxu0
  %v8928 = vadd.f32 %v8899, %v8927
  %8929 = vdwg.mxu0
  %8930 = vmatpush.bf16.msra.mxu0 %v4517
  %8931 = vmatpush.bf16.msra.mxu0 %v4501
  %8932 = vmatpush.bf16.msra.mxu0 %v4485
  %8933 = vmatpush.bf16.msra.mxu0 %v4469
  %8934 = vmatpush.bf16.msra.mxu0 %v4453
  %8935 = vmatpush.bf16.msra.mxu0 %v4437
  %8936 = vmatpush.bf16.msra.mxu0 %v4421
  %8937 = vmatpush.bf16.msra.mxu0 %v4405
  %8938 = vmatmul.bf16.gmra.mxu0 %v397
  %v8939 = vpop.f32.mrf.mxu0
  %v8940 = vadd.f32 %v8911, %v8939
  %v8941 = vpop.f32.mrf.mxu0
  %v8942 = vadd.f32 %v8913, %v8941
  %8943 = vmatmul.bf16.gmra.mxu0 %v404
  %v8944 = vpop.f32.mrf.mxu0
  %v8945 = vadd.f32 %v8916, %v8944
  %v8946 = vpop.f32.mrf.mxu0
  %v8947 = vadd.f32 %v8918, %v8946
  %8948 = vmatmul.bf16.gmra.mxu0 %v411
  %v8949 = vpop.f32.mrf.mxu0
  %v8950 = vadd.f32 %v8921, %v8949
  %v8951 = vpop.f32.mrf.mxu0
  %v8952 = vadd.f32 %v8923, %v8951
  %8953 = vmatmul.bf16.gmra.mxu0 %v418
  %v8954 = vpop.f32.mrf.mxu0
  %v8955 = vadd.f32 %v8926, %v8954
  %v8956 = vpop.f32.mrf.mxu0
  %v8957 = vadd.f32 %v8928, %v8956
  %8958 = vdwg.mxu0
  %8959 = vmatpush.bf16.msra.mxu0 %v4645
  %8960 = vmatpush.bf16.msra.mxu0 %v4629
  %8961 = vmatpush.bf16.msra.mxu0 %v4613
  %8962 = vmatpush.bf16.msra.mxu0 %v4597
  %8963 = vmatpush.bf16.msra.mxu0 %v4581
  %8964 = vmatpush.bf16.msra.mxu0 %v4565
  %8965 = vmatpush.bf16.msra.mxu0 %v4549
  %8966 = vmatpush.bf16.msra.mxu0 %v4533
  %8967 = vmatmul.bf16.gmra.mxu0 %v398
  %v8968 = vpop.f32.mrf.mxu0
  %v8969 = vadd.f32 %v8940, %v8968
  %v8970 = vpop.f32.mrf.mxu0
  %v8971 = vadd.f32 %v8942, %v8970
  %8972 = vmatmul.bf16.gmra.mxu0 %v405
  %v8973 = vpop.f32.mrf.mxu0
  %v8974 = vadd.f32 %v8945, %v8973
  %v8975 = vpop.f32.mrf.mxu0
  %v8976 = vadd.f32 %v8947, %v8975
  %8977 = vmatmul.bf16.gmra.mxu0 %v412
  %v8978 = vpop.f32.mrf.mxu0
  %v8979 = vadd.f32 %v8950, %v8978
  %v8980 = vpop.f32.mrf.mxu0
  %v8981 = vadd.f32 %v8952, %v8980
  %8982 = vmatmul.bf16.gmra.mxu0 %v419
  %v8983 = vpop.f32.mrf.mxu0
  %v8984 = vadd.f32 %v8955, %v8983
  %v8985 = vpop.f32.mrf.mxu0
  %v8986 = vadd.f32 %v8957, %v8985
  %8987 = vdwg.mxu0
  %8988 = vmatpush.bf16.msra.mxu0 %v4773
  %8989 = vmatpush.bf16.msra.mxu0 %v4757
  %8990 = vmatpush.bf16.msra.mxu0 %v4741
  %8991 = vmatpush.bf16.msra.mxu0 %v4725
  %8992 = vmatpush.bf16.msra.mxu0 %v4709
  %8993 = vmatpush.bf16.msra.mxu0 %v4693
  %8994 = vmatpush.bf16.msra.mxu0 %v4677
  %8995 = vmatpush.bf16.msra.mxu0 %v4661
  %8996 = vmatmul.bf16.gmra.mxu0 %v399
  %v8997 = vpop.f32.mrf.mxu0
  %v8998 = vadd.f32 %v8969, %v8997
  %v8999 = vpop.f32.mrf.mxu0
  %v9000 = vadd.f32 %v8971, %v8999
  %9001 = vmatmul.bf16.gmra.mxu0 %v406
  %v9002 = vpop.f32.mrf.mxu0
  %v9003 = vadd.f32 %v8974, %v9002
  %v9004 = vpop.f32.mrf.mxu0
  %v9005 = vadd.f32 %v8976, %v9004
  %9006 = vmatmul.bf16.gmra.mxu0 %v413
  %v9007 = vpop.f32.mrf.mxu0
  %v9008 = vadd.f32 %v8979, %v9007
  %v9009 = vpop.f32.mrf.mxu0
  %v9010 = vadd.f32 %v8981, %v9009
  %9011 = vmatmul.bf16.gmra.mxu0 %v420
  %v9012 = vpop.f32.mrf.mxu0
  %v9013 = vadd.f32 %v8984, %v9012
  %v9014 = vpop.f32.mrf.mxu0
  %v9015 = vadd.f32 %v8986, %v9014
  %9016 = vdwg.mxu0
  %9017 = vmatpush.bf16.msra.mxu0 %v4901
  %9018 = vmatpush.bf16.msra.mxu0 %v4885
  %9019 = vmatpush.bf16.msra.mxu0 %v4869
  %9020 = vmatpush.bf16.msra.mxu0 %v4853
  %9021 = vmatpush.bf16.msra.mxu0 %v4837
  %9022 = vmatpush.bf16.msra.mxu0 %v4821
  %9023 = vmatpush.bf16.msra.mxu0 %v4805
  %9024 = vmatpush.bf16.msra.mxu0 %v4789
  %9025 = vmatmul.bf16.gmra.mxu0 %v400
  %v9026 = vpop.f32.mrf.mxu0
  %v9027 = vadd.f32 %v8998, %v9026
  %v9028 = vpop.f32.mrf.mxu0
  %v9029 = vadd.f32 %v9000, %v9028
  %9030 = vmatmul.bf16.gmra.mxu0 %v407
  %v9031 = vpop.f32.mrf.mxu0
  %v9032 = vadd.f32 %v9003, %v9031
  %v9033 = vpop.f32.mrf.mxu0
  %v9034 = vadd.f32 %v9005, %v9033
  %9035 = vmatmul.bf16.gmra.mxu0 %v414
  %v9036 = vpop.f32.mrf.mxu0
  %v9037 = vadd.f32 %v9008, %v9036
  %v9038 = vpop.f32.mrf.mxu0
  %v9039 = vadd.f32 %v9010, %v9038
  %9040 = vmatmul.bf16.gmra.mxu0 %v421
  %v9041 = vpop.f32.mrf.mxu0
  %v9042 = vadd.f32 %v9013, %v9041
  %v9043 = vpop.f32.mrf.mxu0
  %v9044 = vadd.f32 %v9015, %v9043
  %9045 = vdwg.mxu0
  %v9046 = vadd.f32 %v5982, %v5984
  %v9047 = vadd.f32 %v9046, %v5987
  %v9048 = vadd.f32 %v9047, %v5989
  %v9049 = vadd.f32 %v9048, %v5992
  %v9050 = vadd.f32 %v9049, %v5994
  %v9051 = vadd.f32 %v9050, %v5997
  %v9052 = vadd.f32 %v9051, %v5999
  %v9053 = vrot.slane %v9052, 4
  %v9054 = vadd.f32 %v9052, %v9053
  %v9055 = vrot.slane %v9054, 2
  %v9056 = vadd.f32 %v9054, %v9055
  %v9057 = vrot.slane %v9056, 1
  %v9058 = vadd.f32 %v9056, %v9057
  %v9059 = vadd.f32 %v6185, %v6187
  %v9060 = vadd.f32 %v9059, %v6190
  %v9061 = vadd.f32 %v9060, %v6192
  %v9062 = vadd.f32 %v9061, %v6195
  %v9063 = vadd.f32 %v9062, %v6197
  %v9064 = vadd.f32 %v9063, %v6200
  %v9065 = vadd.f32 %v9064, %v6202
  %v9066 = vrot.slane %v9065, 4
  %v9067 = vadd.f32 %v9065, %v9066
  %v9068 = vrot.slane %v9067, 2
  %v9069 = vadd.f32 %v9067, %v9068
  %v9070 = vrot.slane %v9069, 1
  %v9071 = vadd.f32 %v9069, %v9070
  %v9072 = vadd.f32 %v6388, %v6390
  %v9073 = vadd.f32 %v9072, %v6393
  %v9074 = vadd.f32 %v9073, %v6395
  %v9075 = vadd.f32 %v9074, %v6398
  %v9076 = vadd.f32 %v9075, %v6400
  %v9077 = vadd.f32 %v9076, %v6403
  %v9078 = vadd.f32 %v9077, %v6405
  %v9079 = vrot.slane %v9078, 4
  %v9080 = vadd.f32 %v9078, %v9079
  %v9081 = vrot.slane %v9080, 2
  %v9082 = vadd.f32 %v9080, %v9081
  %v9083 = vrot.slane %v9082, 1
  %v9084 = vadd.f32 %v9082, %v9083
  %v9085 = vadd.f32 %v6591, %v6593
  %v9086 = vadd.f32 %v9085, %v6596
  %v9087 = vadd.f32 %v9086, %v6598
  %v9088 = vadd.f32 %v9087, %v6601
  %v9089 = vadd.f32 %v9088, %v6603
  %v9090 = vadd.f32 %v9089, %v6606
  %v9091 = vadd.f32 %v9090, %v6608
  %v9092 = vrot.slane %v9091, 4
  %v9093 = vadd.f32 %v9091, %v9092
  %v9094 = vrot.slane %v9093, 2
  %v9095 = vadd.f32 %v9093, %v9094
  %v9096 = vrot.slane %v9095, 1
  %v9097 = vadd.f32 %v9095, %v9096
  %v9098 = vadd.f32 %v6794, %v6796
  %v9099 = vadd.f32 %v9098, %v6799
  %v9100 = vadd.f32 %v9099, %v6801
  %v9101 = vadd.f32 %v9100, %v6804
  %v9102 = vadd.f32 %v9101, %v6806
  %v9103 = vadd.f32 %v9102, %v6809
  %v9104 = vadd.f32 %v9103, %v6811
  %v9105 = vrot.slane %v9104, 4
  %v9106 = vadd.f32 %v9104, %v9105
  %v9107 = vrot.slane %v9106, 2
  %v9108 = vadd.f32 %v9106, %v9107
  %v9109 = vrot.slane %v9108, 1
  %v9110 = vadd.f32 %v9108, %v9109
  %v9111 = vadd.f32 %v6997, %v6999
  %v9112 = vadd.f32 %v9111, %v7002
  %v9113 = vadd.f32 %v9112, %v7004
  %v9114 = vadd.f32 %v9113, %v7007
  %v9115 = vadd.f32 %v9114, %v7009
  %v9116 = vadd.f32 %v9115, %v7012
  %v9117 = vadd.f32 %v9116, %v7014
  %v9118 = vrot.slane %v9117, 4
  %v9119 = vadd.f32 %v9117, %v9118
  %v9120 = vrot.slane %v9119, 2
  %v9121 = vadd.f32 %v9119, %v9120
  %v9122 = vrot.slane %v9121, 1
  %v9123 = vadd.f32 %v9121, %v9122
  %v9124 = vadd.f32 %v7200, %v7202
  %v9125 = vadd.f32 %v9124, %v7205
  %v9126 = vadd.f32 %v9125, %v7207
  %v9127 = vadd.f32 %v9126, %v7210
  %v9128 = vadd.f32 %v9127, %v7212
  %v9129 = vadd.f32 %v9128, %v7215
  %v9130 = vadd.f32 %v9129, %v7217
  %v9131 = vrot.slane %v9130, 4
  %v9132 = vadd.f32 %v9130, %v9131
  %v9133 = vrot.slane %v9132, 2
  %v9134 = vadd.f32 %v9132, %v9133
  %v9135 = vrot.slane %v9134, 1
  %v9136 = vadd.f32 %v9134, %v9135
  %v9137 = vadd.f32 %v7403, %v7405
  %v9138 = vadd.f32 %v9137, %v7408
  %v9139 = vadd.f32 %v9138, %v7410
  %v9140 = vadd.f32 %v9139, %v7413
  %v9141 = vadd.f32 %v9140, %v7415
  %v9142 = vadd.f32 %v9141, %v7418
  %v9143 = vadd.f32 %v9142, %v7420
  %v9144 = vrot.slane %v9143, 4
  %v9145 = vadd.f32 %v9143, %v9144
  %v9146 = vrot.slane %v9145, 2
  %v9147 = vadd.f32 %v9145, %v9146
  %v9148 = vrot.slane %v9147, 1
  %v9149 = vadd.f32 %v9147, %v9148
  %v9150 = vadd.f32 %v7606, %v7608
  %v9151 = vadd.f32 %v9150, %v7611
  %v9152 = vadd.f32 %v9151, %v7613
  %v9153 = vadd.f32 %v9152, %v7616
  %v9154 = vadd.f32 %v9153, %v7618
  %v9155 = vadd.f32 %v9154, %v7621
  %v9156 = vadd.f32 %v9155, %v7623
  %v9157 = vrot.slane %v9156, 4
  %v9158 = vadd.f32 %v9156, %v9157
  %v9159 = vrot.slane %v9158, 2
  %v9160 = vadd.f32 %v9158, %v9159
  %v9161 = vrot.slane %v9160, 1
  %v9162 = vadd.f32 %v9160, %v9161
  %v9163 = vadd.f32 %v7809, %v7811
  %v9164 = vadd.f32 %v9163, %v7814
  %v9165 = vadd.f32 %v9164, %v7816
  %v9166 = vadd.f32 %v9165, %v7819
  %v9167 = vadd.f32 %v9166, %v7821
  %v9168 = vadd.f32 %v9167, %v7824
  %v9169 = vadd.f32 %v9168, %v7826
  %v9170 = vrot.slane %v9169, 4
  %v9171 = vadd.f32 %v9169, %v9170
  %v9172 = vrot.slane %v9171, 2
  %v9173 = vadd.f32 %v9171, %v9172
  %v9174 = vrot.slane %v9173, 1
  %v9175 = vadd.f32 %v9173, %v9174
  %v9176 = vadd.f32 %v8012, %v8014
  %v9177 = vadd.f32 %v9176, %v8017
  %v9178 = vadd.f32 %v9177, %v8019
  %v9179 = vadd.f32 %v9178, %v8022
  %v9180 = vadd.f32 %v9179, %v8024
  %v9181 = vadd.f32 %v9180, %v8027
  %v9182 = vadd.f32 %v9181, %v8029
  %v9183 = vrot.slane %v9182, 4
  %v9184 = vadd.f32 %v9182, %v9183
  %v9185 = vrot.slane %v9184, 2
  %v9186 = vadd.f32 %v9184, %v9185
  %v9187 = vrot.slane %v9186, 1
  %v9188 = vadd.f32 %v9186, %v9187
  %v9189 = vadd.f32 %v8215, %v8217
  %v9190 = vadd.f32 %v9189, %v8220
  %v9191 = vadd.f32 %v9190, %v8222
  %v9192 = vadd.f32 %v9191, %v8225
  %v9193 = vadd.f32 %v9192, %v8227
  %v9194 = vadd.f32 %v9193, %v8230
  %v9195 = vadd.f32 %v9194, %v8232
  %v9196 = vrot.slane %v9195, 4
  %v9197 = vadd.f32 %v9195, %v9196
  %v9198 = vrot.slane %v9197, 2
  %v9199 = vadd.f32 %v9197, %v9198
  %v9200 = vrot.slane %v9199, 1
  %v9201 = vadd.f32 %v9199, %v9200
  %v9202 = vadd.f32 %v8418, %v8420
  %v9203 = vadd.f32 %v9202, %v8423
  %v9204 = vadd.f32 %v9203, %v8425
  %v9205 = vadd.f32 %v9204, %v8428
  %v9206 = vadd.f32 %v9205, %v8430
  %v9207 = vadd.f32 %v9206, %v8433
  %v9208 = vadd.f32 %v9207, %v8435
  %v9209 = vrot.slane %v9208, 4
  %v9210 = vadd.f32 %v9208, %v9209
  %v9211 = vrot.slane %v9210, 2
  %v9212 = vadd.f32 %v9210, %v9211
  %v9213 = vrot.slane %v9212, 1
  %v9214 = vadd.f32 %v9212, %v9213
  %v9215 = vadd.f32 %v8621, %v8623
  %v9216 = vadd.f32 %v9215, %v8626
  %v9217 = vadd.f32 %v9216, %v8628
  %v9218 = vadd.f32 %v9217, %v8631
  %v9219 = vadd.f32 %v9218, %v8633
  %v9220 = vadd.f32 %v9219, %v8636
  %v9221 = vadd.f32 %v9220, %v8638
  %v9222 = vrot.slane %v9221, 4
  %v9223 = vadd.f32 %v9221, %v9222
  %v9224 = vrot.slane %v9223, 2
  %v9225 = vadd.f32 %v9223, %v9224
  %v9226 = vrot.slane %v9225, 1
  %v9227 = vadd.f32 %v9225, %v9226
  %v9228 = vadd.f32 %v8824, %v8826
  %v9229 = vadd.f32 %v9228, %v8829
  %v9230 = vadd.f32 %v9229, %v8831
  %v9231 = vadd.f32 %v9230, %v8834
  %v9232 = vadd.f32 %v9231, %v8836
  %v9233 = vadd.f32 %v9232, %v8839
  %v9234 = vadd.f32 %v9233, %v8841
  %v9235 = vrot.slane %v9234, 4
  %v9236 = vadd.f32 %v9234, %v9235
  %v9237 = vrot.slane %v9236, 2
  %v9238 = vadd.f32 %v9236, %v9237
  %v9239 = vrot.slane %v9238, 1
  %v9240 = vadd.f32 %v9238, %v9239
  %v9241 = vadd.f32 %v9027, %v9029
  %v9242 = vadd.f32 %v9241, %v9032
  %v9243 = vadd.f32 %v9242, %v9034
  %v9244 = vadd.f32 %v9243, %v9037
  %v9245 = vadd.f32 %v9244, %v9039
  %v9246 = vadd.f32 %v9245, %v9042
  %v9247 = vadd.f32 %v9246, %v9044
  %v9248 = vrot.slane %v9247, 4
  %v9249 = vadd.f32 %v9247, %v9248
  %v9250 = vrot.slane %v9249, 2
  %v9251 = vadd.f32 %v9249, %v9250
  %v9252 = vrot.slane %v9251, 1
  %v9253 = vadd.f32 %v9251, %v9252
  %v9254 = vmul.f32 %v9058, 0.020408163
  %v9255 = vmul.f32 %v9071, 0.020408163
  %v9256 = vmul.f32 %v9084, 0.020408163
  %v9257 = vmul.f32 %v9097, 0.020408163
  %v9258 = vmul.f32 %v9110, 0.020408163
  %v9259 = vmul.f32 %v9123, 0.020408163
  %v9260 = vmul.f32 %v9136, 0.020408163
  %v9261 = vmul.f32 %v9149, 0.020408163
  %v9262 = vmul.f32 %v9162, 0.020408163
  %v9263 = vmul.f32 %v9175, 0.020408163
  %v9264 = vmul.f32 %v9188, 0.020408163
  %v9265 = vmul.f32 %v9201, 0.020408163
  %v9266 = vmul.f32 %v9214, 0.020408163
  %v9267 = vmul.f32 %v9227, 0.020408163
  %v9268 = vmul.f32 %v9240, 0.020408163
  %v9269 = vmul.f32 %v9253, 0.020408163
  %v9270 = vmul.f32 %v5982, %v5982
  %v9271 = vmul.f32 %v6185, %v6185
  %v9272 = vmul.f32 %v6388, %v6388
  %v9273 = vmul.f32 %v6591, %v6591
  %v9274 = vmul.f32 %v6794, %v6794
  %v9275 = vmul.f32 %v6997, %v6997
  %v9276 = vmul.f32 %v7200, %v7200
  %v9277 = vmul.f32 %v7403, %v7403
  %v9278 = vmul.f32 %v7606, %v7606
  %v9279 = vmul.f32 %v7809, %v7809
  %v9280 = vmul.f32 %v8012, %v8012
  %v9281 = vmul.f32 %v8215, %v8215
  %v9282 = vmul.f32 %v8418, %v8418
  %v9283 = vmul.f32 %v8621, %v8621
  %v9284 = vmul.f32 %v8824, %v8824
  %v9285 = vmul.f32 %v9027, %v9027
  %v9286 = vmul.f32 %v5984, %v5984
  %v9287 = vmul.f32 %v6187, %v6187
  %v9288 = vmul.f32 %v6390, %v6390
  %v9289 = vmul.f32 %v6593, %v6593
  %v9290 = vmul.f32 %v6796, %v6796
  %v9291 = vmul.f32 %v6999, %v6999
  %v9292 = vmul.f32 %v7202, %v7202
  %v9293 = vmul.f32 %v7405, %v7405
  %v9294 = vmul.f32 %v7608, %v7608
  %v9295 = vmul.f32 %v7811, %v7811
  %v9296 = vmul.f32 %v8014, %v8014
  %v9297 = vmul.f32 %v8217, %v8217
  %v9298 = vmul.f32 %v8420, %v8420
  %v9299 = vmul.f32 %v8623, %v8623
  %v9300 = vmul.f32 %v8826, %v8826
  %v9301 = vmul.f32 %v9029, %v9029
  %v9302 = vmul.f32 %v5987, %v5987
  %v9303 = vmul.f32 %v6190, %v6190
  %v9304 = vmul.f32 %v6393, %v6393
  %v9305 = vmul.f32 %v6596, %v6596
  %v9306 = vmul.f32 %v6799, %v6799
  %v9307 = vmul.f32 %v7002, %v7002
  %v9308 = vmul.f32 %v7205, %v7205
  %v9309 = vmul.f32 %v7408, %v7408
  %v9310 = vmul.f32 %v7611, %v7611
  %v9311 = vmul.f32 %v7814, %v7814
  %v9312 = vmul.f32 %v8017, %v8017
  %v9313 = vmul.f32 %v8220, %v8220
  %v9314 = vmul.f32 %v8423, %v8423
  %v9315 = vmul.f32 %v8626, %v8626
  %v9316 = vmul.f32 %v8829, %v8829
  %v9317 = vmul.f32 %v9032, %v9032
  %v9318 = vmul.f32 %v5989, %v5989
  %v9319 = vmul.f32 %v6192, %v6192
  %v9320 = vmul.f32 %v6395, %v6395
  %v9321 = vmul.f32 %v6598, %v6598
  %v9322 = vmul.f32 %v6801, %v6801
  %v9323 = vmul.f32 %v7004, %v7004
  %v9324 = vmul.f32 %v7207, %v7207
  %v9325 = vmul.f32 %v7410, %v7410
  %v9326 = vmul.f32 %v7613, %v7613
  %v9327 = vmul.f32 %v7816, %v7816
  %v9328 = vmul.f32 %v8019, %v8019
  %v9329 = vmul.f32 %v8222, %v8222
  %v9330 = vmul.f32 %v8425, %v8425
  %v9331 = vmul.f32 %v8628, %v8628
  %v9332 = vmul.f32 %v8831, %v8831
  %v9333 = vmul.f32 %v9034, %v9034
  %v9334 = vmul.f32 %v5992, %v5992
  %v9335 = vmul.f32 %v6195, %v6195
  %v9336 = vmul.f32 %v6398, %v6398
  %v9337 = vmul.f32 %v6601, %v6601
  %v9338 = vmul.f32 %v6804, %v6804
  %v9339 = vmul.f32 %v7007, %v7007
  %v9340 = vmul.f32 %v7210, %v7210
  %v9341 = vmul.f32 %v7413, %v7413
  %v9342 = vmul.f32 %v7616, %v7616
  %v9343 = vmul.f32 %v7819, %v7819
  %v9344 = vmul.f32 %v8022, %v8022
  %v9345 = vmul.f32 %v8225, %v8225
  %v9346 = vmul.f32 %v8428, %v8428
  %v9347 = vmul.f32 %v8631, %v8631
  %v9348 = vmul.f32 %v8834, %v8834
  %v9349 = vmul.f32 %v9037, %v9037
  %v9350 = vmul.f32 %v5994, %v5994
  %v9351 = vmul.f32 %v6197, %v6197
  %v9352 = vmul.f32 %v6400, %v6400
  %v9353 = vmul.f32 %v6603, %v6603
  %v9354 = vmul.f32 %v6806, %v6806
  %v9355 = vmul.f32 %v7009, %v7009
  %v9356 = vmul.f32 %v7212, %v7212
  %v9357 = vmul.f32 %v7415, %v7415
  %v9358 = vmul.f32 %v7618, %v7618
  %v9359 = vmul.f32 %v7821, %v7821
  %v9360 = vmul.f32 %v8024, %v8024
  %v9361 = vmul.f32 %v8227, %v8227
  %v9362 = vmul.f32 %v8430, %v8430
  %v9363 = vmul.f32 %v8633, %v8633
  %v9364 = vmul.f32 %v8836, %v8836
  %v9365 = vmul.f32 %v9039, %v9039
  %v9366 = vmul.f32 %v5997, %v5997
  %v9367 = vmul.f32 %v6200, %v6200
  %v9368 = vmul.f32 %v6403, %v6403
  %v9369 = vmul.f32 %v6606, %v6606
  %v9370 = vmul.f32 %v6809, %v6809
  %v9371 = vmul.f32 %v7012, %v7012
  %v9372 = vmul.f32 %v7215, %v7215
  %v9373 = vmul.f32 %v7418, %v7418
  %v9374 = vmul.f32 %v7621, %v7621
  %v9375 = vmul.f32 %v7824, %v7824
  %v9376 = vmul.f32 %v8027, %v8027
  %v9377 = vmul.f32 %v8230, %v8230
  %v9378 = vmul.f32 %v8433, %v8433
  %v9379 = vmul.f32 %v8636, %v8636
  %v9380 = vmul.f32 %v8839, %v8839
  %v9381 = vmul.f32 %v9042, %v9042
  %v9382 = vmul.f32 %v5999, %v5999
  %v9383 = vmul.f32 %v6202, %v6202
  %v9384 = vmul.f32 %v6405, %v6405
  %v9385 = vmul.f32 %v6608, %v6608
  %v9386 = vmul.f32 %v6811, %v6811
  %v9387 = vmul.f32 %v7014, %v7014
  %v9388 = vmul.f32 %v7217, %v7217
  %v9389 = vmul.f32 %v7420, %v7420
  %v9390 = vmul.f32 %v7623, %v7623
  %v9391 = vmul.f32 %v7826, %v7826
  %v9392 = vmul.f32 %v8029, %v8029
  %v9393 = vmul.f32 %v8232, %v8232
  %v9394 = vmul.f32 %v8435, %v8435
  %v9395 = vmul.f32 %v8638, %v8638
  %v9396 = vmul.f32 %v8841, %v8841
  %v9397 = vmul.f32 %v9044, %v9044
  %v9398 = vadd.f32 %v9270, %v9286
  %v9399 = vadd.f32 %v9398, %v9302
  %v9400 = vadd.f32 %v9399, %v9318
  %v9401 = vadd.f32 %v9400, %v9334
  %v9402 = vadd.f32 %v9401, %v9350
  %v9403 = vadd.f32 %v9402, %v9366
  %v9404 = vadd.f32 %v9403, %v9382
  %v9405 = vrot.slane %v9404, 4
  %v9406 = vadd.f32 %v9404, %v9405
  %v9407 = vrot.slane %v9406, 2
  %v9408 = vadd.f32 %v9406, %v9407
  %v9409 = vrot.slane %v9408, 1
  %v9410 = vadd.f32 %v9408, %v9409
  %v9411 = vadd.f32 %v9271, %v9287
  %v9412 = vadd.f32 %v9411, %v9303
  %v9413 = vadd.f32 %v9412, %v9319
  %v9414 = vadd.f32 %v9413, %v9335
  %v9415 = vadd.f32 %v9414, %v9351
  %v9416 = vadd.f32 %v9415, %v9367
  %v9417 = vadd.f32 %v9416, %v9383
  %v9418 = vrot.slane %v9417, 4
  %v9419 = vadd.f32 %v9417, %v9418
  %v9420 = vrot.slane %v9419, 2
  %v9421 = vadd.f32 %v9419, %v9420
  %v9422 = vrot.slane %v9421, 1
  %v9423 = vadd.f32 %v9421, %v9422
  %v9424 = vadd.f32 %v9272, %v9288
  %v9425 = vadd.f32 %v9424, %v9304
  %v9426 = vadd.f32 %v9425, %v9320
  %v9427 = vadd.f32 %v9426, %v9336
  %v9428 = vadd.f32 %v9427, %v9352
  %v9429 = vadd.f32 %v9428, %v9368
  %v9430 = vadd.f32 %v9429, %v9384
  %v9431 = vrot.slane %v9430, 4
  %v9432 = vadd.f32 %v9430, %v9431
  %v9433 = vrot.slane %v9432, 2
  %v9434 = vadd.f32 %v9432, %v9433
  %v9435 = vrot.slane %v9434, 1
  %v9436 = vadd.f32 %v9434, %v9435
  %v9437 = vadd.f32 %v9273, %v9289
  %v9438 = vadd.f32 %v9437, %v9305
  %v9439 = vadd.f32 %v9438, %v9321
  %v9440 = vadd.f32 %v9439, %v9337
  %v9441 = vadd.f32 %v9440, %v9353
  %v9442 = vadd.f32 %v9441, %v9369
  %v9443 = vadd.f32 %v9442, %v9385
  %v9444 = vrot.slane %v9443, 4
  %v9445 = vadd.f32 %v9443, %v9444
  %v9446 = vrot.slane %v9445, 2
  %v9447 = vadd.f32 %v9445, %v9446
  %v9448 = vrot.slane %v9447, 1
  %v9449 = vadd.f32 %v9447, %v9448
  %v9450 = vadd.f32 %v9274, %v9290
  %v9451 = vadd.f32 %v9450, %v9306
  %v9452 = vadd.f32 %v9451, %v9322
  %v9453 = vadd.f32 %v9452, %v9338
  %v9454 = vadd.f32 %v9453, %v9354
  %v9455 = vadd.f32 %v9454, %v9370
  %v9456 = vadd.f32 %v9455, %v9386
  %v9457 = vrot.slane %v9456, 4
  %v9458 = vadd.f32 %v9456, %v9457
  %v9459 = vrot.slane %v9458, 2
  %v9460 = vadd.f32 %v9458, %v9459
  %v9461 = vrot.slane %v9460, 1
  %v9462 = vadd.f32 %v9460, %v9461
  %v9463 = vadd.f32 %v9275, %v9291
  %v9464 = vadd.f32 %v9463, %v9307
  %v9465 = vadd.f32 %v9464, %v9323
  %v9466 = vadd.f32 %v9465, %v9339
  %v9467 = vadd.f32 %v9466, %v9355
  %v9468 = vadd.f32 %v9467, %v9371
  %v9469 = vadd.f32 %v9468, %v9387
  %v9470 = vrot.slane %v9469, 4
  %v9471 = vadd.f32 %v9469, %v9470
  %v9472 = vrot.slane %v9471, 2
  %v9473 = vadd.f32 %v9471, %v9472
  %v9474 = vrot.slane %v9473, 1
  %v9475 = vadd.f32 %v9473, %v9474
  %v9476 = vadd.f32 %v9276, %v9292
  %v9477 = vadd.f32 %v9476, %v9308
  %v9478 = vadd.f32 %v9477, %v9324
  %v9479 = vadd.f32 %v9478, %v9340
  %v9480 = vadd.f32 %v9479, %v9356
  %v9481 = vadd.f32 %v9480, %v9372
  %v9482 = vadd.f32 %v9481, %v9388
  %v9483 = vrot.slane %v9482, 4
  %v9484 = vadd.f32 %v9482, %v9483
  %v9485 = vrot.slane %v9484, 2
  %v9486 = vadd.f32 %v9484, %v9485
  %v9487 = vrot.slane %v9486, 1
  %v9488 = vadd.f32 %v9486, %v9487
  %v9489 = vadd.f32 %v9277, %v9293
  %v9490 = vadd.f32 %v9489, %v9309
  %v9491 = vadd.f32 %v9490, %v9325
  %v9492 = vadd.f32 %v9491, %v9341
  %v9493 = vadd.f32 %v9492, %v9357
  %v9494 = vadd.f32 %v9493, %v9373
  %v9495 = vadd.f32 %v9494, %v9389
  %v9496 = vrot.slane %v9495, 4
  %v9497 = vadd.f32 %v9495, %v9496
  %v9498 = vrot.slane %v9497, 2
  %v9499 = vadd.f32 %v9497, %v9498
  %v9500 = vrot.slane %v9499, 1
  %v9501 = vadd.f32 %v9499, %v9500
  %v9502 = vadd.f32 %v9278, %v9294
  %v9503 = vadd.f32 %v9502, %v9310
  %v9504 = vadd.f32 %v9503, %v9326
  %v9505 = vadd.f32 %v9504, %v9342
  %v9506 = vadd.f32 %v9505, %v9358
  %v9507 = vadd.f32 %v9506, %v9374
  %v9508 = vadd.f32 %v9507, %v9390
  %v9509 = vrot.slane %v9508, 4
  %v9510 = vadd.f32 %v9508, %v9509
  %v9511 = vrot.slane %v9510, 2
  %v9512 = vadd.f32 %v9510, %v9511
  %v9513 = vrot.slane %v9512, 1
  %v9514 = vadd.f32 %v9512, %v9513
  %v9515 = vadd.f32 %v9279, %v9295
  %v9516 = vadd.f32 %v9515, %v9311
  %v9517 = vadd.f32 %v9516, %v9327
  %v9518 = vadd.f32 %v9517, %v9343
  %v9519 = vadd.f32 %v9518, %v9359
  %v9520 = vadd.f32 %v9519, %v9375
  %v9521 = vadd.f32 %v9520, %v9391
  %v9522 = vrot.slane %v9521, 4
  %v9523 = vadd.f32 %v9521, %v9522
  %v9524 = vrot.slane %v9523, 2
  %v9525 = vadd.f32 %v9523, %v9524
  %v9526 = vrot.slane %v9525, 1
  %v9527 = vadd.f32 %v9525, %v9526
  %v9528 = vadd.f32 %v9280, %v9296
  %v9529 = vadd.f32 %v9528, %v9312
  %v9530 = vadd.f32 %v9529, %v9328
  %v9531 = vadd.f32 %v9530, %v9344
  %v9532 = vadd.f32 %v9531, %v9360
  %v9533 = vadd.f32 %v9532, %v9376
  %v9534 = vadd.f32 %v9533, %v9392
  %v9535 = vrot.slane %v9534, 4
  %v9536 = vadd.f32 %v9534, %v9535
  %v9537 = vrot.slane %v9536, 2
  %v9538 = vadd.f32 %v9536, %v9537
  %v9539 = vrot.slane %v9538, 1
  %v9540 = vadd.f32 %v9538, %v9539
  %v9541 = vadd.f32 %v9281, %v9297
  %v9542 = vadd.f32 %v9541, %v9313
  %v9543 = vadd.f32 %v9542, %v9329
  %v9544 = vadd.f32 %v9543, %v9345
  %v9545 = vadd.f32 %v9544, %v9361
  %v9546 = vadd.f32 %v9545, %v9377
  %v9547 = vadd.f32 %v9546, %v9393
  %v9548 = vrot.slane %v9547, 4
  %v9549 = vadd.f32 %v9547, %v9548
  %v9550 = vrot.slane %v9549, 2
  %v9551 = vadd.f32 %v9549, %v9550
  %v9552 = vrot.slane %v9551, 1
  %v9553 = vadd.f32 %v9551, %v9552
  %v9554 = vadd.f32 %v9282, %v9298
  %v9555 = vadd.f32 %v9554, %v9314
  %v9556 = vadd.f32 %v9555, %v9330
  %v9557 = vadd.f32 %v9556, %v9346
  %v9558 = vadd.f32 %v9557, %v9362
  %v9559 = vadd.f32 %v9558, %v9378
  %v9560 = vadd.f32 %v9559, %v9394
  %v9561 = vrot.slane %v9560, 4
  %v9562 = vadd.f32 %v9560, %v9561
  %v9563 = vrot.slane %v9562, 2
  %v9564 = vadd.f32 %v9562, %v9563
  %v9565 = vrot.slane %v9564, 1
  %v9566 = vadd.f32 %v9564, %v9565
  %v9567 = vadd.f32 %v9283, %v9299
  %v9568 = vadd.f32 %v9567, %v9315
  %v9569 = vadd.f32 %v9568, %v9331
  %v9570 = vadd.f32 %v9569, %v9347
  %v9571 = vadd.f32 %v9570, %v9363
  %v9572 = vadd.f32 %v9571, %v9379
  %v9573 = vadd.f32 %v9572, %v9395
  %v9574 = vrot.slane %v9573, 4
  %v9575 = vadd.f32 %v9573, %v9574
  %v9576 = vrot.slane %v9575, 2
  %v9577 = vadd.f32 %v9575, %v9576
  %v9578 = vrot.slane %v9577, 1
  %v9579 = vadd.f32 %v9577, %v9578
  %v9580 = vadd.f32 %v9284, %v9300
  %v9581 = vadd.f32 %v9580, %v9316
  %v9582 = vadd.f32 %v9581, %v9332
  %v9583 = vadd.f32 %v9582, %v9348
  %v9584 = vadd.f32 %v9583, %v9364
  %v9585 = vadd.f32 %v9584, %v9380
  %v9586 = vadd.f32 %v9585, %v9396
  %v9587 = vrot.slane %v9586, 4
  %v9588 = vadd.f32 %v9586, %v9587
  %v9589 = vrot.slane %v9588, 2
  %v9590 = vadd.f32 %v9588, %v9589
  %v9591 = vrot.slane %v9590, 1
  %v9592 = vadd.f32 %v9590, %v9591
  %v9593 = vadd.f32 %v9285, %v9301
  %v9594 = vadd.f32 %v9593, %v9317
  %v9595 = vadd.f32 %v9594, %v9333
  %v9596 = vadd.f32 %v9595, %v9349
  %v9597 = vadd.f32 %v9596, %v9365
  %v9598 = vadd.f32 %v9597, %v9381
  %v9599 = vadd.f32 %v9598, %v9397
  %v9600 = vrot.slane %v9599, 4
  %v9601 = vadd.f32 %v9599, %v9600
  %v9602 = vrot.slane %v9601, 2
  %v9603 = vadd.f32 %v9601, %v9602
  %v9604 = vrot.slane %v9603, 1
  %v9605 = vadd.f32 %v9603, %v9604
  %v9606 = vmul.f32 %v9410, 0.020408163
  %v9607 = vmul.f32 %v9423, 0.020408163
  %v9608 = vmul.f32 %v9436, 0.020408163
  %v9609 = vmul.f32 %v9449, 0.020408163
  %v9610 = vmul.f32 %v9462, 0.020408163
  %v9611 = vmul.f32 %v9475, 0.020408163
  %v9612 = vmul.f32 %v9488, 0.020408163
  %v9613 = vmul.f32 %v9501, 0.020408163
  %v9614 = vmul.f32 %v9514, 0.020408163
  %v9615 = vmul.f32 %v9527, 0.020408163
  %v9616 = vmul.f32 %v9540, 0.020408163
  %v9617 = vmul.f32 %v9553, 0.020408163
  %v9618 = vmul.f32 %v9566, 0.020408163
  %v9619 = vmul.f32 %v9579, 0.020408163
  %v9620 = vmul.f32 %v9592, 0.020408163
  %v9621 = vmul.f32 %v9605, 0.020408163
  %v9622 = vmul.f32 %v9254, %v9254
  %v9623 = vmul.f32 %v9255, %v9255
  %v9624 = vmul.f32 %v9256, %v9256
  %v9625 = vmul.f32 %v9257, %v9257
  %v9626 = vmul.f32 %v9258, %v9258
  %v9627 = vmul.f32 %v9259, %v9259
  %v9628 = vmul.f32 %v9260, %v9260
  %v9629 = vmul.f32 %v9261, %v9261
  %v9630 = vmul.f32 %v9262, %v9262
  %v9631 = vmul.f32 %v9263, %v9263
  %v9632 = vmul.f32 %v9264, %v9264
  %v9633 = vmul.f32 %v9265, %v9265
  %v9634 = vmul.f32 %v9266, %v9266
  %v9635 = vmul.f32 %v9267, %v9267
  %v9636 = vmul.f32 %v9268, %v9268
  %v9637 = vmul.f32 %v9269, %v9269
  %v9638 = vsub.f32 %v9606, %v9622
  %v9639 = vsub.f32 %v9607, %v9623
  %v9640 = vsub.f32 %v9608, %v9624
  %v9641 = vsub.f32 %v9609, %v9625
  %v9642 = vsub.f32 %v9610, %v9626
  %v9643 = vsub.f32 %v9611, %v9627
  %v9644 = vsub.f32 %v9612, %v9628
  %v9645 = vsub.f32 %v9613, %v9629
  %v9646 = vsub.f32 %v9614, %v9630
  %v9647 = vsub.f32 %v9615, %v9631
  %v9648 = vsub.f32 %v9616, %v9632
  %v9649 = vsub.f32 %v9617, %v9633
  %v9650 = vsub.f32 %v9618, %v9634
  %v9651 = vsub.f32 %v9619, %v9635
  %v9652 = vsub.f32 %v9620, %v9636
  %v9653 = vsub.f32 %v9621, %v9637
  %v9654 = vmax.f32 %v9638, 0.0
  %v9655 = vmax.f32 %v9639, 0.0
  %v9656 = vmax.f32 %v9640, 0.0
  %v9657 = vmax.f32 %v9641, 0.0
  %v9658 = vmax.f32 %v9642, 0.0
  %v9659 = vmax.f32 %v9643, 0.0
  %v9660 = vmax.f32 %v9644, 0.0
  %v9661 = vmax.f32 %v9645, 0.0
  %v9662 = vmax.f32 %v9646, 0.0
  %v9663 = vmax.f32 %v9647, 0.0
  %v9664 = vmax.f32 %v9648, 0.0
  %v9665 = vmax.f32 %v9649, 0.0
  %v9666 = vmax.f32 %v9650, 0.0
  %v9667 = vmax.f32 %v9651, 0.0
  %v9668 = vmax.f32 %v9652, 0.0
  %v9669 = vmax.f32 %v9653, 0.0
  %v9670 = vld [vmem:[%s5] sm:$0xff]
  %v9671 = vld [vmem:[%s5 + $0x8] sm:$0xff]
  %v9672 = vadd.f32 %v9654, 1e-05
  %v9673 = vadd.f32 %v9655, 1e-05
  %v9674 = vadd.f32 %v9656, 1e-05
  %v9675 = vadd.f32 %v9657, 1e-05
  %v9676 = vadd.f32 %v9658, 1e-05
  %v9677 = vadd.f32 %v9659, 1e-05
  %v9678 = vadd.f32 %v9660, 1e-05
  %v9679 = vadd.f32 %v9661, 1e-05
  %v9680 = vadd.f32 %v9662, 1e-05
  %v9681 = vadd.f32 %v9663, 1e-05
  %v9682 = vadd.f32 %v9664, 1e-05
  %v9683 = vadd.f32 %v9665, 1e-05
  %v9684 = vadd.f32 %v9666, 1e-05
  %v9685 = vadd.f32 %v9667, 1e-05
  %v9686 = vadd.f32 %v9668, 1e-05
  %v9687 = vadd.f32 %v9669, 1e-05
  %v9688 = vrsqrt.pop %v9672
  %v9689 = vmul.f32 %v9688, %v9672
  %v9690 = vmul.f32 %v9689, %v9688
  %v9691 = vmul.f32 0.5, %v9690
  %v9692 = vsub.f32 1.5, %v9691
  %v9693 = vmul.f32 %v9688, %v9692
  %vm9694 = vweird.f32 %v9672
  %vm9695 = vweird.f32 %v9688
  %vm9696 = vmor %vm9694, %vm9695
  %v9697 = vsel %vm9696, %v9688, %v9693
  %v9698 = vrsqrt.pop %v9673
  %v9699 = vmul.f32 %v9698, %v9673
  %v9700 = vmul.f32 %v9699, %v9698
  %v9701 = vmul.f32 0.5, %v9700
  %v9702 = vsub.f32 1.5, %v9701
  %v9703 = vmul.f32 %v9698, %v9702
  %vm9704 = vweird.f32 %v9673
  %vm9705 = vweird.f32 %v9698
  %vm9706 = vmor %vm9704, %vm9705
  %v9707 = vsel %vm9706, %v9698, %v9703
  %v9708 = vrsqrt.pop %v9674
  %v9709 = vmul.f32 %v9708, %v9674
  %v9710 = vmul.f32 %v9709, %v9708
  %v9711 = vmul.f32 0.5, %v9710
  %v9712 = vsub.f32 1.5, %v9711
  %v9713 = vmul.f32 %v9708, %v9712
  %vm9714 = vweird.f32 %v9674
  %vm9715 = vweird.f32 %v9708
  %vm9716 = vmor %vm9714, %vm9715
  %v9717 = vsel %vm9716, %v9708, %v9713
  %v9718 = vrsqrt.pop %v9675
  %v9719 = vmul.f32 %v9718, %v9675
  %v9720 = vmul.f32 %v9719, %v9718
  %v9721 = vmul.f32 0.5, %v9720
  %v9722 = vsub.f32 1.5, %v9721
  %v9723 = vmul.f32 %v9718, %v9722
  %vm9724 = vweird.f32 %v9675
  %vm9725 = vweird.f32 %v9718
  %vm9726 = vmor %vm9724, %vm9725
  %v9727 = vsel %vm9726, %v9718, %v9723
  %v9728 = vrsqrt.pop %v9676
  %v9729 = vmul.f32 %v9728, %v9676
  %v9730 = vmul.f32 %v9729, %v9728
  %v9731 = vmul.f32 0.5, %v9730
  %v9732 = vsub.f32 1.5, %v9731
  %v9733 = vmul.f32 %v9728, %v9732
  %vm9734 = vweird.f32 %v9676
  %vm9735 = vweird.f32 %v9728
  %vm9736 = vmor %vm9734, %vm9735
  %v9737 = vsel %vm9736, %v9728, %v9733
  %v9738 = vrsqrt.pop %v9677
  %v9739 = vmul.f32 %v9738, %v9677
  %v9740 = vmul.f32 %v9739, %v9738
  %v9741 = vmul.f32 0.5, %v9740
  %v9742 = vsub.f32 1.5, %v9741
  %v9743 = vmul.f32 %v9738, %v9742
  %vm9744 = vweird.f32 %v9677
  %vm9745 = vweird.f32 %v9738
  %vm9746 = vmor %vm9744, %vm9745
  %v9747 = vsel %vm9746, %v9738, %v9743
  %v9748 = vrsqrt.pop %v9678
  %v9749 = vmul.f32 %v9748, %v9678
  %v9750 = vmul.f32 %v9749, %v9748
  %v9751 = vmul.f32 0.5, %v9750
  %v9752 = vsub.f32 1.5, %v9751
  %v9753 = vmul.f32 %v9748, %v9752
  %vm9754 = vweird.f32 %v9678
  %vm9755 = vweird.f32 %v9748
  %vm9756 = vmor %vm9754, %vm9755
  %v9757 = vsel %vm9756, %v9748, %v9753
  %v9758 = vrsqrt.pop %v9679
  %v9759 = vmul.f32 %v9758, %v9679
  %v9760 = vmul.f32 %v9759, %v9758
  %v9761 = vmul.f32 0.5, %v9760
  %v9762 = vsub.f32 1.5, %v9761
  %v9763 = vmul.f32 %v9758, %v9762
  %vm9764 = vweird.f32 %v9679
  %vm9765 = vweird.f32 %v9758
  %vm9766 = vmor %vm9764, %vm9765
  %v9767 = vsel %vm9766, %v9758, %v9763
  %v9768 = vrsqrt.pop %v9680
  %v9769 = vmul.f32 %v9768, %v9680
  %v9770 = vmul.f32 %v9769, %v9768
  %v9771 = vmul.f32 0.5, %v9770
  %v9772 = vsub.f32 1.5, %v9771
  %v9773 = vmul.f32 %v9768, %v9772
  %vm9774 = vweird.f32 %v9680
  %vm9775 = vweird.f32 %v9768
  %vm9776 = vmor %vm9774, %vm9775
  %v9777 = vsel %vm9776, %v9768, %v9773
  %v9778 = vrsqrt.pop %v9681
  %v9779 = vmul.f32 %v9778, %v9681
  %v9780 = vmul.f32 %v9779, %v9778
  %v9781 = vmul.f32 0.5, %v9780
  %v9782 = vsub.f32 1.5, %v9781
  %v9783 = vmul.f32 %v9778, %v9782
  %vm9784 = vweird.f32 %v9681
  %vm9785 = vweird.f32 %v9778
  %vm9786 = vmor %vm9784, %vm9785
  %v9787 = vsel %vm9786, %v9778, %v9783
  %v9788 = vrsqrt.pop %v9682
  %v9789 = vmul.f32 %v9788, %v9682
  %v9790 = vmul.f32 %v9789, %v9788
  %v9791 = vmul.f32 0.5, %v9790
  %v9792 = vsub.f32 1.5, %v9791
  %v9793 = vmul.f32 %v9788, %v9792
  %vm9794 = vweird.f32 %v9682
  %vm9795 = vweird.f32 %v9788
  %vm9796 = vmor %vm9794, %vm9795
  %v9797 = vsel %vm9796, %v9788, %v9793
  %v9798 = vrsqrt.pop %v9683
  %v9799 = vmul.f32 %v9798, %v9683
  %v9800 = vmul.f32 %v9799, %v9798
  %v9801 = vmul.f32 0.5, %v9800
  %v9802 = vsub.f32 1.5, %v9801
  %v9803 = vmul.f32 %v9798, %v9802
  %vm9804 = vweird.f32 %v9683
  %vm9805 = vweird.f32 %v9798
  %vm9806 = vmor %vm9804, %vm9805
  %v9807 = vsel %vm9806, %v9798, %v9803
  %v9808 = vrsqrt.pop %v9684
  %v9809 = vmul.f32 %v9808, %v9684
  %v9810 = vmul.f32 %v9809, %v9808
  %v9811 = vmul.f32 0.5, %v9810
  %v9812 = vsub.f32 1.5, %v9811
  %v9813 = vmul.f32 %v9808, %v9812
  %vm9814 = vweird.f32 %v9684
  %vm9815 = vweird.f32 %v9808
  %vm9816 = vmor %vm9814, %vm9815
  %v9817 = vsel %vm9816, %v9808, %v9813
  %v9818 = vrsqrt.pop %v9685
  %v9819 = vmul.f32 %v9818, %v9685
  %v9820 = vmul.f32 %v9819, %v9818
  %v9821 = vmul.f32 0.5, %v9820
  %v9822 = vsub.f32 1.5, %v9821
  %v9823 = vmul.f32 %v9818, %v9822
  %vm9824 = vweird.f32 %v9685
  %vm9825 = vweird.f32 %v9818
  %vm9826 = vmor %vm9824, %vm9825
  %v9827 = vsel %vm9826, %v9818, %v9823
  %v9828 = vrsqrt.pop %v9686
  %v9829 = vmul.f32 %v9828, %v9686
  %v9830 = vmul.f32 %v9829, %v9828
  %v9831 = vmul.f32 0.5, %v9830
  %v9832 = vsub.f32 1.5, %v9831
  %v9833 = vmul.f32 %v9828, %v9832
  %vm9834 = vweird.f32 %v9686
  %vm9835 = vweird.f32 %v9828
  %vm9836 = vmor %vm9834, %vm9835
  %v9837 = vsel %vm9836, %v9828, %v9833
  %v9838 = vrsqrt.pop %v9687
  %v9839 = vmul.f32 %v9838, %v9687
  %v9840 = vmul.f32 %v9839, %v9838
  %v9841 = vmul.f32 0.5, %v9840
  %v9842 = vsub.f32 1.5, %v9841
  %v9843 = vmul.f32 %v9838, %v9842
  %vm9844 = vweird.f32 %v9687
  %vm9845 = vweird.f32 %v9838
  %vm9846 = vmor %vm9844, %vm9845
  %v9847 = vsel %vm9846, %v9838, %v9843
  %v9864 = vrot.slane %v9707, 7
  %v9865 = vrot.slane %v9717, 6
  %v9866 = vrot.slane %v9727, 5
  %v9867 = vrot.slane %v9737, 4
  %v9868 = vrot.slane %v9747, 3
  %v9869 = vrot.slane %v9757, 2
  %v9870 = vrot.slane %v9767, 1
  %v9871 = vrot.slane %v9787, 7
  %v9872 = vrot.slane %v9797, 6
  %v9873 = vrot.slane %v9807, 5
  %v9874 = vrot.slane %v9817, 4
  %v9875 = vrot.slane %v9827, 3
  %v9876 = vrot.slane %v9837, 2
  %v9877 = vrot.slane %v9847, 1
  %vm9878 = vcmask 1040384
  %v9879 = vsel %vm9878, %v9697, %v9864
  %vm9880 = vcmask 1042434
  %v9881 = vsel %vm9880, %v9865, %v9866
  %vm9882 = vcmask 1041408
  %v9883 = vsel %vm9882, %v9879, %v9881
  %vm9884 = vcmask 1044484
  %v9885 = vsel %vm9884, %v9867, %v9868
  %vm9886 = vcmask 1046534
  %v9887 = vsel %vm9886, %v9869, %v9870
  %vm9888 = vcmask 1045508
  %v9889 = vsel %vm9888, %v9885, %v9887
  %vm9890 = vcmask 1043456
  %v9891 = vsel %vm9890, %v9883, %v9889
  %v9892 = vsel %vm9878, %v9777, %v9871
  %v9893 = vsel %vm9880, %v9872, %v9873
  %v9894 = vsel %vm9882, %v9892, %v9893
  %v9895 = vsel %vm9884, %v9874, %v9875
  %v9896 = vsel %vm9886, %v9876, %v9877
  %v9897 = vsel %vm9888, %v9895, %v9896
  %v9898 = vsel %vm9890, %v9894, %v9897
  %v9901 = vmul.f32 %v9670, %v9891
  %v9902 = vmul.f32 %v9671, %v9898
  %v9903 = vld [vmem:[%s6] sm:$0xff]
  %v9904 = vld [vmem:[%s6 + $0x8] sm:$0xff]
  %v9907 = vperm.slane %v9901, 0
  %v9908 = vperm.slane %v9901, 1
  %v9909 = vperm.slane %v9901, 2
  %v9910 = vperm.slane %v9901, 3
  %v9911 = vperm.slane %v9901, 4
  %v9912 = vperm.slane %v9901, 5
  %v9913 = vperm.slane %v9901, 6
  %v9914 = vperm.slane %v9901, 7
  %v9915 = vperm.slane %v9902, 0
  %v9916 = vperm.slane %v9902, 1
  %v9917 = vperm.slane %v9902, 2
  %v9918 = vperm.slane %v9902, 3
  %v9919 = vperm.slane %v9902, 4
  %v9920 = vperm.slane %v9902, 5
  %v9921 = vperm.slane %v9902, 6
  %v9922 = vperm.slane %v9902, 7
  %v9939 = vmul.f32 %v9254, %v9907
  %v9940 = vmul.f32 %v9255, %v9908
  %v9941 = vmul.f32 %v9256, %v9909
  %v9942 = vmul.f32 %v9257, %v9910
  %v9943 = vmul.f32 %v9258, %v9911
  %v9944 = vmul.f32 %v9259, %v9912
  %v9945 = vmul.f32 %v9260, %v9913
  %v9946 = vmul.f32 %v9261, %v9914
  %v9947 = vmul.f32 %v9262, %v9915
  %v9948 = vmul.f32 %v9263, %v9916
  %v9949 = vmul.f32 %v9264, %v9917
  %v9950 = vmul.f32 %v9265, %v9918
  %v9951 = vmul.f32 %v9266, %v9919
  %v9952 = vmul.f32 %v9267, %v9920
  %v9953 = vmul.f32 %v9268, %v9921
  %v9954 = vmul.f32 %v9269, %v9922
  %v9971 = vrot.slane %v9940, 7
  %v9972 = vrot.slane %v9941, 6
  %v9973 = vrot.slane %v9942, 5
  %v9974 = vrot.slane %v9943, 4
  %v9975 = vrot.slane %v9944, 3
  %v9976 = vrot.slane %v9945, 2
  %v9977 = vrot.slane %v9946, 1
  %v9978 = vrot.slane %v9948, 7
  %v9979 = vrot.slane %v9949, 6
  %v9980 = vrot.slane %v9950, 5
  %v9981 = vrot.slane %v9951, 4
  %v9982 = vrot.slane %v9952, 3
  %v9983 = vrot.slane %v9953, 2
  %v9984 = vrot.slane %v9954, 1
  %v9985 = vsel %vm9878, %v9939, %v9971
  %v9986 = vsel %vm9880, %v9972, %v9973
  %v9987 = vsel %vm9882, %v9985, %v9986
  %v9988 = vsel %vm9884, %v9974, %v9975
  %v9989 = vsel %vm9886, %v9976, %v9977
  %v9990 = vsel %vm9888, %v9988, %v9989
  %v9991 = vsel %vm9890, %v9987, %v9990
  %v9992 = vsel %vm9878, %v9947, %v9978
  %v9993 = vsel %vm9880, %v9979, %v9980
  %v9994 = vsel %vm9882, %v9992, %v9993
  %v9995 = vsel %vm9884, %v9981, %v9982
  %v9996 = vsel %vm9886, %v9983, %v9984
  %v9997 = vsel %vm9888, %v9995, %v9996
  %v9998 = vsel %vm9890, %v9994, %v9997
  %v10001 = vsub.f32 %v9903, %v9991
  %v10002 = vsub.f32 %v9904, %v9998
  %v10003 = vmul.f32 %v5982, %v9907
  %v10004 = vmul.f32 %v6185, %v9908
  %v10005 = vmul.f32 %v6388, %v9909
  %v10006 = vmul.f32 %v6591, %v9910
  %v10007 = vmul.f32 %v6794, %v9911
  %v10008 = vmul.f32 %v6997, %v9912
  %v10009 = vmul.f32 %v7200, %v9913
  %v10010 = vmul.f32 %v7403, %v9914
  %v10011 = vmul.f32 %v7606, %v9915
  %v10012 = vmul.f32 %v7809, %v9916
  %v10013 = vmul.f32 %v8012, %v9917
  %v10014 = vmul.f32 %v8215, %v9918
  %v10015 = vmul.f32 %v8418, %v9919
  %v10016 = vmul.f32 %v8621, %v9920
  %v10017 = vmul.f32 %v8824, %v9921
  %v10018 = vmul.f32 %v9027, %v9922
  %v10019 = vmul.f32 %v5984, %v9907
  %v10020 = vmul.f32 %v6187, %v9908
  %v10021 = vmul.f32 %v6390, %v9909
  %v10022 = vmul.f32 %v6593, %v9910
  %v10023 = vmul.f32 %v6796, %v9911
  %v10024 = vmul.f32 %v6999, %v9912
  %v10025 = vmul.f32 %v7202, %v9913
  %v10026 = vmul.f32 %v7405, %v9914
  %v10027 = vmul.f32 %v7608, %v9915
  %v10028 = vmul.f32 %v7811, %v9916
  %v10029 = vmul.f32 %v8014, %v9917
  %v10030 = vmul.f32 %v8217, %v9918
  %v10031 = vmul.f32 %v8420, %v9919
  %v10032 = vmul.f32 %v8623, %v9920
  %v10033 = vmul.f32 %v8826, %v9921
  %v10034 = vmul.f32 %v9029, %v9922
  %v10035 = vmul.f32 %v5987, %v9907
  %v10036 = vmul.f32 %v6190, %v9908
  %v10037 = vmul.f32 %v6393, %v9909
  %v10038 = vmul.f32 %v6596, %v9910
  %v10039 = vmul.f32 %v6799, %v9911
  %v10040 = vmul.f32 %v7002, %v9912
  %v10041 = vmul.f32 %v7205, %v9913
  %v10042 = vmul.f32 %v7408, %v9914
  %v10043 = vmul.f32 %v7611, %v9915
  %v10044 = vmul.f32 %v7814, %v9916
  %v10045 = vmul.f32 %v8017, %v9917
  %v10046 = vmul.f32 %v8220, %v9918
  %v10047 = vmul.f32 %v8423, %v9919
  %v10048 = vmul.f32 %v8626, %v9920
  %v10049 = vmul.f32 %v8829, %v9921
  %v10050 = vmul.f32 %v9032, %v9922
  %v10051 = vmul.f32 %v5989, %v9907
  %v10052 = vmul.f32 %v6192, %v9908
  %v10053 = vmul.f32 %v6395, %v9909
  %v10054 = vmul.f32 %v6598, %v9910
  %v10055 = vmul.f32 %v6801, %v9911
  %v10056 = vmul.f32 %v7004, %v9912
  %v10057 = vmul.f32 %v7207, %v9913
  %v10058 = vmul.f32 %v7410, %v9914
  %v10059 = vmul.f32 %v7613, %v9915
  %v10060 = vmul.f32 %v7816, %v9916
  %v10061 = vmul.f32 %v8019, %v9917
  %v10062 = vmul.f32 %v8222, %v9918
  %v10063 = vmul.f32 %v8425, %v9919
  %v10064 = vmul.f32 %v8628, %v9920
  %v10065 = vmul.f32 %v8831, %v9921
  %v10066 = vmul.f32 %v9034, %v9922
  %v10067 = vmul.f32 %v5992, %v9907
  %v10068 = vmul.f32 %v6195, %v9908
  %v10069 = vmul.f32 %v6398, %v9909
  %v10070 = vmul.f32 %v6601, %v9910
  %v10071 = vmul.f32 %v6804, %v9911
  %v10072 = vmul.f32 %v7007, %v9912
  %v10073 = vmul.f32 %v7210, %v9913
  %v10074 = vmul.f32 %v7413, %v9914
  %v10075 = vmul.f32 %v7616, %v9915
  %v10076 = vmul.f32 %v7819, %v9916
  %v10077 = vmul.f32 %v8022, %v9917
  %v10078 = vmul.f32 %v8225, %v9918
  %v10079 = vmul.f32 %v8428, %v9919
  %v10080 = vmul.f32 %v8631, %v9920
  %v10081 = vmul.f32 %v8834, %v9921
  %v10082 = vmul.f32 %v9037, %v9922
  %v10083 = vmul.f32 %v5994, %v9907
  %v10084 = vmul.f32 %v6197, %v9908
  %v10085 = vmul.f32 %v6400, %v9909
  %v10086 = vmul.f32 %v6603, %v9910
  %v10087 = vmul.f32 %v6806, %v9911
  %v10088 = vmul.f32 %v7009, %v9912
  %v10089 = vmul.f32 %v7212, %v9913
  %v10090 = vmul.f32 %v7415, %v9914
  %v10091 = vmul.f32 %v7618, %v9915
  %v10092 = vmul.f32 %v7821, %v9916
  %v10093 = vmul.f32 %v8024, %v9917
  %v10094 = vmul.f32 %v8227, %v9918
  %v10095 = vmul.f32 %v8430, %v9919
  %v10096 = vmul.f32 %v8633, %v9920
  %v10097 = vmul.f32 %v8836, %v9921
  %v10098 = vmul.f32 %v9039, %v9922
  %v10099 = vmul.f32 %v5997, %v9907
  %v10100 = vmul.f32 %v6200, %v9908
  %v10101 = vmul.f32 %v6403, %v9909
  %v10102 = vmul.f32 %v6606, %v9910
  %v10103 = vmul.f32 %v6809, %v9911
  %v10104 = vmul.f32 %v7012, %v9912
  %v10105 = vmul.f32 %v7215, %v9913
  %v10106 = vmul.f32 %v7418, %v9914
  %v10107 = vmul.f32 %v7621, %v9915
  %v10108 = vmul.f32 %v7824, %v9916
  %v10109 = vmul.f32 %v8027, %v9917
  %v10110 = vmul.f32 %v8230, %v9918
  %v10111 = vmul.f32 %v8433, %v9919
  %v10112 = vmul.f32 %v8636, %v9920
  %v10113 = vmul.f32 %v8839, %v9921
  %v10114 = vmul.f32 %v9042, %v9922
  %v10115 = vmul.f32 %v5999, %v9907
  %v10116 = vmul.f32 %v6202, %v9908
  %v10117 = vmul.f32 %v6405, %v9909
  %v10118 = vmul.f32 %v6608, %v9910
  %v10119 = vmul.f32 %v6811, %v9911
  %v10120 = vmul.f32 %v7014, %v9912
  %v10121 = vmul.f32 %v7217, %v9913
  %v10122 = vmul.f32 %v7420, %v9914
  %v10123 = vmul.f32 %v7623, %v9915
  %v10124 = vmul.f32 %v7826, %v9916
  %v10125 = vmul.f32 %v8029, %v9917
  %v10126 = vmul.f32 %v8232, %v9918
  %v10127 = vmul.f32 %v8435, %v9919
  %v10128 = vmul.f32 %v8638, %v9920
  %v10129 = vmul.f32 %v8841, %v9921
  %v10130 = vmul.f32 %v9044, %v9922
  %v10133 = vperm.slane %v10001, 0
  %v10134 = vperm.slane %v10001, 1
  %v10135 = vperm.slane %v10001, 2
  %v10136 = vperm.slane %v10001, 3
  %v10137 = vperm.slane %v10001, 4
  %v10138 = vperm.slane %v10001, 5
  %v10139 = vperm.slane %v10001, 6
  %v10140 = vperm.slane %v10001, 7
  %v10141 = vperm.slane %v10002, 0
  %v10142 = vperm.slane %v10002, 1
  %v10143 = vperm.slane %v10002, 2
  %v10144 = vperm.slane %v10002, 3
  %v10145 = vperm.slane %v10002, 4
  %v10146 = vperm.slane %v10002, 5
  %v10147 = vperm.slane %v10002, 6
  %v10148 = vperm.slane %v10002, 7
  %v10165 = vadd.f32 %v10003, %v10133
  %v10166 = vadd.f32 %v10004, %v10134
  %v10167 = vadd.f32 %v10005, %v10135
  %v10168 = vadd.f32 %v10006, %v10136
  %v10169 = vadd.f32 %v10007, %v10137
  %v10170 = vadd.f32 %v10008, %v10138
  %v10171 = vadd.f32 %v10009, %v10139
  %v10172 = vadd.f32 %v10010, %v10140
  %v10173 = vadd.f32 %v10011, %v10141
  %v10174 = vadd.f32 %v10012, %v10142
  %v10175 = vadd.f32 %v10013, %v10143
  %v10176 = vadd.f32 %v10014, %v10144
  %v10177 = vadd.f32 %v10015, %v10145
  %v10178 = vadd.f32 %v10016, %v10146
  %v10179 = vadd.f32 %v10017, %v10147
  %v10180 = vadd.f32 %v10018, %v10148
  %v10181 = vadd.f32 %v10019, %v10133
  %v10182 = vadd.f32 %v10020, %v10134
  %v10183 = vadd.f32 %v10021, %v10135
  %v10184 = vadd.f32 %v10022, %v10136
  %v10185 = vadd.f32 %v10023, %v10137
  %v10186 = vadd.f32 %v10024, %v10138
  %v10187 = vadd.f32 %v10025, %v10139
  %v10188 = vadd.f32 %v10026, %v10140
  %v10189 = vadd.f32 %v10027, %v10141
  %v10190 = vadd.f32 %v10028, %v10142
  %v10191 = vadd.f32 %v10029, %v10143
  %v10192 = vadd.f32 %v10030, %v10144
  %v10193 = vadd.f32 %v10031, %v10145
  %v10194 = vadd.f32 %v10032, %v10146
  %v10195 = vadd.f32 %v10033, %v10147
  %v10196 = vadd.f32 %v10034, %v10148
  %v10197 = vadd.f32 %v10035, %v10133
  %v10198 = vadd.f32 %v10036, %v10134
  %v10199 = vadd.f32 %v10037, %v10135
  %v10200 = vadd.f32 %v10038, %v10136
  %v10201 = vadd.f32 %v10039, %v10137
  %v10202 = vadd.f32 %v10040, %v10138
  %v10203 = vadd.f32 %v10041, %v10139
  %v10204 = vadd.f32 %v10042, %v10140
  %v10205 = vadd.f32 %v10043, %v10141
  %v10206 = vadd.f32 %v10044, %v10142
  %v10207 = vadd.f32 %v10045, %v10143
  %v10208 = vadd.f32 %v10046, %v10144
  %v10209 = vadd.f32 %v10047, %v10145
  %v10210 = vadd.f32 %v10048, %v10146
  %v10211 = vadd.f32 %v10049, %v10147
  %v10212 = vadd.f32 %v10050, %v10148
  %v10213 = vadd.f32 %v10051, %v10133
  %v10214 = vadd.f32 %v10052, %v10134
  %v10215 = vadd.f32 %v10053, %v10135
  %v10216 = vadd.f32 %v10054, %v10136
  %v10217 = vadd.f32 %v10055, %v10137
  %v10218 = vadd.f32 %v10056, %v10138
  %v10219 = vadd.f32 %v10057, %v10139
  %v10220 = vadd.f32 %v10058, %v10140
  %v10221 = vadd.f32 %v10059, %v10141
  %v10222 = vadd.f32 %v10060, %v10142
  %v10223 = vadd.f32 %v10061, %v10143
  %v10224 = vadd.f32 %v10062, %v10144
  %v10225 = vadd.f32 %v10063, %v10145
  %v10226 = vadd.f32 %v10064, %v10146
  %v10227 = vadd.f32 %v10065, %v10147
  %v10228 = vadd.f32 %v10066, %v10148
  %v10229 = vadd.f32 %v10067, %v10133
  %v10230 = vadd.f32 %v10068, %v10134
  %v10231 = vadd.f32 %v10069, %v10135
  %v10232 = vadd.f32 %v10070, %v10136
  %v10233 = vadd.f32 %v10071, %v10137
  %v10234 = vadd.f32 %v10072, %v10138
  %v10235 = vadd.f32 %v10073, %v10139
  %v10236 = vadd.f32 %v10074, %v10140
  %v10237 = vadd.f32 %v10075, %v10141
  %v10238 = vadd.f32 %v10076, %v10142
  %v10239 = vadd.f32 %v10077, %v10143
  %v10240 = vadd.f32 %v10078, %v10144
  %v10241 = vadd.f32 %v10079, %v10145
  %v10242 = vadd.f32 %v10080, %v10146
  %v10243 = vadd.f32 %v10081, %v10147
  %v10244 = vadd.f32 %v10082, %v10148
  %v10245 = vadd.f32 %v10083, %v10133
  %v10246 = vadd.f32 %v10084, %v10134
  %v10247 = vadd.f32 %v10085, %v10135
  %v10248 = vadd.f32 %v10086, %v10136
  %v10249 = vadd.f32 %v10087, %v10137
  %v10250 = vadd.f32 %v10088, %v10138
  %v10251 = vadd.f32 %v10089, %v10139
  %v10252 = vadd.f32 %v10090, %v10140
  %v10253 = vadd.f32 %v10091, %v10141
  %v10254 = vadd.f32 %v10092, %v10142
  %v10255 = vadd.f32 %v10093, %v10143
  %v10256 = vadd.f32 %v10094, %v10144
  %v10257 = vadd.f32 %v10095, %v10145
  %v10258 = vadd.f32 %v10096, %v10146
  %v10259 = vadd.f32 %v10097, %v10147
  %v10260 = vadd.f32 %v10098, %v10148
  %v10261 = vadd.f32 %v10099, %v10133
  %v10262 = vadd.f32 %v10100, %v10134
  %v10263 = vadd.f32 %v10101, %v10135
  %v10264 = vadd.f32 %v10102, %v10136
  %v10265 = vadd.f32 %v10103, %v10137
  %v10266 = vadd.f32 %v10104, %v10138
  %v10267 = vadd.f32 %v10105, %v10139
  %v10268 = vadd.f32 %v10106, %v10140
  %v10269 = vadd.f32 %v10107, %v10141
  %v10270 = vadd.f32 %v10108, %v10142
  %v10271 = vadd.f32 %v10109, %v10143
  %v10272 = vadd.f32 %v10110, %v10144
  %v10273 = vadd.f32 %v10111, %v10145
  %v10274 = vadd.f32 %v10112, %v10146
  %v10275 = vadd.f32 %v10113, %v10147
  %v10276 = vadd.f32 %v10114, %v10148
  %v10277 = vadd.f32 %v10115, %v10133
  %v10278 = vadd.f32 %v10116, %v10134
  %v10279 = vadd.f32 %v10117, %v10135
  %v10280 = vadd.f32 %v10118, %v10136
  %v10281 = vadd.f32 %v10119, %v10137
  %v10282 = vadd.f32 %v10120, %v10138
  %v10283 = vadd.f32 %v10121, %v10139
  %v10284 = vadd.f32 %v10122, %v10140
  %v10285 = vadd.f32 %v10123, %v10141
  %v10286 = vadd.f32 %v10124, %v10142
  %v10287 = vadd.f32 %v10125, %v10143
  %v10288 = vadd.f32 %v10126, %v10144
  %v10289 = vadd.f32 %v10127, %v10145
  %v10290 = vadd.f32 %v10128, %v10146
  %v10291 = vadd.f32 %v10129, %v10147
  %v10292 = vadd.f32 %v10130, %v10148
  %10293 = vst [vmem:[%s7] sm:$0xff] %v10165
  %10294 = vst [vmem:[%s7 + $0x8] sm:$0xff] %v10166
  %10295 = vst [vmem:[%s7 + $0x10] sm:$0xff] %v10167
  %10296 = vst [vmem:[%s7 + $0x18] sm:$0xff] %v10168
  %10297 = vst [vmem:[%s7 + $0x20] sm:$0xff] %v10169
  %10298 = vst [vmem:[%s7 + $0x28] sm:$0xff] %v10170
  %10299 = vst [vmem:[%s7 + $0x30] sm:$0xff] %v10171
  %10300 = vst [vmem:[%s7 + $0x38] sm:$0xff] %v10172
  %10301 = vst [vmem:[%s7 + $0x40] sm:$0xff] %v10173
  %10302 = vst [vmem:[%s7 + $0x48] sm:$0xff] %v10174
  %10303 = vst [vmem:[%s7 + $0x50] sm:$0xff] %v10175
  %10304 = vst [vmem:[%s7 + $0x58] sm:$0xff] %v10176
  %10305 = vst [vmem:[%s7 + $0x60] sm:$0xff] %v10177
  %10306 = vst [vmem:[%s7 + $0x68] sm:$0xff] %v10178
  %10307 = vst [vmem:[%s7 + $0x70] sm:$0xff] %v10179
  %10308 = vst [vmem:[%s7 + $0x78] sm:$0xff] %v10180
  %10309 = vst [vmem:[%s7 + $0x80] sm:$0xff] %v10181
  %10310 = vst [vmem:[%s7 + $0x88] sm:$0xff] %v10182
  %10311 = vst [vmem:[%s7 + $0x90] sm:$0xff] %v10183
  %10312 = vst [vmem:[%s7 + $0x98] sm:$0xff] %v10184
  %10313 = vst [vmem:[%s7 + $0xa0] sm:$0xff] %v10185
  %10314 = vst [vmem:[%s7 + $0xa8] sm:$0xff] %v10186
  %10315 = vst [vmem:[%s7 + $0xb0] sm:$0xff] %v10187
  %10316 = vst [vmem:[%s7 + $0xb8] sm:$0xff] %v10188
  %10317 = vst [vmem:[%s7 + $0xc0] sm:$0xff] %v10189
  %10318 = vst [vmem:[%s7 + $0xc8] sm:$0xff] %v10190
  %10319 = vst [vmem:[%s7 + $0xd0] sm:$0xff] %v10191
  %10320 = vst [vmem:[%s7 + $0xd8] sm:$0xff] %v10192
  %10321 = vst [vmem:[%s7 + $0xe0] sm:$0xff] %v10193
  %10322 = vst [vmem:[%s7 + $0xe8] sm:$0xff] %v10194
  %10323 = vst [vmem:[%s7 + $0xf0] sm:$0xff] %v10195
  %10324 = vst [vmem:[%s7 + $0xf8] sm:$0xff] %v10196
  %10325 = vst [vmem:[%s7 + $0x100] sm:$0xff] %v10197
  %10326 = vst [vmem:[%s7 + $0x108] sm:$0xff] %v10198
  %10327 = vst [vmem:[%s7 + $0x110] sm:$0xff] %v10199
  %10328 = vst [vmem:[%s7 + $0x118] sm:$0xff] %v10200
  %10329 = vst [vmem:[%s7 + $0x120] sm:$0xff] %v10201
  %10330 = vst [vmem:[%s7 + $0x128] sm:$0xff] %v10202
  %10331 = vst [vmem:[%s7 + $0x130] sm:$0xff] %v10203
  %10332 = vst [vmem:[%s7 + $0x138] sm:$0xff] %v10204
  %10333 = vst [vmem:[%s7 + $0x140] sm:$0xff] %v10205
  %10334 = vst [vmem:[%s7 + $0x148] sm:$0xff] %v10206
  %10335 = vst [vmem:[%s7 + $0x150] sm:$0xff] %v10207
  %10336 = vst [vmem:[%s7 + $0x158] sm:$0xff] %v10208
  %10337 = vst [vmem:[%s7 + $0x160] sm:$0xff] %v10209
  %10338 = vst [vmem:[%s7 + $0x168] sm:$0xff] %v10210
  %10339 = vst [vmem:[%s7 + $0x170] sm:$0xff] %v10211
  %10340 = vst [vmem:[%s7 + $0x178] sm:$0xff] %v10212
  %10341 = vst [vmem:[%s7 + $0x180] sm:$0xff] %v10213
  %10342 = vst [vmem:[%s7 + $0x188] sm:$0xff] %v10214
  %10343 = vst [vmem:[%s7 + $0x190] sm:$0xff] %v10215
  %10344 = vst [vmem:[%s7 + $0x198] sm:$0xff] %v10216
  %10345 = vst [vmem:[%s7 + $0x1a0] sm:$0xff] %v10217
  %10346 = vst [vmem:[%s7 + $0x1a8] sm:$0xff] %v10218
  %10347 = vst [vmem:[%s7 + $0x1b0] sm:$0xff] %v10219
  %10348 = vst [vmem:[%s7 + $0x1b8] sm:$0xff] %v10220
  %10349 = vst [vmem:[%s7 + $0x1c0] sm:$0xff] %v10221
  %10350 = vst [vmem:[%s7 + $0x1c8] sm:$0xff] %v10222
  %10351 = vst [vmem:[%s7 + $0x1d0] sm:$0xff] %v10223
  %10352 = vst [vmem:[%s7 + $0x1d8] sm:$0xff] %v10224
  %10353 = vst [vmem:[%s7 + $0x1e0] sm:$0xff] %v10225
  %10354 = vst [vmem:[%s7 + $0x1e8] sm:$0xff] %v10226
  %10355 = vst [vmem:[%s7 + $0x1f0] sm:$0xff] %v10227
  %10356 = vst [vmem:[%s7 + $0x1f8] sm:$0xff] %v10228
  %10357 = vst [vmem:[%s7 + $0x200] sm:$0xff] %v10229
  %10358 = vst [vmem:[%s7 + $0x208] sm:$0xff] %v10230
  %10359 = vst [vmem:[%s7 + $0x210] sm:$0xff] %v10231
  %10360 = vst [vmem:[%s7 + $0x218] sm:$0xff] %v10232
  %10361 = vst [vmem:[%s7 + $0x220] sm:$0xff] %v10233
  %10362 = vst [vmem:[%s7 + $0x228] sm:$0xff] %v10234
  %10363 = vst [vmem:[%s7 + $0x230] sm:$0xff] %v10235
  %10364 = vst [vmem:[%s7 + $0x238] sm:$0xff] %v10236
  %10365 = vst [vmem:[%s7 + $0x240] sm:$0xff] %v10237
  %10366 = vst [vmem:[%s7 + $0x248] sm:$0xff] %v10238
  %10367 = vst [vmem:[%s7 + $0x250] sm:$0xff] %v10239
  %10368 = vst [vmem:[%s7 + $0x258] sm:$0xff] %v10240
  %10369 = vst [vmem:[%s7 + $0x260] sm:$0xff] %v10241
  %10370 = vst [vmem:[%s7 + $0x268] sm:$0xff] %v10242
  %10371 = vst [vmem:[%s7 + $0x270] sm:$0xff] %v10243
  %10372 = vst [vmem:[%s7 + $0x278] sm:$0xff] %v10244
  %10373 = vst [vmem:[%s7 + $0x280] sm:$0xff] %v10245
  %10374 = vst [vmem:[%s7 + $0x288] sm:$0xff] %v10246
  %10375 = vst [vmem:[%s7 + $0x290] sm:$0xff] %v10247
  %10376 = vst [vmem:[%s7 + $0x298] sm:$0xff] %v10248
  %10377 = vst [vmem:[%s7 + $0x2a0] sm:$0xff] %v10249
  %10378 = vst [vmem:[%s7 + $0x2a8] sm:$0xff] %v10250
  %10379 = vst [vmem:[%s7 + $0x2b0] sm:$0xff] %v10251
  %10380 = vst [vmem:[%s7 + $0x2b8] sm:$0xff] %v10252
  %10381 = vst [vmem:[%s7 + $0x2c0] sm:$0xff] %v10253
  %10382 = vst [vmem:[%s7 + $0x2c8] sm:$0xff] %v10254
  %10383 = vst [vmem:[%s7 + $0x2d0] sm:$0xff] %v10255
  %10384 = vst [vmem:[%s7 + $0x2d8] sm:$0xff] %v10256
  %10385 = vst [vmem:[%s7 + $0x2e0] sm:$0xff] %v10257
  %10386 = vst [vmem:[%s7 + $0x2e8] sm:$0xff] %v10258
  %10387 = vst [vmem:[%s7 + $0x2f0] sm:$0xff] %v10259
  %10388 = vst [vmem:[%s7 + $0x2f8] sm:$0xff] %v10260
  %10389 = vst [vmem:[%s7 + $0x300] sm:$0xff] %v10261
  %10390 = vst [vmem:[%s7 + $0x308] sm:$0xff] %v10262
  %10391 = vst [vmem:[%s7 + $0x310] sm:$0xff] %v10263
  %10392 = vst [vmem:[%s7 + $0x318] sm:$0xff] %v10264
  %10393 = vst [vmem:[%s7 + $0x320] sm:$0xff] %v10265
  %10394 = vst [vmem:[%s7 + $0x328] sm:$0xff] %v10266
  %10395 = vst [vmem:[%s7 + $0x330] sm:$0xff] %v10267
  %10396 = vst [vmem:[%s7 + $0x338] sm:$0xff] %v10268
  %10397 = vst [vmem:[%s7 + $0x340] sm:$0xff] %v10269
  %10398 = vst [vmem:[%s7 + $0x348] sm:$0xff] %v10270
  %10399 = vst [vmem:[%s7 + $0x350] sm:$0xff] %v10271
  %10400 = vst [vmem:[%s7 + $0x358] sm:$0xff] %v10272
  %10401 = vst [vmem:[%s7 + $0x360] sm:$0xff] %v10273
  %10402 = vst [vmem:[%s7 + $0x368] sm:$0xff] %v10274
  %10403 = vst [vmem:[%s7 + $0x370] sm:$0xff] %v10275
  %10404 = vst [vmem:[%s7 + $0x378] sm:$0xff] %v10276
  %10405 = vst [vmem:[%s7 + $0x380] sm:$0xff] %v10277
  %10406 = vst [vmem:[%s7 + $0x388] sm:$0xff] %v10278
  %10407 = vst [vmem:[%s7 + $0x390] sm:$0xff] %v10279
  %10408 = vst [vmem:[%s7 + $0x398] sm:$0xff] %v10280
  %10409 = vst [vmem:[%s7 + $0x3a0] sm:$0xff] %v10281
  %10410 = vst [vmem:[%s7 + $0x3a8] sm:$0xff] %v10282
  %10411 = vst [vmem:[%s7 + $0x3b0] sm:$0xff] %v10283
  %10412 = vst [vmem:[%s7 + $0x3b8] sm:$0xff] %v10284
  %10413 = vst [vmem:[%s7 + $0x3c0] sm:$0xff] %v10285
  %10414 = vst [vmem:[%s7 + $0x3c8] sm:$0xff] %v10286
  %10415 = vst [vmem:[%s7 + $0x3d0] sm:$0xff] %v10287
  %10416 = vst [vmem:[%s7 + $0x3d8] sm:$0xff] %v10288
  %10417 = vst [vmem:[%s7 + $0x3e0] sm:$0xff] %v10289
  %10418 = vst [vmem:[%s7 + $0x3e8] sm:$0xff] %v10290
  %10419 = vst [vmem:[%s7 + $0x3f0] sm:$0xff] %v10291
  %10420 = vst [vmem:[%s7 + $0x3f8] sm:$0xff] %v10292
  // Predicated region
  $region30: #{forward.1} parent=0 // pred_check
    _
  $region31: #{forward.1} parent=0 // pred_check_branch
    %10422 = sbr.rel (0) target = $region33
  $region32: #{forward.1} parent=0 // pred_region
    _
  $region33: #{forward.1} parent=0 // pred_fallthru
    _
  // Predicated region
  $region34: #{forward.1} parent=0 // pred_check
    _
  $region35: #{forward.1} parent=0 // pred_check_branch
    %10424 = sbr.rel (0) target = $region37
  $region36: #{forward.1} parent=0 // pred_region
    _
  $region37: #{forward.1} parent=0 // pred_fallthru
    _

</llo_original>
